<compile_context>
chip_gen: v7x
topology: tpu7x:2x2x1
jax: 0.10.0
libtpu: 0.0.40
codegen_flags: <defaults>
</compile_context>

<pallas_src>
import functools

import jax
import jax.numpy as jnp
from jax.experimental import pallas as pl
from jax.experimental.pallas import tpu as pltpu

RNN_HIDDEN = 32      # args.rnn_hidden_size
NUM_ACTIONS = 4      # envs.action_space.n for Breakout
_VMEM_LIMIT = 48 * 1024 * 1024


# --------------------------------------------------------------------------- #
# Kernel 1: fused conv trunk (conv1 -> conv2 -> conv3, biases + ReLUs),
# gridded over batch tiles; emits the valid (TB, 49, 64) feature window directly.
#
# Row layouts (per batch tile, all VMEM resident):
#   act1 rows = (oh1%2, ow1%2, b, oh1//2, ow1//2)   conv1 output on the 20x20 grid
#   act2 rows = (b, oh2*10 + ow2)                   conv2 output (9x9 valid on a 10-grid)
#   a3   rows = (b, oh3*10 + ow3)                   conv3 output (7x7 valid on a 10-grid)
# With these layouts every conv tap reads a *contiguous* row slice of the previous
# activation, so each conv is one K-stacked matmul on the MXU.  Rows outside the valid
# window only ever hold finite garbage and are never gathered into the output.
# --------------------------------------------------------------------------- #
def _trunk_kernel(p1_ref, w1_ref, b1_ref, w2_ref, b2_ref, w3_ref, b3_ref,
                  out_ref, act1_ref, act2_ref, *, tb):
    bpt = tb * 100                       # conv2/conv3 rows per batch tile
    n1 = 4 * bpt                         # conv1 rows per batch tile (4 phases)
    bf16 = jnp.bfloat16

    # ---- conv1 (8x8 / s4): one matmul per phase over the im2col patches (1/255 folded in w1)
    w1 = w1_ref[...]
    b1 = b1_ref[...]
    for ph in range(4):
        a1 = jnp.dot(p1_ref[ph], w1, preferred_element_type=jnp.float32)
        act1_ref[ph * bpt:(ph + 1) * bpt, :] = jnp.maximum(a1 + b1, 0.0)
    act1_ref[n1:, :] = jnp.zeros((act1_ref.shape[0] - n1, 32), jnp.float32)

    # ---- conv2 (4x4 / s2): K-stack the 16 taps into one K=512 matmul
    slab2 = jnp.concatenate(
        [act1_ref[((i % 2) * 2 + (j % 2)) * bpt + (i // 2) * 10 + (j // 2):
                  ((i % 2) * 2 + (j % 2)) * bpt + (i // 2) * 10 + (j // 2) + bpt, :]
         for i in range(4) for j in range(4)], axis=1)                  # (bpt, 512)
    a2 = jnp.dot(slab2.astype(bf16), w2_ref[...], preferred_element_type=jnp.float32)
    act2_ref[0:bpt, :] = jnp.maximum(a2 + b2_ref[...], 0.0)
    act2_ref[bpt:, :] = jnp.zeros((act2_ref.shape[0] - bpt, 64), jnp.float32)

    # ---- conv3 (3x3 / s1): K-stack the 9 taps into one K=576 matmul
    slab3 = jnp.concatenate(
        [act2_ref[i * 10 + j: i * 10 + j + bpt, :]
         for i in range(3) for j in range(3)], axis=1)                  # (bpt, 576)
    a3 = jnp.dot(slab3.astype(bf16), w3_ref[...], preferred_element_type=jnp.float32)
    a3 = jnp.maximum(a3 + b3_ref[...], 0.0)                             # (bpt, 64)

    # ---- gather the valid 7x7 window per image -> (tb, 49, 64) feature output
    for b in range(tb):
        for oh in range(7):
            src = b * 100 + oh * 10
            out_ref[b, oh * 7:(oh + 1) * 7, :] = a3[src:src + 7, :]


def _pick_tile(batch):
    for tb in (8, 4, 2):
        if batch % tb == 0:
            return tb
    return batch                       # odd batch: single full-batch tile


def _conv_trunk(patches, params, *, batch, cin):
    tb = _pick_tile(batch)
    k1 = cin * 64
    kernel = functools.partial(_trunk_kernel, tb=tb)
    return pl.pallas_call(
        kernel,
        out_shape=jax.ShapeDtypeStruct((batch, 49, 64), jnp.float32),
        grid=(batch // tb,),
        in_specs=[
            pl.BlockSpec((4, tb * 100, k1), lambda i: (0, i, 0)),   # patches (bf16)
            pl.BlockSpec((k1, 32), lambda i: (0, 0)),               # w1
            pl.BlockSpec((1, 32), lambda i: (0, 0)),                # b1
            pl.BlockSpec((512, 64), lambda i: (0, 0)),              # w2 (K-stacked)
            pl.BlockSpec((1, 64), lambda i: (0, 0)),                # b2
            pl.BlockSpec((576, 64), lambda i: (0, 0)),              # w3 (K-stacked)
            pl.BlockSpec((1, 64), lambda i: (0, 0)),                # b3
        ],
        out_specs=pl.BlockSpec((tb, 49, 64), lambda i: (i, 0, 0)),
        scratch_shapes=[
            pltpu.VMEM((4 * tb * 100 + 16, 32), jnp.float32),       # conv1 act (+pad tail)
            pltpu.VMEM((tb * 100 + 24, 64), jnp.float32),           # conv2 act (+pad tail)
        ],
        compiler_params=pltpu.CompilerParams(
            dimension_semantics=("parallel",),
            vmem_limit_bytes=_VMEM_LIMIT),
    )(patches, params["w1"], params["b1"], params["w2s"], params["b2"],
      params["w3s"], params["b3"])


# --------------------------------------------------------------------------- #
# Kernel 2: fused FC(3136->H) + ReLU + LSTM sequence loop + actor head.
# Feature rows arrive TIME-MAJOR (row = t*bs + b) so every per-step slice is contiguous.
# --------------------------------------------------------------------------- #
def _head_kernel(feat_ref, wfc_ref, bfc_ref, wih_ref, bg_ref, whh_ref, wa_ref, ba_ref,
                 h0_ref, c0_ref, logits_ref, h_out_ref, c_out_ref,
                 zx_ref, hall_ref, *, seq_len):
    bs, hid = h0_ref.shape
    bf16 = jnp.bfloat16

    # FC + ReLU for all bs*T rows in one MXU pass.
    z = jnp.dot(feat_ref[...], wfc_ref[...], preferred_element_type=jnp.float32)
    z = jnp.maximum(z + bfc_ref[...], 0.0)
    # LSTM input projection hoisted out of the recurrent loop (b_ih + b_hh folded into bg).
    zx_ref[...] = jnp.dot(z.astype(bf16), wih_ref[...],
                          preferred_element_type=jnp.float32) + bg_ref[...]

    h = h0_ref[...]
    c = c0_ref[...]
    whh = whh_ref[...]
    # TODO(synk): for long sequences (T >~ 16) switch to lax.fori_loop to bound live ranges.
    for t in range(seq_len):                       # static unroll; state stays on-chip
        gates = zx_ref[pl.ds(t * bs, bs), :] + jnp.dot(
            h.astype(bf16), whh, preferred_element_type=jnp.float32)
        i_g = jax.nn.sigmoid(gates[:, 0 * hid:1 * hid])        # PyTorch gate order i,f,g,o
        f_g = jax.nn.sigmoid(gates[:, 1 * hid:2 * hid])
        g_g = jnp.tanh(gates[:, 2 * hid:3 * hid])
        o_g = jax.nn.sigmoid(gates[:, 3 * hid:4 * hid])
        c = f_g * c + i_g * g_g
        h = o_g * jnp.tanh(c)
        hall_ref[pl.ds(t * bs, bs), :] = h

    # Actor head hoisted out of the loop: one (bs*T, H) x (H, A) matmul.
    logits_ref[...] = jnp.dot(hall_ref[...].astype(bf16), wa_ref[...],
                              preferred_element_type=jnp.float32) + ba_ref[...]
    h_out_ref[...] = h
    c_out_ref[...] = c


def _head(feat, params, h0, c0, *, seq_len):
    b, f = feat.shape
    bs, hid = h0.shape
    na = params["wa"].shape[1]
    kernel = functools.partial(_head_kernel, seq_len=seq_len)
    return pl.pallas_call(
        kernel,
        out_shape=(
            jax.ShapeDtypeStruct((b, na), jnp.float32),
            jax.ShapeDtypeStruct((bs, hid), jnp.float32),
            jax.ShapeDtypeStruct((bs, hid), jnp.float32),
        ),
        grid=(1,),
        in_specs=[
            pl.BlockSpec((b, f), lambda i: (0, 0)),              # features (bf16, time-major)
            pl.BlockSpec((f, hid), lambda i: (0, 0)),            # wfc
            pl.BlockSpec((1, hid), lambda i: (0, 0)),            # bfc
            pl.BlockSpec((hid, 4 * hid), lambda i: (0, 0)),      # W_ih^T
            pl.BlockSpec((1, 4 * hid), lambda i: (0, 0)),        # b_ih + b_hh
            pl.BlockSpec((hid, 4 * hid), lambda i: (0, 0)),      # W_hh^T
            pl.BlockSpec((hid, na), lambda i: (0, 0)),           # actor W^T
            pl.BlockSpec((1, na), lambda i: (0, 0)),             # actor b
            pl.BlockSpec((bs, hid), lambda i: (0, 0)),           # h0
            pl.BlockSpec((bs, hid), lambda i: (0, 0)),           # c0
        ],
        out_specs=(
            pl.BlockSpec((b, na), lambda i: (0, 0)),
            pl.BlockSpec((bs, hid), lambda i: (0, 0)),
            pl.BlockSpec((bs, hid), lambda i: (0, 0)),
        ),
        scratch_shapes=[
            pltpu.VMEM((b, 4 * hid), jnp.float32),               # precomputed input proj zx
            pltpu.VMEM((b, hid), jnp.float32),                   # all h_t (time-major)
        ],
        compiler_params=pltpu.CompilerParams(
            dimension_semantics=("arbitrary",),
            vmem_limit_bytes=_VMEM_LIMIT),
    )(feat, params["wfc"], params["bfc"], params["wih"], params["bg"],
      params["whh"], params["wa"], params["ba"], h0, c0)


# --------------------------------------------------------------------------- #
# Host-side glue
# --------------------------------------------------------------------------- #
def _conv1_patches(x):
    """(B, C, 84, 84) NCHW -> (4, B*100, C*64) bf16 im2col patches of the 8x8/s4 conv.
    Rows are phase-major (oh1%2, ow1%2, b, oh1//2, ow1//2) so the stride-2 conv2 inside
    the trunk kernel only ever needs contiguous row slices."""
    # TODO(synk): the stride-4 patch gather of the raw frames stays in XLA; a clean
    # in-kernel equivalent needs lane-strided gathers that Pallas does not expose.
    b, c = x.shape[0], x.shape[1]
    x = x.astype(jnp.bfloat16)                                   # exact for 0..255 pixels
    cols = []
    for ki in range(8):
        for kj in range(8):
            cols.append(x[:, :, ki:ki + 77:4, kj:kj + 77:4])     # (B, C, 20, 20)
    p = jnp.stack(cols, axis=0).reshape(8, 8, b, c, 20, 20)
    p = p.reshape(8, 8, b, c, 10, 2, 10, 2)                       # oh1 = 2*ohc + pi
    p = p.transpose(5, 7, 2, 4, 6, 3, 0, 1)                       # (pi,pj,b,ohc,owc,c,ki,kj)
    return p.reshape(4, b * 100, c * 64)


def init_params(key, frames=1, hidden=RNN_HIDDEN, num_actions=NUM_ACTIONS):
    """Orthogonal init matching the PyTorch module, rearranged once into the layouts the
    fused kernels consume (bf16 weights, f32 biases)."""
    ks = jax.random.split(key, 7)
    ortho = jax.nn.initializers.orthogonal
    g = 2.0 ** 0.5

    w1 = ortho(g)(ks[0], (32, frames * 64), jnp.float32)        # Conv2d(C,32,8,s4)
    w2 = ortho(g)(ks[1], (64, 32 * 16), jnp.float32)            # Conv2d(32,64,4,s2)
    w3 = ortho(g)(ks[2], (64, 64 * 9), jnp.float32)             # Conv2d(64,64,3,s1)
    wfc = ortho(g)(ks[3], (hidden, 3136), jnp.float32)          # Linear(3136,H)
    w_ih = ortho(g)(ks[4], (4 * hidden, hidden), jnp.float32)   # LSTM weight_ih
    w_hh = ortho(g)(ks[5], (4 * hidden, hidden), jnp.float32)   # LSTM weight_hh
    wa = ortho(0.01)(ks[6], (num_actions, hidden), jnp.float32)

    # (x * 1/255) @ W == x @ (W * 1/255): fold the Scale module into w1.
    w1_mat = (w1 / 255.0).T                                                     # (C*64, 32)
    # K-stacked conv weights: rows ordered (tap, c_in) to match the in-kernel slab columns.
    w2s = w2.reshape(64, 32, 4, 4).transpose(2, 3, 1, 0).reshape(16 * 32, 64)   # (512, 64)
    w3s = w3.reshape(64, 64, 3, 3).transpose(2, 3, 1, 0).reshape(9 * 64, 64)    # (576, 64)
    # FC weight permuted from PyTorch's NCHW (c*49+p) flatten to the kernels' (p*64+c).
    wfc_r = wfc.T.reshape(64, 49, hidden).transpose(1, 0, 2).reshape(3136, hidden)

    bf = lambda a: a.astype(jnp.bfloat16)
    zeros = lambda n: jnp.zeros((1, n), jnp.float32)
    return {
        "w1": bf(w1_mat), "b1": zeros(32),
        "w2s": bf(w2s), "b2": zeros(64),
        "w3s": bf(w3s), "b3": zeros(64),
        "wfc": bf(wfc_r), "bfc": zeros(hidden),
        "wih": bf(w_ih.T), "whh": bf(w_hh.T), "bg": zeros(4 * hidden),   # b_ih + b_hh (zero)
        "wa": bf(wa.T), "ba": zeros(num_actions),
    }


@functools.partial(jax.jit, static_argnames=("sequence_length",))
def actor_forward(params, x, rnn_state, sequence_length=1):
    """Matches Actor.forward(x, rnn_state, sequence_length) -> (logits, rnn_state)."""
    batch, cin = x.shape[0], x.shape[1]
    t = sequence_length
    h0, c0 = rnn_state                                           # (1, Bs, H) each
    bs = batch // t
    assert bs * t == batch and h0.shape[1] == bs

    patches = _conv1_patches(x)                                  # bf16, phase-major
    conv_valid = _conv_trunk(patches, params, batch=batch, cin=cin)   # (B, 49, 64) f32
    feat = conv_valid.reshape(batch, 3136).astype(jnp.bfloat16)
    if t > 1:
        # time-major rows (t*bs + b) so the in-kernel LSTM slices are contiguous.
        feat = feat.reshape(bs, t, 3136).transpose(1, 0, 2).reshape(batch, 3136)

    logits, h_n, c_n = _head(feat, params, h0[0], c0[0], seq_len=t)
    if t > 1:
        na = logits.shape[1]
        # back to the module's batch-major (b*T + t) row order.
        logits = logits.reshape(t, bs, na).transpose(1, 0, 2).reshape(batch, na)
    return logits, (h_n[None], c_n[None])


# --------------------------------------------------------------------------- #
if __name__ == "__main__":
    key = jax.random.PRNGKey(0)
    k_param, k_x1, k_x2 = jax.random.split(key, 3)

    frames, hidden, num_actions = 1, RNN_HIDDEN, NUM_ACTIONS
    params = init_params(k_param, frames=frames, hidden=hidden,
                         num_actions=num_actions)

    # --- rollout-style call: batch of envs, sequence_length = 1 ---
    b1 = 2
    x1 = jax.random.uniform(k_x1, (b1, frames, 84, 84), jnp.float32, 0.0, 255.0)
    h0 = jnp.zeros((1, b1, hidden), jnp.float32)
    c0 = jnp.zeros((1, b1, hidden), jnp.float32)
    logits1, (h1, c1) = actor_forward(params, x1, (h0, c0), sequence_length=1)
    jax.block_until_ready((logits1, h1, c1))
    assert logits1.shape == (b1, num_actions)
    assert h1.shape == (1, b1, hidden) and c1.shape == (1, b1, hidden)
    assert bool(jnp.all(jnp.isfinite(logits1)))

    # --- training-style call: B = Bs*T rows, multi-step trunk grid + in-kernel LSTM loop ---
    bs, seq = 2, 8
    b2 = bs * seq
    x2 = jax.random.uniform(k_x2, (b2, frames, 84, 84), jnp.float32, 0.0, 255.0)
    h0s = jnp.zeros((1, bs, hidden), jnp.float32)
    c0s = jnp.zeros((1, bs, hidden), jnp.float32)
    logits2, (h2, c2) = actor_forward(params, x2, (h0s, c0s), sequence_length=seq)
    jax.block_until_ready((logits2, h2, c2))
    assert logits2.shape == (b2, num_actions)
    assert h2.shape == (1, bs, hidden) and c2.shape == (1, bs, hidden)
    assert bool(jnp.all(jnp.isfinite(logits2)))

    print("KERNEL_OK")
</pallas_src>

<mosaic_0001>
module attributes {stable_mosaic.version = 11 : i64} {
  func.func @_trunk_kernel(%arg0: i32, %arg1: memref<4x200x64xbf16, #tpu.memory_space<vmem>>, %arg2: memref<64x32xbf16, #tpu.memory_space<vmem>>, %arg3: memref<1x32xf32, #tpu.memory_space<vmem>>, %arg4: memref<512x64xbf16, #tpu.memory_space<vmem>>, %arg5: memref<1x64xf32, #tpu.memory_space<vmem>>, %arg6: memref<576x64xbf16, #tpu.memory_space<vmem>>, %arg7: memref<1x64xf32, #tpu.memory_space<vmem>>, %arg8: memref<2x49x64xf32, #tpu.memory_space<vmem>>, %arg9: memref<816x32xf32, #tpu.memory_space<vmem>>, %arg10: memref<224x64xf32, #tpu.memory_space<vmem>>) attributes {dimension_semantics = [#tpu.dimension_semantics<parallel>], iteration_bounds = array<i64: 1>, scalar_prefetch = 0 : i64, scratch_operands = 2 : i64, tpu.core_type = #tpu.core_type<tc>, window_params = [{transform_indices = @transform_0, window_bounds = array<i64: 4, 200, 64>}, {pipeline_mode = #tpu.pipeline_mode<synchronous>, transform_indices = @transform_1, window_bounds = array<i64: 64, 32>}, {pipeline_mode = #tpu.pipeline_mode<synchronous>, transform_indices = @transform_2, window_bounds = array<i64: 1, 32>}, {pipeline_mode = #tpu.pipeline_mode<synchronous>, transform_indices = @transform_3, window_bounds = array<i64: 512, 64>}, {pipeline_mode = #tpu.pipeline_mode<synchronous>, transform_indices = @transform_4, window_bounds = array<i64: 1, 64>}, {pipeline_mode = #tpu.pipeline_mode<synchronous>, transform_indices = @transform_5, window_bounds = array<i64: 576, 64>}, {pipeline_mode = #tpu.pipeline_mode<synchronous>, transform_indices = @transform_6, window_bounds = array<i64: 1, 64>}, {transform_indices = @transform_7, window_bounds = array<i64: 2, 49, 64>}]} {
    %c0 = arith.constant 0 : index
    %c0_0 = arith.constant 0 : index
    %0 = vector.load %arg2[%c0, %c0_0] : memref<64x32xbf16, #tpu.memory_space<vmem>>, vector<64x32xbf16>
    %c0_1 = arith.constant 0 : index
    %c0_2 = arith.constant 0 : index
    %1 = vector.load %arg3[%c0_1, %c0_2] : memref<1x32xf32, #tpu.memory_space<vmem>>, vector<1x32xf32>
    %c0_3 = arith.constant 0 : index
    %c0_4 = arith.constant 0 : index
    %c0_5 = arith.constant 0 : index
    %2 = vector.load %arg1[%c0_3, %c0_4, %c0_5] : memref<4x200x64xbf16, #tpu.memory_space<vmem>>, vector<1x200x64xbf16>
    %3 = vector.shape_cast %2 : vector<1x200x64xbf16> to vector<200x64xbf16>
    %cst = arith.constant dense<0.000000e+00> : vector<200x32xf32>
    %4 = tpu.matmul %3, %0, %cst {dimension_numbers = #tpu.dot_dimension_numbers<[1], [0], [0], [1], [0, 0, 1, 1], [], []>} : vector<200x64xbf16>, vector<64x32xbf16>, vector<200x32xf32> -> vector<200x32xf32>
    %5 = vector.broadcast %1 : vector<1x32xf32> to vector<200x32xf32>
    %6 = arith.addf %4, %5 : vector<200x32xf32>
    %cst_6 = arith.constant 0.000000e+00 : f32
    %7 = vector.broadcast %cst_6 : f32 to vector<200x32xf32>
    %8 = arith.maximumf %6, %7 : vector<200x32xf32>
    %c0_7 = arith.constant 0 : index
    %c0_8 = arith.constant 0 : index
    %9 = vector.load %arg9[%c0_7, %c0_8] : memref<816x32xf32, #tpu.memory_space<vmem>>, vector<200x32xf32>
    tpu.vector_store %arg9[%c0_7, %c0_8], %8 {strides = array<i32>} : memref<816x32xf32, #tpu.memory_space<vmem>>, vector<200x32xf32>,
    %c1 = arith.constant 1 : index
    %c0_9 = arith.constant 0 : index
    %c0_10 = arith.constant 0 : index
    %10 = vector.load %arg1[%c1, %c0_9, %c0_10] : memref<4x200x64xbf16, #tpu.memory_space<vmem>>, vector<1x200x64xbf16>
    %11 = vector.shape_cast %10 : vector<1x200x64xbf16> to vector<200x64xbf16>
    %cst_11 = arith.constant dense<0.000000e+00> : vector<200x32xf32>
    %12 = tpu.matmul %11, %0, %cst_11 {dimension_numbers = #tpu.dot_dimension_numbers<[1], [0], [0], [1], [0, 0, 1, 1], [], []>} : vector<200x64xbf16>, vector<64x32xbf16>, vector<200x32xf32> -> vector<200x32xf32>
    %13 = vector.broadcast %1 : vector<1x32xf32> to vector<200x32xf32>
    %14 = arith.addf %12, %13 : vector<200x32xf32>
    %cst_12 = arith.constant 0.000000e+00 : f32
    %15 = vector.broadcast %cst_12 : f32 to vector<200x32xf32>
    %16 = arith.maximumf %14, %15 : vector<200x32xf32>
    %c200 = arith.constant 200 : index
    %c0_13 = arith.constant 0 : index
    %17 = vector.load %arg9[%c200, %c0_13] : memref<816x32xf32, #tpu.memory_space<vmem>>, vector<200x32xf32>
    tpu.vector_store %arg9[%c200, %c0_13], %16 {strides = array<i32>} : memref<816x32xf32, #tpu.memory_space<vmem>>, vector<200x32xf32>,
    %c2 = arith.constant 2 : index
    %c0_14 = arith.constant 0 : index
    %c0_15 = arith.constant 0 : index
    %18 = vector.load %arg1[%c2, %c0_14, %c0_15] : memref<4x200x64xbf16, #tpu.memory_space<vmem>>, vector<1x200x64xbf16>
    %19 = vector.shape_cast %18 : vector<1x200x64xbf16> to vector<200x64xbf16>
    %cst_16 = arith.constant dense<0.000000e+00> : vector<200x32xf32>
    %20 = tpu.matmul %19, %0, %cst_16 {dimension_numbers = #tpu.dot_dimension_numbers<[1], [0], [0], [1], [0, 0, 1, 1], [], []>} : vector<200x64xbf16>, vector<64x32xbf16>, vector<200x32xf32> -> vector<200x32xf32>
    %21 = vector.broadcast %1 : vector<1x32xf32> to vector<200x32xf32>
    %22 = arith.addf %20, %21 : vector<200x32xf32>
    %cst_17 = arith.constant 0.000000e+00 : f32
    %23 = vector.broadcast %cst_17 : f32 to vector<200x32xf32>
    %24 = arith.maximumf %22, %23 : vector<200x32xf32>
    %c400 = arith.constant 400 : index
    %c0_18 = arith.constant 0 : index
    %25 = vector.load %arg9[%c400, %c0_18] : memref<816x32xf32, #tpu.memory_space<vmem>>, vector<200x32xf32>
    tpu.vector_store %arg9[%c400, %c0_18], %24 {strides = array<i32>} : memref<816x32xf32, #tpu.memory_space<vmem>>, vector<200x32xf32>,
    %c3 = arith.constant 3 : index
    %c0_19 = arith.constant 0 : index
    %c0_20 = arith.constant 0 : index
    %26 = vector.load %arg1[%c3, %c0_19, %c0_20] : memref<4x200x64xbf16, #tpu.memory_space<vmem>>, vector<1x200x64xbf16>
    %27 = vector.shape_cast %26 : vector<1x200x64xbf16> to vector<200x64xbf16>
    %cst_21 = arith.constant dense<0.000000e+00> : vector<200x32xf32>
    %28 = tpu.matmul %27, %0, %cst_21 {dimension_numbers = #tpu.dot_dimension_numbers<[1], [0], [0], [1], [0, 0, 1, 1], [], []>} : vector<200x64xbf16>, vector<64x32xbf16>, vector<200x32xf32> -> vector<200x32xf32>
    %29 = vector.broadcast %1 : vector<1x32xf32> to vector<200x32xf32>
    %30 = arith.addf %28, %29 : vector<200x32xf32>
    %cst_22 = arith.constant 0.000000e+00 : f32
    %31 = vector.broadcast %cst_22 : f32 to vector<200x32xf32>
    %32 = arith.maximumf %30, %31 : vector<200x32xf32>
    %c600 = arith.constant 600 : index
    %c0_23 = arith.constant 0 : index
    %33 = vector.load %arg9[%c600, %c0_23] : memref<816x32xf32, #tpu.memory_space<vmem>>, vector<200x32xf32>
    tpu.vector_store %arg9[%c600, %c0_23], %32 {strides = array<i32>} : memref<816x32xf32, #tpu.memory_space<vmem>>, vector<200x32xf32>,
    %cst_24 = arith.constant 0.000000e+00 : f32
    %34 = vector.broadcast %cst_24 : f32 to vector<16x32xf32>
    %c800 = arith.constant 800 : index
    %c0_25 = arith.constant 0 : index
    %35 = vector.load %arg9[%c800, %c0_25] : memref<816x32xf32, #tpu.memory_space<vmem>>, vector<16x32xf32>
    tpu.vector_store %arg9[%c800, %c0_25], %34 {strides = array<i32>} : memref<816x32xf32, #tpu.memory_space<vmem>>, vector<16x32xf32>,
    %c0_26 = arith.constant 0 : index
    %c0_27 = arith.constant 0 : index
    %36 = vector.load %arg9[%c0_26, %c0_27] : memref<816x32xf32, #tpu.memory_space<vmem>>, vector<200x32xf32>
    %c200_28 = arith.constant 200 : index
    %c0_29 = arith.constant 0 : index
    %37 = vector.load %arg9[%c200_28, %c0_29] : memref<816x32xf32, #tpu.memory_space<vmem>>, vector<200x32xf32>
    %c1_30 = arith.constant 1 : index
    %c0_31 = arith.constant 0 : index
    %38 = vector.load %arg9[%c1_30, %c0_31] : memref<816x32xf32, #tpu.memory_space<vmem>>, vector<200x32xf32>
    %c201 = arith.constant 201 : index
    %c0_32 = arith.constant 0 : index
    %39 = vector.load %arg9[%c201, %c0_32] : memref<816x32xf32, #tpu.memory_space<vmem>>, vector<200x32xf32>
    %c400_33 = arith.constant 400 : index
    %c0_34 = arith.constant 0 : index
    %40 = vector.load %arg9[%c400_33, %c0_34] : memref<816x32xf32, #tpu.memory_space<vmem>>, vector<200x32xf32>
    %c600_35 = arith.constant 600 : index
    %c0_36 = arith.constant 0 : index
    %41 = vector.load %arg9[%c600_35, %c0_36] : memref<816x32xf32, #tpu.memory_space<vmem>>, vector<200x32xf32>
    %c401 = arith.constant 401 : index
    %c0_37 = arith.constant 0 : index
    %42 = vector.load %arg9[%c401, %c0_37] : memref<816x32xf32, #tpu.memory_space<vmem>>, vector<200x32xf32>
    %c601 = arith.constant 601 : index
    %c0_38 = arith.constant 0 : index
    %43 = vector.load %arg9[%c601, %c0_38] : memref<816x32xf32, #tpu.memory_space<vmem>>, vector<200x32xf32>
    %c10 = arith.constant 10 : index
    %c0_39 = arith.constant 0 : index
    %44 = vector.load %arg9[%c10, %c0_39] : memref<816x32xf32, #tpu.memory_space<vmem>>, vector<200x32xf32>
    %c210 = arith.constant 210 : index
    %c0_40 = arith.constant 0 : index
    %45 = vector.load %arg9[%c210, %c0_40] : memref<816x32xf32, #tpu.memory_space<vmem>>, vector<200x32xf32>
    %c11 = arith.constant 11 : index
    %c0_41 = arith.constant 0 : index
    %46 = vector.load %arg9[%c11, %c0_41] : memref<816x32xf32, #tpu.memory_space<vmem>>, vector<200x32xf32>
    %c211 = arith.constant 211 : index
    %c0_42 = arith.constant 0 : index
    %47 = vector.load %arg9[%c211, %c0_42] : memref<816x32xf32, #tpu.memory_space<vmem>>, vector<200x32xf32>
    %c410 = arith.constant 410 : index
    %c0_43 = arith.constant 0 : index
    %48 = vector.load %arg9[%c410, %c0_43] : memref<816x32xf32, #tpu.memory_space<vmem>>, vector<200x32xf32>
    %c610 = arith.constant 610 : index
    %c0_44 = arith.constant 0 : index
    %49 = vector.load %arg9[%c610, %c0_44] : memref<816x32xf32, #tpu.memory_space<vmem>>, vector<200x32xf32>
    %c411 = arith.constant 411 : index
    %c0_45 = arith.constant 0 : index
    %50 = vector.load %arg9[%c411, %c0_45] : memref<816x32xf32, #tpu.memory_space<vmem>>, vector<200x32xf32>
    %c611 = arith.constant 611 : index
    %c0_46 = arith.constant 0 : index
    %51 = vector.load %arg9[%c611, %c0_46] : memref<816x32xf32, #tpu.memory_space<vmem>>, vector<200x32xf32>
    %52 = tpu.concatenate %36, %37, %38, %39, %40, %41, %42, %43, %44, %45, %46, %47, %48, %49, %50, %51 in 1 : vector<200x32xf32>, vector<200x32xf32>, vector<200x32xf32>, vector<200x32xf32>, vector<200x32xf32>, vector<200x32xf32>, vector<200x32xf32>, vector<200x32xf32>, vector<200x32xf32>, vector<200x32xf32>, vector<200x32xf32>, vector<200x32xf32>, vector<200x32xf32>, vector<200x32xf32>, vector<200x32xf32>, vector<200x32xf32> -> vector<200x512xf32>
    %53 = arith.truncf %52 : vector<200x512xf32> to vector<200x512xbf16>
    %c0_47 = arith.constant 0 : index
    %c0_48 = arith.constant 0 : index
    %54 = vector.load %arg4[%c0_47, %c0_48] : memref<512x64xbf16, #tpu.memory_space<vmem>>, vector<512x64xbf16>
    %cst_49 = arith.constant dense<0.000000e+00> : vector<200x64xf32>
    %55 = tpu.matmul %53, %54, %cst_49 {dimension_numbers = #tpu.dot_dimension_numbers<[1], [0], [0], [1], [0, 0, 1, 1], [], []>} : vector<200x512xbf16>, vector<512x64xbf16>, vector<200x64xf32> -> vector<200x64xf32>
    %c0_50 = arith.constant 0 : index
    %c0_51 = arith.constant 0 : index
    %56 = vector.load %arg5[%c0_50, %c0_51] : memref<1x64xf32, #tpu.memory_space<vmem>>, vector<1x64xf32>
    %57 = vector.broadcast %56 : vector<1x64xf32> to vector<200x64xf32>
    %58 = arith.addf %55, %57 : vector<200x64xf32>
    %cst_52 = arith.constant 0.000000e+00 : f32
    %59 = vector.broadcast %cst_52 : f32 to vector<200x64xf32>
    %60 = arith.maximumf %58, %59 : vector<200x64xf32>
    %c0_53 = arith.constant 0 : index
    %c0_54 = arith.constant 0 : index
    %61 = vector.load %arg10[%c0_53, %c0_54] : memref<224x64xf32, #tpu.memory_space<vmem>>, vector<200x64xf32>
    tpu.vector_store %arg10[%c0_53, %c0_54], %60 {strides = array<i32>} : memref<224x64xf32, #tpu.memory_space<vmem>>, vector<200x64xf32>,
    %cst_55 = arith.constant 0.000000e+00 : f32
    %62 = vector.broadcast %cst_55 : f32 to vector<24x64xf32>
    %c200_56 = arith.constant 200 : index
    %c0_57 = arith.constant 0 : index
    %63 = vector.load %arg10[%c200_56, %c0_57] : memref<224x64xf32, #tpu.memory_space<vmem>>, vector<24x64xf32>
    tpu.vector_store %arg10[%c200_56, %c0_57], %62 {strides = array<i32>} : memref<224x64xf32, #tpu.memory_space<vmem>>, vector<24x64xf32>,
    %c0_58 = arith.constant 0 : index
    %c0_59 = arith.constant 0 : index
    %64 = vector.load %arg10[%c0_58, %c0_59] : memref<224x64xf32, #tpu.memory_space<vmem>>, vector<200x64xf32>
    %c1_60 = arith.constant 1 : index
    %c0_61 = arith.constant 0 : index
    %65 = vector.load %arg10[%c1_60, %c0_61] : memref<224x64xf32, #tpu.memory_space<vmem>>, vector<200x64xf32>
    %c2_62 = arith.constant 2 : index
    %c0_63 = arith.constant 0 : index
    %66 = vector.load %arg10[%c2_62, %c0_63] : memref<224x64xf32, #tpu.memory_space<vmem>>, vector<200x64xf32>
    %c10_64 = arith.constant 10 : index
    %c0_65 = arith.constant 0 : index
    %67 = vector.load %arg10[%c10_64, %c0_65] : memref<224x64xf32, #tpu.memory_space<vmem>>, vector<200x64xf32>
    %c11_66 = arith.constant 11 : index
    %c0_67 = arith.constant 0 : index
    %68 = vector.load %arg10[%c11_66, %c0_67] : memref<224x64xf32, #tpu.memory_space<vmem>>, vector<200x64xf32>
    %c12 = arith.constant 12 : index
    %c0_68 = arith.constant 0 : index
    %69 = vector.load %arg10[%c12, %c0_68] : memref<224x64xf32, #tpu.memory_space<vmem>>, vector<200x64xf32>
    %c20 = arith.constant 20 : index
    %c0_69 = arith.constant 0 : index
    %70 = vector.load %arg10[%c20, %c0_69] : memref<224x64xf32, #tpu.memory_space<vmem>>, vector<200x64xf32>
    %c21 = arith.constant 21 : index
    %c0_70 = arith.constant 0 : index
    %71 = vector.load %arg10[%c21, %c0_70] : memref<224x64xf32, #tpu.memory_space<vmem>>, vector<200x64xf32>
    %c22 = arith.constant 22 : index
    %c0_71 = arith.constant 0 : index
    %72 = vector.load %arg10[%c22, %c0_71] : memref<224x64xf32, #tpu.memory_space<vmem>>, vector<200x64xf32>
    %73 = tpu.concatenate %64, %65, %66, %67, %68, %69, %70, %71, %72 in 1 : vector<200x64xf32>, vector<200x64xf32>, vector<200x64xf32>, vector<200x64xf32>, vector<200x64xf32>, vector<200x64xf32>, vector<200x64xf32>, vector<200x64xf32>, vector<200x64xf32> -> vector<200x576xf32>
    %74 = arith.truncf %73 : vector<200x576xf32> to vector<200x576xbf16>
    %c0_72 = arith.constant 0 : index
    %c0_73 = arith.constant 0 : index
    %75 = vector.load %arg6[%c0_72, %c0_73] : memref<576x64xbf16, #tpu.memory_space<vmem>>, vector<576x64xbf16>
    %cst_74 = arith.constant dense<0.000000e+00> : vector<200x64xf32>
    %76 = tpu.matmul %74, %75, %cst_74 {dimension_numbers = #tpu.dot_dimension_numbers<[1], [0], [0], [1], [0, 0, 1, 1], [], []>} : vector<200x576xbf16>, vector<576x64xbf16>, vector<200x64xf32> -> vector<200x64xf32>
    %c0_75 = arith.constant 0 : index
    %c0_76 = arith.constant 0 : index
    %77 = vector.load %arg7[%c0_75, %c0_76] : memref<1x64xf32, #tpu.memory_space<vmem>>, vector<1x64xf32>
    %78 = vector.broadcast %77 : vector<1x64xf32> to vector<200x64xf32>
    %79 = arith.addf %76, %78 : vector<200x64xf32>
    %cst_77 = arith.constant 0.000000e+00 : f32
    %80 = vector.broadcast %cst_77 : f32 to vector<200x64xf32>
    %81 = arith.maximumf %79, %80 : vector<200x64xf32>
    %82 = vector.extract_strided_slice %81 {offsets = [0, 0], sizes = [7, 64], strides = [1, 1]} : vector<200x64xf32> to vector<7x64xf32>
    %c0_78 = arith.constant 0 : index
    %c0_79 = arith.constant 0 : index
    %c0_80 = arith.constant 0 : index
    %83 = vector.load %arg8[%c0_78, %c0_79, %c0_80] : memref<2x49x64xf32, #tpu.memory_space<vmem>>, vector<1x7x64xf32>
    %84 = vector.shape_cast %83 : vector<1x7x64xf32> to vector<7x64xf32>
    %85 = vector.shape_cast %82 : vector<7x64xf32> to vector<1x7x64xf32>
    tpu.vector_store %arg8[%c0_78, %c0_79, %c0_80], %85 {strides = array<i32>} : memref<2x49x64xf32, #tpu.memory_space<vmem>>, vector<1x7x64xf32>,
    %86 = vector.extract_strided_slice %81 {offsets = [10, 0], sizes = [7, 64], strides = [1, 1]} : vector<200x64xf32> to vector<7x64xf32>
    %c0_81 = arith.constant 0 : index
    %c7 = arith.constant 7 : index
    %c0_82 = arith.constant 0 : index
    %87 = vector.load %arg8[%c0_81, %c7, %c0_82] : memref<2x49x64xf32, #tpu.memory_space<vmem>>, vector<1x7x64xf32>
    %88 = vector.shape_cast %87 : vector<1x7x64xf32> to vector<7x64xf32>
    %89 = vector.shape_cast %86 : vector<7x64xf32> to vector<1x7x64xf32>
    tpu.vector_store %arg8[%c0_81, %c7, %c0_82], %89 {strides = array<i32>} : memref<2x49x64xf32, #tpu.memory_space<vmem>>, vector<1x7x64xf32>,
    %90 = vector.extract_strided_slice %81 {offsets = [20, 0], sizes = [7, 64], strides = [1, 1]} : vector<200x64xf32> to vector<7x64xf32>
    %c0_83 = arith.constant 0 : index
    %c14 = arith.constant 14 : index
    %c0_84 = arith.constant 0 : index
    %91 = vector.load %arg8[%c0_83, %c14, %c0_84] : memref<2x49x64xf32, #tpu.memory_space<vmem>>, vector<1x7x64xf32>
    %92 = vector.shape_cast %91 : vector<1x7x64xf32> to vector<7x64xf32>
    %93 = vector.shape_cast %90 : vector<7x64xf32> to vector<1x7x64xf32>
    tpu.vector_store %arg8[%c0_83, %c14, %c0_84], %93 {strides = array<i32>} : memref<2x49x64xf32, #tpu.memory_space<vmem>>, vector<1x7x64xf32>,
    %94 = vector.extract_strided_slice %81 {offsets = [30, 0], sizes = [7, 64], strides = [1, 1]} : vector<200x64xf32> to vector<7x64xf32>
    %c0_85 = arith.constant 0 : index
    %c21_86 = arith.constant 21 : index
    %c0_87 = arith.constant 0 : index
    %95 = vector.load %arg8[%c0_85, %c21_86, %c0_87] : memref<2x49x64xf32, #tpu.memory_space<vmem>>, vector<1x7x64xf32>
    %96 = vector.shape_cast %95 : vector<1x7x64xf32> to vector<7x64xf32>
    %97 = vector.shape_cast %94 : vector<7x64xf32> to vector<1x7x64xf32>
    tpu.vector_store %arg8[%c0_85, %c21_86, %c0_87], %97 {strides = array<i32>} : memref<2x49x64xf32, #tpu.memory_space<vmem>>, vector<1x7x64xf32>,
    %98 = vector.extract_strided_slice %81 {offsets = [40, 0], sizes = [7, 64], strides = [1, 1]} : vector<200x64xf32> to vector<7x64xf32>
    %c0_88 = arith.constant 0 : index
    %c28 = arith.constant 28 : index
    %c0_89 = arith.constant 0 : index
    %99 = vector.load %arg8[%c0_88, %c28, %c0_89] : memref<2x49x64xf32, #tpu.memory_space<vmem>>, vector<1x7x64xf32>
    %100 = vector.shape_cast %99 : vector<1x7x64xf32> to vector<7x64xf32>
    %101 = vector.shape_cast %98 : vector<7x64xf32> to vector<1x7x64xf32>
    tpu.vector_store %arg8[%c0_88, %c28, %c0_89], %101 {strides = array<i32>} : memref<2x49x64xf32, #tpu.memory_space<vmem>>, vector<1x7x64xf32>,
    %102 = vector.extract_strided_slice %81 {offsets = [50, 0], sizes = [7, 64], strides = [1, 1]} : vector<200x64xf32> to vector<7x64xf32>
    %c0_90 = arith.constant 0 : index
    %c35 = arith.constant 35 : index
    %c0_91 = arith.constant 0 : index
    %103 = vector.load %arg8[%c0_90, %c35, %c0_91] : memref<2x49x64xf32, #tpu.memory_space<vmem>>, vector<1x7x64xf32>
    %104 = vector.shape_cast %103 : vector<1x7x64xf32> to vector<7x64xf32>
    %105 = vector.shape_cast %102 : vector<7x64xf32> to vector<1x7x64xf32>
    tpu.vector_store %arg8[%c0_90, %c35, %c0_91], %105 {strides = array<i32>} : memref<2x49x64xf32, #tpu.memory_space<vmem>>, vector<1x7x64xf32>,
    %106 = vector.extract_strided_slice %81 {offsets = [60, 0], sizes = [7, 64], strides = [1, 1]} : vector<200x64xf32> to vector<7x64xf32>
    %c0_92 = arith.constant 0 : index
    %c42 = arith.constant 42 : index
    %c0_93 = arith.constant 0 : index
    %107 = vector.load %arg8[%c0_92, %c42, %c0_93] : memref<2x49x64xf32, #tpu.memory_space<vmem>>, vector<1x7x64xf32>
    %108 = vector.shape_cast %107 : vector<1x7x64xf32> to vector<7x64xf32>
    %109 = vector.shape_cast %106 : vector<7x64xf32> to vector<1x7x64xf32>
    tpu.vector_store %arg8[%c0_92, %c42, %c0_93], %109 {strides = array<i32>} : memref<2x49x64xf32, #tpu.memory_space<vmem>>, vector<1x7x64xf32>,
    %110 = vector.extract_strided_slice %81 {offsets = [100, 0], sizes = [7, 64], strides = [1, 1]} : vector<200x64xf32> to vector<7x64xf32>
    %c1_94 = arith.constant 1 : index
    %c0_95 = arith.constant 0 : index
    %c0_96 = arith.constant 0 : index
    %111 = vector.load %arg8[%c1_94, %c0_95, %c0_96] : memref<2x49x64xf32, #tpu.memory_space<vmem>>, vector<1x7x64xf32>
    %112 = vector.shape_cast %111 : vector<1x7x64xf32> to vector<7x64xf32>
    %113 = vector.shape_cast %110 : vector<7x64xf32> to vector<1x7x64xf32>
    tpu.vector_store %arg8[%c1_94, %c0_95, %c0_96], %113 {strides = array<i32>} : memref<2x49x64xf32, #tpu.memory_space<vmem>>, vector<1x7x64xf32>,
    %114 = vector.extract_strided_slice %81 {offsets = [110, 0], sizes = [7, 64], strides = [1, 1]} : vector<200x64xf32> to vector<7x64xf32>
    %c1_97 = arith.constant 1 : index
    %c7_98 = arith.constant 7 : index
    %c0_99 = arith.constant 0 : index
    %115 = vector.load %arg8[%c1_97, %c7_98, %c0_99] : memref<2x49x64xf32, #tpu.memory_space<vmem>>, vector<1x7x64xf32>
    %116 = vector.shape_cast %115 : vector<1x7x64xf32> to vector<7x64xf32>
    %117 = vector.shape_cast %114 : vector<7x64xf32> to vector<1x7x64xf32>
    tpu.vector_store %arg8[%c1_97, %c7_98, %c0_99], %117 {strides = array<i32>} : memref<2x49x64xf32, #tpu.memory_space<vmem>>, vector<1x7x64xf32>,
    %118 = vector.extract_strided_slice %81 {offsets = [120, 0], sizes = [7, 64], strides = [1, 1]} : vector<200x64xf32> to vector<7x64xf32>
    %c1_100 = arith.constant 1 : index
    %c14_101 = arith.constant 14 : index
    %c0_102 = arith.constant 0 : index
    %119 = vector.load %arg8[%c1_100, %c14_101, %c0_102] : memref<2x49x64xf32, #tpu.memory_space<vmem>>, vector<1x7x64xf32>
    %120 = vector.shape_cast %119 : vector<1x7x64xf32> to vector<7x64xf32>
    %121 = vector.shape_cast %118 : vector<7x64xf32> to vector<1x7x64xf32>
    tpu.vector_store %arg8[%c1_100, %c14_101, %c0_102], %121 {strides = array<i32>} : memref<2x49x64xf32, #tpu.memory_space<vmem>>, vector<1x7x64xf32>,
    %122 = vector.extract_strided_slice %81 {offsets = [130, 0], sizes = [7, 64], strides = [1, 1]} : vector<200x64xf32> to vector<7x64xf32>
    %c1_103 = arith.constant 1 : index
    %c21_104 = arith.constant 21 : index
    %c0_105 = arith.constant 0 : index
    %123 = vector.load %arg8[%c1_103, %c21_104, %c0_105] : memref<2x49x64xf32, #tpu.memory_space<vmem>>, vector<1x7x64xf32>
    %124 = vector.shape_cast %123 : vector<1x7x64xf32> to vector<7x64xf32>
    %125 = vector.shape_cast %122 : vector<7x64xf32> to vector<1x7x64xf32>
    tpu.vector_store %arg8[%c1_103, %c21_104, %c0_105], %125 {strides = array<i32>} : memref<2x49x64xf32, #tpu.memory_space<vmem>>, vector<1x7x64xf32>,
    %126 = vector.extract_strided_slice %81 {offsets = [140, 0], sizes = [7, 64], strides = [1, 1]} : vector<200x64xf32> to vector<7x64xf32>
    %c1_106 = arith.constant 1 : index
    %c28_107 = arith.constant 28 : index
    %c0_108 = arith.constant 0 : index
    %127 = vector.load %arg8[%c1_106, %c28_107, %c0_108] : memref<2x49x64xf32, #tpu.memory_space<vmem>>, vector<1x7x64xf32>
    %128 = vector.shape_cast %127 : vector<1x7x64xf32> to vector<7x64xf32>
    %129 = vector.shape_cast %126 : vector<7x64xf32> to vector<1x7x64xf32>
    tpu.vector_store %arg8[%c1_106, %c28_107, %c0_108], %129 {strides = array<i32>} : memref<2x49x64xf32, #tpu.memory_space<vmem>>, vector<1x7x64xf32>,
    %130 = vector.extract_strided_slice %81 {offsets = [150, 0], sizes = [7, 64], strides = [1, 1]} : vector<200x64xf32> to vector<7x64xf32>
    %c1_109 = arith.constant 1 : index
    %c35_110 = arith.constant 35 : index
    %c0_111 = arith.constant 0 : index
    %131 = vector.load %arg8[%c1_109, %c35_110, %c0_111] : memref<2x49x64xf32, #tpu.memory_space<vmem>>, vector<1x7x64xf32>
    %132 = vector.shape_cast %131 : vector<1x7x64xf32> to vector<7x64xf32>
    %133 = vector.shape_cast %130 : vector<7x64xf32> to vector<1x7x64xf32>
    tpu.vector_store %arg8[%c1_109, %c35_110, %c0_111], %133 {strides = array<i32>} : memref<2x49x64xf32, #tpu.memory_space<vmem>>, vector<1x7x64xf32>,
    %134 = vector.extract_strided_slice %81 {offsets = [160, 0], sizes = [7, 64], strides = [1, 1]} : vector<200x64xf32> to vector<7x64xf32>
    %c1_112 = arith.constant 1 : index
    %c42_113 = arith.constant 42 : index
    %c0_114 = arith.constant 0 : index
    %135 = vector.load %arg8[%c1_112, %c42_113, %c0_114] : memref<2x49x64xf32, #tpu.memory_space<vmem>>, vector<1x7x64xf32>
    %136 = vector.shape_cast %135 : vector<1x7x64xf32> to vector<7x64xf32>
    %137 = vector.shape_cast %134 : vector<7x64xf32> to vector<1x7x64xf32>
    tpu.vector_store %arg8[%c1_112, %c42_113, %c0_114], %137 {strides = array<i32>} : memref<2x49x64xf32, #tpu.memory_space<vmem>>, vector<1x7x64xf32>,
    return
  }
  func.func @transform_0(%arg0: i32) -> (i32, i32, i32) {
    %c0_i32 = arith.constant 0 : i32
    %c0_i32_0 = arith.constant 0 : i32
    %c0_i32_1 = arith.constant 0 : i32
    return %c0_i32, %arg0, %c0_i32_0 : i32, i32, i32
  }
  func.func @transform_1(%arg0: i32) -> (i32, i32) {
    %c0_i32 = arith.constant 0 : i32
    %c0_i32_0 = arith.constant 0 : i32
    %c0_i32_1 = arith.constant 0 : i32
    return %c0_i32, %c0_i32_0 : i32, i32
  }
  func.func @transform_2(%arg0: i32) -> (i32, i32) {
    %c0_i32 = arith.constant 0 : i32
    %c0_i32_0 = arith.constant 0 : i32
    %c0_i32_1 = arith.constant 0 : i32
    return %c0_i32, %c0_i32_0 : i32, i32
  }
  func.func @transform_3(%arg0: i32) -> (i32, i32) {
    %c0_i32 = arith.constant 0 : i32
    %c0_i32_0 = arith.constant 0 : i32
    %c0_i32_1 = arith.constant 0 : i32
    return %c0_i32, %c0_i32_0 : i32, i32
  }
  func.func @transform_4(%arg0: i32) -> (i32, i32) {
    %c0_i32 = arith.constant 0 : i32
    %c0_i32_0 = arith.constant 0 : i32
    %c0_i32_1 = arith.constant 0 : i32
    return %c0_i32, %c0_i32_0 : i32, i32
  }
  func.func @transform_5(%arg0: i32) -> (i32, i32) {
    %c0_i32 = arith.constant 0 : i32
    %c0_i32_0 = arith.constant 0 : i32
    %c0_i32_1 = arith.constant 0 : i32
    return %c0_i32, %c0_i32_0 : i32, i32
  }
  func.func @transform_6(%arg0: i32) -> (i32, i32) {
    %c0_i32 = arith.constant 0 : i32
    %c0_i32_0 = arith.constant 0 : i32
    %c0_i32_1 = arith.constant 0 : i32
    return %c0_i32, %c0_i32_0 : i32, i32
  }
  func.func @transform_7(%arg0: i32) -> (i32, i32, i32) {
    %c0_i32 = arith.constant 0 : i32
    %c0_i32_0 = arith.constant 0 : i32
    %c0_i32_1 = arith.constant 0 : i32
    return %arg0, %c0_i32, %c0_i32_0 : i32, i32, i32
  }
}

module attributes {stable_mosaic.version = 11 : i64} {
  func.func @_head_kernel(%arg0: i32, %arg1: memref<2x3136xbf16, #tpu.memory_space<vmem>>, %arg2: memref<3136x32xbf16, #tpu.memory_space<vmem>>, %arg3: memref<1x32xf32, #tpu.memory_space<vmem>>, %arg4: memref<32x128xbf16, #tpu.memory_space<vmem>>, %arg5: memref<1x128xf32, #tpu.memory_space<vmem>>, %arg6: memref<32x128xbf16, #tpu.memory_space<vmem>>, %arg7: memref<32x4xbf16, #tpu.memory_space<vmem>>, %arg8: memref<1x4xf32, #tpu.memory_space<vmem>>, %arg9: memref<2x32xf32, #tpu.memory_space<vmem>>, %arg10: memref<2x32xf32, #tpu.memory_space<vmem>>, %arg11: memref<2x4xf32, #tpu.memory_space<vmem>>, %arg12: memref<2x32xf32, #tpu.memory_space<vmem>>, %arg13: memref<2x32xf32, #tpu.memory_space<vmem>>, %arg14: memref<2x128xf32, #tpu.memory_space<vmem>>, %arg15: memref<2x32xf32, #tpu.memory_space<vmem>>) attributes {dimension_semantics = [#tpu.dimension_semantics<arbitrary>], iteration_bounds = array<i64: 1>, scalar_prefetch = 0 : i64, scratch_operands = 2 : i64, tpu.core_type = #tpu.core_type<tc>, window_params = [{pipeline_mode = #tpu.pipeline_mode<synchronous>, transform_indices = @transform_0, window_bounds = array<i64: 2, 3136>}, {pipeline_mode = #tpu.pipeline_mode<synchronous>, transform_indices = @transform_1, window_bounds = array<i64: 3136, 32>}, {pipeline_mode = #tpu.pipeline_mode<synchronous>, transform_indices = @transform_2, window_bounds = array<i64: 1, 32>}, {pipeline_mode = #tpu.pipeline_mode<synchronous>, transform_indices = @transform_3, window_bounds = array<i64: 32, 128>}, {pipeline_mode = #tpu.pipeline_mode<synchronous>, transform_indices = @transform_4, window_bounds = array<i64: 1, 128>}, {pipeline_mode = #tpu.pipeline_mode<synchronous>, transform_indices = @transform_5, window_bounds = array<i64: 32, 128>}, {pipeline_mode = #tpu.pipeline_mode<synchronous>, transform_indices = @transform_6, window_bounds = array<i64: 32, 4>}, {pipeline_mode = #tpu.pipeline_mode<synchronous>, transform_indices = @transform_7, window_bounds = array<i64: 1, 4>}, {pipeline_mode = #tpu.pipeline_mode<synchronous>, transform_indices = @transform_8, window_bounds = array<i64: 2, 32>}, {pipeline_mode = #tpu.pipeline_mode<synchronous>, transform_indices = @transform_9, window_bounds = array<i64: 2, 32>}, {pipeline_mode = #tpu.pipeline_mode<synchronous>, transform_indices = @transform_10, window_bounds = array<i64: 2, 4>}, {pipeline_mode = #tpu.pipeline_mode<synchronous>, transform_indices = @transform_11, window_bounds = array<i64: 2, 32>}, {pipeline_mode = #tpu.pipeline_mode<synchronous>, transform_indices = @transform_12, window_bounds = array<i64: 2, 32>}]} {
    %c0 = arith.constant 0 : index
    %c0_0 = arith.constant 0 : index
    %0 = vector.load %arg1[%c0, %c0_0] : memref<2x3136xbf16, #tpu.memory_space<vmem>>, vector<2x3136xbf16>
    %c0_1 = arith.constant 0 : index
    %c0_2 = arith.constant 0 : index
    %1 = vector.load %arg2[%c0_1, %c0_2] : memref<3136x32xbf16, #tpu.memory_space<vmem>>, vector<3136x32xbf16>
    %cst = arith.constant dense<0.000000e+00> : vector<2x32xf32>
    %2 = tpu.matmul %0, %1, %cst {dimension_numbers = #tpu.dot_dimension_numbers<[1], [0], [0], [1], [0, 0, 1, 1], [], []>} : vector<2x3136xbf16>, vector<3136x32xbf16>, vector<2x32xf32> -> vector<2x32xf32>
    %c0_3 = arith.constant 0 : index
    %c0_4 = arith.constant 0 : index
    %3 = vector.load %arg3[%c0_3, %c0_4] : memref<1x32xf32, #tpu.memory_space<vmem>>, vector<1x32xf32>
    %4 = vector.broadcast %3 : vector<1x32xf32> to vector<2x32xf32>
    %5 = arith.addf %2, %4 : vector<2x32xf32>
    %cst_5 = arith.constant 0.000000e+00 : f32
    %6 = vector.broadcast %cst_5 : f32 to vector<2x32xf32>
    %7 = arith.maximumf %5, %6 : vector<2x32xf32>
    %8 = arith.truncf %7 : vector<2x32xf32> to vector<2x32xbf16>
    %c0_6 = arith.constant 0 : index
    %c0_7 = arith.constant 0 : index
    %9 = vector.load %arg4[%c0_6, %c0_7] : memref<32x128xbf16, #tpu.memory_space<vmem>>, vector<32x128xbf16>
    %cst_8 = arith.constant dense<0.000000e+00> : vector<2x128xf32>
    %10 = tpu.matmul %8, %9, %cst_8 {dimension_numbers = #tpu.dot_dimension_numbers<[1], [0], [0], [1], [0, 0, 1, 1], [], []>} : vector<2x32xbf16>, vector<32x128xbf16>, vector<2x128xf32> -> vector<2x128xf32>
    %c0_9 = arith.constant 0 : index
    %c0_10 = arith.constant 0 : index
    %11 = vector.load %arg5[%c0_9, %c0_10] : memref<1x128xf32, #tpu.memory_space<vmem>>, vector<1x128xf32>
    %12 = vector.broadcast %11 : vector<1x128xf32> to vector<2x128xf32>
    %13 = arith.addf %10, %12 : vector<2x128xf32>
    %c0_11 = arith.constant 0 : index
    %c0_12 = arith.constant 0 : index
    %14 = vector.load %arg14[%c0_11, %c0_12] : memref<2x128xf32, #tpu.memory_space<vmem>>, vector<2x128xf32>
    tpu.vector_store %arg14[%c0_11, %c0_12], %13 {strides = array<i32>} : memref<2x128xf32, #tpu.memory_space<vmem>>, vector<2x128xf32>,
    %c0_13 = arith.constant 0 : index
    %c0_14 = arith.constant 0 : index
    %15 = vector.load %arg9[%c0_13, %c0_14] : memref<2x32xf32, #tpu.memory_space<vmem>>, vector<2x32xf32>
    %c0_15 = arith.constant 0 : index
    %c0_16 = arith.constant 0 : index
    %16 = vector.load %arg10[%c0_15, %c0_16] : memref<2x32xf32, #tpu.memory_space<vmem>>, vector<2x32xf32>
    %c0_17 = arith.constant 0 : index
    %c0_18 = arith.constant 0 : index
    %17 = vector.load %arg6[%c0_17, %c0_18] : memref<32x128xbf16, #tpu.memory_space<vmem>>, vector<32x128xbf16>
    %c0_19 = arith.constant 0 : index
    %c0_20 = arith.constant 0 : index
    %18 = vector.load %arg14[%c0_19, %c0_20] : memref<2x128xf32, #tpu.memory_space<vmem>>, vector<2x128xf32>
    %19 = arith.truncf %15 : vector<2x32xf32> to vector<2x32xbf16>
    %cst_21 = arith.constant dense<0.000000e+00> : vector<2x128xf32>
    %20 = tpu.matmul %19, %17, %cst_21 {dimension_numbers = #tpu.dot_dimension_numbers<[1], [0], [0], [1], [0, 0, 1, 1], [], []>} : vector<2x32xbf16>, vector<32x128xbf16>, vector<2x128xf32> -> vector<2x128xf32>
    %21 = arith.addf %18, %20 : vector<2x128xf32>
    %22 = vector.extract_strided_slice %21 {offsets = [0, 0], sizes = [2, 32], strides = [1, 1]} : vector<2x128xf32> to vector<2x32xf32>
    %23 = arith.negf %22 : vector<2x32xf32>
    %24 = math.exp %23 : vector<2x32xf32>
    %cst_22 = arith.constant 1.000000e+00 : f32
    %25 = vector.broadcast %cst_22 : f32 to vector<2x32xf32>
    %26 = arith.addf %25, %24 : vector<2x32xf32>
    %27 = arith.divf %25, %26 : vector<2x32xf32>
    %28 = vector.extract_strided_slice %21 {offsets = [0, 32], sizes = [2, 32], strides = [1, 1]} : vector<2x128xf32> to vector<2x32xf32>
    %29 = arith.negf %28 : vector<2x32xf32>
    %30 = math.exp %29 : vector<2x32xf32>
    %cst_23 = arith.constant 1.000000e+00 : f32
    %31 = vector.broadcast %cst_23 : f32 to vector<2x32xf32>
    %32 = arith.addf %31, %30 : vector<2x32xf32>
    %33 = arith.divf %31, %32 : vector<2x32xf32>
    %34 = vector.extract_strided_slice %21 {offsets = [0, 64], sizes = [2, 32], strides = [1, 1]} : vector<2x128xf32> to vector<2x32xf32>
    %35 = math.tanh %34 : vector<2x32xf32>
    %36 = vector.extract_strided_slice %21 {offsets = [0, 96], sizes = [2, 32], strides = [1, 1]} : vector<2x128xf32> to vector<2x32xf32>
    %37 = arith.negf %36 : vector<2x32xf32>
    %38 = math.exp %37 : vector<2x32xf32>
    %cst_24 = arith.constant 1.000000e+00 : f32
    %39 = vector.broadcast %cst_24 : f32 to vector<2x32xf32>
    %40 = arith.addf %39, %38 : vector<2x32xf32>
    %41 = arith.divf %39, %40 : vector<2x32xf32>
    %42 = arith.mulf %33, %16 : vector<2x32xf32>
    %43 = arith.mulf %27, %35 : vector<2x32xf32>
    %44 = arith.addf %42, %43 : vector<2x32xf32>
    %45 = math.tanh %44 : vector<2x32xf32>
    %46 = arith.mulf %41, %45 : vector<2x32xf32>
    %c0_25 = arith.constant 0 : index
    %c0_26 = arith.constant 0 : index
    %47 = vector.load %arg15[%c0_25, %c0_26] : memref<2x32xf32, #tpu.memory_space<vmem>>, vector<2x32xf32>
    tpu.vector_store %arg15[%c0_25, %c0_26], %46 {strides = array<i32>} : memref<2x32xf32, #tpu.memory_space<vmem>>, vector<2x32xf32>,
    %c0_27 = arith.constant 0 : index
    %c0_28 = arith.constant 0 : index
    %48 = vector.load %arg15[%c0_27, %c0_28] : memref<2x32xf32, #tpu.memory_space<vmem>>, vector<2x32xf32>
    %49 = arith.truncf %48 : vector<2x32xf32> to vector<2x32xbf16>
    %c0_29 = arith.constant 0 : index
    %c0_30 = arith.constant 0 : index
    %50 = vector.load %arg7[%c0_29, %c0_30] : memref<32x4xbf16, #tpu.memory_space<vmem>>, vector<32x4xbf16>
    %cst_31 = arith.constant dense<0.000000e+00> : vector<2x4xf32>
    %51 = tpu.matmul %49, %50, %cst_31 {dimension_numbers = #tpu.dot_dimension_numbers<[1], [0], [0], [1], [0, 0, 1, 1], [], []>} : vector<2x32xbf16>, vector<32x4xbf16>, vector<2x4xf32> -> vector<2x4xf32>
    %c0_32 = arith.constant 0 : index
    %c0_33 = arith.constant 0 : index
    %52 = vector.load %arg8[%c0_32, %c0_33] : memref<1x4xf32, #tpu.memory_space<vmem>>, vector<1x4xf32>
    %53 = vector.broadcast %52 : vector<1x4xf32> to vector<2x4xf32>
    %54 = arith.addf %51, %53 : vector<2x4xf32>
    %c0_34 = arith.constant 0 : index
    %c0_35 = arith.constant 0 : index
    %55 = vector.load %arg11[%c0_34, %c0_35] : memref<2x4xf32, #tpu.memory_space<vmem>>, vector<2x4xf32>
    tpu.vector_store %arg11[%c0_34, %c0_35], %54 {strides = array<i32>} : memref<2x4xf32, #tpu.memory_space<vmem>>, vector<2x4xf32>,
    %c0_36 = arith.constant 0 : index
    %c0_37 = arith.constant 0 : index
    %56 = vector.load %arg12[%c0_36, %c0_37] : memref<2x32xf32, #tpu.memory_space<vmem>>, vector<2x32xf32>
    tpu.vector_store %arg12[%c0_36, %c0_37], %46 {strides = array<i32>} : memref<2x32xf32, #tpu.memory_space<vmem>>, vector<2x32xf32>,
    %c0_38 = arith.constant 0 : index
    %c0_39 = arith.constant 0 : index
    %57 = vector.load %arg13[%c0_38, %c0_39] : memref<2x32xf32, #tpu.memory_space<vmem>>, vector<2x32xf32>
    tpu.vector_store %arg13[%c0_38, %c0_39], %44 {strides = array<i32>} : memref<2x32xf32, #tpu.memory_space<vmem>>, vector<2x32xf32>,
    return
  }
  func.func @transform_0(%arg0: i32) -> (i32, i32) {
    %c0_i32 = arith.constant 0 : i32
    %c0_i32_0 = arith.constant 0 : i32
    %c0_i32_1 = arith.constant 0 : i32
    return %c0_i32, %c0_i32_0 : i32, i32
  }
  func.func @transform_1(%arg0: i32) -> (i32, i32) {
    %c0_i32 = arith.constant 0 : i32
    %c0_i32_0 = arith.constant 0 : i32
    %c0_i32_1 = arith.constant 0 : i32
    return %c0_i32, %c0_i32_0 : i32, i32
  }
  func.func @transform_2(%arg0: i32) -> (i32, i32) {
    %c0_i32 = arith.constant 0 : i32
    %c0_i32_0 = arith.constant 0 : i32
    %c0_i32_1 = arith.constant 0 : i32
    return %c0_i32, %c0_i32_0 : i32, i32
  }
  func.func @transform_3(%arg0: i32) -> (i32, i32) {
    %c0_i32 = arith.constant 0 : i32
    %c0_i32_0 = arith.constant 0 : i32
    %c0_i32_1 = arith.constant 0 : i32
    return %c0_i32, %c0_i32_0 : i32, i32
  }
  func.func @transform_4(%arg0: i32) -> (i32, i32) {
    %c0_i32 = arith.constant 0 : i32
    %c0_i32_0 = arith.constant 0 : i32
    %c0_i32_1 = arith.constant 0 : i32
    return %c0_i32, %c0_i32_0 : i32, i32
  }
  func.func @transform_5(%arg0: i32) -> (i32, i32) {
    %c0_i32 = arith.constant 0 : i32
    %c0_i32_0 = arith.constant 0 : i32
    %c0_i32_1 = arith.constant 0 : i32
    return %c0_i32, %c0_i32_0 : i32, i32
  }
  func.func @transform_6(%arg0: i32) -> (i32, i32) {
    %c0_i32 = arith.constant 0 : i32
    %c0_i32_0 = arith.constant 0 : i32
    %c0_i32_1 = arith.constant 0 : i32
    return %c0_i32, %c0_i32_0 : i32, i32
  }
  func.func @transform_7(%arg0: i32) -> (i32, i32) {
    %c0_i32 = arith.constant 0 : i32
    %c0_i32_0 = arith.constant 0 : i32
    %c0_i32_1 = arith.constant 0 : i32
    return %c0_i32, %c0_i32_0 : i32, i32
  }
  func.func @transform_8(%arg0: i32) -> (i32, i32) {
    %c0_i32 = arith.constant 0 : i32
    %c0_i32_0 = arith.constant 0 : i32
    %c0_i32_1 = arith.constant 0 : i32
    return %c0_i32, %c0_i32_0 : i32, i32
  }
  func.func @transform_9(%arg0: i32) -> (i32, i32) {
    %c0_i32 = arith.constant 0 : i32
    %c0_i32_0 = arith.constant 0 : i32
    %c0_i32_1 = arith.constant 0 : i32
    return %c0_i32, %c0_i32_0 : i32, i32
  }
  func.func @transform_10(%arg0: i32) -> (i32, i32) {
    %c0_i32 = arith.constant 0 : i32
    %c0_i32_0 = arith.constant 0 : i32
    %c0_i32_1 = arith.constant 0 : i32
    return %c0_i32, %c0_i32_0 : i32, i32
  }
  func.func @transform_11(%arg0: i32) -> (i32, i32) {
    %c0_i32 = arith.constant 0 : i32
    %c0_i32_0 = arith.constant 0 : i32
    %c0_i32_1 = arith.constant 0 : i32
    return %c0_i32, %c0_i32_0 : i32, i32
  }
  func.func @transform_12(%arg0: i32) -> (i32, i32) {
    %c0_i32 = arith.constant 0 : i32
    %c0_i32_0 = arith.constant 0 : i32
    %c0_i32_1 = arith.constant 0 : i32
    return %c0_i32, %c0_i32_0 : i32, i32
  }
}

</mosaic_0001>

<llo_original>
// kernel: actor_forward.2
$region0: #{actor_forward.2}
  #allocation0 [shape = 'u32[]', space=smem, size = 0x4, offset = 0x4, fixed_abs, tag = 'smem constant byte address 0x4 - core index']
  #allocation1 [shape = 'u32[144,128]{1,0:T(1,128)}', space=vmem, size = 0x12000, scoped, tag = 'internal scratch']
  #allocation2 [shape = 'f32[816,32]{1,0:T(8,128)}', space=vmem, size = 0x66000, scoped, tag = 'scratch operand']
  #allocation3 [shape = 'f32[224,64]{1,0:T(8,128)}', space=vmem, size = 0x1c000, scoped, tag = 'scratch operand']
  %s0 = inlined_call_operand.vmem [shape: bf16[4,200,64], index: 0, kind: input, shape index: {}]
  %s1 = inlined_call_operand.vmem [shape: bf16[64,32], index: 1, kind: input, shape index: {}]
  %s2 = inlined_call_operand.vmem [shape: f32[1,32], index: 2, kind: input, shape index: {}]
  %s3 = inlined_call_operand.vmem [shape: bf16[512,64], index: 3, kind: input, shape index: {}]
  %s4 = inlined_call_operand.vmem [shape: f32[1,64], index: 4, kind: input, shape index: {}]
  %s5 = inlined_call_operand.vmem [shape: bf16[576,64], index: 5, kind: input, shape index: {}]
  %s6 = inlined_call_operand.vmem [shape: f32[1,64], index: 6, kind: input, shape index: {}]
  %s7 = inlined_call_operand.vmem [shape: f32[2,49,64], index: 7, kind: output, shape index: {}]
  %s8 = sld [smem:[#allocation0]]
  $region38: #{actor_forward.2} parent=0
    _
  %s10 = ssub.s32 1, %s8
  %s11 = scalar_select 0, %s10, %s8
  // Predicated region
  $region2: #{actor_forward.2} parent=0 // pred_check
    _
  $region3: #{actor_forward.2} parent=0 // pred_check_branch
    %13 = sbr.rel (0) target = $region5
  $region4: #{actor_forward.2} parent=0 // pred_region
    _
  $region5: #{actor_forward.2} parent=0 // pred_fallthru
    _
  // Predicated region
  $region6: #{actor_forward.2} parent=0 // pred_check
    _
  $region7: #{actor_forward.2} parent=0 // pred_check_branch
    %15 = sbr.rel (0) target = $region9
  $region8: #{actor_forward.2} parent=0 // pred_region
    _
  $region9: #{actor_forward.2} parent=0 // pred_fallthru
    _
  // Predicated region
  $region10: #{actor_forward.2} parent=0 // pred_check
    _
  $region11: #{actor_forward.2} parent=0 // pred_check_branch
    %17 = sbr.rel (0) target = $region13
  $region12: #{actor_forward.2} parent=0 // pred_region
    _
  $region13: #{actor_forward.2} parent=0 // pred_fallthru
    _
  // Predicated region
  $region14: #{actor_forward.2} parent=0 // pred_check
    _
  $region15: #{actor_forward.2} parent=0 // pred_check_branch
    %19 = sbr.rel (0) target = $region17
  $region16: #{actor_forward.2} parent=0 // pred_region
    _
  $region17: #{actor_forward.2} parent=0 // pred_fallthru
    _
  // Predicated region
  $region18: #{actor_forward.2} parent=0 // pred_check
    _
  $region19: #{actor_forward.2} parent=0 // pred_check_branch
    %21 = sbr.rel (0) target = $region21
  $region20: #{actor_forward.2} parent=0 // pred_region
    _
  $region21: #{actor_forward.2} parent=0 // pred_fallthru
    _
  // Predicated region
  $region22: #{actor_forward.2} parent=0 // pred_check
    _
  $region23: #{actor_forward.2} parent=0 // pred_check_branch
    %23 = sbr.rel (0) target = $region25
  $region24: #{actor_forward.2} parent=0 // pred_region
    _
  $region25: #{actor_forward.2} parent=0 // pred_fallthru
    _
  // Predicated region
  $region26: #{actor_forward.2} parent=0 // pred_check
    _
  $region27: #{actor_forward.2} parent=0 // pred_check_branch
    %25 = sbr.rel (0) target = $region29
  $region28: #{actor_forward.2} parent=0 // pred_region
    _
  $region29: #{actor_forward.2} parent=0 // pred_fallthru
    _
  %v27 = vld [vmem:[%s1] sm:$0xf]
  %v28 = vld [vmem:[%s1 + $0x4] sm:$0xf]
  %v29 = vld [vmem:[%s1 + $0x8] sm:$0xf]
  %v30 = vld [vmem:[%s1 + $0xc] sm:$0xf]
  %v31 = vld [vmem:[%s1 + $0x10] sm:$0xf]
  %v32 = vld [vmem:[%s1 + $0x14] sm:$0xf]
  %v33 = vld [vmem:[%s1 + $0x18] sm:$0xf]
  %v34 = vld [vmem:[%s1 + $0x1c] sm:$0xf]
  %v35 = vld [vmem:[%s2] sm:$0x1]
  %v36 = vld [vmem:[%s0] sm:$0xf]
  %v37 = vld [vmem:[%s0 + $0x4] sm:$0xf]
  %v38 = vld [vmem:[%s0 + $0x8] sm:$0xf]
  %v39 = vld [vmem:[%s0 + $0xc] sm:$0xf]
  %v40 = vld [vmem:[%s0 + $0x10] sm:$0xf]
  %v41 = vld [vmem:[%s0 + $0x14] sm:$0xf]
  %v42 = vld [vmem:[%s0 + $0x18] sm:$0xf]
  %v43 = vld [vmem:[%s0 + $0x1c] sm:$0xf]
  %v44 = vld [vmem:[%s0 + $0x20] sm:$0xf]
  %v45 = vld [vmem:[%s0 + $0x24] sm:$0xf]
  %v46 = vld [vmem:[%s0 + $0x28] sm:$0xf]
  %v47 = vld [vmem:[%s0 + $0x2c] sm:$0xf]
  %v48 = vld [vmem:[%s0 + $0x30] sm:$0xf]
  %v49 = vld [vmem:[%s0 + $0x34] sm:$0xf]
  %v50 = vld [vmem:[%s0 + $0x38] sm:$0xf]
  %v51 = vld [vmem:[%s0 + $0x3c] sm:$0xf]
  %v52 = vld [vmem:[%s0 + $0x40] sm:$0xf]
  %v53 = vld [vmem:[%s0 + $0x44] sm:$0xf]
  %v54 = vld [vmem:[%s0 + $0x48] sm:$0xf]
  %v55 = vld [vmem:[%s0 + $0x4c] sm:$0xf]
  %v56 = vld [vmem:[%s0 + $0x50] sm:$0xf]
  %v57 = vld [vmem:[%s0 + $0x54] sm:$0xf]
  %v58 = vld [vmem:[%s0 + $0x58] sm:$0xf]
  %v59 = vld [vmem:[%s0 + $0x5c] sm:$0xf]
  %v60 = vld [vmem:[%s0 + $0x60] sm:$0xf]
  %v62 = vlaneseq
  %v63 = vshrl.u32 %v62, 7
  %v64 = vsub.s32 0, %v63
  %v65 = vrot.slane %v35, %v64
  %v92 = vunpack.c.l.b16 %v36
  %v93 = vunpack.c.l.b16 %v37
  %v94 = vunpack.c.l.b16 %v38
  %v95 = vunpack.c.l.b16 %v39
  %v96 = vunpack.c.l.b16 %v40
  %v97 = vunpack.c.l.b16 %v41
  %v98 = vunpack.c.l.b16 %v42
  %v99 = vunpack.c.l.b16 %v43
  %v100 = vunpack.c.l.b16 %v44
  %v101 = vunpack.c.l.b16 %v45
  %v102 = vunpack.c.l.b16 %v46
  %v103 = vunpack.c.l.b16 %v47
  %v104 = vunpack.c.l.b16 %v48
  %v105 = vunpack.c.l.b16 %v49
  %v106 = vunpack.c.l.b16 %v50
  %v107 = vunpack.c.l.b16 %v51
  %v108 = vunpack.c.l.b16 %v52
  %v109 = vunpack.c.l.b16 %v53
  %v110 = vunpack.c.l.b16 %v54
  %v111 = vunpack.c.l.b16 %v55
  %v112 = vunpack.c.l.b16 %v56
  %v113 = vunpack.c.l.b16 %v57
  %v114 = vunpack.c.l.b16 %v58
  %v115 = vunpack.c.l.b16 %v59
  %v116 = vunpack.c.l.b16 %v60
  %v117 = vpack.c.b16 %v93, %v92
  %v118 = vpack.c.b16 %v95, %v94
  %v119 = vpack.c.b16 %v97, %v96
  %v120 = vpack.c.b16 %v99, %v98
  %v121 = vpack.c.b16 %v101, %v100
  %v122 = vpack.c.b16 %v103, %v102
  %v123 = vpack.c.b16 %v105, %v104
  %v124 = vpack.c.b16 %v107, %v106
  %v125 = vpack.c.b16 %v109, %v108
  %v126 = vpack.c.b16 %v111, %v110
  %v127 = vpack.c.b16 %v113, %v112
  %v128 = vpack.c.b16 %v115, %v114
  %v129 = vpack.c.b16 %v116, %v116
  %v138 = vunpack.c.l.b16 %v27
  %v139 = vunpack.c.l.b16 %v28
  %v140 = vunpack.c.l.b16 %v29
  %v141 = vunpack.c.l.b16 %v30
  %v142 = vunpack.c.l.b16 %v31
  %v143 = vunpack.c.l.b16 %v32
  %v144 = vunpack.c.l.b16 %v33
  %v145 = vunpack.c.l.b16 %v34
  %v146 = vpack.c.b16 %v139, %v138
  %v147 = vpack.c.b16 %v141, %v140
  %v148 = vpack.c.b16 %v143, %v142
  %v149 = vpack.c.b16 %v145, %v144
  %vm154 = vcmask 523264
  %v156 = vsel %vm154, %v117, 0
  %v159 = vsel %vm154, %v118, 0
  %v162 = vsel %vm154, %v119, 0
  %v165 = vsel %vm154, %v120, 0
  %v168 = vsel %vm154, %v121, 0
  %v171 = vsel %vm154, %v122, 0
  %v174 = vsel %vm154, %v123, 0
  %v177 = vsel %vm154, %v124, 0
  %v180 = vsel %vm154, %v125, 0
  %v183 = vsel %vm154, %v126, 0
  %v186 = vsel %vm154, %v127, 0
  %v189 = vsel %vm154, %v128, 0
  %v192 = vsel %vm154, %v129, 0
  %194 = vmatprep.subr.bf16.mxu0 0
  %195 = vmatpush1.bf16.msra.mxu0 %v146
  %196 = vmatprep.subr.bf16.mxu0 0
  %197 = vmatpush1.bf16.msra.mxu0 %v147
  %198 = vmatprep.subr.bf16.mxu0 0
  %199 = vmatpush1.bf16.msra.mxu0 %v148
  %200 = vmatprep.subr.bf16.mxu0 0
  %201 = vmatpush1.bf16.msra.mxu0 %v149
  %202 = vmatprep.subr.bf16.mxu0 0
  %203 = vmatpush1.bf16.msra.mxu0 0
  %204 = vmatprep.subr.bf16.mxu0 0
  %205 = vmatpush1.bf16.msra.mxu0 0
  %206 = vmatprep.subr.bf16.mxu0 0
  %207 = vmatpush1.bf16.msra.mxu0 0
  %208 = vmatprep.subr.bf16.mxu0 0
  %209 = vmatpush1.bf16.msra.mxu0 0
  %210 = vmatprep.subr.bf16.mxu0 0
  %211 = vmatpush1.bf16.msra.mxu0 0
  %212 = vmatprep.subr.bf16.mxu0 0
  %213 = vmatpush1.bf16.msra.mxu0 0
  %214 = vmatprep.subr.bf16.mxu0 0
  %215 = vmatpush1.bf16.msra.mxu0 0
  %216 = vmatprep.subr.bf16.mxu0 0
  %217 = vmatpush1.bf16.msra.mxu0 0
  %218 = vmatprep.subr.bf16.mxu0 0
  %219 = vmatpush1.bf16.msra.mxu0 0
  %220 = vmatprep.subr.bf16.mxu0 0
  %221 = vmatpush1.bf16.msra.mxu0 0
  %222 = vmatprep.subr.bf16.mxu0 0
  %223 = vmatpush1.bf16.msra.mxu0 0
  %224 = vmatprep.subr.bf16.mxu0 0
  %225 = vmatpush1.bf16.msra.mxu0 0
  %226 = vmatprep.mubr.bf16.mxu0 0
  %227 = vmatmul.mubr.bf16.gmra.mrb[0].mxu0 %v156
  %v228 = vpop.f32.mrb[0].mxu0
  %v229 = vadd.f32 %v65, %v228
  %v230 = vpop.f32.mrb[0].mxu0
  %v231 = vpop.f32.mrb[0].mxu0
  %v232 = vadd.f32 %v65, %v231
  %v233 = vpop.f32.mrb[0].mxu0
  %234 = vmatprep.mubr.bf16.mxu0 0
  %235 = vmatmul.mubr.bf16.gmra.mrb[0].mxu0 %v159
  %v236 = vpop.f32.mrb[0].mxu0
  %v237 = vadd.f32 %v65, %v236
  %v238 = vpop.f32.mrb[0].mxu0
  %v239 = vpop.f32.mrb[0].mxu0
  %v240 = vadd.f32 %v65, %v239
  %v241 = vpop.f32.mrb[0].mxu0
  %242 = vmatprep.mubr.bf16.mxu0 0
  %243 = vmatmul.mubr.bf16.gmra.mrb[0].mxu0 %v162
  %v244 = vpop.f32.mrb[0].mxu0
  %v245 = vadd.f32 %v65, %v244
  %v246 = vpop.f32.mrb[0].mxu0
  %v247 = vpop.f32.mrb[0].mxu0
  %v248 = vadd.f32 %v65, %v247
  %v249 = vpop.f32.mrb[0].mxu0
  %250 = vmatprep.mubr.bf16.mxu0 0
  %251 = vmatmul.mubr.bf16.gmra.mrb[0].mxu0 %v165
  %v252 = vpop.f32.mrb[0].mxu0
  %v253 = vadd.f32 %v65, %v252
  %v254 = vpop.f32.mrb[0].mxu0
  %v255 = vpop.f32.mrb[0].mxu0
  %v256 = vadd.f32 %v65, %v255
  %v257 = vpop.f32.mrb[0].mxu0
  %258 = vmatprep.mubr.bf16.mxu0 0
  %259 = vmatmul.mubr.bf16.gmra.mrb[0].mxu0 %v168
  %v260 = vpop.f32.mrb[0].mxu0
  %v261 = vadd.f32 %v65, %v260
  %v262 = vpop.f32.mrb[0].mxu0
  %v263 = vpop.f32.mrb[0].mxu0
  %v264 = vadd.f32 %v65, %v263
  %v265 = vpop.f32.mrb[0].mxu0
  %266 = vmatprep.mubr.bf16.mxu0 0
  %267 = vmatmul.mubr.bf16.gmra.mrb[0].mxu0 %v171
  %v268 = vpop.f32.mrb[0].mxu0
  %v269 = vadd.f32 %v65, %v268
  %v270 = vpop.f32.mrb[0].mxu0
  %v271 = vpop.f32.mrb[0].mxu0
  %v272 = vadd.f32 %v65, %v271
  %v273 = vpop.f32.mrb[0].mxu0
  %274 = vmatprep.mubr.bf16.mxu0 0
  %275 = vmatmul.mubr.bf16.gmra.mrb[0].mxu0 %v174
  %v276 = vpop.f32.mrb[0].mxu0
  %v277 = vadd.f32 %v65, %v276
  %v278 = vpop.f32.mrb[0].mxu0
  %v279 = vpop.f32.mrb[0].mxu0
  %v280 = vadd.f32 %v65, %v279
  %v281 = vpop.f32.mrb[0].mxu0
  %282 = vmatprep.mubr.bf16.mxu0 0
  %283 = vmatmul.mubr.bf16.gmra.mrb[0].mxu0 %v177
  %v284 = vpop.f32.mrb[0].mxu0
  %v285 = vadd.f32 %v65, %v284
  %v286 = vpop.f32.mrb[0].mxu0
  %v287 = vpop.f32.mrb[0].mxu0
  %v288 = vadd.f32 %v65, %v287
  %v289 = vpop.f32.mrb[0].mxu0
  %290 = vmatprep.mubr.bf16.mxu0 0
  %291 = vmatmul.mubr.bf16.gmra.mrb[0].mxu0 %v180
  %v292 = vpop.f32.mrb[0].mxu0
  %v293 = vadd.f32 %v65, %v292
  %v294 = vpop.f32.mrb[0].mxu0
  %v295 = vpop.f32.mrb[0].mxu0
  %v296 = vadd.f32 %v65, %v295
  %v297 = vpop.f32.mrb[0].mxu0
  %298 = vmatprep.mubr.bf16.mxu0 0
  %299 = vmatmul.mubr.bf16.gmra.mrb[0].mxu0 %v183
  %v300 = vpop.f32.mrb[0].mxu0
  %v301 = vadd.f32 %v65, %v300
  %v302 = vpop.f32.mrb[0].mxu0
  %v303 = vpop.f32.mrb[0].mxu0
  %v304 = vadd.f32 %v65, %v303
  %v305 = vpop.f32.mrb[0].mxu0
  %306 = vmatprep.mubr.bf16.mxu0 0
  %307 = vmatmul.mubr.bf16.gmra.mrb[0].mxu0 %v186
  %v308 = vpop.f32.mrb[0].mxu0
  %v309 = vadd.f32 %v65, %v308
  %v310 = vpop.f32.mrb[0].mxu0
  %v311 = vpop.f32.mrb[0].mxu0
  %v312 = vadd.f32 %v65, %v311
  %v313 = vpop.f32.mrb[0].mxu0
  %314 = vmatprep.mubr.bf16.mxu0 0
  %315 = vmatmul.mubr.bf16.gmra.mrb[0].mxu0 %v189
  %v316 = vpop.f32.mrb[0].mxu0
  %v317 = vadd.f32 %v65, %v316
  %v318 = vpop.f32.mrb[0].mxu0
  %v319 = vpop.f32.mrb[0].mxu0
  %v320 = vadd.f32 %v65, %v319
  %v321 = vpop.f32.mrb[0].mxu0
  %322 = vmatprep.mubr.bf16.mxu0 0
  %323 = vmatmul.mubr.bf16.gmra.mrb[0].mxu0 %v192
  %v324 = vpop.f32.mrb[0].mxu0
  %v325 = vadd.f32 %v65, %v324
  %v326 = vpop.f32.mrb[0].mxu0
  %v327 = vpop.f32.mrb[0].mxu0
  %v328 = vpop.f32.mrb[0].mxu0
  %329 = vdwg.mxu0
  %v330 = vmax.f32 %v229, 0.0
  %v331 = vmax.f32 %v232, 0.0
  %v332 = vmax.f32 %v237, 0.0
  %v333 = vmax.f32 %v240, 0.0
  %v334 = vmax.f32 %v245, 0.0
  %v335 = vmax.f32 %v248, 0.0
  %v336 = vmax.f32 %v253, 0.0
  %v337 = vmax.f32 %v256, 0.0
  %v338 = vmax.f32 %v261, 0.0
  %v339 = vmax.f32 %v264, 0.0
  %v340 = vmax.f32 %v269, 0.0
  %v341 = vmax.f32 %v272, 0.0
  %v342 = vmax.f32 %v277, 0.0
  %v343 = vmax.f32 %v280, 0.0
  %v344 = vmax.f32 %v285, 0.0
  %v345 = vmax.f32 %v288, 0.0
  %v346 = vmax.f32 %v293, 0.0
  %v347 = vmax.f32 %v296, 0.0
  %v348 = vmax.f32 %v301, 0.0
  %v349 = vmax.f32 %v304, 0.0
  %v350 = vmax.f32 %v309, 0.0
  %v351 = vmax.f32 %v312, 0.0
  %v352 = vmax.f32 %v317, 0.0
  %v353 = vmax.f32 %v320, 0.0
  %v354 = vmax.f32 %v325, 0.0
  %vm355 = vcmask 261120
  %356 = vst.msk [vmem:[#allocation2] sm:$0xff] %vm355, %v330
  %357 = vst.msk [vmem:[#allocation2 + $0x8] sm:$0xff] %vm355, %v331
  %358 = vst.msk [vmem:[#allocation2 + $0x10] sm:$0xff] %vm355, %v332
  %359 = vst.msk [vmem:[#allocation2 + $0x18] sm:$0xff] %vm355, %v333
  %360 = vst.msk [vmem:[#allocation2 + $0x20] sm:$0xff] %vm355, %v334
  %361 = vst.msk [vmem:[#allocation2 + $0x28] sm:$0xff] %vm355, %v335
  %362 = vst.msk [vmem:[#allocation2 + $0x30] sm:$0xff] %vm355, %v336
  %363 = vst.msk [vmem:[#allocation2 + $0x38] sm:$0xff] %vm355, %v337
  %364 = vst.msk [vmem:[#allocation2 + $0x40] sm:$0xff] %vm355, %v338
  %365 = vst.msk [vmem:[#allocation2 + $0x48] sm:$0xff] %vm355, %v339
  %366 = vst.msk [vmem:[#allocation2 + $0x50] sm:$0xff] %vm355, %v340
  %367 = vst.msk [vmem:[#allocation2 + $0x58] sm:$0xff] %vm355, %v341
  %368 = vst.msk [vmem:[#allocation2 + $0x60] sm:$0xff] %vm355, %v342
  %369 = vst.msk [vmem:[#allocation2 + $0x68] sm:$0xff] %vm355, %v343
  %370 = vst.msk [vmem:[#allocation2 + $0x70] sm:$0xff] %vm355, %v344
  %371 = vst.msk [vmem:[#allocation2 + $0x78] sm:$0xff] %vm355, %v345
  %372 = vst.msk [vmem:[#allocation2 + $0x80] sm:$0xff] %vm355, %v346
  %373 = vst.msk [vmem:[#allocation2 + $0x88] sm:$0xff] %vm355, %v347
  %374 = vst.msk [vmem:[#allocation2 + $0x90] sm:$0xff] %vm355, %v348
  %375 = vst.msk [vmem:[#allocation2 + $0x98] sm:$0xff] %vm355, %v349
  %376 = vst.msk [vmem:[#allocation2 + $0xa0] sm:$0xff] %vm355, %v350
  %377 = vst.msk [vmem:[#allocation2 + $0xa8] sm:$0xff] %vm355, %v351
  %378 = vst.msk [vmem:[#allocation2 + $0xb0] sm:$0xff] %vm355, %v352
  %379 = vst.msk [vmem:[#allocation2 + $0xb8] sm:$0xff] %vm355, %v353
  %380 = vst.msk [vmem:[#allocation2 + $0xc0] sm:$0xff] %vm355, %v354
  %s381 = scalar_lea.vmem %s0, 100
  %v382 = vld [vmem:[%s381] sm:$0xf]
  %v383 = vld [vmem:[%s381 + $0x4] sm:$0xf]
  %v384 = vld [vmem:[%s381 + $0x8] sm:$0xf]
  %v385 = vld [vmem:[%s381 + $0xc] sm:$0xf]
  %v386 = vld [vmem:[%s381 + $0x10] sm:$0xf]
  %v387 = vld [vmem:[%s381 + $0x14] sm:$0xf]
  %v388 = vld [vmem:[%s381 + $0x18] sm:$0xf]
  %v389 = vld [vmem:[%s381 + $0x1c] sm:$0xf]
  %v390 = vld [vmem:[%s381 + $0x20] sm:$0xf]
  %v391 = vld [vmem:[%s381 + $0x24] sm:$0xf]
  %v392 = vld [vmem:[%s381 + $0x28] sm:$0xf]
  %v393 = vld [vmem:[%s381 + $0x2c] sm:$0xf]
  %v394 = vld [vmem:[%s381 + $0x30] sm:$0xf]
  %v395 = vld [vmem:[%s381 + $0x34] sm:$0xf]
  %v396 = vld [vmem:[%s381 + $0x38] sm:$0xf]
  %v397 = vld [vmem:[%s381 + $0x3c] sm:$0xf]
  %v398 = vld [vmem:[%s381 + $0x40] sm:$0xf]
  %v399 = vld [vmem:[%s381 + $0x44] sm:$0xf]
  %v400 = vld [vmem:[%s381 + $0x48] sm:$0xf]
  %v401 = vld [vmem:[%s381 + $0x4c] sm:$0xf]
  %v402 = vld [vmem:[%s381 + $0x50] sm:$0xf]
  %v403 = vld [vmem:[%s381 + $0x54] sm:$0xf]
  %v404 = vld [vmem:[%s381 + $0x58] sm:$0xf]
  %v405 = vld [vmem:[%s381 + $0x5c] sm:$0xf]
  %v406 = vld [vmem:[%s381 + $0x60] sm:$0xf]
  %v432 = vunpack.c.l.b16 %v382
  %v433 = vunpack.c.l.b16 %v383
  %v434 = vunpack.c.l.b16 %v384
  %v435 = vunpack.c.l.b16 %v385
  %v436 = vunpack.c.l.b16 %v386
  %v437 = vunpack.c.l.b16 %v387
  %v438 = vunpack.c.l.b16 %v388
  %v439 = vunpack.c.l.b16 %v389
  %v440 = vunpack.c.l.b16 %v390
  %v441 = vunpack.c.l.b16 %v391
  %v442 = vunpack.c.l.b16 %v392
  %v443 = vunpack.c.l.b16 %v393
  %v444 = vunpack.c.l.b16 %v394
  %v445 = vunpack.c.l.b16 %v395
  %v446 = vunpack.c.l.b16 %v396
  %v447 = vunpack.c.l.b16 %v397
  %v448 = vunpack.c.l.b16 %v398
  %v449 = vunpack.c.l.b16 %v399
  %v450 = vunpack.c.l.b16 %v400
  %v451 = vunpack.c.l.b16 %v401
  %v452 = vunpack.c.l.b16 %v402
  %v453 = vunpack.c.l.b16 %v403
  %v454 = vunpack.c.l.b16 %v404
  %v455 = vunpack.c.l.b16 %v405
  %v456 = vunpack.c.l.b16 %v406
  %v457 = vpack.c.b16 %v433, %v432
  %v458 = vpack.c.b16 %v435, %v434
  %v459 = vpack.c.b16 %v437, %v436
  %v460 = vpack.c.b16 %v439, %v438
  %v461 = vpack.c.b16 %v441, %v440
  %v462 = vpack.c.b16 %v443, %v442
  %v463 = vpack.c.b16 %v445, %v444
  %v464 = vpack.c.b16 %v447, %v446
  %v465 = vpack.c.b16 %v449, %v448
  %v466 = vpack.c.b16 %v451, %v450
  %v467 = vpack.c.b16 %v453, %v452
  %v468 = vpack.c.b16 %v455, %v454
  %v469 = vpack.c.b16 %v456, %v456
  %v471 = vsel %vm154, %v457, 0
  %v474 = vsel %vm154, %v458, 0
  %v477 = vsel %vm154, %v459, 0
  %v480 = vsel %vm154, %v460, 0
  %v483 = vsel %vm154, %v461, 0
  %v486 = vsel %vm154, %v462, 0
  %v489 = vsel %vm154, %v463, 0
  %v492 = vsel %vm154, %v464, 0
  %v495 = vsel %vm154, %v465, 0
  %v498 = vsel %vm154, %v466, 0
  %v501 = vsel %vm154, %v467, 0
  %v504 = vsel %vm154, %v468, 0
  %v507 = vsel %vm154, %v469, 0
  %509 = vmatprep.subr.bf16.mxu0 0
  %510 = vmatpush1.bf16.msra.mxu0 %v146
  %511 = vmatprep.subr.bf16.mxu0 0
  %512 = vmatpush1.bf16.msra.mxu0 %v147
  %513 = vmatprep.subr.bf16.mxu0 0
  %514 = vmatpush1.bf16.msra.mxu0 %v148
  %515 = vmatprep.subr.bf16.mxu0 0
  %516 = vmatpush1.bf16.msra.mxu0 %v149
  %517 = vmatprep.subr.bf16.mxu0 0
  %518 = vmatpush1.bf16.msra.mxu0 0
  %519 = vmatprep.subr.bf16.mxu0 0
  %520 = vmatpush1.bf16.msra.mxu0 0
  %521 = vmatprep.subr.bf16.mxu0 0
  %522 = vmatpush1.bf16.msra.mxu0 0
  %523 = vmatprep.subr.bf16.mxu0 0
  %524 = vmatpush1.bf16.msra.mxu0 0
  %525 = vmatprep.subr.bf16.mxu0 0
  %526 = vmatpush1.bf16.msra.mxu0 0
  %527 = vmatprep.subr.bf16.mxu0 0
  %528 = vmatpush1.bf16.msra.mxu0 0
  %529 = vmatprep.subr.bf16.mxu0 0
  %530 = vmatpush1.bf16.msra.mxu0 0
  %531 = vmatprep.subr.bf16.mxu0 0
  %532 = vmatpush1.bf16.msra.mxu0 0
  %533 = vmatprep.subr.bf16.mxu0 0
  %534 = vmatpush1.bf16.msra.mxu0 0
  %535 = vmatprep.subr.bf16.mxu0 0
  %536 = vmatpush1.bf16.msra.mxu0 0
  %537 = vmatprep.subr.bf16.mxu0 0
  %538 = vmatpush1.bf16.msra.mxu0 0
  %539 = vmatprep.subr.bf16.mxu0 0
  %540 = vmatpush1.bf16.msra.mxu0 0
  %541 = vmatprep.mubr.bf16.mxu0 0
  %542 = vmatmul.mubr.bf16.gmra.mrb[0].mxu0 %v471
  %v543 = vpop.f32.mrb[0].mxu0
  %v544 = vadd.f32 %v65, %v543
  %v545 = vpop.f32.mrb[0].mxu0
  %v546 = vpop.f32.mrb[0].mxu0
  %v547 = vadd.f32 %v65, %v546
  %v548 = vpop.f32.mrb[0].mxu0
  %549 = vmatprep.mubr.bf16.mxu0 0
  %550 = vmatmul.mubr.bf16.gmra.mrb[0].mxu0 %v474
  %v551 = vpop.f32.mrb[0].mxu0
  %v552 = vadd.f32 %v65, %v551
  %v553 = vpop.f32.mrb[0].mxu0
  %v554 = vpop.f32.mrb[0].mxu0
  %v555 = vadd.f32 %v65, %v554
  %v556 = vpop.f32.mrb[0].mxu0
  %557 = vmatprep.mubr.bf16.mxu0 0
  %558 = vmatmul.mubr.bf16.gmra.mrb[0].mxu0 %v477
  %v559 = vpop.f32.mrb[0].mxu0
  %v560 = vadd.f32 %v65, %v559
  %v561 = vpop.f32.mrb[0].mxu0
  %v562 = vpop.f32.mrb[0].mxu0
  %v563 = vadd.f32 %v65, %v562
  %v564 = vpop.f32.mrb[0].mxu0
  %565 = vmatprep.mubr.bf16.mxu0 0
  %566 = vmatmul.mubr.bf16.gmra.mrb[0].mxu0 %v480
  %v567 = vpop.f32.mrb[0].mxu0
  %v568 = vadd.f32 %v65, %v567
  %v569 = vpop.f32.mrb[0].mxu0
  %v570 = vpop.f32.mrb[0].mxu0
  %v571 = vadd.f32 %v65, %v570
  %v572 = vpop.f32.mrb[0].mxu0
  %573 = vmatprep.mubr.bf16.mxu0 0
  %574 = vmatmul.mubr.bf16.gmra.mrb[0].mxu0 %v483
  %v575 = vpop.f32.mrb[0].mxu0
  %v576 = vadd.f32 %v65, %v575
  %v577 = vpop.f32.mrb[0].mxu0
  %v578 = vpop.f32.mrb[0].mxu0
  %v579 = vadd.f32 %v65, %v578
  %v580 = vpop.f32.mrb[0].mxu0
  %581 = vmatprep.mubr.bf16.mxu0 0
  %582 = vmatmul.mubr.bf16.gmra.mrb[0].mxu0 %v486
  %v583 = vpop.f32.mrb[0].mxu0
  %v584 = vadd.f32 %v65, %v583
  %v585 = vpop.f32.mrb[0].mxu0
  %v586 = vpop.f32.mrb[0].mxu0
  %v587 = vadd.f32 %v65, %v586
  %v588 = vpop.f32.mrb[0].mxu0
  %589 = vmatprep.mubr.bf16.mxu0 0
  %590 = vmatmul.mubr.bf16.gmra.mrb[0].mxu0 %v489
  %v591 = vpop.f32.mrb[0].mxu0
  %v592 = vadd.f32 %v65, %v591
  %v593 = vpop.f32.mrb[0].mxu0
  %v594 = vpop.f32.mrb[0].mxu0
  %v595 = vadd.f32 %v65, %v594
  %v596 = vpop.f32.mrb[0].mxu0
  %597 = vmatprep.mubr.bf16.mxu0 0
  %598 = vmatmul.mubr.bf16.gmra.mrb[0].mxu0 %v492
  %v599 = vpop.f32.mrb[0].mxu0
  %v600 = vadd.f32 %v65, %v599
  %v601 = vpop.f32.mrb[0].mxu0
  %v602 = vpop.f32.mrb[0].mxu0
  %v603 = vadd.f32 %v65, %v602
  %v604 = vpop.f32.mrb[0].mxu0
  %605 = vmatprep.mubr.bf16.mxu0 0
  %606 = vmatmul.mubr.bf16.gmra.mrb[0].mxu0 %v495
  %v607 = vpop.f32.mrb[0].mxu0
  %v608 = vadd.f32 %v65, %v607
  %v609 = vpop.f32.mrb[0].mxu0
  %v610 = vpop.f32.mrb[0].mxu0
  %v611 = vadd.f32 %v65, %v610
  %v612 = vpop.f32.mrb[0].mxu0
  %613 = vmatprep.mubr.bf16.mxu0 0
  %614 = vmatmul.mubr.bf16.gmra.mrb[0].mxu0 %v498
  %v615 = vpop.f32.mrb[0].mxu0
  %v616 = vadd.f32 %v65, %v615
  %v617 = vpop.f32.mrb[0].mxu0
  %v618 = vpop.f32.mrb[0].mxu0
  %v619 = vadd.f32 %v65, %v618
  %v620 = vpop.f32.mrb[0].mxu0
  %621 = vmatprep.mubr.bf16.mxu0 0
  %622 = vmatmul.mubr.bf16.gmra.mrb[0].mxu0 %v501
  %v623 = vpop.f32.mrb[0].mxu0
  %v624 = vadd.f32 %v65, %v623
  %v625 = vpop.f32.mrb[0].mxu0
  %v626 = vpop.f32.mrb[0].mxu0
  %v627 = vadd.f32 %v65, %v626
  %v628 = vpop.f32.mrb[0].mxu0
  %629 = vmatprep.mubr.bf16.mxu0 0
  %630 = vmatmul.mubr.bf16.gmra.mrb[0].mxu0 %v504
  %v631 = vpop.f32.mrb[0].mxu0
  %v632 = vadd.f32 %v65, %v631
  %v633 = vpop.f32.mrb[0].mxu0
  %v634 = vpop.f32.mrb[0].mxu0
  %v635 = vadd.f32 %v65, %v634
  %v636 = vpop.f32.mrb[0].mxu0
  %637 = vmatprep.mubr.bf16.mxu0 0
  %638 = vmatmul.mubr.bf16.gmra.mrb[0].mxu0 %v507
  %v639 = vpop.f32.mrb[0].mxu0
  %v640 = vadd.f32 %v65, %v639
  %v641 = vpop.f32.mrb[0].mxu0
  %v642 = vpop.f32.mrb[0].mxu0
  %v643 = vpop.f32.mrb[0].mxu0
  %644 = vdwg.mxu0
  %v645 = vmax.f32 %v544, 0.0
  %v646 = vmax.f32 %v547, 0.0
  %v647 = vmax.f32 %v552, 0.0
  %v648 = vmax.f32 %v555, 0.0
  %v649 = vmax.f32 %v560, 0.0
  %v650 = vmax.f32 %v563, 0.0
  %v651 = vmax.f32 %v568, 0.0
  %v652 = vmax.f32 %v571, 0.0
  %v653 = vmax.f32 %v576, 0.0
  %v654 = vmax.f32 %v579, 0.0
  %v655 = vmax.f32 %v584, 0.0
  %v656 = vmax.f32 %v587, 0.0
  %v657 = vmax.f32 %v592, 0.0
  %v658 = vmax.f32 %v595, 0.0
  %v659 = vmax.f32 %v600, 0.0
  %v660 = vmax.f32 %v603, 0.0
  %v661 = vmax.f32 %v608, 0.0
  %v662 = vmax.f32 %v611, 0.0
  %v663 = vmax.f32 %v616, 0.0
  %v664 = vmax.f32 %v619, 0.0
  %v665 = vmax.f32 %v624, 0.0
  %v666 = vmax.f32 %v627, 0.0
  %v667 = vmax.f32 %v632, 0.0
  %v668 = vmax.f32 %v635, 0.0
  %v669 = vmax.f32 %v640, 0.0
  %670 = vst.msk [vmem:[#allocation2 + $0xc8] sm:$0xff] %vm355, %v645
  %671 = vst.msk [vmem:[#allocation2 + $0xd0] sm:$0xff] %vm355, %v646
  %672 = vst.msk [vmem:[#allocation2 + $0xd8] sm:$0xff] %vm355, %v647
  %673 = vst.msk [vmem:[#allocation2 + $0xe0] sm:$0xff] %vm355, %v648
  %674 = vst.msk [vmem:[#allocation2 + $0xe8] sm:$0xff] %vm355, %v649
  %675 = vst.msk [vmem:[#allocation2 + $0xf0] sm:$0xff] %vm355, %v650
  %676 = vst.msk [vmem:[#allocation2 + $0xf8] sm:$0xff] %vm355, %v651
  %677 = vst.msk [vmem:[#allocation2 + $0x100] sm:$0xff] %vm355, %v652
  %678 = vst.msk [vmem:[#allocation2 + $0x108] sm:$0xff] %vm355, %v653
  %679 = vst.msk [vmem:[#allocation2 + $0x110] sm:$0xff] %vm355, %v654
  %680 = vst.msk [vmem:[#allocation2 + $0x118] sm:$0xff] %vm355, %v655
  %681 = vst.msk [vmem:[#allocation2 + $0x120] sm:$0xff] %vm355, %v656
  %682 = vst.msk [vmem:[#allocation2 + $0x128] sm:$0xff] %vm355, %v657
  %683 = vst.msk [vmem:[#allocation2 + $0x130] sm:$0xff] %vm355, %v658
  %684 = vst.msk [vmem:[#allocation2 + $0x138] sm:$0xff] %vm355, %v659
  %685 = vst.msk [vmem:[#allocation2 + $0x140] sm:$0xff] %vm355, %v660
  %686 = vst.msk [vmem:[#allocation2 + $0x148] sm:$0xff] %vm355, %v661
  %687 = vst.msk [vmem:[#allocation2 + $0x150] sm:$0xff] %vm355, %v662
  %688 = vst.msk [vmem:[#allocation2 + $0x158] sm:$0xff] %vm355, %v663
  %689 = vst.msk [vmem:[#allocation2 + $0x160] sm:$0xff] %vm355, %v664
  %690 = vst.msk [vmem:[#allocation2 + $0x168] sm:$0xff] %vm355, %v665
  %691 = vst.msk [vmem:[#allocation2 + $0x170] sm:$0xff] %vm355, %v666
  %692 = vst.msk [vmem:[#allocation2 + $0x178] sm:$0xff] %vm355, %v667
  %693 = vst.msk [vmem:[#allocation2 + $0x180] sm:$0xff] %vm355, %v668
  %694 = vst.msk [vmem:[#allocation2 + $0x188] sm:$0xff] %vm355, %v669
  %s695 = scalar_lea.vmem %s0, 200
  %v696 = vld [vmem:[%s695] sm:$0xf]
  %v697 = vld [vmem:[%s695 + $0x4] sm:$0xf]
  %v698 = vld [vmem:[%s695 + $0x8] sm:$0xf]
  %v699 = vld [vmem:[%s695 + $0xc] sm:$0xf]
  %v700 = vld [vmem:[%s695 + $0x10] sm:$0xf]
  %v701 = vld [vmem:[%s695 + $0x14] sm:$0xf]
  %v702 = vld [vmem:[%s695 + $0x18] sm:$0xf]
  %v703 = vld [vmem:[%s695 + $0x1c] sm:$0xf]
  %v704 = vld [vmem:[%s695 + $0x20] sm:$0xf]
  %v705 = vld [vmem:[%s695 + $0x24] sm:$0xf]
  %v706 = vld [vmem:[%s695 + $0x28] sm:$0xf]
  %v707 = vld [vmem:[%s695 + $0x2c] sm:$0xf]
  %v708 = vld [vmem:[%s695 + $0x30] sm:$0xf]
  %v709 = vld [vmem:[%s695 + $0x34] sm:$0xf]
  %v710 = vld [vmem:[%s695 + $0x38] sm:$0xf]
  %v711 = vld [vmem:[%s695 + $0x3c] sm:$0xf]
  %v712 = vld [vmem:[%s695 + $0x40] sm:$0xf]
  %v713 = vld [vmem:[%s695 + $0x44] sm:$0xf]
  %v714 = vld [vmem:[%s695 + $0x48] sm:$0xf]
  %v715 = vld [vmem:[%s695 + $0x4c] sm:$0xf]
  %v716 = vld [vmem:[%s695 + $0x50] sm:$0xf]
  %v717 = vld [vmem:[%s695 + $0x54] sm:$0xf]
  %v718 = vld [vmem:[%s695 + $0x58] sm:$0xf]
  %v719 = vld [vmem:[%s695 + $0x5c] sm:$0xf]
  %v720 = vld [vmem:[%s695 + $0x60] sm:$0xf]
  %v746 = vunpack.c.l.b16 %v696
  %v747 = vunpack.c.l.b16 %v697
  %v748 = vunpack.c.l.b16 %v698
  %v749 = vunpack.c.l.b16 %v699
  %v750 = vunpack.c.l.b16 %v700
  %v751 = vunpack.c.l.b16 %v701
  %v752 = vunpack.c.l.b16 %v702
  %v753 = vunpack.c.l.b16 %v703
  %v754 = vunpack.c.l.b16 %v704
  %v755 = vunpack.c.l.b16 %v705
  %v756 = vunpack.c.l.b16 %v706
  %v757 = vunpack.c.l.b16 %v707
  %v758 = vunpack.c.l.b16 %v708
  %v759 = vunpack.c.l.b16 %v709
  %v760 = vunpack.c.l.b16 %v710
  %v761 = vunpack.c.l.b16 %v711
  %v762 = vunpack.c.l.b16 %v712
  %v763 = vunpack.c.l.b16 %v713
  %v764 = vunpack.c.l.b16 %v714
  %v765 = vunpack.c.l.b16 %v715
  %v766 = vunpack.c.l.b16 %v716
  %v767 = vunpack.c.l.b16 %v717
  %v768 = vunpack.c.l.b16 %v718
  %v769 = vunpack.c.l.b16 %v719
  %v770 = vunpack.c.l.b16 %v720
  %v771 = vpack.c.b16 %v747, %v746
  %v772 = vpack.c.b16 %v749, %v748
  %v773 = vpack.c.b16 %v751, %v750
  %v774 = vpack.c.b16 %v753, %v752
  %v775 = vpack.c.b16 %v755, %v754
  %v776 = vpack.c.b16 %v757, %v756
  %v777 = vpack.c.b16 %v759, %v758
  %v778 = vpack.c.b16 %v761, %v760
  %v779 = vpack.c.b16 %v763, %v762
  %v780 = vpack.c.b16 %v765, %v764
  %v781 = vpack.c.b16 %v767, %v766
  %v782 = vpack.c.b16 %v769, %v768
  %v783 = vpack.c.b16 %v770, %v770
  %v785 = vsel %vm154, %v771, 0
  %v788 = vsel %vm154, %v772, 0
  %v791 = vsel %vm154, %v773, 0
  %v794 = vsel %vm154, %v774, 0
  %v797 = vsel %vm154, %v775, 0
  %v800 = vsel %vm154, %v776, 0
  %v803 = vsel %vm154, %v777, 0
  %v806 = vsel %vm154, %v778, 0
  %v809 = vsel %vm154, %v779, 0
  %v812 = vsel %vm154, %v780, 0
  %v815 = vsel %vm154, %v781, 0
  %v818 = vsel %vm154, %v782, 0
  %v821 = vsel %vm154, %v783, 0
  %823 = vmatprep.subr.bf16.mxu0 0
  %824 = vmatpush1.bf16.msra.mxu0 %v146
  %825 = vmatprep.subr.bf16.mxu0 0
  %826 = vmatpush1.bf16.msra.mxu0 %v147
  %827 = vmatprep.subr.bf16.mxu0 0
  %828 = vmatpush1.bf16.msra.mxu0 %v148
  %829 = vmatprep.subr.bf16.mxu0 0
  %830 = vmatpush1.bf16.msra.mxu0 %v149
  %831 = vmatprep.subr.bf16.mxu0 0
  %832 = vmatpush1.bf16.msra.mxu0 0
  %833 = vmatprep.subr.bf16.mxu0 0
  %834 = vmatpush1.bf16.msra.mxu0 0
  %835 = vmatprep.subr.bf16.mxu0 0
  %836 = vmatpush1.bf16.msra.mxu0 0
  %837 = vmatprep.subr.bf16.mxu0 0
  %838 = vmatpush1.bf16.msra.mxu0 0
  %839 = vmatprep.subr.bf16.mxu0 0
  %840 = vmatpush1.bf16.msra.mxu0 0
  %841 = vmatprep.subr.bf16.mxu0 0
  %842 = vmatpush1.bf16.msra.mxu0 0
  %843 = vmatprep.subr.bf16.mxu0 0
  %844 = vmatpush1.bf16.msra.mxu0 0
  %845 = vmatprep.subr.bf16.mxu0 0
  %846 = vmatpush1.bf16.msra.mxu0 0
  %847 = vmatprep.subr.bf16.mxu0 0
  %848 = vmatpush1.bf16.msra.mxu0 0
  %849 = vmatprep.subr.bf16.mxu0 0
  %850 = vmatpush1.bf16.msra.mxu0 0
  %851 = vmatprep.subr.bf16.mxu0 0
  %852 = vmatpush1.bf16.msra.mxu0 0
  %853 = vmatprep.subr.bf16.mxu0 0
  %854 = vmatpush1.bf16.msra.mxu0 0
  %855 = vmatprep.mubr.bf16.mxu0 0
  %856 = vmatmul.mubr.bf16.gmra.mrb[0].mxu0 %v785
  %v857 = vpop.f32.mrb[0].mxu0
  %v858 = vadd.f32 %v65, %v857
  %v859 = vpop.f32.mrb[0].mxu0
  %v860 = vpop.f32.mrb[0].mxu0
  %v861 = vadd.f32 %v65, %v860
  %v862 = vpop.f32.mrb[0].mxu0
  %863 = vmatprep.mubr.bf16.mxu0 0
  %864 = vmatmul.mubr.bf16.gmra.mrb[0].mxu0 %v788
  %v865 = vpop.f32.mrb[0].mxu0
  %v866 = vadd.f32 %v65, %v865
  %v867 = vpop.f32.mrb[0].mxu0
  %v868 = vpop.f32.mrb[0].mxu0
  %v869 = vadd.f32 %v65, %v868
  %v870 = vpop.f32.mrb[0].mxu0
  %871 = vmatprep.mubr.bf16.mxu0 0
  %872 = vmatmul.mubr.bf16.gmra.mrb[0].mxu0 %v791
  %v873 = vpop.f32.mrb[0].mxu0
  %v874 = vadd.f32 %v65, %v873
  %v875 = vpop.f32.mrb[0].mxu0
  %v876 = vpop.f32.mrb[0].mxu0
  %v877 = vadd.f32 %v65, %v876
  %v878 = vpop.f32.mrb[0].mxu0
  %879 = vmatprep.mubr.bf16.mxu0 0
  %880 = vmatmul.mubr.bf16.gmra.mrb[0].mxu0 %v794
  %v881 = vpop.f32.mrb[0].mxu0
  %v882 = vadd.f32 %v65, %v881
  %v883 = vpop.f32.mrb[0].mxu0
  %v884 = vpop.f32.mrb[0].mxu0
  %v885 = vadd.f32 %v65, %v884
  %v886 = vpop.f32.mrb[0].mxu0
  %887 = vmatprep.mubr.bf16.mxu0 0
  %888 = vmatmul.mubr.bf16.gmra.mrb[0].mxu0 %v797
  %v889 = vpop.f32.mrb[0].mxu0
  %v890 = vadd.f32 %v65, %v889
  %v891 = vpop.f32.mrb[0].mxu0
  %v892 = vpop.f32.mrb[0].mxu0
  %v893 = vadd.f32 %v65, %v892
  %v894 = vpop.f32.mrb[0].mxu0
  %895 = vmatprep.mubr.bf16.mxu0 0
  %896 = vmatmul.mubr.bf16.gmra.mrb[0].mxu0 %v800
  %v897 = vpop.f32.mrb[0].mxu0
  %v898 = vadd.f32 %v65, %v897
  %v899 = vpop.f32.mrb[0].mxu0
  %v900 = vpop.f32.mrb[0].mxu0
  %v901 = vadd.f32 %v65, %v900
  %v902 = vpop.f32.mrb[0].mxu0
  %903 = vmatprep.mubr.bf16.mxu0 0
  %904 = vmatmul.mubr.bf16.gmra.mrb[0].mxu0 %v803
  %v905 = vpop.f32.mrb[0].mxu0
  %v906 = vadd.f32 %v65, %v905
  %v907 = vpop.f32.mrb[0].mxu0
  %v908 = vpop.f32.mrb[0].mxu0
  %v909 = vadd.f32 %v65, %v908
  %v910 = vpop.f32.mrb[0].mxu0
  %911 = vmatprep.mubr.bf16.mxu0 0
  %912 = vmatmul.mubr.bf16.gmra.mrb[0].mxu0 %v806
  %v913 = vpop.f32.mrb[0].mxu0
  %v914 = vadd.f32 %v65, %v913
  %v915 = vpop.f32.mrb[0].mxu0
  %v916 = vpop.f32.mrb[0].mxu0
  %v917 = vadd.f32 %v65, %v916
  %v918 = vpop.f32.mrb[0].mxu0
  %919 = vmatprep.mubr.bf16.mxu0 0
  %920 = vmatmul.mubr.bf16.gmra.mrb[0].mxu0 %v809
  %v921 = vpop.f32.mrb[0].mxu0
  %v922 = vadd.f32 %v65, %v921
  %v923 = vpop.f32.mrb[0].mxu0
  %v924 = vpop.f32.mrb[0].mxu0
  %v925 = vadd.f32 %v65, %v924
  %v926 = vpop.f32.mrb[0].mxu0
  %927 = vmatprep.mubr.bf16.mxu0 0
  %928 = vmatmul.mubr.bf16.gmra.mrb[0].mxu0 %v812
  %v929 = vpop.f32.mrb[0].mxu0
  %v930 = vadd.f32 %v65, %v929
  %v931 = vpop.f32.mrb[0].mxu0
  %v932 = vpop.f32.mrb[0].mxu0
  %v933 = vadd.f32 %v65, %v932
  %v934 = vpop.f32.mrb[0].mxu0
  %935 = vmatprep.mubr.bf16.mxu0 0
  %936 = vmatmul.mubr.bf16.gmra.mrb[0].mxu0 %v815
  %v937 = vpop.f32.mrb[0].mxu0
  %v938 = vadd.f32 %v65, %v937
  %v939 = vpop.f32.mrb[0].mxu0
  %v940 = vpop.f32.mrb[0].mxu0
  %v941 = vadd.f32 %v65, %v940
  %v942 = vpop.f32.mrb[0].mxu0
  %943 = vmatprep.mubr.bf16.mxu0 0
  %944 = vmatmul.mubr.bf16.gmra.mrb[0].mxu0 %v818
  %v945 = vpop.f32.mrb[0].mxu0
  %v946 = vadd.f32 %v65, %v945
  %v947 = vpop.f32.mrb[0].mxu0
  %v948 = vpop.f32.mrb[0].mxu0
  %v949 = vadd.f32 %v65, %v948
  %v950 = vpop.f32.mrb[0].mxu0
  %951 = vmatprep.mubr.bf16.mxu0 0
  %952 = vmatmul.mubr.bf16.gmra.mrb[0].mxu0 %v821
  %v953 = vpop.f32.mrb[0].mxu0
  %v954 = vadd.f32 %v65, %v953
  %v955 = vpop.f32.mrb[0].mxu0
  %v956 = vpop.f32.mrb[0].mxu0
  %v957 = vpop.f32.mrb[0].mxu0
  %958 = vdwg.mxu0
  %v959 = vmax.f32 %v858, 0.0
  %v960 = vmax.f32 %v861, 0.0
  %v961 = vmax.f32 %v866, 0.0
  %v962 = vmax.f32 %v869, 0.0
  %v963 = vmax.f32 %v874, 0.0
  %v964 = vmax.f32 %v877, 0.0
  %v965 = vmax.f32 %v882, 0.0
  %v966 = vmax.f32 %v885, 0.0
  %v967 = vmax.f32 %v890, 0.0
  %v968 = vmax.f32 %v893, 0.0
  %v969 = vmax.f32 %v898, 0.0
  %v970 = vmax.f32 %v901, 0.0
  %v971 = vmax.f32 %v906, 0.0
  %v972 = vmax.f32 %v909, 0.0
  %v973 = vmax.f32 %v914, 0.0
  %v974 = vmax.f32 %v917, 0.0
  %v975 = vmax.f32 %v922, 0.0
  %v976 = vmax.f32 %v925, 0.0
  %v977 = vmax.f32 %v930, 0.0
  %v978 = vmax.f32 %v933, 0.0
  %v979 = vmax.f32 %v938, 0.0
  %v980 = vmax.f32 %v941, 0.0
  %v981 = vmax.f32 %v946, 0.0
  %v982 = vmax.f32 %v949, 0.0
  %v983 = vmax.f32 %v954, 0.0
  %984 = vst.msk [vmem:[#allocation2 + $0x190] sm:$0xff] %vm355, %v959
  %985 = vst.msk [vmem:[#allocation2 + $0x198] sm:$0xff] %vm355, %v960
  %986 = vst.msk [vmem:[#allocation2 + $0x1a0] sm:$0xff] %vm355, %v961
  %987 = vst.msk [vmem:[#allocation2 + $0x1a8] sm:$0xff] %vm355, %v962
  %988 = vst.msk [vmem:[#allocation2 + $0x1b0] sm:$0xff] %vm355, %v963
  %989 = vst.msk [vmem:[#allocation2 + $0x1b8] sm:$0xff] %vm355, %v964
  %990 = vst.msk [vmem:[#allocation2 + $0x1c0] sm:$0xff] %vm355, %v965
  %991 = vst.msk [vmem:[#allocation2 + $0x1c8] sm:$0xff] %vm355, %v966
  %992 = vst.msk [vmem:[#allocation2 + $0x1d0] sm:$0xff] %vm355, %v967
  %993 = vst.msk [vmem:[#allocation2 + $0x1d8] sm:$0xff] %vm355, %v968
  %994 = vst.msk [vmem:[#allocation2 + $0x1e0] sm:$0xff] %vm355, %v969
  %995 = vst.msk [vmem:[#allocation2 + $0x1e8] sm:$0xff] %vm355, %v970
  %996 = vst.msk [vmem:[#allocation2 + $0x1f0] sm:$0xff] %vm355, %v971
  %997 = vst.msk [vmem:[#allocation2 + $0x1f8] sm:$0xff] %vm355, %v972
  %998 = vst.msk [vmem:[#allocation2 + $0x200] sm:$0xff] %vm355, %v973
  %999 = vst.msk [vmem:[#allocation2 + $0x208] sm:$0xff] %vm355, %v974
  %1000 = vst.msk [vmem:[#allocation2 + $0x210] sm:$0xff] %vm355, %v975
  %1001 = vst.msk [vmem:[#allocation2 + $0x218] sm:$0xff] %vm355, %v976
  %1002 = vst.msk [vmem:[#allocation2 + $0x220] sm:$0xff] %vm355, %v977
  %1003 = vst.msk [vmem:[#allocation2 + $0x228] sm:$0xff] %vm355, %v978
  %1004 = vst.msk [vmem:[#allocation2 + $0x230] sm:$0xff] %vm355, %v979
  %1005 = vst.msk [vmem:[#allocation2 + $0x238] sm:$0xff] %vm355, %v980
  %1006 = vst.msk [vmem:[#allocation2 + $0x240] sm:$0xff] %vm355, %v981
  %1007 = vst.msk [vmem:[#allocation2 + $0x248] sm:$0xff] %vm355, %v982
  %1008 = vst.msk [vmem:[#allocation2 + $0x250] sm:$0xff] %vm355, %v983
  %s1009 = scalar_lea.vmem %s0, 300
  %v1010 = vld [vmem:[%s1009] sm:$0xf]
  %v1011 = vld [vmem:[%s1009 + $0x4] sm:$0xf]
  %v1012 = vld [vmem:[%s1009 + $0x8] sm:$0xf]
  %v1013 = vld [vmem:[%s1009 + $0xc] sm:$0xf]
  %v1014 = vld [vmem:[%s1009 + $0x10] sm:$0xf]
  %v1015 = vld [vmem:[%s1009 + $0x14] sm:$0xf]
  %v1016 = vld [vmem:[%s1009 + $0x18] sm:$0xf]
  %v1017 = vld [vmem:[%s1009 + $0x1c] sm:$0xf]
  %v1018 = vld [vmem:[%s1009 + $0x20] sm:$0xf]
  %v1019 = vld [vmem:[%s1009 + $0x24] sm:$0xf]
  %v1020 = vld [vmem:[%s1009 + $0x28] sm:$0xf]
  %v1021 = vld [vmem:[%s1009 + $0x2c] sm:$0xf]
  %v1022 = vld [vmem:[%s1009 + $0x30] sm:$0xf]
  %v1023 = vld [vmem:[%s1009 + $0x34] sm:$0xf]
  %v1024 = vld [vmem:[%s1009 + $0x38] sm:$0xf]
  %v1025 = vld [vmem:[%s1009 + $0x3c] sm:$0xf]
  %v1026 = vld [vmem:[%s1009 + $0x40] sm:$0xf]
  %v1027 = vld [vmem:[%s1009 + $0x44] sm:$0xf]
  %v1028 = vld [vmem:[%s1009 + $0x48] sm:$0xf]
  %v1029 = vld [vmem:[%s1009 + $0x4c] sm:$0xf]
  %v1030 = vld [vmem:[%s1009 + $0x50] sm:$0xf]
  %v1031 = vld [vmem:[%s1009 + $0x54] sm:$0xf]
  %v1032 = vld [vmem:[%s1009 + $0x58] sm:$0xf]
  %v1033 = vld [vmem:[%s1009 + $0x5c] sm:$0xf]
  %v1034 = vld [vmem:[%s1009 + $0x60] sm:$0xf]
  %v1060 = vunpack.c.l.b16 %v1010
  %v1061 = vunpack.c.l.b16 %v1011
  %v1062 = vunpack.c.l.b16 %v1012
  %v1063 = vunpack.c.l.b16 %v1013
  %v1064 = vunpack.c.l.b16 %v1014
  %v1065 = vunpack.c.l.b16 %v1015
  %v1066 = vunpack.c.l.b16 %v1016
  %v1067 = vunpack.c.l.b16 %v1017
  %v1068 = vunpack.c.l.b16 %v1018
  %v1069 = vunpack.c.l.b16 %v1019
  %v1070 = vunpack.c.l.b16 %v1020
  %v1071 = vunpack.c.l.b16 %v1021
  %v1072 = vunpack.c.l.b16 %v1022
  %v1073 = vunpack.c.l.b16 %v1023
  %v1074 = vunpack.c.l.b16 %v1024
  %v1075 = vunpack.c.l.b16 %v1025
  %v1076 = vunpack.c.l.b16 %v1026
  %v1077 = vunpack.c.l.b16 %v1027
  %v1078 = vunpack.c.l.b16 %v1028
  %v1079 = vunpack.c.l.b16 %v1029
  %v1080 = vunpack.c.l.b16 %v1030
  %v1081 = vunpack.c.l.b16 %v1031
  %v1082 = vunpack.c.l.b16 %v1032
  %v1083 = vunpack.c.l.b16 %v1033
  %v1084 = vunpack.c.l.b16 %v1034
  %v1085 = vpack.c.b16 %v1061, %v1060
  %v1086 = vpack.c.b16 %v1063, %v1062
  %v1087 = vpack.c.b16 %v1065, %v1064
  %v1088 = vpack.c.b16 %v1067, %v1066
  %v1089 = vpack.c.b16 %v1069, %v1068
  %v1090 = vpack.c.b16 %v1071, %v1070
  %v1091 = vpack.c.b16 %v1073, %v1072
  %v1092 = vpack.c.b16 %v1075, %v1074
  %v1093 = vpack.c.b16 %v1077, %v1076
  %v1094 = vpack.c.b16 %v1079, %v1078
  %v1095 = vpack.c.b16 %v1081, %v1080
  %v1096 = vpack.c.b16 %v1083, %v1082
  %v1097 = vpack.c.b16 %v1084, %v1084
  %v1099 = vsel %vm154, %v1085, 0
  %v1102 = vsel %vm154, %v1086, 0
  %v1105 = vsel %vm154, %v1087, 0
  %v1108 = vsel %vm154, %v1088, 0
  %v1111 = vsel %vm154, %v1089, 0
  %v1114 = vsel %vm154, %v1090, 0
  %v1117 = vsel %vm154, %v1091, 0
  %v1120 = vsel %vm154, %v1092, 0
  %v1123 = vsel %vm154, %v1093, 0
  %v1126 = vsel %vm154, %v1094, 0
  %v1129 = vsel %vm154, %v1095, 0
  %v1132 = vsel %vm154, %v1096, 0
  %v1135 = vsel %vm154, %v1097, 0
  %1137 = vmatprep.subr.bf16.mxu0 0
  %1138 = vmatpush1.bf16.msra.mxu0 %v146
  %1139 = vmatprep.subr.bf16.mxu0 0
  %1140 = vmatpush1.bf16.msra.mxu0 %v147
  %1141 = vmatprep.subr.bf16.mxu0 0
  %1142 = vmatpush1.bf16.msra.mxu0 %v148
  %1143 = vmatprep.subr.bf16.mxu0 0
  %1144 = vmatpush1.bf16.msra.mxu0 %v149
  %1145 = vmatprep.subr.bf16.mxu0 0
  %1146 = vmatpush1.bf16.msra.mxu0 0
  %1147 = vmatprep.subr.bf16.mxu0 0
  %1148 = vmatpush1.bf16.msra.mxu0 0
  %1149 = vmatprep.subr.bf16.mxu0 0
  %1150 = vmatpush1.bf16.msra.mxu0 0
  %1151 = vmatprep.subr.bf16.mxu0 0
  %1152 = vmatpush1.bf16.msra.mxu0 0
  %1153 = vmatprep.subr.bf16.mxu0 0
  %1154 = vmatpush1.bf16.msra.mxu0 0
  %1155 = vmatprep.subr.bf16.mxu0 0
  %1156 = vmatpush1.bf16.msra.mxu0 0
  %1157 = vmatprep.subr.bf16.mxu0 0
  %1158 = vmatpush1.bf16.msra.mxu0 0
  %1159 = vmatprep.subr.bf16.mxu0 0
  %1160 = vmatpush1.bf16.msra.mxu0 0
  %1161 = vmatprep.subr.bf16.mxu0 0
  %1162 = vmatpush1.bf16.msra.mxu0 0
  %1163 = vmatprep.subr.bf16.mxu0 0
  %1164 = vmatpush1.bf16.msra.mxu0 0
  %1165 = vmatprep.subr.bf16.mxu0 0
  %1166 = vmatpush1.bf16.msra.mxu0 0
  %1167 = vmatprep.subr.bf16.mxu0 0
  %1168 = vmatpush1.bf16.msra.mxu0 0
  %1169 = vmatprep.mubr.bf16.mxu0 0
  %1170 = vmatmul.mubr.bf16.gmra.mrb[0].mxu0 %v1099
  %v1171 = vpop.f32.mrb[0].mxu0
  %v1172 = vadd.f32 %v65, %v1171
  %v1173 = vpop.f32.mrb[0].mxu0
  %v1174 = vpop.f32.mrb[0].mxu0
  %v1175 = vadd.f32 %v65, %v1174
  %v1176 = vpop.f32.mrb[0].mxu0
  %1177 = vmatprep.mubr.bf16.mxu0 0
  %1178 = vmatmul.mubr.bf16.gmra.mrb[0].mxu0 %v1102
  %v1179 = vpop.f32.mrb[0].mxu0
  %v1180 = vadd.f32 %v65, %v1179
  %v1181 = vpop.f32.mrb[0].mxu0
  %v1182 = vpop.f32.mrb[0].mxu0
  %v1183 = vadd.f32 %v65, %v1182
  %v1184 = vpop.f32.mrb[0].mxu0
  %1185 = vmatprep.mubr.bf16.mxu0 0
  %1186 = vmatmul.mubr.bf16.gmra.mrb[0].mxu0 %v1105
  %v1187 = vpop.f32.mrb[0].mxu0
  %v1188 = vadd.f32 %v65, %v1187
  %v1189 = vpop.f32.mrb[0].mxu0
  %v1190 = vpop.f32.mrb[0].mxu0
  %v1191 = vadd.f32 %v65, %v1190
  %v1192 = vpop.f32.mrb[0].mxu0
  %1193 = vmatprep.mubr.bf16.mxu0 0
  %1194 = vmatmul.mubr.bf16.gmra.mrb[0].mxu0 %v1108
  %v1195 = vpop.f32.mrb[0].mxu0
  %v1196 = vadd.f32 %v65, %v1195
  %v1197 = vpop.f32.mrb[0].mxu0
  %v1198 = vpop.f32.mrb[0].mxu0
  %v1199 = vadd.f32 %v65, %v1198
  %v1200 = vpop.f32.mrb[0].mxu0
  %1201 = vmatprep.mubr.bf16.mxu0 0
  %1202 = vmatmul.mubr.bf16.gmra.mrb[0].mxu0 %v1111
  %v1203 = vpop.f32.mrb[0].mxu0
  %v1204 = vadd.f32 %v65, %v1203
  %v1205 = vpop.f32.mrb[0].mxu0
  %v1206 = vpop.f32.mrb[0].mxu0
  %v1207 = vadd.f32 %v65, %v1206
  %v1208 = vpop.f32.mrb[0].mxu0
  %1209 = vmatprep.mubr.bf16.mxu0 0
  %1210 = vmatmul.mubr.bf16.gmra.mrb[0].mxu0 %v1114
  %v1211 = vpop.f32.mrb[0].mxu0
  %v1212 = vadd.f32 %v65, %v1211
  %v1213 = vpop.f32.mrb[0].mxu0
  %v1214 = vpop.f32.mrb[0].mxu0
  %v1215 = vadd.f32 %v65, %v1214
  %v1216 = vpop.f32.mrb[0].mxu0
  %1217 = vmatprep.mubr.bf16.mxu0 0
  %1218 = vmatmul.mubr.bf16.gmra.mrb[0].mxu0 %v1117
  %v1219 = vpop.f32.mrb[0].mxu0
  %v1220 = vadd.f32 %v65, %v1219
  %v1221 = vpop.f32.mrb[0].mxu0
  %v1222 = vpop.f32.mrb[0].mxu0
  %v1223 = vadd.f32 %v65, %v1222
  %v1224 = vpop.f32.mrb[0].mxu0
  %1225 = vmatprep.mubr.bf16.mxu0 0
  %1226 = vmatmul.mubr.bf16.gmra.mrb[0].mxu0 %v1120
  %v1227 = vpop.f32.mrb[0].mxu0
  %v1228 = vadd.f32 %v65, %v1227
  %v1229 = vpop.f32.mrb[0].mxu0
  %v1230 = vpop.f32.mrb[0].mxu0
  %v1231 = vadd.f32 %v65, %v1230
  %v1232 = vpop.f32.mrb[0].mxu0
  %1233 = vmatprep.mubr.bf16.mxu0 0
  %1234 = vmatmul.mubr.bf16.gmra.mrb[0].mxu0 %v1123
  %v1235 = vpop.f32.mrb[0].mxu0
  %v1236 = vadd.f32 %v65, %v1235
  %v1237 = vpop.f32.mrb[0].mxu0
  %v1238 = vpop.f32.mrb[0].mxu0
  %v1239 = vadd.f32 %v65, %v1238
  %v1240 = vpop.f32.mrb[0].mxu0
  %1241 = vmatprep.mubr.bf16.mxu0 0
  %1242 = vmatmul.mubr.bf16.gmra.mrb[0].mxu0 %v1126
  %v1243 = vpop.f32.mrb[0].mxu0
  %v1244 = vadd.f32 %v65, %v1243
  %v1245 = vpop.f32.mrb[0].mxu0
  %v1246 = vpop.f32.mrb[0].mxu0
  %v1247 = vadd.f32 %v65, %v1246
  %v1248 = vpop.f32.mrb[0].mxu0
  %1249 = vmatprep.mubr.bf16.mxu0 0
  %1250 = vmatmul.mubr.bf16.gmra.mrb[0].mxu0 %v1129
  %v1251 = vpop.f32.mrb[0].mxu0
  %v1252 = vadd.f32 %v65, %v1251
  %v1253 = vpop.f32.mrb[0].mxu0
  %v1254 = vpop.f32.mrb[0].mxu0
  %v1255 = vadd.f32 %v65, %v1254
  %v1256 = vpop.f32.mrb[0].mxu0
  %1257 = vmatprep.mubr.bf16.mxu0 0
  %1258 = vmatmul.mubr.bf16.gmra.mrb[0].mxu0 %v1132
  %v1259 = vpop.f32.mrb[0].mxu0
  %v1260 = vadd.f32 %v65, %v1259
  %v1261 = vpop.f32.mrb[0].mxu0
  %v1262 = vpop.f32.mrb[0].mxu0
  %v1263 = vadd.f32 %v65, %v1262
  %v1264 = vpop.f32.mrb[0].mxu0
  %1265 = vmatprep.mubr.bf16.mxu0 0
  %1266 = vmatmul.mubr.bf16.gmra.mrb[0].mxu0 %v1135
  %v1267 = vpop.f32.mrb[0].mxu0
  %v1268 = vadd.f32 %v65, %v1267
  %v1269 = vpop.f32.mrb[0].mxu0
  %v1270 = vpop.f32.mrb[0].mxu0
  %v1271 = vpop.f32.mrb[0].mxu0
  %1272 = vdwg.mxu0
  %v1273 = vmax.f32 %v1172, 0.0
  %v1274 = vmax.f32 %v1175, 0.0
  %v1275 = vmax.f32 %v1180, 0.0
  %v1276 = vmax.f32 %v1183, 0.0
  %v1277 = vmax.f32 %v1188, 0.0
  %v1278 = vmax.f32 %v1191, 0.0
  %v1279 = vmax.f32 %v1196, 0.0
  %v1280 = vmax.f32 %v1199, 0.0
  %v1281 = vmax.f32 %v1204, 0.0
  %v1282 = vmax.f32 %v1207, 0.0
  %v1283 = vmax.f32 %v1212, 0.0
  %v1284 = vmax.f32 %v1215, 0.0
  %v1285 = vmax.f32 %v1220, 0.0
  %v1286 = vmax.f32 %v1223, 0.0
  %v1287 = vmax.f32 %v1228, 0.0
  %v1288 = vmax.f32 %v1231, 0.0
  %v1289 = vmax.f32 %v1236, 0.0
  %v1290 = vmax.f32 %v1239, 0.0
  %v1291 = vmax.f32 %v1244, 0.0
  %v1292 = vmax.f32 %v1247, 0.0
  %v1293 = vmax.f32 %v1252, 0.0
  %v1294 = vmax.f32 %v1255, 0.0
  %v1295 = vmax.f32 %v1260, 0.0
  %v1296 = vmax.f32 %v1263, 0.0
  %v1297 = vmax.f32 %v1268, 0.0
  %1298 = vst.msk [vmem:[#allocation2 + $0x258] sm:$0xff] %vm355, %v1273
  %1299 = vst.msk [vmem:[#allocation2 + $0x260] sm:$0xff] %vm355, %v1274
  %1300 = vst.msk [vmem:[#allocation2 + $0x268] sm:$0xff] %vm355, %v1275
  %1301 = vst.msk [vmem:[#allocation2 + $0x270] sm:$0xff] %vm355, %v1276
  %1302 = vst.msk [vmem:[#allocation2 + $0x278] sm:$0xff] %vm355, %v1277
  %1303 = vst.msk [vmem:[#allocation2 + $0x280] sm:$0xff] %vm355, %v1278
  %1304 = vst.msk [vmem:[#allocation2 + $0x288] sm:$0xff] %vm355, %v1279
  %1305 = vst.msk [vmem:[#allocation2 + $0x290] sm:$0xff] %vm355, %v1280
  %1306 = vst.msk [vmem:[#allocation2 + $0x298] sm:$0xff] %vm355, %v1281
  %1307 = vst.msk [vmem:[#allocation2 + $0x2a0] sm:$0xff] %vm355, %v1282
  %1308 = vst.msk [vmem:[#allocation2 + $0x2a8] sm:$0xff] %vm355, %v1283
  %1309 = vst.msk [vmem:[#allocation2 + $0x2b0] sm:$0xff] %vm355, %v1284
  %1310 = vst.msk [vmem:[#allocation2 + $0x2b8] sm:$0xff] %vm355, %v1285
  %1311 = vst.msk [vmem:[#allocation2 + $0x2c0] sm:$0xff] %vm355, %v1286
  %1312 = vst.msk [vmem:[#allocation2 + $0x2c8] sm:$0xff] %vm355, %v1287
  %1313 = vst.msk [vmem:[#allocation2 + $0x2d0] sm:$0xff] %vm355, %v1288
  %1314 = vst.msk [vmem:[#allocation2 + $0x2d8] sm:$0xff] %vm355, %v1289
  %1315 = vst.msk [vmem:[#allocation2 + $0x2e0] sm:$0xff] %vm355, %v1290
  %1316 = vst.msk [vmem:[#allocation2 + $0x2e8] sm:$0xff] %vm355, %v1291
  %1317 = vst.msk [vmem:[#allocation2 + $0x2f0] sm:$0xff] %vm355, %v1292
  %1318 = vst.msk [vmem:[#allocation2 + $0x2f8] sm:$0xff] %vm355, %v1293
  %1319 = vst.msk [vmem:[#allocation2 + $0x300] sm:$0xff] %vm355, %v1294
  %1320 = vst.msk [vmem:[#allocation2 + $0x308] sm:$0xff] %vm355, %v1295
  %1321 = vst.msk [vmem:[#allocation2 + $0x310] sm:$0xff] %vm355, %v1296
  %1322 = vst.msk [vmem:[#allocation2 + $0x318] sm:$0xff] %vm355, %v1297
  %1323 = vst.msk [vmem:[#allocation2 + $0x320] sm:$0xff] %vm355, 0.0
  %1324 = vst.msk [vmem:[#allocation2 + $0x328] sm:$0xff] %vm355, 0.0
  %v1325 = vld [vmem:[#allocation2] sm:$0xff]
  %v1326 = vld [vmem:[#allocation2 + $0x8] sm:$0xff]
  %v1327 = vld [vmem:[#allocation2 + $0x10] sm:$0xff]
  %v1328 = vld [vmem:[#allocation2 + $0x18] sm:$0xff]
  %v1329 = vld [vmem:[#allocation2 + $0x20] sm:$0xff]
  %v1330 = vld [vmem:[#allocation2 + $0x28] sm:$0xff]
  %v1331 = vld [vmem:[#allocation2 + $0x30] sm:$0xff]
  %v1332 = vld [vmem:[#allocation2 + $0x38] sm:$0xff]
  %v1333 = vld [vmem:[#allocation2 + $0x40] sm:$0xff]
  %v1334 = vld [vmem:[#allocation2 + $0x48] sm:$0xff]
  %v1335 = vld [vmem:[#allocation2 + $0x50] sm:$0xff]
  %v1336 = vld [vmem:[#allocation2 + $0x58] sm:$0xff]
  %v1337 = vld [vmem:[#allocation2 + $0x60] sm:$0xff]
  %v1338 = vld [vmem:[#allocation2 + $0x68] sm:$0xff]
  %v1339 = vld [vmem:[#allocation2 + $0x70] sm:$0xff]
  %v1340 = vld [vmem:[#allocation2 + $0x78] sm:$0xff]
  %v1341 = vld [vmem:[#allocation2 + $0x80] sm:$0xff]
  %v1342 = vld [vmem:[#allocation2 + $0x88] sm:$0xff]
  %v1343 = vld [vmem:[#allocation2 + $0x90] sm:$0xff]
  %v1344 = vld [vmem:[#allocation2 + $0x98] sm:$0xff]
  %v1345 = vld [vmem:[#allocation2 + $0xa0] sm:$0xff]
  %v1346 = vld [vmem:[#allocation2 + $0xa8] sm:$0xff]
  %v1347 = vld [vmem:[#allocation2 + $0xb0] sm:$0xff]
  %v1348 = vld [vmem:[#allocation2 + $0xb8] sm:$0xff]
  %v1349 = vld [vmem:[#allocation2 + $0xc0] sm:$0xff]
  %v1350 = vld [vmem:[#allocation2 + $0xc8] sm:$0xff]
  %v1351 = vld [vmem:[#allocation2 + $0xd0] sm:$0xff]
  %v1352 = vld [vmem:[#allocation2 + $0xd8] sm:$0xff]
  %v1353 = vld [vmem:[#allocation2 + $0xe0] sm:$0xff]
  %v1354 = vld [vmem:[#allocation2 + $0xe8] sm:$0xff]
  %v1355 = vld [vmem:[#allocation2 + $0xf0] sm:$0xff]
  %v1356 = vld [vmem:[#allocation2 + $0xf8] sm:$0xff]
  %v1357 = vld [vmem:[#allocation2 + $0x100] sm:$0xff]
  %v1358 = vld [vmem:[#allocation2 + $0x108] sm:$0xff]
  %v1359 = vld [vmem:[#allocation2 + $0x110] sm:$0xff]
  %v1360 = vld [vmem:[#allocation2 + $0x118] sm:$0xff]
  %v1361 = vld [vmem:[#allocation2 + $0x120] sm:$0xff]
  %v1362 = vld [vmem:[#allocation2 + $0x128] sm:$0xff]
  %v1363 = vld [vmem:[#allocation2 + $0x130] sm:$0xff]
  %v1364 = vld [vmem:[#allocation2 + $0x138] sm:$0xff]
  %v1365 = vld [vmem:[#allocation2 + $0x140] sm:$0xff]
  %v1366 = vld [vmem:[#allocation2 + $0x148] sm:$0xff]
  %v1367 = vld [vmem:[#allocation2 + $0x150] sm:$0xff]
  %v1368 = vld [vmem:[#allocation2 + $0x158] sm:$0xff]
  %v1369 = vld [vmem:[#allocation2 + $0x160] sm:$0xff]
  %v1370 = vld [vmem:[#allocation2 + $0x168] sm:$0xff]
  %v1371 = vld [vmem:[#allocation2 + $0x170] sm:$0xff]
  %v1372 = vld [vmem:[#allocation2 + $0x178] sm:$0xff]
  %v1373 = vld [vmem:[#allocation2 + $0x180] sm:$0xff]
  %v1374 = vld [vmem:[#allocation2 + $0x188] sm:$0xff]
  %v1375 = vld [vmem:[#allocation2 + $0x1] sm:$0xff]
  %v1376 = vld [vmem:[#allocation2 + $0x9] sm:$0xff]
  %v1377 = vld [vmem:[#allocation2 + $0x11] sm:$0xff]
  %v1378 = vld [vmem:[#allocation2 + $0x19] sm:$0xff]
  %v1379 = vld [vmem:[#allocation2 + $0x21] sm:$0xff]
  %v1380 = vld [vmem:[#allocation2 + $0x29] sm:$0xff]
  %v1381 = vld [vmem:[#allocation2 + $0x31] sm:$0xff]
  %v1382 = vld [vmem:[#allocation2 + $0x39] sm:$0xff]
  %v1383 = vld [vmem:[#allocation2 + $0x41] sm:$0xff]
  %v1384 = vld [vmem:[#allocation2 + $0x49] sm:$0xff]
  %v1385 = vld [vmem:[#allocation2 + $0x51] sm:$0xff]
  %v1386 = vld [vmem:[#allocation2 + $0x59] sm:$0xff]
  %v1387 = vld [vmem:[#allocation2 + $0x61] sm:$0xff]
  %v1388 = vld [vmem:[#allocation2 + $0x69] sm:$0xff]
  %v1389 = vld [vmem:[#allocation2 + $0x71] sm:$0xff]
  %v1390 = vld [vmem:[#allocation2 + $0x79] sm:$0xff]
  %v1391 = vld [vmem:[#allocation2 + $0x81] sm:$0xff]
  %v1392 = vld [vmem:[#allocation2 + $0x89] sm:$0xff]
  %v1393 = vld [vmem:[#allocation2 + $0x91] sm:$0xff]
  %v1394 = vld [vmem:[#allocation2 + $0x99] sm:$0xff]
  %v1395 = vld [vmem:[#allocation2 + $0xa1] sm:$0xff]
  %v1396 = vld [vmem:[#allocation2 + $0xa9] sm:$0xff]
  %v1397 = vld [vmem:[#allocation2 + $0xb1] sm:$0xff]
  %v1398 = vld [vmem:[#allocation2 + $0xb9] sm:$0xff]
  %v1399 = vld [vmem:[#allocation2 + $0xc1] sm:$0xff]
  %v1400 = vld [vmem:[#allocation2 + $0xc9] sm:$0xff]
  %v1401 = vld [vmem:[#allocation2 + $0xd1] sm:$0xff]
  %v1402 = vld [vmem:[#allocation2 + $0xd9] sm:$0xff]
  %v1403 = vld [vmem:[#allocation2 + $0xe1] sm:$0xff]
  %v1404 = vld [vmem:[#allocation2 + $0xe9] sm:$0xff]
  %v1405 = vld [vmem:[#allocation2 + $0xf1] sm:$0xff]
  %v1406 = vld [vmem:[#allocation2 + $0xf9] sm:$0xff]
  %v1407 = vld [vmem:[#allocation2 + $0x101] sm:$0xff]
  %v1408 = vld [vmem:[#allocation2 + $0x109] sm:$0xff]
  %v1409 = vld [vmem:[#allocation2 + $0x111] sm:$0xff]
  %v1410 = vld [vmem:[#allocation2 + $0x119] sm:$0xff]
  %v1411 = vld [vmem:[#allocation2 + $0x121] sm:$0xff]
  %v1412 = vld [vmem:[#allocation2 + $0x129] sm:$0xff]
  %v1413 = vld [vmem:[#allocation2 + $0x131] sm:$0xff]
  %v1414 = vld [vmem:[#allocation2 + $0x139] sm:$0xff]
  %v1415 = vld [vmem:[#allocation2 + $0x141] sm:$0xff]
  %v1416 = vld [vmem:[#allocation2 + $0x149] sm:$0xff]
  %v1417 = vld [vmem:[#allocation2 + $0x151] sm:$0xff]
  %v1418 = vld [vmem:[#allocation2 + $0x159] sm:$0xff]
  %v1419 = vld [vmem:[#allocation2 + $0x161] sm:$0xff]
  %v1420 = vld [vmem:[#allocation2 + $0x169] sm:$0xff]
  %v1421 = vld [vmem:[#allocation2 + $0x171] sm:$0xff]
  %v1422 = vld [vmem:[#allocation2 + $0x179] sm:$0xff]
  %v1423 = vld [vmem:[#allocation2 + $0x181] sm:$0xff]
  %v1424 = vld [vmem:[#allocation2 + $0x189] sm:$0xff]
  %v1425 = vld [vmem:[#allocation2 + $0x190] sm:$0xff]
  %v1426 = vld [vmem:[#allocation2 + $0x198] sm:$0xff]
  %v1427 = vld [vmem:[#allocation2 + $0x1a0] sm:$0xff]
  %v1428 = vld [vmem:[#allocation2 + $0x1a8] sm:$0xff]
  %v1429 = vld [vmem:[#allocation2 + $0x1b0] sm:$0xff]
  %v1430 = vld [vmem:[#allocation2 + $0x1b8] sm:$0xff]
  %v1431 = vld [vmem:[#allocation2 + $0x1c0] sm:$0xff]
  %v1432 = vld [vmem:[#allocation2 + $0x1c8] sm:$0xff]
  %v1433 = vld [vmem:[#allocation2 + $0x1d0] sm:$0xff]
  %v1434 = vld [vmem:[#allocation2 + $0x1d8] sm:$0xff]
  %v1435 = vld [vmem:[#allocation2 + $0x1e0] sm:$0xff]
  %v1436 = vld [vmem:[#allocation2 + $0x1e8] sm:$0xff]
  %v1437 = vld [vmem:[#allocation2 + $0x1f0] sm:$0xff]
  %v1438 = vld [vmem:[#allocation2 + $0x1f8] sm:$0xff]
  %v1439 = vld [vmem:[#allocation2 + $0x200] sm:$0xff]
  %v1440 = vld [vmem:[#allocation2 + $0x208] sm:$0xff]
  %v1441 = vld [vmem:[#allocation2 + $0x210] sm:$0xff]
  %v1442 = vld [vmem:[#allocation2 + $0x218] sm:$0xff]
  %v1443 = vld [vmem:[#allocation2 + $0x220] sm:$0xff]
  %v1444 = vld [vmem:[#allocation2 + $0x228] sm:$0xff]
  %v1445 = vld [vmem:[#allocation2 + $0x230] sm:$0xff]
  %v1446 = vld [vmem:[#allocation2 + $0x238] sm:$0xff]
  %v1447 = vld [vmem:[#allocation2 + $0x240] sm:$0xff]
  %v1448 = vld [vmem:[#allocation2 + $0x248] sm:$0xff]
  %v1449 = vld [vmem:[#allocation2 + $0x250] sm:$0xff]
  %v1450 = vld [vmem:[#allocation2 + $0x258] sm:$0xff]
  %v1451 = vld [vmem:[#allocation2 + $0x260] sm:$0xff]
  %v1452 = vld [vmem:[#allocation2 + $0x268] sm:$0xff]
  %v1453 = vld [vmem:[#allocation2 + $0x270] sm:$0xff]
  %v1454 = vld [vmem:[#allocation2 + $0x278] sm:$0xff]
  %v1455 = vld [vmem:[#allocation2 + $0x280] sm:$0xff]
  %v1456 = vld [vmem:[#allocation2 + $0x288] sm:$0xff]
  %v1457 = vld [vmem:[#allocation2 + $0x290] sm:$0xff]
  %v1458 = vld [vmem:[#allocation2 + $0x298] sm:$0xff]
  %v1459 = vld [vmem:[#allocation2 + $0x2a0] sm:$0xff]
  %v1460 = vld [vmem:[#allocation2 + $0x2a8] sm:$0xff]
  %v1461 = vld [vmem:[#allocation2 + $0x2b0] sm:$0xff]
  %v1462 = vld [vmem:[#allocation2 + $0x2b8] sm:$0xff]
  %v1463 = vld [vmem:[#allocation2 + $0x2c0] sm:$0xff]
  %v1464 = vld [vmem:[#allocation2 + $0x2c8] sm:$0xff]
  %v1465 = vld [vmem:[#allocation2 + $0x2d0] sm:$0xff]
  %v1466 = vld [vmem:[#allocation2 + $0x2d8] sm:$0xff]
  %v1467 = vld [vmem:[#allocation2 + $0x2e0] sm:$0xff]
  %v1468 = vld [vmem:[#allocation2 + $0x2e8] sm:$0xff]
  %v1469 = vld [vmem:[#allocation2 + $0x2f0] sm:$0xff]
  %v1470 = vld [vmem:[#allocation2 + $0x2f8] sm:$0xff]
  %v1471 = vld [vmem:[#allocation2 + $0x300] sm:$0xff]
  %v1472 = vld [vmem:[#allocation2 + $0x308] sm:$0xff]
  %v1473 = vld [vmem:[#allocation2 + $0x310] sm:$0xff]
  %v1474 = vld [vmem:[#allocation2 + $0x318] sm:$0xff]
  %v1475 = vld [vmem:[#allocation2 + $0x191] sm:$0xff]
  %v1476 = vld [vmem:[#allocation2 + $0x199] sm:$0xff]
  %v1477 = vld [vmem:[#allocation2 + $0x1a1] sm:$0xff]
  %v1478 = vld [vmem:[#allocation2 + $0x1a9] sm:$0xff]
  %v1479 = vld [vmem:[#allocation2 + $0x1b1] sm:$0xff]
  %v1480 = vld [vmem:[#allocation2 + $0x1b9] sm:$0xff]
  %v1481 = vld [vmem:[#allocation2 + $0x1c1] sm:$0xff]
  %v1482 = vld [vmem:[#allocation2 + $0x1c9] sm:$0xff]
  %v1483 = vld [vmem:[#allocation2 + $0x1d1] sm:$0xff]
  %v1484 = vld [vmem:[#allocation2 + $0x1d9] sm:$0xff]
  %v1485 = vld [vmem:[#allocation2 + $0x1e1] sm:$0xff]
  %v1486 = vld [vmem:[#allocation2 + $0x1e9] sm:$0xff]
  %v1487 = vld [vmem:[#allocation2 + $0x1f1] sm:$0xff]
  %v1488 = vld [vmem:[#allocation2 + $0x1f9] sm:$0xff]
  %v1489 = vld [vmem:[#allocation2 + $0x201] sm:$0xff]
  %v1490 = vld [vmem:[#allocation2 + $0x209] sm:$0xff]
  %v1491 = vld [vmem:[#allocation2 + $0x211] sm:$0xff]
  %v1492 = vld [vmem:[#allocation2 + $0x219] sm:$0xff]
  %v1493 = vld [vmem:[#allocation2 + $0x221] sm:$0xff]
  %v1494 = vld [vmem:[#allocation2 + $0x229] sm:$0xff]
  %v1495 = vld [vmem:[#allocation2 + $0x231] sm:$0xff]
  %v1496 = vld [vmem:[#allocation2 + $0x239] sm:$0xff]
  %v1497 = vld [vmem:[#allocation2 + $0x241] sm:$0xff]
  %v1498 = vld [vmem:[#allocation2 + $0x249] sm:$0xff]
  %v1499 = vld [vmem:[#allocation2 + $0x251] sm:$0xff]
  %v1500 = vld [vmem:[#allocation2 + $0x259] sm:$0xff]
  %v1501 = vld [vmem:[#allocation2 + $0x261] sm:$0xff]
  %v1502 = vld [vmem:[#allocation2 + $0x269] sm:$0xff]
  %v1503 = vld [vmem:[#allocation2 + $0x271] sm:$0xff]
  %v1504 = vld [vmem:[#allocation2 + $0x279] sm:$0xff]
  %v1505 = vld [vmem:[#allocation2 + $0x281] sm:$0xff]
  %v1506 = vld [vmem:[#allocation2 + $0x289] sm:$0xff]
  %v1507 = vld [vmem:[#allocation2 + $0x291] sm:$0xff]
  %v1508 = vld [vmem:[#allocation2 + $0x299] sm:$0xff]
  %v1509 = vld [vmem:[#allocation2 + $0x2a1] sm:$0xff]
  %v1510 = vld [vmem:[#allocation2 + $0x2a9] sm:$0xff]
  %v1511 = vld [vmem:[#allocation2 + $0x2b1] sm:$0xff]
  %v1512 = vld [vmem:[#allocation2 + $0x2b9] sm:$0xff]
  %v1513 = vld [vmem:[#allocation2 + $0x2c1] sm:$0xff]
  %v1514 = vld [vmem:[#allocation2 + $0x2c9] sm:$0xff]
  %v1515 = vld [vmem:[#allocation2 + $0x2d1] sm:$0xff]
  %v1516 = vld [vmem:[#allocation2 + $0x2d9] sm:$0xff]
  %v1517 = vld [vmem:[#allocation2 + $0x2e1] sm:$0xff]
  %v1518 = vld [vmem:[#allocation2 + $0x2e9] sm:$0xff]
  %v1519 = vld [vmem:[#allocation2 + $0x2f1] sm:$0xff]
  %v1520 = vld [vmem:[#allocation2 + $0x2f9] sm:$0xff]
  %v1521 = vld [vmem:[#allocation2 + $0x301] sm:$0xff]
  %v1522 = vld [vmem:[#allocation2 + $0x309] sm:$0xff]
  %v1523 = vld [vmem:[#allocation2 + $0x311] sm:$0xff]
  %v1524 = vld [vmem:[#allocation2 + $0x319] sm:$0xff]
  %v1525 = vld [vmem:[#allocation2 + $0xa] sm:$0xff]
  %v1526 = vld [vmem:[#allocation2 + $0x12] sm:$0xff]
  %v1527 = vld [vmem:[#allocation2 + $0x1a] sm:$0xff]
  %v1528 = vld [vmem:[#allocation2 + $0x22] sm:$0xff]
  %v1529 = vld [vmem:[#allocation2 + $0x2a] sm:$0xff]
  %v1530 = vld [vmem:[#allocation2 + $0x32] sm:$0xff]
  %v1531 = vld [vmem:[#allocation2 + $0x3a] sm:$0xff]
  %v1532 = vld [vmem:[#allocation2 + $0x42] sm:$0xff]
  %v1533 = vld [vmem:[#allocation2 + $0x4a] sm:$0xff]
  %v1534 = vld [vmem:[#allocation2 + $0x52] sm:$0xff]
  %v1535 = vld [vmem:[#allocation2 + $0x5a] sm:$0xff]
  %v1536 = vld [vmem:[#allocation2 + $0x62] sm:$0xff]
  %v1537 = vld [vmem:[#allocation2 + $0x6a] sm:$0xff]
  %v1538 = vld [vmem:[#allocation2 + $0x72] sm:$0xff]
  %v1539 = vld [vmem:[#allocation2 + $0x7a] sm:$0xff]
  %v1540 = vld [vmem:[#allocation2 + $0x82] sm:$0xff]
  %v1541 = vld [vmem:[#allocation2 + $0x8a] sm:$0xff]
  %v1542 = vld [vmem:[#allocation2 + $0x92] sm:$0xff]
  %v1543 = vld [vmem:[#allocation2 + $0x9a] sm:$0xff]
  %v1544 = vld [vmem:[#allocation2 + $0xa2] sm:$0xff]
  %v1545 = vld [vmem:[#allocation2 + $0xaa] sm:$0xff]
  %v1546 = vld [vmem:[#allocation2 + $0xb2] sm:$0xff]
  %v1547 = vld [vmem:[#allocation2 + $0xba] sm:$0xff]
  %v1548 = vld [vmem:[#allocation2 + $0xc2] sm:$0xff]
  %v1549 = vld [vmem:[#allocation2 + $0xca] sm:$0xff]
  %v1550 = vld [vmem:[#allocation2 + $0xd2] sm:$0xff]
  %v1551 = vld [vmem:[#allocation2 + $0xda] sm:$0xff]
  %v1552 = vld [vmem:[#allocation2 + $0xe2] sm:$0xff]
  %v1553 = vld [vmem:[#allocation2 + $0xea] sm:$0xff]
  %v1554 = vld [vmem:[#allocation2 + $0xf2] sm:$0xff]
  %v1555 = vld [vmem:[#allocation2 + $0xfa] sm:$0xff]
  %v1556 = vld [vmem:[#allocation2 + $0x102] sm:$0xff]
  %v1557 = vld [vmem:[#allocation2 + $0x10a] sm:$0xff]
  %v1558 = vld [vmem:[#allocation2 + $0x112] sm:$0xff]
  %v1559 = vld [vmem:[#allocation2 + $0x11a] sm:$0xff]
  %v1560 = vld [vmem:[#allocation2 + $0x122] sm:$0xff]
  %v1561 = vld [vmem:[#allocation2 + $0x12a] sm:$0xff]
  %v1562 = vld [vmem:[#allocation2 + $0x132] sm:$0xff]
  %v1563 = vld [vmem:[#allocation2 + $0x13a] sm:$0xff]
  %v1564 = vld [vmem:[#allocation2 + $0x142] sm:$0xff]
  %v1565 = vld [vmem:[#allocation2 + $0x14a] sm:$0xff]
  %v1566 = vld [vmem:[#allocation2 + $0x152] sm:$0xff]
  %v1567 = vld [vmem:[#allocation2 + $0x15a] sm:$0xff]
  %v1568 = vld [vmem:[#allocation2 + $0x162] sm:$0xff]
  %v1569 = vld [vmem:[#allocation2 + $0x16a] sm:$0xff]
  %v1570 = vld [vmem:[#allocation2 + $0x172] sm:$0xff]
  %v1571 = vld [vmem:[#allocation2 + $0x17a] sm:$0xff]
  %v1572 = vld [vmem:[#allocation2 + $0x182] sm:$0xff]
  %v1573 = vld [vmem:[#allocation2 + $0x18a] sm:$0xff]
  %v1574 = vld [vmem:[#allocation2 + $0x192] sm:$0xff]
  %v1575 = vld [vmem:[#allocation2 + $0xb] sm:$0xff]
  %v1576 = vld [vmem:[#allocation2 + $0x13] sm:$0xff]
  %v1577 = vld [vmem:[#allocation2 + $0x1b] sm:$0xff]
  %v1578 = vld [vmem:[#allocation2 + $0x23] sm:$0xff]
  %v1579 = vld [vmem:[#allocation2 + $0x2b] sm:$0xff]
  %v1580 = vld [vmem:[#allocation2 + $0x33] sm:$0xff]
  %v1581 = vld [vmem:[#allocation2 + $0x3b] sm:$0xff]
  %v1582 = vld [vmem:[#allocation2 + $0x43] sm:$0xff]
  %v1583 = vld [vmem:[#allocation2 + $0x4b] sm:$0xff]
  %v1584 = vld [vmem:[#allocation2 + $0x53] sm:$0xff]
  %v1585 = vld [vmem:[#allocation2 + $0x5b] sm:$0xff]
  %v1586 = vld [vmem:[#allocation2 + $0x63] sm:$0xff]
  %v1587 = vld [vmem:[#allocation2 + $0x6b] sm:$0xff]
  %v1588 = vld [vmem:[#allocation2 + $0x73] sm:$0xff]
  %v1589 = vld [vmem:[#allocation2 + $0x7b] sm:$0xff]
  %v1590 = vld [vmem:[#allocation2 + $0x83] sm:$0xff]
  %v1591 = vld [vmem:[#allocation2 + $0x8b] sm:$0xff]
  %v1592 = vld [vmem:[#allocation2 + $0x93] sm:$0xff]
  %v1593 = vld [vmem:[#allocation2 + $0x9b] sm:$0xff]
  %v1594 = vld [vmem:[#allocation2 + $0xa3] sm:$0xff]
  %v1595 = vld [vmem:[#allocation2 + $0xab] sm:$0xff]
  %v1596 = vld [vmem:[#allocation2 + $0xb3] sm:$0xff]
  %v1597 = vld [vmem:[#allocation2 + $0xbb] sm:$0xff]
  %v1598 = vld [vmem:[#allocation2 + $0xc3] sm:$0xff]
  %v1599 = vld [vmem:[#allocation2 + $0xcb] sm:$0xff]
  %v1600 = vld [vmem:[#allocation2 + $0xd3] sm:$0xff]
  %v1601 = vld [vmem:[#allocation2 + $0xdb] sm:$0xff]
  %v1602 = vld [vmem:[#allocation2 + $0xe3] sm:$0xff]
  %v1603 = vld [vmem:[#allocation2 + $0xeb] sm:$0xff]
  %v1604 = vld [vmem:[#allocation2 + $0xf3] sm:$0xff]
  %v1605 = vld [vmem:[#allocation2 + $0xfb] sm:$0xff]
  %v1606 = vld [vmem:[#allocation2 + $0x103] sm:$0xff]
  %v1607 = vld [vmem:[#allocation2 + $0x10b] sm:$0xff]
  %v1608 = vld [vmem:[#allocation2 + $0x113] sm:$0xff]
  %v1609 = vld [vmem:[#allocation2 + $0x11b] sm:$0xff]
  %v1610 = vld [vmem:[#allocation2 + $0x123] sm:$0xff]
  %v1611 = vld [vmem:[#allocation2 + $0x12b] sm:$0xff]
  %v1612 = vld [vmem:[#allocation2 + $0x133] sm:$0xff]
  %v1613 = vld [vmem:[#allocation2 + $0x13b] sm:$0xff]
  %v1614 = vld [vmem:[#allocation2 + $0x143] sm:$0xff]
  %v1615 = vld [vmem:[#allocation2 + $0x14b] sm:$0xff]
  %v1616 = vld [vmem:[#allocation2 + $0x153] sm:$0xff]
  %v1617 = vld [vmem:[#allocation2 + $0x15b] sm:$0xff]
  %v1618 = vld [vmem:[#allocation2 + $0x163] sm:$0xff]
  %v1619 = vld [vmem:[#allocation2 + $0x16b] sm:$0xff]
  %v1620 = vld [vmem:[#allocation2 + $0x173] sm:$0xff]
  %v1621 = vld [vmem:[#allocation2 + $0x17b] sm:$0xff]
  %v1622 = vld [vmem:[#allocation2 + $0x183] sm:$0xff]
  %v1623 = vld [vmem:[#allocation2 + $0x18b] sm:$0xff]
  %v1624 = vld [vmem:[#allocation2 + $0x193] sm:$0xff]
  %v1625 = vld [vmem:[#allocation2 + $0x19a] sm:$0xff]
  %v1626 = vld [vmem:[#allocation2 + $0x1a2] sm:$0xff]
  %v1627 = vld [vmem:[#allocation2 + $0x1aa] sm:$0xff]
  %v1628 = vld [vmem:[#allocation2 + $0x1b2] sm:$0xff]
  %v1629 = vld [vmem:[#allocation2 + $0x1ba] sm:$0xff]
  %v1630 = vld [vmem:[#allocation2 + $0x1c2] sm:$0xff]
  %v1631 = vld [vmem:[#allocation2 + $0x1ca] sm:$0xff]
  %v1632 = vld [vmem:[#allocation2 + $0x1d2] sm:$0xff]
  %v1633 = vld [vmem:[#allocation2 + $0x1da] sm:$0xff]
  %v1634 = vld [vmem:[#allocation2 + $0x1e2] sm:$0xff]
  %v1635 = vld [vmem:[#allocation2 + $0x1ea] sm:$0xff]
  %v1636 = vld [vmem:[#allocation2 + $0x1f2] sm:$0xff]
  %v1637 = vld [vmem:[#allocation2 + $0x1fa] sm:$0xff]
  %v1638 = vld [vmem:[#allocation2 + $0x202] sm:$0xff]
  %v1639 = vld [vmem:[#allocation2 + $0x20a] sm:$0xff]
  %v1640 = vld [vmem:[#allocation2 + $0x212] sm:$0xff]
  %v1641 = vld [vmem:[#allocation2 + $0x21a] sm:$0xff]
  %v1642 = vld [vmem:[#allocation2 + $0x222] sm:$0xff]
  %v1643 = vld [vmem:[#allocation2 + $0x22a] sm:$0xff]
  %v1644 = vld [vmem:[#allocation2 + $0x232] sm:$0xff]
  %v1645 = vld [vmem:[#allocation2 + $0x23a] sm:$0xff]
  %v1646 = vld [vmem:[#allocation2 + $0x242] sm:$0xff]
  %v1647 = vld [vmem:[#allocation2 + $0x24a] sm:$0xff]
  %v1648 = vld [vmem:[#allocation2 + $0x252] sm:$0xff]
  %v1649 = vld [vmem:[#allocation2 + $0x25a] sm:$0xff]
  %v1650 = vld [vmem:[#allocation2 + $0x262] sm:$0xff]
  %v1651 = vld [vmem:[#allocation2 + $0x26a] sm:$0xff]
  %v1652 = vld [vmem:[#allocation2 + $0x272] sm:$0xff]
  %v1653 = vld [vmem:[#allocation2 + $0x27a] sm:$0xff]
  %v1654 = vld [vmem:[#allocation2 + $0x282] sm:$0xff]
  %v1655 = vld [vmem:[#allocation2 + $0x28a] sm:$0xff]
  %v1656 = vld [vmem:[#allocation2 + $0x292] sm:$0xff]
  %v1657 = vld [vmem:[#allocation2 + $0x29a] sm:$0xff]
  %v1658 = vld [vmem:[#allocation2 + $0x2a2] sm:$0xff]
  %v1659 = vld [vmem:[#allocation2 + $0x2aa] sm:$0xff]
  %v1660 = vld [vmem:[#allocation2 + $0x2b2] sm:$0xff]
  %v1661 = vld [vmem:[#allocation2 + $0x2ba] sm:$0xff]
  %v1662 = vld [vmem:[#allocation2 + $0x2c2] sm:$0xff]
  %v1663 = vld [vmem:[#allocation2 + $0x2ca] sm:$0xff]
  %v1664 = vld [vmem:[#allocation2 + $0x2d2] sm:$0xff]
  %v1665 = vld [vmem:[#allocation2 + $0x2da] sm:$0xff]
  %v1666 = vld [vmem:[#allocation2 + $0x2e2] sm:$0xff]
  %v1667 = vld [vmem:[#allocation2 + $0x2ea] sm:$0xff]
  %v1668 = vld [vmem:[#allocation2 + $0x2f2] sm:$0xff]
  %v1669 = vld [vmem:[#allocation2 + $0x2fa] sm:$0xff]
  %v1670 = vld [vmem:[#allocation2 + $0x302] sm:$0xff]
  %v1671 = vld [vmem:[#allocation2 + $0x30a] sm:$0xff]
  %v1672 = vld [vmem:[#allocation2 + $0x312] sm:$0xff]
  %v1673 = vld [vmem:[#allocation2 + $0x31a] sm:$0xff]
  %v1674 = vld [vmem:[#allocation2 + $0x322] sm:$0xff]
  %v1675 = vld [vmem:[#allocation2 + $0x19b] sm:$0xff]
  %v1676 = vld [vmem:[#allocation2 + $0x1a3] sm:$0xff]
  %v1677 = vld [vmem:[#allocation2 + $0x1ab] sm:$0xff]
  %v1678 = vld [vmem:[#allocation2 + $0x1b3] sm:$0xff]
  %v1679 = vld [vmem:[#allocation2 + $0x1bb] sm:$0xff]
  %v1680 = vld [vmem:[#allocation2 + $0x1c3] sm:$0xff]
  %v1681 = vld [vmem:[#allocation2 + $0x1cb] sm:$0xff]
  %v1682 = vld [vmem:[#allocation2 + $0x1d3] sm:$0xff]
  %v1683 = vld [vmem:[#allocation2 + $0x1db] sm:$0xff]
  %v1684 = vld [vmem:[#allocation2 + $0x1e3] sm:$0xff]
  %v1685 = vld [vmem:[#allocation2 + $0x1eb] sm:$0xff]
  %v1686 = vld [vmem:[#allocation2 + $0x1f3] sm:$0xff]
  %v1687 = vld [vmem:[#allocation2 + $0x1fb] sm:$0xff]
  %v1688 = vld [vmem:[#allocation2 + $0x203] sm:$0xff]
  %v1689 = vld [vmem:[#allocation2 + $0x20b] sm:$0xff]
  %v1690 = vld [vmem:[#allocation2 + $0x213] sm:$0xff]
  %v1691 = vld [vmem:[#allocation2 + $0x21b] sm:$0xff]
  %v1692 = vld [vmem:[#allocation2 + $0x223] sm:$0xff]
  %v1693 = vld [vmem:[#allocation2 + $0x22b] sm:$0xff]
  %v1694 = vld [vmem:[#allocation2 + $0x233] sm:$0xff]
  %v1695 = vld [vmem:[#allocation2 + $0x23b] sm:$0xff]
  %v1696 = vld [vmem:[#allocation2 + $0x243] sm:$0xff]
  %v1697 = vld [vmem:[#allocation2 + $0x24b] sm:$0xff]
  %v1698 = vld [vmem:[#allocation2 + $0x253] sm:$0xff]
  %v1699 = vld [vmem:[#allocation2 + $0x25b] sm:$0xff]
  %v1700 = vld [vmem:[#allocation2 + $0x263] sm:$0xff]
  %v1701 = vld [vmem:[#allocation2 + $0x26b] sm:$0xff]
  %v1702 = vld [vmem:[#allocation2 + $0x273] sm:$0xff]
  %v1703 = vld [vmem:[#allocation2 + $0x27b] sm:$0xff]
  %v1704 = vld [vmem:[#allocation2 + $0x283] sm:$0xff]
  %v1705 = vld [vmem:[#allocation2 + $0x28b] sm:$0xff]
  %v1706 = vld [vmem:[#allocation2 + $0x293] sm:$0xff]
  %v1707 = vld [vmem:[#allocation2 + $0x29b] sm:$0xff]
  %v1708 = vld [vmem:[#allocation2 + $0x2a3] sm:$0xff]
  %v1709 = vld [vmem:[#allocation2 + $0x2ab] sm:$0xff]
  %v1710 = vld [vmem:[#allocation2 + $0x2b3] sm:$0xff]
  %v1711 = vld [vmem:[#allocation2 + $0x2bb] sm:$0xff]
  %v1712 = vld [vmem:[#allocation2 + $0x2c3] sm:$0xff]
  %v1713 = vld [vmem:[#allocation2 + $0x2cb] sm:$0xff]
  %v1714 = vld [vmem:[#allocation2 + $0x2d3] sm:$0xff]
  %v1715 = vld [vmem:[#allocation2 + $0x2db] sm:$0xff]
  %v1716 = vld [vmem:[#allocation2 + $0x2e3] sm:$0xff]
  %v1717 = vld [vmem:[#allocation2 + $0x2eb] sm:$0xff]
  %v1718 = vld [vmem:[#allocation2 + $0x2f3] sm:$0xff]
  %v1719 = vld [vmem:[#allocation2 + $0x2fb] sm:$0xff]
  %v1720 = vld [vmem:[#allocation2 + $0x303] sm:$0xff]
  %v1721 = vld [vmem:[#allocation2 + $0x30b] sm:$0xff]
  %v1722 = vld [vmem:[#allocation2 + $0x313] sm:$0xff]
  %v1723 = vld [vmem:[#allocation2 + $0x31b] sm:$0xff]
  %v1724 = vld [vmem:[#allocation2 + $0x323] sm:$0xff]
  %1750 = vrot.lane.b32.xlu0 %v1350, 32
  %v1751 = vpop.permute.xlu0 %1750
  %1752 = vrot.lane.b32.xlu0 %v1351, 32
  %v1753 = vpop.permute.xlu0 %1752
  %1754 = vrot.lane.b32.xlu0 %v1352, 32
  %v1755 = vpop.permute.xlu0 %1754
  %1756 = vrot.lane.b32.xlu0 %v1353, 32
  %v1757 = vpop.permute.xlu0 %1756
  %1758 = vrot.lane.b32.xlu0 %v1354, 32
  %v1759 = vpop.permute.xlu0 %1758
  %1760 = vrot.lane.b32.xlu0 %v1355, 32
  %v1761 = vpop.permute.xlu0 %1760
  %1762 = vrot.lane.b32.xlu0 %v1356, 32
  %v1763 = vpop.permute.xlu0 %1762
  %1764 = vrot.lane.b32.xlu0 %v1357, 32
  %v1765 = vpop.permute.xlu0 %1764
  %1766 = vrot.lane.b32.xlu0 %v1358, 32
  %v1767 = vpop.permute.xlu0 %1766
  %1768 = vrot.lane.b32.xlu0 %v1359, 32
  %v1769 = vpop.permute.xlu0 %1768
  %1770 = vrot.lane.b32.xlu0 %v1360, 32
  %v1771 = vpop.permute.xlu0 %1770
  %1772 = vrot.lane.b32.xlu0 %v1361, 32
  %v1773 = vpop.permute.xlu0 %1772
  %1774 = vrot.lane.b32.xlu0 %v1362, 32
  %v1775 = vpop.permute.xlu0 %1774
  %1776 = vrot.lane.b32.xlu0 %v1363, 32
  %v1777 = vpop.permute.xlu0 %1776
  %1778 = vrot.lane.b32.xlu0 %v1364, 32
  %v1779 = vpop.permute.xlu0 %1778
  %1780 = vrot.lane.b32.xlu0 %v1365, 32
  %v1781 = vpop.permute.xlu0 %1780
  %1782 = vrot.lane.b32.xlu0 %v1366, 32
  %v1783 = vpop.permute.xlu0 %1782
  %1784 = vrot.lane.b32.xlu0 %v1367, 32
  %v1785 = vpop.permute.xlu0 %1784
  %1786 = vrot.lane.b32.xlu0 %v1368, 32
  %v1787 = vpop.permute.xlu0 %1786
  %1788 = vrot.lane.b32.xlu0 %v1369, 32
  %v1789 = vpop.permute.xlu0 %1788
  %1790 = vrot.lane.b32.xlu0 %v1370, 32
  %v1791 = vpop.permute.xlu0 %1790
  %1792 = vrot.lane.b32.xlu0 %v1371, 32
  %v1793 = vpop.permute.xlu0 %1792
  %1794 = vrot.lane.b32.xlu0 %v1372, 32
  %v1795 = vpop.permute.xlu0 %1794
  %1796 = vrot.lane.b32.xlu0 %v1373, 32
  %v1797 = vpop.permute.xlu0 %1796
  %1798 = vrot.lane.b32.xlu0 %v1374, 32
  %v1799 = vpop.permute.xlu0 %1798
  %1850 = vrot.lane.b32.xlu0 %v1375, 64
  %v1851 = vpop.permute.xlu0 %1850
  %1852 = vrot.lane.b32.xlu0 %v1376, 64
  %v1853 = vpop.permute.xlu0 %1852
  %1854 = vrot.lane.b32.xlu0 %v1377, 64
  %v1855 = vpop.permute.xlu0 %1854
  %1856 = vrot.lane.b32.xlu0 %v1378, 64
  %v1857 = vpop.permute.xlu0 %1856
  %1858 = vrot.lane.b32.xlu0 %v1379, 64
  %v1859 = vpop.permute.xlu0 %1858
  %1860 = vrot.lane.b32.xlu0 %v1380, 64
  %v1861 = vpop.permute.xlu0 %1860
  %1862 = vrot.lane.b32.xlu0 %v1381, 64
  %v1863 = vpop.permute.xlu0 %1862
  %1864 = vrot.lane.b32.xlu0 %v1382, 64
  %v1865 = vpop.permute.xlu0 %1864
  %1866 = vrot.lane.b32.xlu0 %v1383, 64
  %v1867 = vpop.permute.xlu0 %1866
  %1868 = vrot.lane.b32.xlu0 %v1384, 64
  %v1869 = vpop.permute.xlu0 %1868
  %1870 = vrot.lane.b32.xlu0 %v1385, 64
  %v1871 = vpop.permute.xlu0 %1870
  %1872 = vrot.lane.b32.xlu0 %v1386, 64
  %v1873 = vpop.permute.xlu0 %1872
  %1874 = vrot.lane.b32.xlu0 %v1387, 64
  %v1875 = vpop.permute.xlu0 %1874
  %1876 = vrot.lane.b32.xlu0 %v1388, 64
  %v1877 = vpop.permute.xlu0 %1876
  %1878 = vrot.lane.b32.xlu0 %v1389, 64
  %v1879 = vpop.permute.xlu0 %1878
  %1880 = vrot.lane.b32.xlu0 %v1390, 64
  %v1881 = vpop.permute.xlu0 %1880
  %1882 = vrot.lane.b32.xlu0 %v1391, 64
  %v1883 = vpop.permute.xlu0 %1882
  %1884 = vrot.lane.b32.xlu0 %v1392, 64
  %v1885 = vpop.permute.xlu0 %1884
  %1886 = vrot.lane.b32.xlu0 %v1393, 64
  %v1887 = vpop.permute.xlu0 %1886
  %1888 = vrot.lane.b32.xlu0 %v1394, 64
  %v1889 = vpop.permute.xlu0 %1888
  %1890 = vrot.lane.b32.xlu0 %v1395, 64
  %v1891 = vpop.permute.xlu0 %1890
  %1892 = vrot.lane.b32.xlu0 %v1396, 64
  %v1893 = vpop.permute.xlu0 %1892
  %1894 = vrot.lane.b32.xlu0 %v1397, 64
  %v1895 = vpop.permute.xlu0 %1894
  %1896 = vrot.lane.b32.xlu0 %v1398, 64
  %v1897 = vpop.permute.xlu0 %1896
  %1898 = vrot.lane.b32.xlu0 %v1399, 64
  %v1899 = vpop.permute.xlu0 %1898
  %1950 = vrot.lane.b32.xlu0 %v1400, 96
  %v1951 = vpop.permute.xlu0 %1950
  %1952 = vrot.lane.b32.xlu0 %v1401, 96
  %v1953 = vpop.permute.xlu0 %1952
  %1954 = vrot.lane.b32.xlu0 %v1402, 96
  %v1955 = vpop.permute.xlu0 %1954
  %1956 = vrot.lane.b32.xlu0 %v1403, 96
  %v1957 = vpop.permute.xlu0 %1956
  %1958 = vrot.lane.b32.xlu0 %v1404, 96
  %v1959 = vpop.permute.xlu0 %1958
  %1960 = vrot.lane.b32.xlu0 %v1405, 96
  %v1961 = vpop.permute.xlu0 %1960
  %1962 = vrot.lane.b32.xlu0 %v1406, 96
  %v1963 = vpop.permute.xlu0 %1962
  %1964 = vrot.lane.b32.xlu0 %v1407, 96
  %v1965 = vpop.permute.xlu0 %1964
  %1966 = vrot.lane.b32.xlu0 %v1408, 96
  %v1967 = vpop.permute.xlu0 %1966
  %1968 = vrot.lane.b32.xlu0 %v1409, 96
  %v1969 = vpop.permute.xlu0 %1968
  %1970 = vrot.lane.b32.xlu0 %v1410, 96
  %v1971 = vpop.permute.xlu0 %1970
  %1972 = vrot.lane.b32.xlu0 %v1411, 96
  %v1973 = vpop.permute.xlu0 %1972
  %1974 = vrot.lane.b32.xlu0 %v1412, 96
  %v1975 = vpop.permute.xlu0 %1974
  %1976 = vrot.lane.b32.xlu0 %v1413, 96
  %v1977 = vpop.permute.xlu0 %1976
  %1978 = vrot.lane.b32.xlu0 %v1414, 96
  %v1979 = vpop.permute.xlu0 %1978
  %1980 = vrot.lane.b32.xlu0 %v1415, 96
  %v1981 = vpop.permute.xlu0 %1980
  %1982 = vrot.lane.b32.xlu0 %v1416, 96
  %v1983 = vpop.permute.xlu0 %1982
  %1984 = vrot.lane.b32.xlu0 %v1417, 96
  %v1985 = vpop.permute.xlu0 %1984
  %1986 = vrot.lane.b32.xlu0 %v1418, 96
  %v1987 = vpop.permute.xlu0 %1986
  %1988 = vrot.lane.b32.xlu0 %v1419, 96
  %v1989 = vpop.permute.xlu0 %1988
  %1990 = vrot.lane.b32.xlu0 %v1420, 96
  %v1991 = vpop.permute.xlu0 %1990
  %1992 = vrot.lane.b32.xlu0 %v1421, 96
  %v1993 = vpop.permute.xlu0 %1992
  %1994 = vrot.lane.b32.xlu0 %v1422, 96
  %v1995 = vpop.permute.xlu0 %1994
  %1996 = vrot.lane.b32.xlu0 %v1423, 96
  %v1997 = vpop.permute.xlu0 %1996
  %1998 = vrot.lane.b32.xlu0 %v1424, 96
  %v1999 = vpop.permute.xlu0 %1998
  %2050 = vrot.lane.b32.xlu0 %v1450, 32
  %v2051 = vpop.permute.xlu0 %2050
  %2052 = vrot.lane.b32.xlu0 %v1451, 32
  %v2053 = vpop.permute.xlu0 %2052
  %2054 = vrot.lane.b32.xlu0 %v1452, 32
  %v2055 = vpop.permute.xlu0 %2054
  %2056 = vrot.lane.b32.xlu0 %v1453, 32
  %v2057 = vpop.permute.xlu0 %2056
  %2058 = vrot.lane.b32.xlu0 %v1454, 32
  %v2059 = vpop.permute.xlu0 %2058
  %2060 = vrot.lane.b32.xlu0 %v1455, 32
  %v2061 = vpop.permute.xlu0 %2060
  %2062 = vrot.lane.b32.xlu0 %v1456, 32
  %v2063 = vpop.permute.xlu0 %2062
  %2064 = vrot.lane.b32.xlu0 %v1457, 32
  %v2065 = vpop.permute.xlu0 %2064
  %2066 = vrot.lane.b32.xlu0 %v1458, 32
  %v2067 = vpop.permute.xlu0 %2066
  %2068 = vrot.lane.b32.xlu0 %v1459, 32
  %v2069 = vpop.permute.xlu0 %2068
  %2070 = vrot.lane.b32.xlu0 %v1460, 32
  %v2071 = vpop.permute.xlu0 %2070
  %2072 = vrot.lane.b32.xlu0 %v1461, 32
  %v2073 = vpop.permute.xlu0 %2072
  %2074 = vrot.lane.b32.xlu0 %v1462, 32
  %v2075 = vpop.permute.xlu0 %2074
  %2076 = vrot.lane.b32.xlu0 %v1463, 32
  %v2077 = vpop.permute.xlu0 %2076
  %2078 = vrot.lane.b32.xlu0 %v1464, 32
  %v2079 = vpop.permute.xlu0 %2078
  %2080 = vrot.lane.b32.xlu0 %v1465, 32
  %v2081 = vpop.permute.xlu0 %2080
  %2082 = vrot.lane.b32.xlu0 %v1466, 32
  %v2083 = vpop.permute.xlu0 %2082
  %2084 = vrot.lane.b32.xlu0 %v1467, 32
  %v2085 = vpop.permute.xlu0 %2084
  %2086 = vrot.lane.b32.xlu0 %v1468, 32
  %v2087 = vpop.permute.xlu0 %2086
  %2088 = vrot.lane.b32.xlu0 %v1469, 32
  %v2089 = vpop.permute.xlu0 %2088
  %2090 = vrot.lane.b32.xlu0 %v1470, 32
  %v2091 = vpop.permute.xlu0 %2090
  %2092 = vrot.lane.b32.xlu0 %v1471, 32
  %v2093 = vpop.permute.xlu0 %2092
  %2094 = vrot.lane.b32.xlu0 %v1472, 32
  %v2095 = vpop.permute.xlu0 %2094
  %2096 = vrot.lane.b32.xlu0 %v1473, 32
  %v2097 = vpop.permute.xlu0 %2096
  %2098 = vrot.lane.b32.xlu0 %v1474, 32
  %v2099 = vpop.permute.xlu0 %2098
  %2150 = vrot.lane.b32.xlu0 %v1475, 64
  %v2151 = vpop.permute.xlu0 %2150
  %2152 = vrot.lane.b32.xlu0 %v1476, 64
  %v2153 = vpop.permute.xlu0 %2152
  %2154 = vrot.lane.b32.xlu0 %v1477, 64
  %v2155 = vpop.permute.xlu0 %2154
  %2156 = vrot.lane.b32.xlu0 %v1478, 64
  %v2157 = vpop.permute.xlu0 %2156
  %2158 = vrot.lane.b32.xlu0 %v1479, 64
  %v2159 = vpop.permute.xlu0 %2158
  %2160 = vrot.lane.b32.xlu0 %v1480, 64
  %v2161 = vpop.permute.xlu0 %2160
  %2162 = vrot.lane.b32.xlu0 %v1481, 64
  %v2163 = vpop.permute.xlu0 %2162
  %2164 = vrot.lane.b32.xlu0 %v1482, 64
  %v2165 = vpop.permute.xlu0 %2164
  %2166 = vrot.lane.b32.xlu0 %v1483, 64
  %v2167 = vpop.permute.xlu0 %2166
  %2168 = vrot.lane.b32.xlu0 %v1484, 64
  %v2169 = vpop.permute.xlu0 %2168
  %2170 = vrot.lane.b32.xlu0 %v1485, 64
  %v2171 = vpop.permute.xlu0 %2170
  %2172 = vrot.lane.b32.xlu0 %v1486, 64
  %v2173 = vpop.permute.xlu0 %2172
  %2174 = vrot.lane.b32.xlu0 %v1487, 64
  %v2175 = vpop.permute.xlu0 %2174
  %2176 = vrot.lane.b32.xlu0 %v1488, 64
  %v2177 = vpop.permute.xlu0 %2176
  %2178 = vrot.lane.b32.xlu0 %v1489, 64
  %v2179 = vpop.permute.xlu0 %2178
  %2180 = vrot.lane.b32.xlu0 %v1490, 64
  %v2181 = vpop.permute.xlu0 %2180
  %2182 = vrot.lane.b32.xlu0 %v1491, 64
  %v2183 = vpop.permute.xlu0 %2182
  %2184 = vrot.lane.b32.xlu0 %v1492, 64
  %v2185 = vpop.permute.xlu0 %2184
  %2186 = vrot.lane.b32.xlu0 %v1493, 64
  %v2187 = vpop.permute.xlu0 %2186
  %2188 = vrot.lane.b32.xlu0 %v1494, 64
  %v2189 = vpop.permute.xlu0 %2188
  %2190 = vrot.lane.b32.xlu0 %v1495, 64
  %v2191 = vpop.permute.xlu0 %2190
  %2192 = vrot.lane.b32.xlu0 %v1496, 64
  %v2193 = vpop.permute.xlu0 %2192
  %2194 = vrot.lane.b32.xlu0 %v1497, 64
  %v2195 = vpop.permute.xlu0 %2194
  %2196 = vrot.lane.b32.xlu0 %v1498, 64
  %v2197 = vpop.permute.xlu0 %2196
  %2198 = vrot.lane.b32.xlu0 %v1499, 64
  %v2199 = vpop.permute.xlu0 %2198
  %2250 = vrot.lane.b32.xlu0 %v1500, 96
  %v2251 = vpop.permute.xlu0 %2250
  %2252 = vrot.lane.b32.xlu0 %v1501, 96
  %v2253 = vpop.permute.xlu0 %2252
  %2254 = vrot.lane.b32.xlu0 %v1502, 96
  %v2255 = vpop.permute.xlu0 %2254
  %2256 = vrot.lane.b32.xlu0 %v1503, 96
  %v2257 = vpop.permute.xlu0 %2256
  %2258 = vrot.lane.b32.xlu0 %v1504, 96
  %v2259 = vpop.permute.xlu0 %2258
  %2260 = vrot.lane.b32.xlu0 %v1505, 96
  %v2261 = vpop.permute.xlu0 %2260
  %2262 = vrot.lane.b32.xlu0 %v1506, 96
  %v2263 = vpop.permute.xlu0 %2262
  %2264 = vrot.lane.b32.xlu0 %v1507, 96
  %v2265 = vpop.permute.xlu0 %2264
  %2266 = vrot.lane.b32.xlu0 %v1508, 96
  %v2267 = vpop.permute.xlu0 %2266
  %2268 = vrot.lane.b32.xlu0 %v1509, 96
  %v2269 = vpop.permute.xlu0 %2268
  %2270 = vrot.lane.b32.xlu0 %v1510, 96
  %v2271 = vpop.permute.xlu0 %2270
  %2272 = vrot.lane.b32.xlu0 %v1511, 96
  %v2273 = vpop.permute.xlu0 %2272
  %2274 = vrot.lane.b32.xlu0 %v1512, 96
  %v2275 = vpop.permute.xlu0 %2274
  %2276 = vrot.lane.b32.xlu0 %v1513, 96
  %v2277 = vpop.permute.xlu0 %2276
  %2278 = vrot.lane.b32.xlu0 %v1514, 96
  %v2279 = vpop.permute.xlu0 %2278
  %2280 = vrot.lane.b32.xlu0 %v1515, 96
  %v2281 = vpop.permute.xlu0 %2280
  %2282 = vrot.lane.b32.xlu0 %v1516, 96
  %v2283 = vpop.permute.xlu0 %2282
  %2284 = vrot.lane.b32.xlu0 %v1517, 96
  %v2285 = vpop.permute.xlu0 %2284
  %2286 = vrot.lane.b32.xlu0 %v1518, 96
  %v2287 = vpop.permute.xlu0 %2286
  %2288 = vrot.lane.b32.xlu0 %v1519, 96
  %v2289 = vpop.permute.xlu0 %2288
  %2290 = vrot.lane.b32.xlu0 %v1520, 96
  %v2291 = vpop.permute.xlu0 %2290
  %2292 = vrot.lane.b32.xlu0 %v1521, 96
  %v2293 = vpop.permute.xlu0 %2292
  %2294 = vrot.lane.b32.xlu0 %v1522, 96
  %v2295 = vpop.permute.xlu0 %2294
  %2296 = vrot.lane.b32.xlu0 %v1523, 96
  %v2297 = vpop.permute.xlu0 %2296
  %2298 = vrot.lane.b32.xlu0 %v1524, 96
  %v2299 = vpop.permute.xlu0 %2298
  %2350 = vrot.lane.b32.xlu0 %v1550, 32
  %v2351 = vpop.permute.xlu0 %2350
  %2352 = vrot.lane.b32.xlu0 %v1551, 32
  %v2353 = vpop.permute.xlu0 %2352
  %2354 = vrot.lane.b32.xlu0 %v1552, 32
  %v2355 = vpop.permute.xlu0 %2354
  %2356 = vrot.lane.b32.xlu0 %v1553, 32
  %v2357 = vpop.permute.xlu0 %2356
  %2358 = vrot.lane.b32.xlu0 %v1554, 32
  %v2359 = vpop.permute.xlu0 %2358
  %2360 = vrot.lane.b32.xlu0 %v1555, 32
  %v2361 = vpop.permute.xlu0 %2360
  %2362 = vrot.lane.b32.xlu0 %v1556, 32
  %v2363 = vpop.permute.xlu0 %2362
  %2364 = vrot.lane.b32.xlu0 %v1557, 32
  %v2365 = vpop.permute.xlu0 %2364
  %2366 = vrot.lane.b32.xlu0 %v1558, 32
  %v2367 = vpop.permute.xlu0 %2366
  %2368 = vrot.lane.b32.xlu0 %v1559, 32
  %v2369 = vpop.permute.xlu0 %2368
  %2370 = vrot.lane.b32.xlu0 %v1560, 32
  %v2371 = vpop.permute.xlu0 %2370
  %2372 = vrot.lane.b32.xlu0 %v1561, 32
  %v2373 = vpop.permute.xlu0 %2372
  %2374 = vrot.lane.b32.xlu0 %v1562, 32
  %v2375 = vpop.permute.xlu0 %2374
  %2376 = vrot.lane.b32.xlu0 %v1563, 32
  %v2377 = vpop.permute.xlu0 %2376
  %2378 = vrot.lane.b32.xlu0 %v1564, 32
  %v2379 = vpop.permute.xlu0 %2378
  %2380 = vrot.lane.b32.xlu0 %v1565, 32
  %v2381 = vpop.permute.xlu0 %2380
  %2382 = vrot.lane.b32.xlu0 %v1566, 32
  %v2383 = vpop.permute.xlu0 %2382
  %2384 = vrot.lane.b32.xlu0 %v1567, 32
  %v2385 = vpop.permute.xlu0 %2384
  %2386 = vrot.lane.b32.xlu0 %v1568, 32
  %v2387 = vpop.permute.xlu0 %2386
  %2388 = vrot.lane.b32.xlu0 %v1569, 32
  %v2389 = vpop.permute.xlu0 %2388
  %2390 = vrot.lane.b32.xlu0 %v1570, 32
  %v2391 = vpop.permute.xlu0 %2390
  %2392 = vrot.lane.b32.xlu0 %v1571, 32
  %v2393 = vpop.permute.xlu0 %2392
  %2394 = vrot.lane.b32.xlu0 %v1572, 32
  %v2395 = vpop.permute.xlu0 %2394
  %2396 = vrot.lane.b32.xlu0 %v1573, 32
  %v2397 = vpop.permute.xlu0 %2396
  %2398 = vrot.lane.b32.xlu0 %v1574, 32
  %v2399 = vpop.permute.xlu0 %2398
  %2450 = vrot.lane.b32.xlu0 %v1575, 64
  %v2451 = vpop.permute.xlu0 %2450
  %2452 = vrot.lane.b32.xlu0 %v1576, 64
  %v2453 = vpop.permute.xlu0 %2452
  %2454 = vrot.lane.b32.xlu0 %v1577, 64
  %v2455 = vpop.permute.xlu0 %2454
  %2456 = vrot.lane.b32.xlu0 %v1578, 64
  %v2457 = vpop.permute.xlu0 %2456
  %2458 = vrot.lane.b32.xlu0 %v1579, 64
  %v2459 = vpop.permute.xlu0 %2458
  %2460 = vrot.lane.b32.xlu0 %v1580, 64
  %v2461 = vpop.permute.xlu0 %2460
  %2462 = vrot.lane.b32.xlu0 %v1581, 64
  %v2463 = vpop.permute.xlu0 %2462
  %2464 = vrot.lane.b32.xlu0 %v1582, 64
  %v2465 = vpop.permute.xlu0 %2464
  %2466 = vrot.lane.b32.xlu0 %v1583, 64
  %v2467 = vpop.permute.xlu0 %2466
  %2468 = vrot.lane.b32.xlu0 %v1584, 64
  %v2469 = vpop.permute.xlu0 %2468
  %2470 = vrot.lane.b32.xlu0 %v1585, 64
  %v2471 = vpop.permute.xlu0 %2470
  %2472 = vrot.lane.b32.xlu0 %v1586, 64
  %v2473 = vpop.permute.xlu0 %2472
  %2474 = vrot.lane.b32.xlu0 %v1587, 64
  %v2475 = vpop.permute.xlu0 %2474
  %2476 = vrot.lane.b32.xlu0 %v1588, 64
  %v2477 = vpop.permute.xlu0 %2476
  %2478 = vrot.lane.b32.xlu0 %v1589, 64
  %v2479 = vpop.permute.xlu0 %2478
  %2480 = vrot.lane.b32.xlu0 %v1590, 64
  %v2481 = vpop.permute.xlu0 %2480
  %2482 = vrot.lane.b32.xlu0 %v1591, 64
  %v2483 = vpop.permute.xlu0 %2482
  %2484 = vrot.lane.b32.xlu0 %v1592, 64
  %v2485 = vpop.permute.xlu0 %2484
  %2486 = vrot.lane.b32.xlu0 %v1593, 64
  %v2487 = vpop.permute.xlu0 %2486
  %2488 = vrot.lane.b32.xlu0 %v1594, 64
  %v2489 = vpop.permute.xlu0 %2488
  %2490 = vrot.lane.b32.xlu0 %v1595, 64
  %v2491 = vpop.permute.xlu0 %2490
  %2492 = vrot.lane.b32.xlu0 %v1596, 64
  %v2493 = vpop.permute.xlu0 %2492
  %2494 = vrot.lane.b32.xlu0 %v1597, 64
  %v2495 = vpop.permute.xlu0 %2494
  %2496 = vrot.lane.b32.xlu0 %v1598, 64
  %v2497 = vpop.permute.xlu0 %2496
  %2498 = vrot.lane.b32.xlu0 %v1599, 64
  %v2499 = vpop.permute.xlu0 %2498
  %2550 = vrot.lane.b32.xlu0 %v1600, 96
  %v2551 = vpop.permute.xlu0 %2550
  %2552 = vrot.lane.b32.xlu0 %v1601, 96
  %v2553 = vpop.permute.xlu0 %2552
  %2554 = vrot.lane.b32.xlu0 %v1602, 96
  %v2555 = vpop.permute.xlu0 %2554
  %2556 = vrot.lane.b32.xlu0 %v1603, 96
  %v2557 = vpop.permute.xlu0 %2556
  %2558 = vrot.lane.b32.xlu0 %v1604, 96
  %v2559 = vpop.permute.xlu0 %2558
  %2560 = vrot.lane.b32.xlu0 %v1605, 96
  %v2561 = vpop.permute.xlu0 %2560
  %2562 = vrot.lane.b32.xlu0 %v1606, 96
  %v2563 = vpop.permute.xlu0 %2562
  %2564 = vrot.lane.b32.xlu0 %v1607, 96
  %v2565 = vpop.permute.xlu0 %2564
  %2566 = vrot.lane.b32.xlu0 %v1608, 96
  %v2567 = vpop.permute.xlu0 %2566
  %2568 = vrot.lane.b32.xlu0 %v1609, 96
  %v2569 = vpop.permute.xlu0 %2568
  %2570 = vrot.lane.b32.xlu0 %v1610, 96
  %v2571 = vpop.permute.xlu0 %2570
  %2572 = vrot.lane.b32.xlu0 %v1611, 96
  %v2573 = vpop.permute.xlu0 %2572
  %2574 = vrot.lane.b32.xlu0 %v1612, 96
  %v2575 = vpop.permute.xlu0 %2574
  %2576 = vrot.lane.b32.xlu0 %v1613, 96
  %v2577 = vpop.permute.xlu0 %2576
  %2578 = vrot.lane.b32.xlu0 %v1614, 96
  %v2579 = vpop.permute.xlu0 %2578
  %2580 = vrot.lane.b32.xlu0 %v1615, 96
  %v2581 = vpop.permute.xlu0 %2580
  %2582 = vrot.lane.b32.xlu0 %v1616, 96
  %v2583 = vpop.permute.xlu0 %2582
  %2584 = vrot.lane.b32.xlu0 %v1617, 96
  %v2585 = vpop.permute.xlu0 %2584
  %2586 = vrot.lane.b32.xlu0 %v1618, 96
  %v2587 = vpop.permute.xlu0 %2586
  %2588 = vrot.lane.b32.xlu0 %v1619, 96
  %v2589 = vpop.permute.xlu0 %2588
  %2590 = vrot.lane.b32.xlu0 %v1620, 96
  %v2591 = vpop.permute.xlu0 %2590
  %2592 = vrot.lane.b32.xlu0 %v1621, 96
  %v2593 = vpop.permute.xlu0 %2592
  %2594 = vrot.lane.b32.xlu0 %v1622, 96
  %v2595 = vpop.permute.xlu0 %2594
  %2596 = vrot.lane.b32.xlu0 %v1623, 96
  %v2597 = vpop.permute.xlu0 %2596
  %2598 = vrot.lane.b32.xlu0 %v1624, 96
  %v2599 = vpop.permute.xlu0 %2598
  %2650 = vrot.lane.b32.xlu0 %v1650, 32
  %v2651 = vpop.permute.xlu0 %2650
  %2652 = vrot.lane.b32.xlu0 %v1651, 32
  %v2653 = vpop.permute.xlu0 %2652
  %2654 = vrot.lane.b32.xlu0 %v1652, 32
  %v2655 = vpop.permute.xlu0 %2654
  %2656 = vrot.lane.b32.xlu0 %v1653, 32
  %v2657 = vpop.permute.xlu0 %2656
  %2658 = vrot.lane.b32.xlu0 %v1654, 32
  %v2659 = vpop.permute.xlu0 %2658
  %2660 = vrot.lane.b32.xlu0 %v1655, 32
  %v2661 = vpop.permute.xlu0 %2660
  %2662 = vrot.lane.b32.xlu0 %v1656, 32
  %v2663 = vpop.permute.xlu0 %2662
  %2664 = vrot.lane.b32.xlu0 %v1657, 32
  %v2665 = vpop.permute.xlu0 %2664
  %2666 = vrot.lane.b32.xlu0 %v1658, 32
  %v2667 = vpop.permute.xlu0 %2666
  %2668 = vrot.lane.b32.xlu0 %v1659, 32
  %v2669 = vpop.permute.xlu0 %2668
  %2670 = vrot.lane.b32.xlu0 %v1660, 32
  %v2671 = vpop.permute.xlu0 %2670
  %2672 = vrot.lane.b32.xlu0 %v1661, 32
  %v2673 = vpop.permute.xlu0 %2672
  %2674 = vrot.lane.b32.xlu0 %v1662, 32
  %v2675 = vpop.permute.xlu0 %2674
  %2676 = vrot.lane.b32.xlu0 %v1663, 32
  %v2677 = vpop.permute.xlu0 %2676
  %2678 = vrot.lane.b32.xlu0 %v1664, 32
  %v2679 = vpop.permute.xlu0 %2678
  %2680 = vrot.lane.b32.xlu0 %v1665, 32
  %v2681 = vpop.permute.xlu0 %2680
  %2682 = vrot.lane.b32.xlu0 %v1666, 32
  %v2683 = vpop.permute.xlu0 %2682
  %2684 = vrot.lane.b32.xlu0 %v1667, 32
  %v2685 = vpop.permute.xlu0 %2684
  %2686 = vrot.lane.b32.xlu0 %v1668, 32
  %v2687 = vpop.permute.xlu0 %2686
  %2688 = vrot.lane.b32.xlu0 %v1669, 32
  %v2689 = vpop.permute.xlu0 %2688
  %2690 = vrot.lane.b32.xlu0 %v1670, 32
  %v2691 = vpop.permute.xlu0 %2690
  %2692 = vrot.lane.b32.xlu0 %v1671, 32
  %v2693 = vpop.permute.xlu0 %2692
  %2694 = vrot.lane.b32.xlu0 %v1672, 32
  %v2695 = vpop.permute.xlu0 %2694
  %2696 = vrot.lane.b32.xlu0 %v1673, 32
  %v2697 = vpop.permute.xlu0 %2696
  %2698 = vrot.lane.b32.xlu0 %v1674, 32
  %v2699 = vpop.permute.xlu0 %2698
  %2750 = vrot.lane.b32.xlu0 %v1675, 64
  %v2751 = vpop.permute.xlu0 %2750
  %2752 = vrot.lane.b32.xlu0 %v1676, 64
  %v2753 = vpop.permute.xlu0 %2752
  %2754 = vrot.lane.b32.xlu0 %v1677, 64
  %v2755 = vpop.permute.xlu0 %2754
  %2756 = vrot.lane.b32.xlu0 %v1678, 64
  %v2757 = vpop.permute.xlu0 %2756
  %2758 = vrot.lane.b32.xlu0 %v1679, 64
  %v2759 = vpop.permute.xlu0 %2758
  %2760 = vrot.lane.b32.xlu0 %v1680, 64
  %v2761 = vpop.permute.xlu0 %2760
  %2762 = vrot.lane.b32.xlu0 %v1681, 64
  %v2763 = vpop.permute.xlu0 %2762
  %2764 = vrot.lane.b32.xlu0 %v1682, 64
  %v2765 = vpop.permute.xlu0 %2764
  %2766 = vrot.lane.b32.xlu0 %v1683, 64
  %v2767 = vpop.permute.xlu0 %2766
  %2768 = vrot.lane.b32.xlu0 %v1684, 64
  %v2769 = vpop.permute.xlu0 %2768
  %2770 = vrot.lane.b32.xlu0 %v1685, 64
  %v2771 = vpop.permute.xlu0 %2770
  %2772 = vrot.lane.b32.xlu0 %v1686, 64
  %v2773 = vpop.permute.xlu0 %2772
  %2774 = vrot.lane.b32.xlu0 %v1687, 64
  %v2775 = vpop.permute.xlu0 %2774
  %2776 = vrot.lane.b32.xlu0 %v1688, 64
  %v2777 = vpop.permute.xlu0 %2776
  %2778 = vrot.lane.b32.xlu0 %v1689, 64
  %v2779 = vpop.permute.xlu0 %2778
  %2780 = vrot.lane.b32.xlu0 %v1690, 64
  %v2781 = vpop.permute.xlu0 %2780
  %2782 = vrot.lane.b32.xlu0 %v1691, 64
  %v2783 = vpop.permute.xlu0 %2782
  %2784 = vrot.lane.b32.xlu0 %v1692, 64
  %v2785 = vpop.permute.xlu0 %2784
  %2786 = vrot.lane.b32.xlu0 %v1693, 64
  %v2787 = vpop.permute.xlu0 %2786
  %2788 = vrot.lane.b32.xlu0 %v1694, 64
  %v2789 = vpop.permute.xlu0 %2788
  %2790 = vrot.lane.b32.xlu0 %v1695, 64
  %v2791 = vpop.permute.xlu0 %2790
  %2792 = vrot.lane.b32.xlu0 %v1696, 64
  %v2793 = vpop.permute.xlu0 %2792
  %2794 = vrot.lane.b32.xlu0 %v1697, 64
  %v2795 = vpop.permute.xlu0 %2794
  %2796 = vrot.lane.b32.xlu0 %v1698, 64
  %v2797 = vpop.permute.xlu0 %2796
  %2798 = vrot.lane.b32.xlu0 %v1699, 64
  %v2799 = vpop.permute.xlu0 %2798
  %2850 = vrot.lane.b32.xlu0 %v1700, 96
  %v2851 = vpop.permute.xlu0 %2850
  %2852 = vrot.lane.b32.xlu0 %v1701, 96
  %v2853 = vpop.permute.xlu0 %2852
  %2854 = vrot.lane.b32.xlu0 %v1702, 96
  %v2855 = vpop.permute.xlu0 %2854
  %2856 = vrot.lane.b32.xlu0 %v1703, 96
  %v2857 = vpop.permute.xlu0 %2856
  %2858 = vrot.lane.b32.xlu0 %v1704, 96
  %v2859 = vpop.permute.xlu0 %2858
  %2860 = vrot.lane.b32.xlu0 %v1705, 96
  %v2861 = vpop.permute.xlu0 %2860
  %2862 = vrot.lane.b32.xlu0 %v1706, 96
  %v2863 = vpop.permute.xlu0 %2862
  %2864 = vrot.lane.b32.xlu0 %v1707, 96
  %v2865 = vpop.permute.xlu0 %2864
  %2866 = vrot.lane.b32.xlu0 %v1708, 96
  %v2867 = vpop.permute.xlu0 %2866
  %2868 = vrot.lane.b32.xlu0 %v1709, 96
  %v2869 = vpop.permute.xlu0 %2868
  %2870 = vrot.lane.b32.xlu0 %v1710, 96
  %v2871 = vpop.permute.xlu0 %2870
  %2872 = vrot.lane.b32.xlu0 %v1711, 96
  %v2873 = vpop.permute.xlu0 %2872
  %2874 = vrot.lane.b32.xlu0 %v1712, 96
  %v2875 = vpop.permute.xlu0 %2874
  %2876 = vrot.lane.b32.xlu0 %v1713, 96
  %v2877 = vpop.permute.xlu0 %2876
  %2878 = vrot.lane.b32.xlu0 %v1714, 96
  %v2879 = vpop.permute.xlu0 %2878
  %2880 = vrot.lane.b32.xlu0 %v1715, 96
  %v2881 = vpop.permute.xlu0 %2880
  %2882 = vrot.lane.b32.xlu0 %v1716, 96
  %v2883 = vpop.permute.xlu0 %2882
  %2884 = vrot.lane.b32.xlu0 %v1717, 96
  %v2885 = vpop.permute.xlu0 %2884
  %2886 = vrot.lane.b32.xlu0 %v1718, 96
  %v2887 = vpop.permute.xlu0 %2886
  %2888 = vrot.lane.b32.xlu0 %v1719, 96
  %v2889 = vpop.permute.xlu0 %2888
  %2890 = vrot.lane.b32.xlu0 %v1720, 96
  %v2891 = vpop.permute.xlu0 %2890
  %2892 = vrot.lane.b32.xlu0 %v1721, 96
  %v2893 = vpop.permute.xlu0 %2892
  %2894 = vrot.lane.b32.xlu0 %v1722, 96
  %v2895 = vpop.permute.xlu0 %2894
  %2896 = vrot.lane.b32.xlu0 %v1723, 96
  %v2897 = vpop.permute.xlu0 %2896
  %2898 = vrot.lane.b32.xlu0 %v1724, 96
  %v2899 = vpop.permute.xlu0 %2898
  %v2925 = vsel %vm355, %v1325, %v1751
  %v2926 = vsel %vm355, %v1326, %v1753
  %v2927 = vsel %vm355, %v1327, %v1755
  %v2928 = vsel %vm355, %v1328, %v1757
  %v2929 = vsel %vm355, %v1329, %v1759
  %v2930 = vsel %vm355, %v1330, %v1761
  %v2931 = vsel %vm355, %v1331, %v1763
  %v2932 = vsel %vm355, %v1332, %v1765
  %v2933 = vsel %vm355, %v1333, %v1767
  %v2934 = vsel %vm355, %v1334, %v1769
  %v2935 = vsel %vm355, %v1335, %v1771
  %v2936 = vsel %vm355, %v1336, %v1773
  %v2937 = vsel %vm355, %v1337, %v1775
  %v2938 = vsel %vm355, %v1338, %v1777
  %v2939 = vsel %vm355, %v1339, %v1779
  %v2940 = vsel %vm355, %v1340, %v1781
  %v2941 = vsel %vm355, %v1341, %v1783
  %v2942 = vsel %vm355, %v1342, %v1785
  %v2943 = vsel %vm355, %v1343, %v1787
  %v2944 = vsel %vm355, %v1344, %v1789
  %v2945 = vsel %vm355, %v1345, %v1791
  %v2946 = vsel %vm355, %v1346, %v1793
  %v2947 = vsel %vm355, %v1347, %v1795
  %v2948 = vsel %vm355, %v1348, %v1797
  %v2949 = vsel %vm355, %v1349, %v1799
  %v2950 = vsel %vm154, %v2925, %v1851
  %v2951 = vsel %vm154, %v2926, %v1853
  %v2952 = vsel %vm154, %v2927, %v1855
  %v2953 = vsel %vm154, %v2928, %v1857
  %v2954 = vsel %vm154, %v2929, %v1859
  %v2955 = vsel %vm154, %v2930, %v1861
  %v2956 = vsel %vm154, %v2931, %v1863
  %v2957 = vsel %vm154, %v2932, %v1865
  %v2958 = vsel %vm154, %v2933, %v1867
  %v2959 = vsel %vm154, %v2934, %v1869
  %v2960 = vsel %vm154, %v2935, %v1871
  %v2961 = vsel %vm154, %v2936, %v1873
  %v2962 = vsel %vm154, %v2937, %v1875
  %v2963 = vsel %vm154, %v2938, %v1877
  %v2964 = vsel %vm154, %v2939, %v1879
  %v2965 = vsel %vm154, %v2940, %v1881
  %v2966 = vsel %vm154, %v2941, %v1883
  %v2967 = vsel %vm154, %v2942, %v1885
  %v2968 = vsel %vm154, %v2943, %v1887
  %v2969 = vsel %vm154, %v2944, %v1889
  %v2970 = vsel %vm154, %v2945, %v1891
  %v2971 = vsel %vm154, %v2946, %v1893
  %v2972 = vsel %vm154, %v2947, %v1895
  %v2973 = vsel %vm154, %v2948, %v1897
  %v2974 = vsel %vm154, %v2949, %v1899
  %vm2975 = vcmask 785408
  %v2976 = vsel %vm2975, %v2950, %v1951
  %v2977 = vsel %vm2975, %v2951, %v1953
  %v2978 = vsel %vm2975, %v2952, %v1955
  %v2979 = vsel %vm2975, %v2953, %v1957
  %v2980 = vsel %vm2975, %v2954, %v1959
  %v2981 = vsel %vm2975, %v2955, %v1961
  %v2982 = vsel %vm2975, %v2956, %v1963
  %v2983 = vsel %vm2975, %v2957, %v1965
  %v2984 = vsel %vm2975, %v2958, %v1967
  %v2985 = vsel %vm2975, %v2959, %v1969
  %v2986 = vsel %vm2975, %v2960, %v1971
  %v2987 = vsel %vm2975, %v2961, %v1973
  %v2988 = vsel %vm2975, %v2962, %v1975
  %v2989 = vsel %vm2975, %v2963, %v1977
  %v2990 = vsel %vm2975, %v2964, %v1979
  %v2991 = vsel %vm2975, %v2965, %v1981
  %v2992 = vsel %vm2975, %v2966, %v1983
  %v2993 = vsel %vm2975, %v2967, %v1985
  %v2994 = vsel %vm2975, %v2968, %v1987
  %v2995 = vsel %vm2975, %v2969, %v1989
  %v2996 = vsel %vm2975, %v2970, %v1991
  %v2997 = vsel %vm2975, %v2971, %v1993
  %v2998 = vsel %vm2975, %v2972, %v1995
  %v2999 = vsel %vm2975, %v2973, %v1997
  %v3000 = vsel %vm2975, %v2974, %v1999
  %v3001 = vsel %vm355, %v1425, %v2051
  %v3002 = vsel %vm355, %v1426, %v2053
  %v3003 = vsel %vm355, %v1427, %v2055
  %v3004 = vsel %vm355, %v1428, %v2057
  %v3005 = vsel %vm355, %v1429, %v2059
  %v3006 = vsel %vm355, %v1430, %v2061
  %v3007 = vsel %vm355, %v1431, %v2063
  %v3008 = vsel %vm355, %v1432, %v2065
  %v3009 = vsel %vm355, %v1433, %v2067
  %v3010 = vsel %vm355, %v1434, %v2069
  %v3011 = vsel %vm355, %v1435, %v2071
  %v3012 = vsel %vm355, %v1436, %v2073
  %v3013 = vsel %vm355, %v1437, %v2075
  %v3014 = vsel %vm355, %v1438, %v2077
  %v3015 = vsel %vm355, %v1439, %v2079
  %v3016 = vsel %vm355, %v1440, %v2081
  %v3017 = vsel %vm355, %v1441, %v2083
  %v3018 = vsel %vm355, %v1442, %v2085
  %v3019 = vsel %vm355, %v1443, %v2087
  %v3020 = vsel %vm355, %v1444, %v2089
  %v3021 = vsel %vm355, %v1445, %v2091
  %v3022 = vsel %vm355, %v1446, %v2093
  %v3023 = vsel %vm355, %v1447, %v2095
  %v3024 = vsel %vm355, %v1448, %v2097
  %v3025 = vsel %vm355, %v1449, %v2099
  %v3026 = vsel %vm154, %v3001, %v2151
  %v3027 = vsel %vm154, %v3002, %v2153
  %v3028 = vsel %vm154, %v3003, %v2155
  %v3029 = vsel %vm154, %v3004, %v2157
  %v3030 = vsel %vm154, %v3005, %v2159
  %v3031 = vsel %vm154, %v3006, %v2161
  %v3032 = vsel %vm154, %v3007, %v2163
  %v3033 = vsel %vm154, %v3008, %v2165
  %v3034 = vsel %vm154, %v3009, %v2167
  %v3035 = vsel %vm154, %v3010, %v2169
  %v3036 = vsel %vm154, %v3011, %v2171
  %v3037 = vsel %vm154, %v3012, %v2173
  %v3038 = vsel %vm154, %v3013, %v2175
  %v3039 = vsel %vm154, %v3014, %v2177
  %v3040 = vsel %vm154, %v3015, %v2179
  %v3041 = vsel %vm154, %v3016, %v2181
  %v3042 = vsel %vm154, %v3017, %v2183
  %v3043 = vsel %vm154, %v3018, %v2185
  %v3044 = vsel %vm154, %v3019, %v2187
  %v3045 = vsel %vm154, %v3020, %v2189
  %v3046 = vsel %vm154, %v3021, %v2191
  %v3047 = vsel %vm154, %v3022, %v2193
  %v3048 = vsel %vm154, %v3023, %v2195
  %v3049 = vsel %vm154, %v3024, %v2197
  %v3050 = vsel %vm154, %v3025, %v2199
  %v3051 = vsel %vm2975, %v3026, %v2251
  %v3052 = vsel %vm2975, %v3027, %v2253
  %v3053 = vsel %vm2975, %v3028, %v2255
  %v3054 = vsel %vm2975, %v3029, %v2257
  %v3055 = vsel %vm2975, %v3030, %v2259
  %v3056 = vsel %vm2975, %v3031, %v2261
  %v3057 = vsel %vm2975, %v3032, %v2263
  %v3058 = vsel %vm2975, %v3033, %v2265
  %v3059 = vsel %vm2975, %v3034, %v2267
  %v3060 = vsel %vm2975, %v3035, %v2269
  %v3061 = vsel %vm2975, %v3036, %v2271
  %v3062 = vsel %vm2975, %v3037, %v2273
  %v3063 = vsel %vm2975, %v3038, %v2275
  %v3064 = vsel %vm2975, %v3039, %v2277
  %v3065 = vsel %vm2975, %v3040, %v2279
  %v3066 = vsel %vm2975, %v3041, %v2281
  %v3067 = vsel %vm2975, %v3042, %v2283
  %v3068 = vsel %vm2975, %v3043, %v2285
  %v3069 = vsel %vm2975, %v3044, %v2287
  %v3070 = vsel %vm2975, %v3045, %v2289
  %v3071 = vsel %vm2975, %v3046, %v2291
  %v3072 = vsel %vm2975, %v3047, %v2293
  %v3073 = vsel %vm2975, %v3048, %v2295
  %v3074 = vsel %vm2975, %v3049, %v2297
  %v3075 = vsel %vm2975, %v3050, %v2299
  %v3076 = vsel %vm355, %v1525, %v2351
  %v3077 = vsel %vm355, %v1526, %v2353
  %v3078 = vsel %vm355, %v1527, %v2355
  %v3079 = vsel %vm355, %v1528, %v2357
  %v3080 = vsel %vm355, %v1529, %v2359
  %v3081 = vsel %vm355, %v1530, %v2361
  %v3082 = vsel %vm355, %v1531, %v2363
  %v3083 = vsel %vm355, %v1532, %v2365
  %v3084 = vsel %vm355, %v1533, %v2367
  %v3085 = vsel %vm355, %v1534, %v2369
  %v3086 = vsel %vm355, %v1535, %v2371
  %v3087 = vsel %vm355, %v1536, %v2373
  %v3088 = vsel %vm355, %v1537, %v2375
  %v3089 = vsel %vm355, %v1538, %v2377
  %v3090 = vsel %vm355, %v1539, %v2379
  %v3091 = vsel %vm355, %v1540, %v2381
  %v3092 = vsel %vm355, %v1541, %v2383
  %v3093 = vsel %vm355, %v1542, %v2385
  %v3094 = vsel %vm355, %v1543, %v2387
  %v3095 = vsel %vm355, %v1544, %v2389
  %v3096 = vsel %vm355, %v1545, %v2391
  %v3097 = vsel %vm355, %v1546, %v2393
  %v3098 = vsel %vm355, %v1547, %v2395
  %v3099 = vsel %vm355, %v1548, %v2397
  %v3100 = vsel %vm355, %v1549, %v2399
  %v3101 = vsel %vm154, %v3076, %v2451
  %v3102 = vsel %vm154, %v3077, %v2453
  %v3103 = vsel %vm154, %v3078, %v2455
  %v3104 = vsel %vm154, %v3079, %v2457
  %v3105 = vsel %vm154, %v3080, %v2459
  %v3106 = vsel %vm154, %v3081, %v2461
  %v3107 = vsel %vm154, %v3082, %v2463
  %v3108 = vsel %vm154, %v3083, %v2465
  %v3109 = vsel %vm154, %v3084, %v2467
  %v3110 = vsel %vm154, %v3085, %v2469
  %v3111 = vsel %vm154, %v3086, %v2471
  %v3112 = vsel %vm154, %v3087, %v2473
  %v3113 = vsel %vm154, %v3088, %v2475
  %v3114 = vsel %vm154, %v3089, %v2477
  %v3115 = vsel %vm154, %v3090, %v2479
  %v3116 = vsel %vm154, %v3091, %v2481
  %v3117 = vsel %vm154, %v3092, %v2483
  %v3118 = vsel %vm154, %v3093, %v2485
  %v3119 = vsel %vm154, %v3094, %v2487
  %v3120 = vsel %vm154, %v3095, %v2489
  %v3121 = vsel %vm154, %v3096, %v2491
  %v3122 = vsel %vm154, %v3097, %v2493
  %v3123 = vsel %vm154, %v3098, %v2495
  %v3124 = vsel %vm154, %v3099, %v2497
  %v3125 = vsel %vm154, %v3100, %v2499
  %v3126 = vsel %vm2975, %v3101, %v2551
  %v3127 = vsel %vm2975, %v3102, %v2553
  %v3128 = vsel %vm2975, %v3103, %v2555
  %v3129 = vsel %vm2975, %v3104, %v2557
  %v3130 = vsel %vm2975, %v3105, %v2559
  %v3131 = vsel %vm2975, %v3106, %v2561
  %v3132 = vsel %vm2975, %v3107, %v2563
  %v3133 = vsel %vm2975, %v3108, %v2565
  %v3134 = vsel %vm2975, %v3109, %v2567
  %v3135 = vsel %vm2975, %v3110, %v2569
  %v3136 = vsel %vm2975, %v3111, %v2571
  %v3137 = vsel %vm2975, %v3112, %v2573
  %v3138 = vsel %vm2975, %v3113, %v2575
  %v3139 = vsel %vm2975, %v3114, %v2577
  %v3140 = vsel %vm2975, %v3115, %v2579
  %v3141 = vsel %vm2975, %v3116, %v2581
  %v3142 = vsel %vm2975, %v3117, %v2583
  %v3143 = vsel %vm2975, %v3118, %v2585
  %v3144 = vsel %vm2975, %v3119, %v2587
  %v3145 = vsel %vm2975, %v3120, %v2589
  %v3146 = vsel %vm2975, %v3121, %v2591
  %v3147 = vsel %vm2975, %v3122, %v2593
  %v3148 = vsel %vm2975, %v3123, %v2595
  %v3149 = vsel %vm2975, %v3124, %v2597
  %v3150 = vsel %vm2975, %v3125, %v2599
  %v3151 = vsel %vm355, %v1625, %v2651
  %v3152 = vsel %vm355, %v1626, %v2653
  %v3153 = vsel %vm355, %v1627, %v2655
  %v3154 = vsel %vm355, %v1628, %v2657
  %v3155 = vsel %vm355, %v1629, %v2659
  %v3156 = vsel %vm355, %v1630, %v2661
  %v3157 = vsel %vm355, %v1631, %v2663
  %v3158 = vsel %vm355, %v1632, %v2665
  %v3159 = vsel %vm355, %v1633, %v2667
  %v3160 = vsel %vm355, %v1634, %v2669
  %v3161 = vsel %vm355, %v1635, %v2671
  %v3162 = vsel %vm355, %v1636, %v2673
  %v3163 = vsel %vm355, %v1637, %v2675
  %v3164 = vsel %vm355, %v1638, %v2677
  %v3165 = vsel %vm355, %v1639, %v2679
  %v3166 = vsel %vm355, %v1640, %v2681
  %v3167 = vsel %vm355, %v1641, %v2683
  %v3168 = vsel %vm355, %v1642, %v2685
  %v3169 = vsel %vm355, %v1643, %v2687
  %v3170 = vsel %vm355, %v1644, %v2689
  %v3171 = vsel %vm355, %v1645, %v2691
  %v3172 = vsel %vm355, %v1646, %v2693
  %v3173 = vsel %vm355, %v1647, %v2695
  %v3174 = vsel %vm355, %v1648, %v2697
  %v3175 = vsel %vm355, %v1649, %v2699
  %v3176 = vsel %vm154, %v3151, %v2751
  %v3177 = vsel %vm154, %v3152, %v2753
  %v3178 = vsel %vm154, %v3153, %v2755
  %v3179 = vsel %vm154, %v3154, %v2757
  %v3180 = vsel %vm154, %v3155, %v2759
  %v3181 = vsel %vm154, %v3156, %v2761
  %v3182 = vsel %vm154, %v3157, %v2763
  %v3183 = vsel %vm154, %v3158, %v2765
  %v3184 = vsel %vm154, %v3159, %v2767
  %v3185 = vsel %vm154, %v3160, %v2769
  %v3186 = vsel %vm154, %v3161, %v2771
  %v3187 = vsel %vm154, %v3162, %v2773
  %v3188 = vsel %vm154, %v3163, %v2775
  %v3189 = vsel %vm154, %v3164, %v2777
  %v3190 = vsel %vm154, %v3165, %v2779
  %v3191 = vsel %vm154, %v3166, %v2781
  %v3192 = vsel %vm154, %v3167, %v2783
  %v3193 = vsel %vm154, %v3168, %v2785
  %v3194 = vsel %vm154, %v3169, %v2787
  %v3195 = vsel %vm154, %v3170, %v2789
  %v3196 = vsel %vm154, %v3171, %v2791
  %v3197 = vsel %vm154, %v3172, %v2793
  %v3198 = vsel %vm154, %v3173, %v2795
  %v3199 = vsel %vm154, %v3174, %v2797
  %v3200 = vsel %vm154, %v3175, %v2799
  %v3201 = vsel %vm2975, %v3176, %v2851
  %v3202 = vsel %vm2975, %v3177, %v2853
  %v3203 = vsel %vm2975, %v3178, %v2855
  %v3204 = vsel %vm2975, %v3179, %v2857
  %v3205 = vsel %vm2975, %v3180, %v2859
  %v3206 = vsel %vm2975, %v3181, %v2861
  %v3207 = vsel %vm2975, %v3182, %v2863
  %v3208 = vsel %vm2975, %v3183, %v2865
  %v3209 = vsel %vm2975, %v3184, %v2867
  %v3210 = vsel %vm2975, %v3185, %v2869
  %v3211 = vsel %vm2975, %v3186, %v2871
  %v3212 = vsel %vm2975, %v3187, %v2873
  %v3213 = vsel %vm2975, %v3188, %v2875
  %v3214 = vsel %vm2975, %v3189, %v2877
  %v3215 = vsel %vm2975, %v3190, %v2879
  %v3216 = vsel %vm2975, %v3191, %v2881
  %v3217 = vsel %vm2975, %v3192, %v2883
  %v3218 = vsel %vm2975, %v3193, %v2885
  %v3219 = vsel %vm2975, %v3194, %v2887
  %v3220 = vsel %vm2975, %v3195, %v2889
  %v3221 = vsel %vm2975, %v3196, %v2891
  %v3222 = vsel %vm2975, %v3197, %v2893
  %v3223 = vsel %vm2975, %v3198, %v2895
  %v3224 = vsel %vm2975, %v3199, %v2897
  %v3225 = vsel %vm2975, %v3200, %v2899
  %v3226 = vpack.c.bf16 %v2977, %v2976
  %v3227 = vpack.c.bf16 %v3052, %v3051
  %v3228 = vpack.c.bf16 %v3127, %v3126
  %v3229 = vpack.c.bf16 %v3202, %v3201
  %v3230 = vpack.c.bf16 %v2979, %v2978
  %v3231 = vpack.c.bf16 %v3054, %v3053
  %v3232 = vpack.c.bf16 %v3129, %v3128
  %v3233 = vpack.c.bf16 %v3204, %v3203
  %v3234 = vpack.c.bf16 %v2981, %v2980
  %v3235 = vpack.c.bf16 %v3056, %v3055
  %v3236 = vpack.c.bf16 %v3131, %v3130
  %v3237 = vpack.c.bf16 %v3206, %v3205
  %v3238 = vpack.c.bf16 %v2983, %v2982
  %v3239 = vpack.c.bf16 %v3058, %v3057
  %v3240 = vpack.c.bf16 %v3133, %v3132
  %v3241 = vpack.c.bf16 %v3208, %v3207
  %v3242 = vpack.c.bf16 %v2985, %v2984
  %v3243 = vpack.c.bf16 %v3060, %v3059
  %v3244 = vpack.c.bf16 %v3135, %v3134
  %v3245 = vpack.c.bf16 %v3210, %v3209
  %v3246 = vpack.c.bf16 %v2987, %v2986
  %v3247 = vpack.c.bf16 %v3062, %v3061
  %v3248 = vpack.c.bf16 %v3137, %v3136
  %v3249 = vpack.c.bf16 %v3212, %v3211
  %v3250 = vpack.c.bf16 %v2989, %v2988
  %v3251 = vpack.c.bf16 %v3064, %v3063
  %v3252 = vpack.c.bf16 %v3139, %v3138
  %v3253 = vpack.c.bf16 %v3214, %v3213
  %v3254 = vpack.c.bf16 %v2991, %v2990
  %v3255 = vpack.c.bf16 %v3066, %v3065
  %v3256 = vpack.c.bf16 %v3141, %v3140
  %v3257 = vpack.c.bf16 %v3216, %v3215
  %v3258 = vpack.c.bf16 %v2993, %v2992
  %v3259 = vpack.c.bf16 %v3068, %v3067
  %v3260 = vpack.c.bf16 %v3143, %v3142
  %v3261 = vpack.c.bf16 %v3218, %v3217
  %v3262 = vpack.c.bf16 %v2995, %v2994
  %v3263 = vpack.c.bf16 %v3070, %v3069
  %v3264 = vpack.c.bf16 %v3145, %v3144
  %v3265 = vpack.c.bf16 %v3220, %v3219
  %v3266 = vpack.c.bf16 %v2997, %v2996
  %v3267 = vpack.c.bf16 %v3072, %v3071
  %v3268 = vpack.c.bf16 %v3147, %v3146
  %v3269 = vpack.c.bf16 %v3222, %v3221
  %v3270 = vpack.c.bf16 %v2999, %v2998
  %v3271 = vpack.c.bf16 %v3074, %v3073
  %v3272 = vpack.c.bf16 %v3149, %v3148
  %v3273 = vpack.c.bf16 %v3224, %v3223
  %v3274 = vpack.c.bf16 %v3000, %v3000
  %v3275 = vpack.c.bf16 %v3075, %v3075
  %v3276 = vpack.c.bf16 %v3150, %v3150
  %v3277 = vpack.c.bf16 %v3225, %v3225
  %v3278 = vld [vmem:[%s3] sm:$0xf]
  %v3279 = vld [vmem:[%s3 + $0x4] sm:$0xf]
  %v3280 = vld [vmem:[%s3 + $0x8] sm:$0xf]
  %v3281 = vld [vmem:[%s3 + $0xc] sm:$0xf]
  %v3282 = vld [vmem:[%s3 + $0x10] sm:$0xf]
  %v3283 = vld [vmem:[%s3 + $0x14] sm:$0xf]
  %v3284 = vld [vmem:[%s3 + $0x18] sm:$0xf]
  %v3285 = vld [vmem:[%s3 + $0x1c] sm:$0xf]
  %v3286 = vld [vmem:[%s3 + $0x20] sm:$0xf]
  %v3287 = vld [vmem:[%s3 + $0x24] sm:$0xf]
  %v3288 = vld [vmem:[%s3 + $0x28] sm:$0xf]
  %v3289 = vld [vmem:[%s3 + $0x2c] sm:$0xf]
  %v3290 = vld [vmem:[%s3 + $0x30] sm:$0xf]
  %v3291 = vld [vmem:[%s3 + $0x34] sm:$0xf]
  %v3292 = vld [vmem:[%s3 + $0x38] sm:$0xf]
  %v3293 = vld [vmem:[%s3 + $0x3c] sm:$0xf]
  %v3294 = vld [vmem:[%s3 + $0x40] sm:$0xf]
  %v3295 = vld [vmem:[%s3 + $0x44] sm:$0xf]
  %v3296 = vld [vmem:[%s3 + $0x48] sm:$0xf]
  %v3297 = vld [vmem:[%s3 + $0x4c] sm:$0xf]
  %v3298 = vld [vmem:[%s3 + $0x50] sm:$0xf]
  %v3299 = vld [vmem:[%s3 + $0x54] sm:$0xf]
  %v3300 = vld [vmem:[%s3 + $0x58] sm:$0xf]
  %v3301 = vld [vmem:[%s3 + $0x5c] sm:$0xf]
  %v3302 = vld [vmem:[%s3 + $0x60] sm:$0xf]
  %v3303 = vld [vmem:[%s3 + $0x64] sm:$0xf]
  %v3304 = vld [vmem:[%s3 + $0x68] sm:$0xf]
  %v3305 = vld [vmem:[%s3 + $0x6c] sm:$0xf]
  %v3306 = vld [vmem:[%s3 + $0x70] sm:$0xf]
  %v3307 = vld [vmem:[%s3 + $0x74] sm:$0xf]
  %v3308 = vld [vmem:[%s3 + $0x78] sm:$0xf]
  %v3309 = vld [vmem:[%s3 + $0x7c] sm:$0xf]
  %v3310 = vld [vmem:[%s3 + $0x80] sm:$0xf]
  %v3311 = vld [vmem:[%s3 + $0x84] sm:$0xf]
  %v3312 = vld [vmem:[%s3 + $0x88] sm:$0xf]
  %v3313 = vld [vmem:[%s3 + $0x8c] sm:$0xf]
  %v3314 = vld [vmem:[%s3 + $0x90] sm:$0xf]
  %v3315 = vld [vmem:[%s3 + $0x94] sm:$0xf]
  %v3316 = vld [vmem:[%s3 + $0x98] sm:$0xf]
  %v3317 = vld [vmem:[%s3 + $0x9c] sm:$0xf]
  %v3318 = vld [vmem:[%s3 + $0xa0] sm:$0xf]
  %v3319 = vld [vmem:[%s3 + $0xa4] sm:$0xf]
  %v3320 = vld [vmem:[%s3 + $0xa8] sm:$0xf]
  %v3321 = vld [vmem:[%s3 + $0xac] sm:$0xf]
  %v3322 = vld [vmem:[%s3 + $0xb0] sm:$0xf]
  %v3323 = vld [vmem:[%s3 + $0xb4] sm:$0xf]
  %v3324 = vld [vmem:[%s3 + $0xb8] sm:$0xf]
  %v3325 = vld [vmem:[%s3 + $0xbc] sm:$0xf]
  %v3326 = vld [vmem:[%s3 + $0xc0] sm:$0xf]
  %v3327 = vld [vmem:[%s3 + $0xc4] sm:$0xf]
  %v3328 = vld [vmem:[%s3 + $0xc8] sm:$0xf]
  %v3329 = vld [vmem:[%s3 + $0xcc] sm:$0xf]
  %v3330 = vld [vmem:[%s3 + $0xd0] sm:$0xf]
  %v3331 = vld [vmem:[%s3 + $0xd4] sm:$0xf]
  %v3332 = vld [vmem:[%s3 + $0xd8] sm:$0xf]
  %v3333 = vld [vmem:[%s3 + $0xdc] sm:$0xf]
  %v3334 = vld [vmem:[%s3 + $0xe0] sm:$0xf]
  %v3335 = vld [vmem:[%s3 + $0xe4] sm:$0xf]
  %v3336 = vld [vmem:[%s3 + $0xe8] sm:$0xf]
  %v3337 = vld [vmem:[%s3 + $0xec] sm:$0xf]
  %v3338 = vld [vmem:[%s3 + $0xf0] sm:$0xf]
  %v3339 = vld [vmem:[%s3 + $0xf4] sm:$0xf]
  %v3340 = vld [vmem:[%s3 + $0xf8] sm:$0xf]
  %v3341 = vld [vmem:[%s3 + $0xfc] sm:$0xf]
  %v3342 = vld [vmem:[%s4] sm:$0x1]
  %v3344 = vlaneseq
  %v3345 = vshrl.u32 %v3344, 7
  %v3346 = vsub.s32 0, %v3345
  %v3347 = vrot.slane %v3342, %v3346
  %v3413 = vunpack.c.l.b16 %v3278
  %v3414 = vunpack.c.l.b16 %v3279
  %v3415 = vunpack.c.l.b16 %v3280
  %v3416 = vunpack.c.l.b16 %v3281
  %v3417 = vunpack.c.l.b16 %v3282
  %v3418 = vunpack.c.l.b16 %v3283
  %v3419 = vunpack.c.l.b16 %v3284
  %v3420 = vunpack.c.l.b16 %v3285
  %v3421 = vunpack.c.l.b16 %v3286
  %v3422 = vunpack.c.l.b16 %v3287
  %v3423 = vunpack.c.l.b16 %v3288
  %v3424 = vunpack.c.l.b16 %v3289
  %v3425 = vunpack.c.l.b16 %v3290
  %v3426 = vunpack.c.l.b16 %v3291
  %v3427 = vunpack.c.l.b16 %v3292
  %v3428 = vunpack.c.l.b16 %v3293
  %v3429 = vunpack.c.l.b16 %v3294
  %v3430 = vunpack.c.l.b16 %v3295
  %v3431 = vunpack.c.l.b16 %v3296
  %v3432 = vunpack.c.l.b16 %v3297
  %v3433 = vunpack.c.l.b16 %v3298
  %v3434 = vunpack.c.l.b16 %v3299
  %v3435 = vunpack.c.l.b16 %v3300
  %v3436 = vunpack.c.l.b16 %v3301
  %v3437 = vunpack.c.l.b16 %v3302
  %v3438 = vunpack.c.l.b16 %v3303
  %v3439 = vunpack.c.l.b16 %v3304
  %v3440 = vunpack.c.l.b16 %v3305
  %v3441 = vunpack.c.l.b16 %v3306
  %v3442 = vunpack.c.l.b16 %v3307
  %v3443 = vunpack.c.l.b16 %v3308
  %v3444 = vunpack.c.l.b16 %v3309
  %v3445 = vunpack.c.l.b16 %v3310
  %v3446 = vunpack.c.l.b16 %v3311
  %v3447 = vunpack.c.l.b16 %v3312
  %v3448 = vunpack.c.l.b16 %v3313
  %v3449 = vunpack.c.l.b16 %v3314
  %v3450 = vunpack.c.l.b16 %v3315
  %v3451 = vunpack.c.l.b16 %v3316
  %v3452 = vunpack.c.l.b16 %v3317
  %v3453 = vunpack.c.l.b16 %v3318
  %v3454 = vunpack.c.l.b16 %v3319
  %v3455 = vunpack.c.l.b16 %v3320
  %v3456 = vunpack.c.l.b16 %v3321
  %v3457 = vunpack.c.l.b16 %v3322
  %v3458 = vunpack.c.l.b16 %v3323
  %v3459 = vunpack.c.l.b16 %v3324
  %v3460 = vunpack.c.l.b16 %v3325
  %v3461 = vunpack.c.l.b16 %v3326
  %v3462 = vunpack.c.l.b16 %v3327
  %v3463 = vunpack.c.l.b16 %v3328
  %v3464 = vunpack.c.l.b16 %v3329
  %v3465 = vunpack.c.l.b16 %v3330
  %v3466 = vunpack.c.l.b16 %v3331
  %v3467 = vunpack.c.l.b16 %v3332
  %v3468 = vunpack.c.l.b16 %v3333
  %v3469 = vunpack.c.l.b16 %v3334
  %v3470 = vunpack.c.l.b16 %v3335
  %v3471 = vunpack.c.l.b16 %v3336
  %v3472 = vunpack.c.l.b16 %v3337
  %v3473 = vunpack.c.l.b16 %v3338
  %v3474 = vunpack.c.l.b16 %v3339
  %v3475 = vunpack.c.l.b16 %v3340
  %v3476 = vunpack.c.l.b16 %v3341
  %v3477 = vpack.c.b16 %v3414, %v3413
  %v3478 = vpack.c.b16 %v3416, %v3415
  %v3479 = vpack.c.b16 %v3418, %v3417
  %v3480 = vpack.c.b16 %v3420, %v3419
  %v3481 = vpack.c.b16 %v3422, %v3421
  %v3482 = vpack.c.b16 %v3424, %v3423
  %v3483 = vpack.c.b16 %v3426, %v3425
  %v3484 = vpack.c.b16 %v3428, %v3427
  %v3485 = vpack.c.b16 %v3430, %v3429
  %v3486 = vpack.c.b16 %v3432, %v3431
  %v3487 = vpack.c.b16 %v3434, %v3433
  %v3488 = vpack.c.b16 %v3436, %v3435
  %v3489 = vpack.c.b16 %v3438, %v3437
  %v3490 = vpack.c.b16 %v3440, %v3439
  %v3491 = vpack.c.b16 %v3442, %v3441
  %v3492 = vpack.c.b16 %v3444, %v3443
  %v3493 = vpack.c.b16 %v3446, %v3445
  %v3494 = vpack.c.b16 %v3448, %v3447
  %v3495 = vpack.c.b16 %v3450, %v3449
  %v3496 = vpack.c.b16 %v3452, %v3451
  %v3497 = vpack.c.b16 %v3454, %v3453
  %v3498 = vpack.c.b16 %v3456, %v3455
  %v3499 = vpack.c.b16 %v3458, %v3457
  %v3500 = vpack.c.b16 %v3460, %v3459
  %v3501 = vpack.c.b16 %v3462, %v3461
  %v3502 = vpack.c.b16 %v3464, %v3463
  %v3503 = vpack.c.b16 %v3466, %v3465
  %v3504 = vpack.c.b16 %v3468, %v3467
  %v3505 = vpack.c.b16 %v3470, %v3469
  %v3506 = vpack.c.b16 %v3472, %v3471
  %v3507 = vpack.c.b16 %v3474, %v3473
  %v3508 = vpack.c.b16 %v3476, %v3475
  %3541 = vmatprep.subr.bf16.mxu0 0
  %3542 = vmatpush1.bf16.msra.mxu0 %v3477
  %3543 = vmatprep.subr.bf16.mxu0 0
  %3544 = vmatpush1.bf16.msra.mxu0 %v3478
  %3545 = vmatprep.subr.bf16.mxu0 0
  %3546 = vmatpush1.bf16.msra.mxu0 %v3479
  %3547 = vmatprep.subr.bf16.mxu0 0
  %3548 = vmatpush1.bf16.msra.mxu0 %v3480
  %3549 = vmatprep.subr.bf16.mxu0 0
  %3550 = vmatpush1.bf16.msra.mxu0 %v3481
  %3551 = vmatprep.subr.bf16.mxu0 0
  %3552 = vmatpush1.bf16.msra.mxu0 %v3482
  %3553 = vmatprep.subr.bf16.mxu0 0
  %3554 = vmatpush1.bf16.msra.mxu0 %v3483
  %3555 = vmatprep.subr.bf16.mxu0 0
  %3556 = vmatpush1.bf16.msra.mxu0 %v3484
  %3557 = vmatprep.subr.bf16.mxu0 0
  %3558 = vmatpush1.bf16.msra.mxu0 %v3485
  %3559 = vmatprep.subr.bf16.mxu0 0
  %3560 = vmatpush1.bf16.msra.mxu0 %v3486
  %3561 = vmatprep.subr.bf16.mxu0 0
  %3562 = vmatpush1.bf16.msra.mxu0 %v3487
  %3563 = vmatprep.subr.bf16.mxu0 0
  %3564 = vmatpush1.bf16.msra.mxu0 %v3488
  %3565 = vmatprep.subr.bf16.mxu0 0
  %3566 = vmatpush1.bf16.msra.mxu0 %v3489
  %3567 = vmatprep.subr.bf16.mxu0 0
  %3568 = vmatpush1.bf16.msra.mxu0 %v3490
  %3569 = vmatprep.subr.bf16.mxu0 0
  %3570 = vmatpush1.bf16.msra.mxu0 %v3491
  %3571 = vmatprep.subr.bf16.mxu0 0
  %3572 = vmatpush1.bf16.msra.mxu0 %v3492
  %3573 = vmatprep.mubr.bf16.mxu0 %v3227
  %3574 = vmatmul.mubr.bf16.gmra.mrb[0].mxu0 %v3226
  %v3575 = vpop.f32.mrb[0].mxu0
  %v3576 = vadd.f32 %v3347, %v3575
  %v3577 = vpop.f32.mrb[0].mxu0
  %v3578 = vpop.f32.mrb[0].mxu0
  %v3579 = vadd.f32 %v3347, %v3578
  %v3580 = vpop.f32.mrb[0].mxu0
  %3581 = vmatprep.mubr.bf16.mxu0 %v3231
  %3582 = vmatmul.mubr.bf16.gmra.mrb[0].mxu0 %v3230
  %v3583 = vpop.f32.mrb[0].mxu0
  %v3584 = vadd.f32 %v3347, %v3583
  %v3585 = vpop.f32.mrb[0].mxu0
  %v3586 = vpop.f32.mrb[0].mxu0
  %v3587 = vadd.f32 %v3347, %v3586
  %v3588 = vpop.f32.mrb[0].mxu0
  %3589 = vmatprep.mubr.bf16.mxu0 %v3235
  %3590 = vmatmul.mubr.bf16.gmra.mrb[0].mxu0 %v3234
  %v3591 = vpop.f32.mrb[0].mxu0
  %v3592 = vadd.f32 %v3347, %v3591
  %v3593 = vpop.f32.mrb[0].mxu0
  %v3594 = vpop.f32.mrb[0].mxu0
  %v3595 = vadd.f32 %v3347, %v3594
  %v3596 = vpop.f32.mrb[0].mxu0
  %3597 = vmatprep.mubr.bf16.mxu0 %v3239
  %3598 = vmatmul.mubr.bf16.gmra.mrb[0].mxu0 %v3238
  %v3599 = vpop.f32.mrb[0].mxu0
  %v3600 = vadd.f32 %v3347, %v3599
  %v3601 = vpop.f32.mrb[0].mxu0
  %v3602 = vpop.f32.mrb[0].mxu0
  %v3603 = vadd.f32 %v3347, %v3602
  %v3604 = vpop.f32.mrb[0].mxu0
  %3605 = vmatprep.mubr.bf16.mxu0 %v3243
  %3606 = vmatmul.mubr.bf16.gmra.mrb[0].mxu0 %v3242
  %v3607 = vpop.f32.mrb[0].mxu0
  %v3608 = vadd.f32 %v3347, %v3607
  %v3609 = vpop.f32.mrb[0].mxu0
  %v3610 = vpop.f32.mrb[0].mxu0
  %v3611 = vadd.f32 %v3347, %v3610
  %v3612 = vpop.f32.mrb[0].mxu0
  %3613 = vmatprep.mubr.bf16.mxu0 %v3247
  %3614 = vmatmul.mubr.bf16.gmra.mrb[0].mxu0 %v3246
  %v3615 = vpop.f32.mrb[0].mxu0
  %v3616 = vadd.f32 %v3347, %v3615
  %v3617 = vpop.f32.mrb[0].mxu0
  %v3618 = vpop.f32.mrb[0].mxu0
  %v3619 = vadd.f32 %v3347, %v3618
  %v3620 = vpop.f32.mrb[0].mxu0
  %3621 = vmatprep.mubr.bf16.mxu0 %v3251
  %3622 = vmatmul.mubr.bf16.gmra.mrb[0].mxu0 %v3250
  %v3623 = vpop.f32.mrb[0].mxu0
  %v3624 = vadd.f32 %v3347, %v3623
  %v3625 = vpop.f32.mrb[0].mxu0
  %v3626 = vpop.f32.mrb[0].mxu0
  %v3627 = vadd.f32 %v3347, %v3626
  %v3628 = vpop.f32.mrb[0].mxu0
  %3629 = vmatprep.mubr.bf16.mxu0 %v3255
  %3630 = vmatmul.mubr.bf16.gmra.mrb[0].mxu0 %v3254
  %v3631 = vpop.f32.mrb[0].mxu0
  %v3632 = vadd.f32 %v3347, %v3631
  %v3633 = vpop.f32.mrb[0].mxu0
  %v3634 = vpop.f32.mrb[0].mxu0
  %v3635 = vadd.f32 %v3347, %v3634
  %v3636 = vpop.f32.mrb[0].mxu0
  %3637 = vmatprep.mubr.bf16.mxu0 %v3259
  %3638 = vmatmul.mubr.bf16.gmra.mrb[0].mxu0 %v3258
  %v3639 = vpop.f32.mrb[0].mxu0
  %v3640 = vadd.f32 %v3347, %v3639
  %v3641 = vpop.f32.mrb[0].mxu0
  %v3642 = vpop.f32.mrb[0].mxu0
  %v3643 = vadd.f32 %v3347, %v3642
  %v3644 = vpop.f32.mrb[0].mxu0
  %3645 = vmatprep.mubr.bf16.mxu0 %v3263
  %3646 = vmatmul.mubr.bf16.gmra.mrb[0].mxu0 %v3262
  %v3647 = vpop.f32.mrb[0].mxu0
  %v3648 = vadd.f32 %v3347, %v3647
  %v3649 = vpop.f32.mrb[0].mxu0
  %v3650 = vpop.f32.mrb[0].mxu0
  %v3651 = vadd.f32 %v3347, %v3650
  %v3652 = vpop.f32.mrb[0].mxu0
  %3653 = vmatprep.mubr.bf16.mxu0 %v3267
  %3654 = vmatmul.mubr.bf16.gmra.mrb[0].mxu0 %v3266
  %v3655 = vpop.f32.mrb[0].mxu0
  %v3656 = vadd.f32 %v3347, %v3655
  %v3657 = vpop.f32.mrb[0].mxu0
  %v3658 = vpop.f32.mrb[0].mxu0
  %v3659 = vadd.f32 %v3347, %v3658
  %v3660 = vpop.f32.mrb[0].mxu0
  %3661 = vmatprep.mubr.bf16.mxu0 %v3271
  %3662 = vmatmul.mubr.bf16.gmra.mrb[0].mxu0 %v3270
  %v3663 = vpop.f32.mrb[0].mxu0
  %v3664 = vadd.f32 %v3347, %v3663
  %v3665 = vpop.f32.mrb[0].mxu0
  %v3666 = vpop.f32.mrb[0].mxu0
  %v3667 = vadd.f32 %v3347, %v3666
  %v3668 = vpop.f32.mrb[0].mxu0
  %3669 = vmatprep.mubr.bf16.mxu0 %v3275
  %3670 = vmatmul.mubr.bf16.gmra.mrb[0].mxu0 %v3274
  %v3671 = vpop.f32.mrb[0].mxu0
  %v3672 = vadd.f32 %v3347, %v3671
  %v3673 = vpop.f32.mrb[0].mxu0
  %v3674 = vpop.f32.mrb[0].mxu0
  %v3675 = vpop.f32.mrb[0].mxu0
  %3676 = vdwg.mxu0
  %3677 = vmatprep.subr.bf16.mxu0 0
  %3678 = vmatpush1.bf16.msra.mxu0 %v3493
  %3679 = vmatprep.subr.bf16.mxu0 0
  %3680 = vmatpush1.bf16.msra.mxu0 %v3494
  %3681 = vmatprep.subr.bf16.mxu0 0
  %3682 = vmatpush1.bf16.msra.mxu0 %v3495
  %3683 = vmatprep.subr.bf16.mxu0 0
  %3684 = vmatpush1.bf16.msra.mxu0 %v3496
  %3685 = vmatprep.subr.bf16.mxu0 0
  %3686 = vmatpush1.bf16.msra.mxu0 %v3497
  %3687 = vmatprep.subr.bf16.mxu0 0
  %3688 = vmatpush1.bf16.msra.mxu0 %v3498
  %3689 = vmatprep.subr.bf16.mxu0 0
  %3690 = vmatpush1.bf16.msra.mxu0 %v3499
  %3691 = vmatprep.subr.bf16.mxu0 0
  %3692 = vmatpush1.bf16.msra.mxu0 %v3500
  %3693 = vmatprep.subr.bf16.mxu0 0
  %3694 = vmatpush1.bf16.msra.mxu0 %v3501
  %3695 = vmatprep.subr.bf16.mxu0 0
  %3696 = vmatpush1.bf16.msra.mxu0 %v3502
  %3697 = vmatprep.subr.bf16.mxu0 0
  %3698 = vmatpush1.bf16.msra.mxu0 %v3503
  %3699 = vmatprep.subr.bf16.mxu0 0
  %3700 = vmatpush1.bf16.msra.mxu0 %v3504
  %3701 = vmatprep.subr.bf16.mxu0 0
  %3702 = vmatpush1.bf16.msra.mxu0 %v3505
  %3703 = vmatprep.subr.bf16.mxu0 0
  %3704 = vmatpush1.bf16.msra.mxu0 %v3506
  %3705 = vmatprep.subr.bf16.mxu0 0
  %3706 = vmatpush1.bf16.msra.mxu0 %v3507
  %3707 = vmatprep.subr.bf16.mxu0 0
  %3708 = vmatpush1.bf16.msra.mxu0 %v3508
  %3709 = vmatprep.mubr.bf16.mxu0 %v3229
  %3710 = vmatmul.mubr.bf16.gmra.mrb[0].mxu0 %v3228
  %v3711 = vpop.f32.mrb[0].mxu0
  %v3712 = vadd.f32 %v3576, %v3711
  %v3713 = vpop.f32.mrb[0].mxu0
  %v3714 = vpop.f32.mrb[0].mxu0
  %v3715 = vadd.f32 %v3579, %v3714
  %v3716 = vpop.f32.mrb[0].mxu0
  %3717 = vmatprep.mubr.bf16.mxu0 %v3233
  %3718 = vmatmul.mubr.bf16.gmra.mrb[0].mxu0 %v3232
  %v3719 = vpop.f32.mrb[0].mxu0
  %v3720 = vadd.f32 %v3584, %v3719
  %v3721 = vpop.f32.mrb[0].mxu0
  %v3722 = vpop.f32.mrb[0].mxu0
  %v3723 = vadd.f32 %v3587, %v3722
  %v3724 = vpop.f32.mrb[0].mxu0
  %3725 = vmatprep.mubr.bf16.mxu0 %v3237
  %3726 = vmatmul.mubr.bf16.gmra.mrb[0].mxu0 %v3236
  %v3727 = vpop.f32.mrb[0].mxu0
  %v3728 = vadd.f32 %v3592, %v3727
  %v3729 = vpop.f32.mrb[0].mxu0
  %v3730 = vpop.f32.mrb[0].mxu0
  %v3731 = vadd.f32 %v3595, %v3730
  %v3732 = vpop.f32.mrb[0].mxu0
  %3733 = vmatprep.mubr.bf16.mxu0 %v3241
  %3734 = vmatmul.mubr.bf16.gmra.mrb[0].mxu0 %v3240
  %v3735 = vpop.f32.mrb[0].mxu0
  %v3736 = vadd.f32 %v3600, %v3735
  %v3737 = vpop.f32.mrb[0].mxu0
  %v3738 = vpop.f32.mrb[0].mxu0
  %v3739 = vadd.f32 %v3603, %v3738
  %v3740 = vpop.f32.mrb[0].mxu0
  %3741 = vmatprep.mubr.bf16.mxu0 %v3245
  %3742 = vmatmul.mubr.bf16.gmra.mrb[0].mxu0 %v3244
  %v3743 = vpop.f32.mrb[0].mxu0
  %v3744 = vadd.f32 %v3608, %v3743
  %v3745 = vpop.f32.mrb[0].mxu0
  %v3746 = vpop.f32.mrb[0].mxu0
  %v3747 = vadd.f32 %v3611, %v3746
  %v3748 = vpop.f32.mrb[0].mxu0
  %3749 = vmatprep.mubr.bf16.mxu0 %v3249
  %3750 = vmatmul.mubr.bf16.gmra.mrb[0].mxu0 %v3248
  %v3751 = vpop.f32.mrb[0].mxu0
  %v3752 = vadd.f32 %v3616, %v3751
  %v3753 = vpop.f32.mrb[0].mxu0
  %v3754 = vpop.f32.mrb[0].mxu0
  %v3755 = vadd.f32 %v3619, %v3754
  %v3756 = vpop.f32.mrb[0].mxu0
  %3757 = vmatprep.mubr.bf16.mxu0 %v3253
  %3758 = vmatmul.mubr.bf16.gmra.mrb[0].mxu0 %v3252
  %v3759 = vpop.f32.mrb[0].mxu0
  %v3760 = vadd.f32 %v3624, %v3759
  %v3761 = vpop.f32.mrb[0].mxu0
  %v3762 = vpop.f32.mrb[0].mxu0
  %v3763 = vadd.f32 %v3627, %v3762
  %v3764 = vpop.f32.mrb[0].mxu0
  %3765 = vmatprep.mubr.bf16.mxu0 %v3257
  %3766 = vmatmul.mubr.bf16.gmra.mrb[0].mxu0 %v3256
  %v3767 = vpop.f32.mrb[0].mxu0
  %v3768 = vadd.f32 %v3632, %v3767
  %v3769 = vpop.f32.mrb[0].mxu0
  %v3770 = vpop.f32.mrb[0].mxu0
  %v3771 = vadd.f32 %v3635, %v3770
  %v3772 = vpop.f32.mrb[0].mxu0
  %3773 = vmatprep.mubr.bf16.mxu0 %v3261
  %3774 = vmatmul.mubr.bf16.gmra.mrb[0].mxu0 %v3260
  %v3775 = vpop.f32.mrb[0].mxu0
  %v3776 = vadd.f32 %v3640, %v3775
  %v3777 = vpop.f32.mrb[0].mxu0
  %v3778 = vpop.f32.mrb[0].mxu0
  %v3779 = vadd.f32 %v3643, %v3778
  %v3780 = vpop.f32.mrb[0].mxu0
  %3781 = vmatprep.mubr.bf16.mxu0 %v3265
  %3782 = vmatmul.mubr.bf16.gmra.mrb[0].mxu0 %v3264
  %v3783 = vpop.f32.mrb[0].mxu0
  %v3784 = vadd.f32 %v3648, %v3783
  %v3785 = vpop.f32.mrb[0].mxu0
  %v3786 = vpop.f32.mrb[0].mxu0
  %v3787 = vadd.f32 %v3651, %v3786
  %v3788 = vpop.f32.mrb[0].mxu0
  %3789 = vmatprep.mubr.bf16.mxu0 %v3269
  %3790 = vmatmul.mubr.bf16.gmra.mrb[0].mxu0 %v3268
  %v3791 = vpop.f32.mrb[0].mxu0
  %v3792 = vadd.f32 %v3656, %v3791
  %v3793 = vpop.f32.mrb[0].mxu0
  %v3794 = vpop.f32.mrb[0].mxu0
  %v3795 = vadd.f32 %v3659, %v3794
  %v3796 = vpop.f32.mrb[0].mxu0
  %3797 = vmatprep.mubr.bf16.mxu0 %v3273
  %3798 = vmatmul.mubr.bf16.gmra.mrb[0].mxu0 %v3272
  %v3799 = vpop.f32.mrb[0].mxu0
  %v3800 = vadd.f32 %v3664, %v3799
  %v3801 = vpop.f32.mrb[0].mxu0
  %v3802 = vpop.f32.mrb[0].mxu0
  %v3803 = vadd.f32 %v3667, %v3802
  %v3804 = vpop.f32.mrb[0].mxu0
  %3805 = vmatprep.mubr.bf16.mxu0 %v3277
  %3806 = vmatmul.mubr.bf16.gmra.mrb[0].mxu0 %v3276
  %v3807 = vpop.f32.mrb[0].mxu0
  %v3808 = vadd.f32 %v3672, %v3807
  %v3809 = vpop.f32.mrb[0].mxu0
  %v3810 = vpop.f32.mrb[0].mxu0
  %v3811 = vpop.f32.mrb[0].mxu0
  %3812 = vdwg.mxu0
  %v3813 = vmax.f32 %v3712, 0.0
  %v3814 = vmax.f32 %v3715, 0.0
  %v3815 = vmax.f32 %v3720, 0.0
  %v3816 = vmax.f32 %v3723, 0.0
  %v3817 = vmax.f32 %v3728, 0.0
  %v3818 = vmax.f32 %v3731, 0.0
  %v3819 = vmax.f32 %v3736, 0.0
  %v3820 = vmax.f32 %v3739, 0.0
  %v3821 = vmax.f32 %v3744, 0.0
  %v3822 = vmax.f32 %v3747, 0.0
  %v3823 = vmax.f32 %v3752, 0.0
  %v3824 = vmax.f32 %v3755, 0.0
  %v3825 = vmax.f32 %v3760, 0.0
  %v3826 = vmax.f32 %v3763, 0.0
  %v3827 = vmax.f32 %v3768, 0.0
  %v3828 = vmax.f32 %v3771, 0.0
  %v3829 = vmax.f32 %v3776, 0.0
  %v3830 = vmax.f32 %v3779, 0.0
  %v3831 = vmax.f32 %v3784, 0.0
  %v3832 = vmax.f32 %v3787, 0.0
  %v3833 = vmax.f32 %v3792, 0.0
  %v3834 = vmax.f32 %v3795, 0.0
  %v3835 = vmax.f32 %v3800, 0.0
  %v3836 = vmax.f32 %v3803, 0.0
  %v3837 = vmax.f32 %v3808, 0.0
  %3838 = vst.msk [vmem:[#allocation3] sm:$0xff] %vm154, %v3813
  %3839 = vst.msk [vmem:[#allocation3 + $0x8] sm:$0xff] %vm154, %v3814
  %3840 = vst.msk [vmem:[#allocation3 + $0x10] sm:$0xff] %vm154, %v3815
  %3841 = vst.msk [vmem:[#allocation3 + $0x18] sm:$0xff] %vm154, %v3816
  %3842 = vst.msk [vmem:[#allocation3 + $0x20] sm:$0xff] %vm154, %v3817
  %3843 = vst.msk [vmem:[#allocation3 + $0x28] sm:$0xff] %vm154, %v3818
  %3844 = vst.msk [vmem:[#allocation3 + $0x30] sm:$0xff] %vm154, %v3819
  %3845 = vst.msk [vmem:[#allocation3 + $0x38] sm:$0xff] %vm154, %v3820
  %3846 = vst.msk [vmem:[#allocation3 + $0x40] sm:$0xff] %vm154, %v3821
  %3847 = vst.msk [vmem:[#allocation3 + $0x48] sm:$0xff] %vm154, %v3822
  %3848 = vst.msk [vmem:[#allocation3 + $0x50] sm:$0xff] %vm154, %v3823
  %3849 = vst.msk [vmem:[#allocation3 + $0x58] sm:$0xff] %vm154, %v3824
  %3850 = vst.msk [vmem:[#allocation3 + $0x60] sm:$0xff] %vm154, %v3825
  %3851 = vst.msk [vmem:[#allocation3 + $0x68] sm:$0xff] %vm154, %v3826
  %3852 = vst.msk [vmem:[#allocation3 + $0x70] sm:$0xff] %vm154, %v3827
  %3853 = vst.msk [vmem:[#allocation3 + $0x78] sm:$0xff] %vm154, %v3828
  %3854 = vst.msk [vmem:[#allocation3 + $0x80] sm:$0xff] %vm154, %v3829
  %3855 = vst.msk [vmem:[#allocation3 + $0x88] sm:$0xff] %vm154, %v3830
  %3856 = vst.msk [vmem:[#allocation3 + $0x90] sm:$0xff] %vm154, %v3831
  %3857 = vst.msk [vmem:[#allocation3 + $0x98] sm:$0xff] %vm154, %v3832
  %3858 = vst.msk [vmem:[#allocation3 + $0xa0] sm:$0xff] %vm154, %v3833
  %3859 = vst.msk [vmem:[#allocation3 + $0xa8] sm:$0xff] %vm154, %v3834
  %3860 = vst.msk [vmem:[#allocation3 + $0xb0] sm:$0xff] %vm154, %v3835
  %3861 = vst.msk [vmem:[#allocation3 + $0xb8] sm:$0xff] %vm154, %v3836
  %3862 = vst.msk [vmem:[#allocation3 + $0xc0] sm:$0xff] %vm154, %v3837
  %3863 = vst.msk [vmem:[#allocation3 + $0xc8] sm:$0xff] %vm154, 0.0
  %3864 = vst.msk [vmem:[#allocation3 + $0xd0] sm:$0xff] %vm154, 0.0
  %3865 = vst.msk [vmem:[#allocation3 + $0xd8] sm:$0xff] %vm154, 0.0
  %v3866 = vld [vmem:[#allocation3] sm:$0xff]
  %v3867 = vld [vmem:[#allocation3 + $0x8] sm:$0xff]
  %v3868 = vld [vmem:[#allocation3 + $0x10] sm:$0xff]
  %v3869 = vld [vmem:[#allocation3 + $0x18] sm:$0xff]
  %v3870 = vld [vmem:[#allocation3 + $0x20] sm:$0xff]
  %v3871 = vld [vmem:[#allocation3 + $0x28] sm:$0xff]
  %v3872 = vld [vmem:[#allocation3 + $0x30] sm:$0xff]
  %v3873 = vld [vmem:[#allocation3 + $0x38] sm:$0xff]
  %v3874 = vld [vmem:[#allocation3 + $0x40] sm:$0xff]
  %v3875 = vld [vmem:[#allocation3 + $0x48] sm:$0xff]
  %v3876 = vld [vmem:[#allocation3 + $0x50] sm:$0xff]
  %v3877 = vld [vmem:[#allocation3 + $0x58] sm:$0xff]
  %v3878 = vld [vmem:[#allocation3 + $0x60] sm:$0xff]
  %v3879 = vld [vmem:[#allocation3 + $0x68] sm:$0xff]
  %v3880 = vld [vmem:[#allocation3 + $0x70] sm:$0xff]
  %v3881 = vld [vmem:[#allocation3 + $0x78] sm:$0xff]
  %v3882 = vld [vmem:[#allocation3 + $0x80] sm:$0xff]
  %v3883 = vld [vmem:[#allocation3 + $0x88] sm:$0xff]
  %v3884 = vld [vmem:[#allocation3 + $0x90] sm:$0xff]
  %v3885 = vld [vmem:[#allocation3 + $0x98] sm:$0xff]
  %v3886 = vld [vmem:[#allocation3 + $0xa0] sm:$0xff]
  %v3887 = vld [vmem:[#allocation3 + $0xa8] sm:$0xff]
  %v3888 = vld [vmem:[#allocation3 + $0xb0] sm:$0xff]
  %v3889 = vld [vmem:[#allocation3 + $0xb8] sm:$0xff]
  %v3890 = vld [vmem:[#allocation3 + $0xc0] sm:$0xff]
  %v3891 = vld [vmem:[#allocation3 + $0x1] sm:$0xff]
  %v3892 = vld [vmem:[#allocation3 + $0x9] sm:$0xff]
  %v3893 = vld [vmem:[#allocation3 + $0x11] sm:$0xff]
  %v3894 = vld [vmem:[#allocation3 + $0x19] sm:$0xff]
  %v3895 = vld [vmem:[#allocation3 + $0x21] sm:$0xff]
  %v3896 = vld [vmem:[#allocation3 + $0x29] sm:$0xff]
  %v3897 = vld [vmem:[#allocation3 + $0x31] sm:$0xff]
  %v3898 = vld [vmem:[#allocation3 + $0x39] sm:$0xff]
  %v3899 = vld [vmem:[#allocation3 + $0x41] sm:$0xff]
  %v3900 = vld [vmem:[#allocation3 + $0x49] sm:$0xff]
  %v3901 = vld [vmem:[#allocation3 + $0x51] sm:$0xff]
  %v3902 = vld [vmem:[#allocation3 + $0x59] sm:$0xff]
  %v3903 = vld [vmem:[#allocation3 + $0x61] sm:$0xff]
  %v3904 = vld [vmem:[#allocation3 + $0x69] sm:$0xff]
  %v3905 = vld [vmem:[#allocation3 + $0x71] sm:$0xff]
  %v3906 = vld [vmem:[#allocation3 + $0x79] sm:$0xff]
  %v3907 = vld [vmem:[#allocation3 + $0x81] sm:$0xff]
  %v3908 = vld [vmem:[#allocation3 + $0x89] sm:$0xff]
  %v3909 = vld [vmem:[#allocation3 + $0x91] sm:$0xff]
  %v3910 = vld [vmem:[#allocation3 + $0x99] sm:$0xff]
  %v3911 = vld [vmem:[#allocation3 + $0xa1] sm:$0xff]
  %v3912 = vld [vmem:[#allocation3 + $0xa9] sm:$0xff]
  %v3913 = vld [vmem:[#allocation3 + $0xb1] sm:$0xff]
  %v3914 = vld [vmem:[#allocation3 + $0xb9] sm:$0xff]
  %v3915 = vld [vmem:[#allocation3 + $0xc1] sm:$0xff]
  %v3916 = vld [vmem:[#allocation3 + $0x2] sm:$0xff]
  %v3917 = vld [vmem:[#allocation3 + $0xa] sm:$0xff]
  %v3918 = vld [vmem:[#allocation3 + $0x12] sm:$0xff]
  %v3919 = vld [vmem:[#allocation3 + $0x1a] sm:$0xff]
  %v3920 = vld [vmem:[#allocation3 + $0x22] sm:$0xff]
  %v3921 = vld [vmem:[#allocation3 + $0x2a] sm:$0xff]
  %v3922 = vld [vmem:[#allocation3 + $0x32] sm:$0xff]
  %v3923 = vld [vmem:[#allocation3 + $0x3a] sm:$0xff]
  %v3924 = vld [vmem:[#allocation3 + $0x42] sm:$0xff]
  %v3925 = vld [vmem:[#allocation3 + $0x4a] sm:$0xff]
  %v3926 = vld [vmem:[#allocation3 + $0x52] sm:$0xff]
  %v3927 = vld [vmem:[#allocation3 + $0x5a] sm:$0xff]
  %v3928 = vld [vmem:[#allocation3 + $0x62] sm:$0xff]
  %v3929 = vld [vmem:[#allocation3 + $0x6a] sm:$0xff]
  %v3930 = vld [vmem:[#allocation3 + $0x72] sm:$0xff]
  %v3931 = vld [vmem:[#allocation3 + $0x7a] sm:$0xff]
  %v3932 = vld [vmem:[#allocation3 + $0x82] sm:$0xff]
  %v3933 = vld [vmem:[#allocation3 + $0x8a] sm:$0xff]
  %v3934 = vld [vmem:[#allocation3 + $0x92] sm:$0xff]
  %v3935 = vld [vmem:[#allocation3 + $0x9a] sm:$0xff]
  %v3936 = vld [vmem:[#allocation3 + $0xa2] sm:$0xff]
  %v3937 = vld [vmem:[#allocation3 + $0xaa] sm:$0xff]
  %v3938 = vld [vmem:[#allocation3 + $0xb2] sm:$0xff]
  %v3939 = vld [vmem:[#allocation3 + $0xba] sm:$0xff]
  %v3940 = vld [vmem:[#allocation3 + $0xc2] sm:$0xff]
  %v3941 = vld [vmem:[#allocation3 + $0xca] sm:$0xff]
  %v3942 = vld [vmem:[#allocation3 + $0xb] sm:$0xff]
  %v3943 = vld [vmem:[#allocation3 + $0x13] sm:$0xff]
  %v3944 = vld [vmem:[#allocation3 + $0x1b] sm:$0xff]
  %v3945 = vld [vmem:[#allocation3 + $0x23] sm:$0xff]
  %v3946 = vld [vmem:[#allocation3 + $0x2b] sm:$0xff]
  %v3947 = vld [vmem:[#allocation3 + $0x33] sm:$0xff]
  %v3948 = vld [vmem:[#allocation3 + $0x3b] sm:$0xff]
  %v3949 = vld [vmem:[#allocation3 + $0x43] sm:$0xff]
  %v3950 = vld [vmem:[#allocation3 + $0x4b] sm:$0xff]
  %v3951 = vld [vmem:[#allocation3 + $0x53] sm:$0xff]
  %v3952 = vld [vmem:[#allocation3 + $0x5b] sm:$0xff]
  %v3953 = vld [vmem:[#allocation3 + $0x63] sm:$0xff]
  %v3954 = vld [vmem:[#allocation3 + $0x6b] sm:$0xff]
  %v3955 = vld [vmem:[#allocation3 + $0x73] sm:$0xff]
  %v3956 = vld [vmem:[#allocation3 + $0x7b] sm:$0xff]
  %v3957 = vld [vmem:[#allocation3 + $0x83] sm:$0xff]
  %v3958 = vld [vmem:[#allocation3 + $0x8b] sm:$0xff]
  %v3959 = vld [vmem:[#allocation3 + $0x93] sm:$0xff]
  %v3960 = vld [vmem:[#allocation3 + $0x9b] sm:$0xff]
  %v3961 = vld [vmem:[#allocation3 + $0xa3] sm:$0xff]
  %v3962 = vld [vmem:[#allocation3 + $0xab] sm:$0xff]
  %v3963 = vld [vmem:[#allocation3 + $0xb3] sm:$0xff]
  %v3964 = vld [vmem:[#allocation3 + $0xbb] sm:$0xff]
  %v3965 = vld [vmem:[#allocation3 + $0xc3] sm:$0xff]
  %v3966 = vld [vmem:[#allocation3 + $0xcb] sm:$0xff]
  %v3967 = vld [vmem:[#allocation3 + $0xc] sm:$0xff]
  %v3968 = vld [vmem:[#allocation3 + $0x14] sm:$0xff]
  %v3969 = vld [vmem:[#allocation3 + $0x1c] sm:$0xff]
  %v3970 = vld [vmem:[#allocation3 + $0x24] sm:$0xff]
  %v3971 = vld [vmem:[#allocation3 + $0x2c] sm:$0xff]
  %v3972 = vld [vmem:[#allocation3 + $0x34] sm:$0xff]
  %v3973 = vld [vmem:[#allocation3 + $0x3c] sm:$0xff]
  %v3974 = vld [vmem:[#allocation3 + $0x44] sm:$0xff]
  %v3975 = vld [vmem:[#allocation3 + $0x4c] sm:$0xff]
  %v3976 = vld [vmem:[#allocation3 + $0x54] sm:$0xff]
  %v3977 = vld [vmem:[#allocation3 + $0x5c] sm:$0xff]
  %v3978 = vld [vmem:[#allocation3 + $0x64] sm:$0xff]
  %v3979 = vld [vmem:[#allocation3 + $0x6c] sm:$0xff]
  %v3980 = vld [vmem:[#allocation3 + $0x74] sm:$0xff]
  %v3981 = vld [vmem:[#allocation3 + $0x7c] sm:$0xff]
  %v3982 = vld [vmem:[#allocation3 + $0x84] sm:$0xff]
  %v3983 = vld [vmem:[#allocation3 + $0x8c] sm:$0xff]
  %v3984 = vld [vmem:[#allocation3 + $0x94] sm:$0xff]
  %v3985 = vld [vmem:[#allocation3 + $0x9c] sm:$0xff]
  %v3986 = vld [vmem:[#allocation3 + $0xa4] sm:$0xff]
  %v3987 = vld [vmem:[#allocation3 + $0xac] sm:$0xff]
  %v3988 = vld [vmem:[#allocation3 + $0xb4] sm:$0xff]
  %v3989 = vld [vmem:[#allocation3 + $0xbc] sm:$0xff]
  %v3990 = vld [vmem:[#allocation3 + $0xc4] sm:$0xff]
  %v3991 = vld [vmem:[#allocation3 + $0xcc] sm:$0xff]
  %v3992 = vld [vmem:[#allocation3 + $0xd4] sm:$0xff]
  %v3993 = vld [vmem:[#allocation3 + $0x15] sm:$0xff]
  %v3994 = vld [vmem:[#allocation3 + $0x1d] sm:$0xff]
  %v3995 = vld [vmem:[#allocation3 + $0x25] sm:$0xff]
  %v3996 = vld [vmem:[#allocation3 + $0x2d] sm:$0xff]
  %v3997 = vld [vmem:[#allocation3 + $0x35] sm:$0xff]
  %v3998 = vld [vmem:[#allocation3 + $0x3d] sm:$0xff]
  %v3999 = vld [vmem:[#allocation3 + $0x45] sm:$0xff]
  %v4000 = vld [vmem:[#allocation3 + $0x4d] sm:$0xff]
  %v4001 = vld [vmem:[#allocation3 + $0x55] sm:$0xff]
  %v4002 = vld [vmem:[#allocation3 + $0x5d] sm:$0xff]
  %v4003 = vld [vmem:[#allocation3 + $0x65] sm:$0xff]
  %v4004 = vld [vmem:[#allocation3 + $0x6d] sm:$0xff]
  %v4005 = vld [vmem:[#allocation3 + $0x75] sm:$0xff]
  %v4006 = vld [vmem:[#allocation3 + $0x7d] sm:$0xff]
  %v4007 = vld [vmem:[#allocation3 + $0x85] sm:$0xff]
  %v4008 = vld [vmem:[#allocation3 + $0x8d] sm:$0xff]
  %v4009 = vld [vmem:[#allocation3 + $0x95] sm:$0xff]
  %v4010 = vld [vmem:[#allocation3 + $0x9d] sm:$0xff]
  %v4011 = vld [vmem:[#allocation3 + $0xa5] sm:$0xff]
  %v4012 = vld [vmem:[#allocation3 + $0xad] sm:$0xff]
  %v4013 = vld [vmem:[#allocation3 + $0xb5] sm:$0xff]
  %v4014 = vld [vmem:[#allocation3 + $0xbd] sm:$0xff]
  %v4015 = vld [vmem:[#allocation3 + $0xc5] sm:$0xff]
  %v4016 = vld [vmem:[#allocation3 + $0xcd] sm:$0xff]
  %v4017 = vld [vmem:[#allocation3 + $0xd5] sm:$0xff]
  %v4018 = vld [vmem:[#allocation3 + $0x16] sm:$0xff]
  %v4019 = vld [vmem:[#allocation3 + $0x1e] sm:$0xff]
  %v4020 = vld [vmem:[#allocation3 + $0x26] sm:$0xff]
  %v4021 = vld [vmem:[#allocation3 + $0x2e] sm:$0xff]
  %v4022 = vld [vmem:[#allocation3 + $0x36] sm:$0xff]
  %v4023 = vld [vmem:[#allocation3 + $0x3e] sm:$0xff]
  %v4024 = vld [vmem:[#allocation3 + $0x46] sm:$0xff]
  %v4025 = vld [vmem:[#allocation3 + $0x4e] sm:$0xff]
  %v4026 = vld [vmem:[#allocation3 + $0x56] sm:$0xff]
  %v4027 = vld [vmem:[#allocation3 + $0x5e] sm:$0xff]
  %v4028 = vld [vmem:[#allocation3 + $0x66] sm:$0xff]
  %v4029 = vld [vmem:[#allocation3 + $0x6e] sm:$0xff]
  %v4030 = vld [vmem:[#allocation3 + $0x76] sm:$0xff]
  %v4031 = vld [vmem:[#allocation3 + $0x7e] sm:$0xff]
  %v4032 = vld [vmem:[#allocation3 + $0x86] sm:$0xff]
  %v4033 = vld [vmem:[#allocation3 + $0x8e] sm:$0xff]
  %v4034 = vld [vmem:[#allocation3 + $0x96] sm:$0xff]
  %v4035 = vld [vmem:[#allocation3 + $0x9e] sm:$0xff]
  %v4036 = vld [vmem:[#allocation3 + $0xa6] sm:$0xff]
  %v4037 = vld [vmem:[#allocation3 + $0xae] sm:$0xff]
  %v4038 = vld [vmem:[#allocation3 + $0xb6] sm:$0xff]
  %v4039 = vld [vmem:[#allocation3 + $0xbe] sm:$0xff]
  %v4040 = vld [vmem:[#allocation3 + $0xc6] sm:$0xff]
  %v4041 = vld [vmem:[#allocation3 + $0xce] sm:$0xff]
  %v4042 = vld [vmem:[#allocation3 + $0xd6] sm:$0xff]
  %4068 = vrot.lane.b32.xlu0 %v3891, 64
  %v4069 = vpop.permute.xlu0 %4068
  %4070 = vrot.lane.b32.xlu0 %v3892, 64
  %v4071 = vpop.permute.xlu0 %4070
  %4072 = vrot.lane.b32.xlu0 %v3893, 64
  %v4073 = vpop.permute.xlu0 %4072
  %4074 = vrot.lane.b32.xlu0 %v3894, 64
  %v4075 = vpop.permute.xlu0 %4074
  %4076 = vrot.lane.b32.xlu0 %v3895, 64
  %v4077 = vpop.permute.xlu0 %4076
  %4078 = vrot.lane.b32.xlu0 %v3896, 64
  %v4079 = vpop.permute.xlu0 %4078
  %4080 = vrot.lane.b32.xlu0 %v3897, 64
  %v4081 = vpop.permute.xlu0 %4080
  %4082 = vrot.lane.b32.xlu0 %v3898, 64
  %v4083 = vpop.permute.xlu0 %4082
  %4084 = vrot.lane.b32.xlu0 %v3899, 64
  %v4085 = vpop.permute.xlu0 %4084
  %4086 = vrot.lane.b32.xlu0 %v3900, 64
  %v4087 = vpop.permute.xlu0 %4086
  %4088 = vrot.lane.b32.xlu0 %v3901, 64
  %v4089 = vpop.permute.xlu0 %4088
  %4090 = vrot.lane.b32.xlu0 %v3902, 64
  %v4091 = vpop.permute.xlu0 %4090
  %4092 = vrot.lane.b32.xlu0 %v3903, 64
  %v4093 = vpop.permute.xlu0 %4092
  %4094 = vrot.lane.b32.xlu0 %v3904, 64
  %v4095 = vpop.permute.xlu0 %4094
  %4096 = vrot.lane.b32.xlu0 %v3905, 64
  %v4097 = vpop.permute.xlu0 %4096
  %4098 = vrot.lane.b32.xlu0 %v3906, 64
  %v4099 = vpop.permute.xlu0 %4098
  %4100 = vrot.lane.b32.xlu0 %v3907, 64
  %v4101 = vpop.permute.xlu0 %4100
  %4102 = vrot.lane.b32.xlu0 %v3908, 64
  %v4103 = vpop.permute.xlu0 %4102
  %4104 = vrot.lane.b32.xlu0 %v3909, 64
  %v4105 = vpop.permute.xlu0 %4104
  %4106 = vrot.lane.b32.xlu0 %v3910, 64
  %v4107 = vpop.permute.xlu0 %4106
  %4108 = vrot.lane.b32.xlu0 %v3911, 64
  %v4109 = vpop.permute.xlu0 %4108
  %4110 = vrot.lane.b32.xlu0 %v3912, 64
  %v4111 = vpop.permute.xlu0 %4110
  %4112 = vrot.lane.b32.xlu0 %v3913, 64
  %v4113 = vpop.permute.xlu0 %4112
  %4114 = vrot.lane.b32.xlu0 %v3914, 64
  %v4115 = vpop.permute.xlu0 %4114
  %4116 = vrot.lane.b32.xlu0 %v3915, 64
  %v4117 = vpop.permute.xlu0 %4116
  %4168 = vrot.lane.b32.xlu0 %v3917, 64
  %v4169 = vpop.permute.xlu0 %4168
  %4170 = vrot.lane.b32.xlu0 %v3918, 64
  %v4171 = vpop.permute.xlu0 %4170
  %4172 = vrot.lane.b32.xlu0 %v3919, 64
  %v4173 = vpop.permute.xlu0 %4172
  %4174 = vrot.lane.b32.xlu0 %v3920, 64
  %v4175 = vpop.permute.xlu0 %4174
  %4176 = vrot.lane.b32.xlu0 %v3921, 64
  %v4177 = vpop.permute.xlu0 %4176
  %4178 = vrot.lane.b32.xlu0 %v3922, 64
  %v4179 = vpop.permute.xlu0 %4178
  %4180 = vrot.lane.b32.xlu0 %v3923, 64
  %v4181 = vpop.permute.xlu0 %4180
  %4182 = vrot.lane.b32.xlu0 %v3924, 64
  %v4183 = vpop.permute.xlu0 %4182
  %4184 = vrot.lane.b32.xlu0 %v3925, 64
  %v4185 = vpop.permute.xlu0 %4184
  %4186 = vrot.lane.b32.xlu0 %v3926, 64
  %v4187 = vpop.permute.xlu0 %4186
  %4188 = vrot.lane.b32.xlu0 %v3927, 64
  %v4189 = vpop.permute.xlu0 %4188
  %4190 = vrot.lane.b32.xlu0 %v3928, 64
  %v4191 = vpop.permute.xlu0 %4190
  %4192 = vrot.lane.b32.xlu0 %v3929, 64
  %v4193 = vpop.permute.xlu0 %4192
  %4194 = vrot.lane.b32.xlu0 %v3930, 64
  %v4195 = vpop.permute.xlu0 %4194
  %4196 = vrot.lane.b32.xlu0 %v3931, 64
  %v4197 = vpop.permute.xlu0 %4196
  %4198 = vrot.lane.b32.xlu0 %v3932, 64
  %v4199 = vpop.permute.xlu0 %4198
  %4200 = vrot.lane.b32.xlu0 %v3933, 64
  %v4201 = vpop.permute.xlu0 %4200
  %4202 = vrot.lane.b32.xlu0 %v3934, 64
  %v4203 = vpop.permute.xlu0 %4202
  %4204 = vrot.lane.b32.xlu0 %v3935, 64
  %v4205 = vpop.permute.xlu0 %4204
  %4206 = vrot.lane.b32.xlu0 %v3936, 64
  %v4207 = vpop.permute.xlu0 %4206
  %4208 = vrot.lane.b32.xlu0 %v3937, 64
  %v4209 = vpop.permute.xlu0 %4208
  %4210 = vrot.lane.b32.xlu0 %v3938, 64
  %v4211 = vpop.permute.xlu0 %4210
  %4212 = vrot.lane.b32.xlu0 %v3939, 64
  %v4213 = vpop.permute.xlu0 %4212
  %4214 = vrot.lane.b32.xlu0 %v3940, 64
  %v4215 = vpop.permute.xlu0 %4214
  %4216 = vrot.lane.b32.xlu0 %v3941, 64
  %v4217 = vpop.permute.xlu0 %4216
  %4268 = vrot.lane.b32.xlu0 %v3967, 64
  %v4269 = vpop.permute.xlu0 %4268
  %4270 = vrot.lane.b32.xlu0 %v3968, 64
  %v4271 = vpop.permute.xlu0 %4270
  %4272 = vrot.lane.b32.xlu0 %v3969, 64
  %v4273 = vpop.permute.xlu0 %4272
  %4274 = vrot.lane.b32.xlu0 %v3970, 64
  %v4275 = vpop.permute.xlu0 %4274
  %4276 = vrot.lane.b32.xlu0 %v3971, 64
  %v4277 = vpop.permute.xlu0 %4276
  %4278 = vrot.lane.b32.xlu0 %v3972, 64
  %v4279 = vpop.permute.xlu0 %4278
  %4280 = vrot.lane.b32.xlu0 %v3973, 64
  %v4281 = vpop.permute.xlu0 %4280
  %4282 = vrot.lane.b32.xlu0 %v3974, 64
  %v4283 = vpop.permute.xlu0 %4282
  %4284 = vrot.lane.b32.xlu0 %v3975, 64
  %v4285 = vpop.permute.xlu0 %4284
  %4286 = vrot.lane.b32.xlu0 %v3976, 64
  %v4287 = vpop.permute.xlu0 %4286
  %4288 = vrot.lane.b32.xlu0 %v3977, 64
  %v4289 = vpop.permute.xlu0 %4288
  %4290 = vrot.lane.b32.xlu0 %v3978, 64
  %v4291 = vpop.permute.xlu0 %4290
  %4292 = vrot.lane.b32.xlu0 %v3979, 64
  %v4293 = vpop.permute.xlu0 %4292
  %4294 = vrot.lane.b32.xlu0 %v3980, 64
  %v4295 = vpop.permute.xlu0 %4294
  %4296 = vrot.lane.b32.xlu0 %v3981, 64
  %v4297 = vpop.permute.xlu0 %4296
  %4298 = vrot.lane.b32.xlu0 %v3982, 64
  %v4299 = vpop.permute.xlu0 %4298
  %4300 = vrot.lane.b32.xlu0 %v3983, 64
  %v4301 = vpop.permute.xlu0 %4300
  %4302 = vrot.lane.b32.xlu0 %v3984, 64
  %v4303 = vpop.permute.xlu0 %4302
  %4304 = vrot.lane.b32.xlu0 %v3985, 64
  %v4305 = vpop.permute.xlu0 %4304
  %4306 = vrot.lane.b32.xlu0 %v3986, 64
  %v4307 = vpop.permute.xlu0 %4306
  %4308 = vrot.lane.b32.xlu0 %v3987, 64
  %v4309 = vpop.permute.xlu0 %4308
  %4310 = vrot.lane.b32.xlu0 %v3988, 64
  %v4311 = vpop.permute.xlu0 %4310
  %4312 = vrot.lane.b32.xlu0 %v3989, 64
  %v4313 = vpop.permute.xlu0 %4312
  %4314 = vrot.lane.b32.xlu0 %v3990, 64
  %v4315 = vpop.permute.xlu0 %4314
  %4316 = vrot.lane.b32.xlu0 %v3991, 64
  %v4317 = vpop.permute.xlu0 %4316
  %4368 = vrot.lane.b32.xlu0 %v3993, 64
  %v4369 = vpop.permute.xlu0 %4368
  %4370 = vrot.lane.b32.xlu0 %v3994, 64
  %v4371 = vpop.permute.xlu0 %4370
  %4372 = vrot.lane.b32.xlu0 %v3995, 64
  %v4373 = vpop.permute.xlu0 %4372
  %4374 = vrot.lane.b32.xlu0 %v3996, 64
  %v4375 = vpop.permute.xlu0 %4374
  %4376 = vrot.lane.b32.xlu0 %v3997, 64
  %v4377 = vpop.permute.xlu0 %4376
  %4378 = vrot.lane.b32.xlu0 %v3998, 64
  %v4379 = vpop.permute.xlu0 %4378
  %4380 = vrot.lane.b32.xlu0 %v3999, 64
  %v4381 = vpop.permute.xlu0 %4380
  %4382 = vrot.lane.b32.xlu0 %v4000, 64
  %v4383 = vpop.permute.xlu0 %4382
  %4384 = vrot.lane.b32.xlu0 %v4001, 64
  %v4385 = vpop.permute.xlu0 %4384
  %4386 = vrot.lane.b32.xlu0 %v4002, 64
  %v4387 = vpop.permute.xlu0 %4386
  %4388 = vrot.lane.b32.xlu0 %v4003, 64
  %v4389 = vpop.permute.xlu0 %4388
  %4390 = vrot.lane.b32.xlu0 %v4004, 64
  %v4391 = vpop.permute.xlu0 %4390
  %4392 = vrot.lane.b32.xlu0 %v4005, 64
  %v4393 = vpop.permute.xlu0 %4392
  %4394 = vrot.lane.b32.xlu0 %v4006, 64
  %v4395 = vpop.permute.xlu0 %4394
  %4396 = vrot.lane.b32.xlu0 %v4007, 64
  %v4397 = vpop.permute.xlu0 %4396
  %4398 = vrot.lane.b32.xlu0 %v4008, 64
  %v4399 = vpop.permute.xlu0 %4398
  %4400 = vrot.lane.b32.xlu0 %v4009, 64
  %v4401 = vpop.permute.xlu0 %4400
  %4402 = vrot.lane.b32.xlu0 %v4010, 64
  %v4403 = vpop.permute.xlu0 %4402
  %4404 = vrot.lane.b32.xlu0 %v4011, 64
  %v4405 = vpop.permute.xlu0 %4404
  %4406 = vrot.lane.b32.xlu0 %v4012, 64
  %v4407 = vpop.permute.xlu0 %4406
  %4408 = vrot.lane.b32.xlu0 %v4013, 64
  %v4409 = vpop.permute.xlu0 %4408
  %4410 = vrot.lane.b32.xlu0 %v4014, 64
  %v4411 = vpop.permute.xlu0 %4410
  %4412 = vrot.lane.b32.xlu0 %v4015, 64
  %v4413 = vpop.permute.xlu0 %4412
  %4414 = vrot.lane.b32.xlu0 %v4016, 64
  %v4415 = vpop.permute.xlu0 %4414
  %4416 = vrot.lane.b32.xlu0 %v4017, 64
  %v4417 = vpop.permute.xlu0 %4416
  %v4443 = vsel %vm154, %v3866, %v4069
  %v4444 = vsel %vm154, %v3867, %v4071
  %v4445 = vsel %vm154, %v3868, %v4073
  %v4446 = vsel %vm154, %v3869, %v4075
  %v4447 = vsel %vm154, %v3870, %v4077
  %v4448 = vsel %vm154, %v3871, %v4079
  %v4449 = vsel %vm154, %v3872, %v4081
  %v4450 = vsel %vm154, %v3873, %v4083
  %v4451 = vsel %vm154, %v3874, %v4085
  %v4452 = vsel %vm154, %v3875, %v4087
  %v4453 = vsel %vm154, %v3876, %v4089
  %v4454 = vsel %vm154, %v3877, %v4091
  %v4455 = vsel %vm154, %v3878, %v4093
  %v4456 = vsel %vm154, %v3879, %v4095
  %v4457 = vsel %vm154, %v3880, %v4097
  %v4458 = vsel %vm154, %v3881, %v4099
  %v4459 = vsel %vm154, %v3882, %v4101
  %v4460 = vsel %vm154, %v3883, %v4103
  %v4461 = vsel %vm154, %v3884, %v4105
  %v4462 = vsel %vm154, %v3885, %v4107
  %v4463 = vsel %vm154, %v3886, %v4109
  %v4464 = vsel %vm154, %v3887, %v4111
  %v4465 = vsel %vm154, %v3888, %v4113
  %v4466 = vsel %vm154, %v3889, %v4115
  %v4467 = vsel %vm154, %v3890, %v4117
  %v4468 = vsel %vm154, %v3916, %v4169
  %v4469 = vsel %vm154, %v3917, %v4171
  %v4470 = vsel %vm154, %v3918, %v4173
  %v4471 = vsel %vm154, %v3919, %v4175
  %v4472 = vsel %vm154, %v3920, %v4177
  %v4473 = vsel %vm154, %v3921, %v4179
  %v4474 = vsel %vm154, %v3922, %v4181
  %v4475 = vsel %vm154, %v3923, %v4183
  %v4476 = vsel %vm154, %v3924, %v4185
  %v4477 = vsel %vm154, %v3925, %v4187
  %v4478 = vsel %vm154, %v3926, %v4189
  %v4479 = vsel %vm154, %v3927, %v4191
  %v4480 = vsel %vm154, %v3928, %v4193
  %v4481 = vsel %vm154, %v3929, %v4195
  %v4482 = vsel %vm154, %v3930, %v4197
  %v4483 = vsel %vm154, %v3931, %v4199
  %v4484 = vsel %vm154, %v3932, %v4201
  %v4485 = vsel %vm154, %v3933, %v4203
  %v4486 = vsel %vm154, %v3934, %v4205
  %v4487 = vsel %vm154, %v3935, %v4207
  %v4488 = vsel %vm154, %v3936, %v4209
  %v4489 = vsel %vm154, %v3937, %v4211
  %v4490 = vsel %vm154, %v3938, %v4213
  %v4491 = vsel %vm154, %v3939, %v4215
  %v4492 = vsel %vm154, %v3940, %v4217
  %v4493 = vsel %vm154, %v3942, %v4269
  %v4494 = vsel %vm154, %v3943, %v4271
  %v4495 = vsel %vm154, %v3944, %v4273
  %v4496 = vsel %vm154, %v3945, %v4275
  %v4497 = vsel %vm154, %v3946, %v4277
  %v4498 = vsel %vm154, %v3947, %v4279
  %v4499 = vsel %vm154, %v3948, %v4281
  %v4500 = vsel %vm154, %v3949, %v4283
  %v4501 = vsel %vm154, %v3950, %v4285
  %v4502 = vsel %vm154, %v3951, %v4287
  %v4503 = vsel %vm154, %v3952, %v4289
  %v4504 = vsel %vm154, %v3953, %v4291
  %v4505 = vsel %vm154, %v3954, %v4293
  %v4506 = vsel %vm154, %v3955, %v4295
  %v4507 = vsel %vm154, %v3956, %v4297
  %v4508 = vsel %vm154, %v3957, %v4299
  %v4509 = vsel %vm154, %v3958, %v4301
  %v4510 = vsel %vm154, %v3959, %v4303
  %v4511 = vsel %vm154, %v3960, %v4305
  %v4512 = vsel %vm154, %v3961, %v4307
  %v4513 = vsel %vm154, %v3962, %v4309
  %v4514 = vsel %vm154, %v3963, %v4311
  %v4515 = vsel %vm154, %v3964, %v4313
  %v4516 = vsel %vm154, %v3965, %v4315
  %v4517 = vsel %vm154, %v3966, %v4317
  %v4518 = vsel %vm154, %v3968, %v4369
  %v4519 = vsel %vm154, %v3969, %v4371
  %v4520 = vsel %vm154, %v3970, %v4373
  %v4521 = vsel %vm154, %v3971, %v4375
  %v4522 = vsel %vm154, %v3972, %v4377
  %v4523 = vsel %vm154, %v3973, %v4379
  %v4524 = vsel %vm154, %v3974, %v4381
  %v4525 = vsel %vm154, %v3975, %v4383
  %v4526 = vsel %vm154, %v3976, %v4385
  %v4527 = vsel %vm154, %v3977, %v4387
  %v4528 = vsel %vm154, %v3978, %v4389
  %v4529 = vsel %vm154, %v3979, %v4391
  %v4530 = vsel %vm154, %v3980, %v4393
  %v4531 = vsel %vm154, %v3981, %v4395
  %v4532 = vsel %vm154, %v3982, %v4397
  %v4533 = vsel %vm154, %v3983, %v4399
  %v4534 = vsel %vm154, %v3984, %v4401
  %v4535 = vsel %vm154, %v3985, %v4403
  %v4536 = vsel %vm154, %v3986, %v4405
  %v4537 = vsel %vm154, %v3987, %v4407
  %v4538 = vsel %vm154, %v3988, %v4409
  %v4539 = vsel %vm154, %v3989, %v4411
  %v4540 = vsel %vm154, %v3990, %v4413
  %v4541 = vsel %vm154, %v3991, %v4415
  %v4542 = vsel %vm154, %v3992, %v4417
  %v4543 = vpack.c.bf16 %v4444, %v4443
  %v4544 = vpack.c.bf16 %v4469, %v4468
  %v4545 = vpack.c.bf16 %v4494, %v4493
  %v4546 = vpack.c.bf16 %v4519, %v4518
  %v4547 = vpack.c.bf16 %v4019, %v4018
  %v4548 = vpack.c.bf16 %v4446, %v4445
  %v4549 = vpack.c.bf16 %v4471, %v4470
  %v4550 = vpack.c.bf16 %v4496, %v4495
  %v4551 = vpack.c.bf16 %v4521, %v4520
  %v4552 = vpack.c.bf16 %v4021, %v4020
  %v4553 = vpack.c.bf16 %v4448, %v4447
  %v4554 = vpack.c.bf16 %v4473, %v4472
  %v4555 = vpack.c.bf16 %v4498, %v4497
  %v4556 = vpack.c.bf16 %v4523, %v4522
  %v4557 = vpack.c.bf16 %v4023, %v4022
  %v4558 = vpack.c.bf16 %v4450, %v4449
  %v4559 = vpack.c.bf16 %v4475, %v4474
  %v4560 = vpack.c.bf16 %v4500, %v4499
  %v4561 = vpack.c.bf16 %v4525, %v4524
  %v4562 = vpack.c.bf16 %v4025, %v4024
  %v4563 = vpack.c.bf16 %v4452, %v4451
  %v4564 = vpack.c.bf16 %v4477, %v4476
  %v4565 = vpack.c.bf16 %v4502, %v4501
  %v4566 = vpack.c.bf16 %v4527, %v4526
  %v4567 = vpack.c.bf16 %v4027, %v4026
  %v4568 = vpack.c.bf16 %v4454, %v4453
  %v4569 = vpack.c.bf16 %v4479, %v4478
  %v4570 = vpack.c.bf16 %v4504, %v4503
  %v4571 = vpack.c.bf16 %v4529, %v4528
  %v4572 = vpack.c.bf16 %v4029, %v4028
  %v4573 = vpack.c.bf16 %v4456, %v4455
  %v4574 = vpack.c.bf16 %v4481, %v4480
  %v4575 = vpack.c.bf16 %v4506, %v4505
  %v4576 = vpack.c.bf16 %v4531, %v4530
  %v4577 = vpack.c.bf16 %v4031, %v4030
  %v4578 = vpack.c.bf16 %v4458, %v4457
  %v4579 = vpack.c.bf16 %v4483, %v4482
  %v4580 = vpack.c.bf16 %v4508, %v4507
  %v4581 = vpack.c.bf16 %v4533, %v4532
  %v4582 = vpack.c.bf16 %v4033, %v4032
  %v4583 = vpack.c.bf16 %v4460, %v4459
  %v4584 = vpack.c.bf16 %v4485, %v4484
  %v4585 = vpack.c.bf16 %v4510, %v4509
  %v4586 = vpack.c.bf16 %v4535, %v4534
  %v4587 = vpack.c.bf16 %v4035, %v4034
  %v4588 = vpack.c.bf16 %v4462, %v4461
  %v4589 = vpack.c.bf16 %v4487, %v4486
  %v4590 = vpack.c.bf16 %v4512, %v4511
  %v4591 = vpack.c.bf16 %v4537, %v4536
  %v4592 = vpack.c.bf16 %v4037, %v4036
  %v4593 = vpack.c.bf16 %v4464, %v4463
  %v4594 = vpack.c.bf16 %v4489, %v4488
  %v4595 = vpack.c.bf16 %v4514, %v4513
  %v4596 = vpack.c.bf16 %v4539, %v4538
  %v4597 = vpack.c.bf16 %v4039, %v4038
  %v4598 = vpack.c.bf16 %v4466, %v4465
  %v4599 = vpack.c.bf16 %v4491, %v4490
  %v4600 = vpack.c.bf16 %v4516, %v4515
  %v4601 = vpack.c.bf16 %v4541, %v4540
  %v4602 = vpack.c.bf16 %v4041, %v4040
  %v4603 = vpack.c.bf16 %v4467, %v4467
  %v4604 = vpack.c.bf16 %v4492, %v4492
  %v4605 = vpack.c.bf16 %v4517, %v4517
  %v4606 = vpack.c.bf16 %v4542, %v4542
  %v4607 = vpack.c.bf16 %v4042, %v4042
  %v4608 = vld [vmem:[%s5] sm:$0xf]
  %v4609 = vld [vmem:[%s5 + $0x4] sm:$0xf]
  %v4610 = vld [vmem:[%s5 + $0x8] sm:$0xf]
  %v4611 = vld [vmem:[%s5 + $0xc] sm:$0xf]
  %v4612 = vld [vmem:[%s5 + $0x10] sm:$0xf]
  %v4613 = vld [vmem:[%s5 + $0x14] sm:$0xf]
  %v4614 = vld [vmem:[%s5 + $0x18] sm:$0xf]
  %v4615 = vld [vmem:[%s5 + $0x1c] sm:$0xf]
  %v4616 = vld [vmem:[%s5 + $0x20] sm:$0xf]
  %v4617 = vld [vmem:[%s5 + $0x24] sm:$0xf]
  %v4618 = vld [vmem:[%s5 + $0x28] sm:$0xf]
  %v4619 = vld [vmem:[%s5 + $0x2c] sm:$0xf]
  %v4620 = vld [vmem:[%s5 + $0x30] sm:$0xf]
  %v4621 = vld [vmem:[%s5 + $0x34] sm:$0xf]
  %v4622 = vld [vmem:[%s5 + $0x38] sm:$0xf]
  %v4623 = vld [vmem:[%s5 + $0x3c] sm:$0xf]
  %v4624 = vld [vmem:[%s5 + $0x40] sm:$0xf]
  %v4625 = vld [vmem:[%s5 + $0x44] sm:$0xf]
  %v4626 = vld [vmem:[%s5 + $0x48] sm:$0xf]
  %v4627 = vld [vmem:[%s5 + $0x4c] sm:$0xf]
  %v4628 = vld [vmem:[%s5 + $0x50] sm:$0xf]
  %v4629 = vld [vmem:[%s5 + $0x54] sm:$0xf]
  %v4630 = vld [vmem:[%s5 + $0x58] sm:$0xf]
  %v4631 = vld [vmem:[%s5 + $0x5c] sm:$0xf]
  %v4632 = vld [vmem:[%s5 + $0x60] sm:$0xf]
  %v4633 = vld [vmem:[%s5 + $0x64] sm:$0xf]
  %v4634 = vld [vmem:[%s5 + $0x68] sm:$0xf]
  %v4635 = vld [vmem:[%s5 + $0x6c] sm:$0xf]
  %v4636 = vld [vmem:[%s5 + $0x70] sm:$0xf]
  %v4637 = vld [vmem:[%s5 + $0x74] sm:$0xf]
  %v4638 = vld [vmem:[%s5 + $0x78] sm:$0xf]
  %v4639 = vld [vmem:[%s5 + $0x7c] sm:$0xf]
  %v4640 = vld [vmem:[%s5 + $0x80] sm:$0xf]
  %v4641 = vld [vmem:[%s5 + $0x84] sm:$0xf]
  %v4642 = vld [vmem:[%s5 + $0x88] sm:$0xf]
  %v4643 = vld [vmem:[%s5 + $0x8c] sm:$0xf]
  %v4644 = vld [vmem:[%s5 + $0x90] sm:$0xf]
  %v4645 = vld [vmem:[%s5 + $0x94] sm:$0xf]
  %v4646 = vld [vmem:[%s5 + $0x98] sm:$0xf]
  %v4647 = vld [vmem:[%s5 + $0x9c] sm:$0xf]
  %v4648 = vld [vmem:[%s5 + $0xa0] sm:$0xf]
  %v4649 = vld [vmem:[%s5 + $0xa4] sm:$0xf]
  %v4650 = vld [vmem:[%s5 + $0xa8] sm:$0xf]
  %v4651 = vld [vmem:[%s5 + $0xac] sm:$0xf]
  %v4652 = vld [vmem:[%s5 + $0xb0] sm:$0xf]
  %v4653 = vld [vmem:[%s5 + $0xb4] sm:$0xf]
  %v4654 = vld [vmem:[%s5 + $0xb8] sm:$0xf]
  %v4655 = vld [vmem:[%s5 + $0xbc] sm:$0xf]
  %v4656 = vld [vmem:[%s5 + $0xc0] sm:$0xf]
  %v4657 = vld [vmem:[%s5 + $0xc4] sm:$0xf]
  %v4658 = vld [vmem:[%s5 + $0xc8] sm:$0xf]
  %v4659 = vld [vmem:[%s5 + $0xcc] sm:$0xf]
  %v4660 = vld [vmem:[%s5 + $0xd0] sm:$0xf]
  %v4661 = vld [vmem:[%s5 + $0xd4] sm:$0xf]
  %v4662 = vld [vmem:[%s5 + $0xd8] sm:$0xf]
  %v4663 = vld [vmem:[%s5 + $0xdc] sm:$0xf]
  %v4664 = vld [vmem:[%s5 + $0xe0] sm:$0xf]
  %v4665 = vld [vmem:[%s5 + $0xe4] sm:$0xf]
  %v4666 = vld [vmem:[%s5 + $0xe8] sm:$0xf]
  %v4667 = vld [vmem:[%s5 + $0xec] sm:$0xf]
  %v4668 = vld [vmem:[%s5 + $0xf0] sm:$0xf]
  %v4669 = vld [vmem:[%s5 + $0xf4] sm:$0xf]
  %v4670 = vld [vmem:[%s5 + $0xf8] sm:$0xf]
  %v4671 = vld [vmem:[%s5 + $0xfc] sm:$0xf]
  %v4672 = vld [vmem:[%s5 + $0x100] sm:$0xf]
  %v4673 = vld [vmem:[%s5 + $0x104] sm:$0xf]
  %v4674 = vld [vmem:[%s5 + $0x108] sm:$0xf]
  %v4675 = vld [vmem:[%s5 + $0x10c] sm:$0xf]
  %v4676 = vld [vmem:[%s5 + $0x110] sm:$0xf]
  %v4677 = vld [vmem:[%s5 + $0x114] sm:$0xf]
  %v4678 = vld [vmem:[%s5 + $0x118] sm:$0xf]
  %v4679 = vld [vmem:[%s5 + $0x11c] sm:$0xf]
  %v4680 = vld [vmem:[%s6] sm:$0x1]
  %v4682 = vlaneseq
  %v4683 = vshrl.u32 %v4682, 7
  %v4684 = vsub.s32 0, %v4683
  %v4685 = vrot.slane %v4680, %v4684
  %v4759 = vunpack.c.l.b16 %v4608
  %v4760 = vunpack.c.l.b16 %v4609
  %v4761 = vunpack.c.l.b16 %v4610
  %v4762 = vunpack.c.l.b16 %v4611
  %v4763 = vunpack.c.l.b16 %v4612
  %v4764 = vunpack.c.l.b16 %v4613
  %v4765 = vunpack.c.l.b16 %v4614
  %v4766 = vunpack.c.l.b16 %v4615
  %v4767 = vunpack.c.l.b16 %v4616
  %v4768 = vunpack.c.l.b16 %v4617
  %v4769 = vunpack.c.l.b16 %v4618
  %v4770 = vunpack.c.l.b16 %v4619
  %v4771 = vunpack.c.l.b16 %v4620
  %v4772 = vunpack.c.l.b16 %v4621
  %v4773 = vunpack.c.l.b16 %v4622
  %v4774 = vunpack.c.l.b16 %v4623
  %v4775 = vunpack.c.l.b16 %v4624
  %v4776 = vunpack.c.l.b16 %v4625
  %v4777 = vunpack.c.l.b16 %v4626
  %v4778 = vunpack.c.l.b16 %v4627
  %v4779 = vunpack.c.l.b16 %v4628
  %v4780 = vunpack.c.l.b16 %v4629
  %v4781 = vunpack.c.l.b16 %v4630
  %v4782 = vunpack.c.l.b16 %v4631
  %v4783 = vunpack.c.l.b16 %v4632
  %v4784 = vunpack.c.l.b16 %v4633
  %v4785 = vunpack.c.l.b16 %v4634
  %v4786 = vunpack.c.l.b16 %v4635
  %v4787 = vunpack.c.l.b16 %v4636
  %v4788 = vunpack.c.l.b16 %v4637
  %v4789 = vunpack.c.l.b16 %v4638
  %v4790 = vunpack.c.l.b16 %v4639
  %v4791 = vunpack.c.l.b16 %v4640
  %v4792 = vunpack.c.l.b16 %v4641
  %v4793 = vunpack.c.l.b16 %v4642
  %v4794 = vunpack.c.l.b16 %v4643
  %v4795 = vunpack.c.l.b16 %v4644
  %v4796 = vunpack.c.l.b16 %v4645
  %v4797 = vunpack.c.l.b16 %v4646
  %v4798 = vunpack.c.l.b16 %v4647
  %v4799 = vunpack.c.l.b16 %v4648
  %v4800 = vunpack.c.l.b16 %v4649
  %v4801 = vunpack.c.l.b16 %v4650
  %v4802 = vunpack.c.l.b16 %v4651
  %v4803 = vunpack.c.l.b16 %v4652
  %v4804 = vunpack.c.l.b16 %v4653
  %v4805 = vunpack.c.l.b16 %v4654
  %v4806 = vunpack.c.l.b16 %v4655
  %v4807 = vunpack.c.l.b16 %v4656
  %v4808 = vunpack.c.l.b16 %v4657
  %v4809 = vunpack.c.l.b16 %v4658
  %v4810 = vunpack.c.l.b16 %v4659
  %v4811 = vunpack.c.l.b16 %v4660
  %v4812 = vunpack.c.l.b16 %v4661
  %v4813 = vunpack.c.l.b16 %v4662
  %v4814 = vunpack.c.l.b16 %v4663
  %v4815 = vunpack.c.l.b16 %v4664
  %v4816 = vunpack.c.l.b16 %v4665
  %v4817 = vunpack.c.l.b16 %v4666
  %v4818 = vunpack.c.l.b16 %v4667
  %v4819 = vunpack.c.l.b16 %v4668
  %v4820 = vunpack.c.l.b16 %v4669
  %v4821 = vunpack.c.l.b16 %v4670
  %v4822 = vunpack.c.l.b16 %v4671
  %v4823 = vunpack.c.l.b16 %v4672
  %v4824 = vunpack.c.l.b16 %v4673
  %v4825 = vunpack.c.l.b16 %v4674
  %v4826 = vunpack.c.l.b16 %v4675
  %v4827 = vunpack.c.l.b16 %v4676
  %v4828 = vunpack.c.l.b16 %v4677
  %v4829 = vunpack.c.l.b16 %v4678
  %v4830 = vunpack.c.l.b16 %v4679
  %v4831 = vpack.c.b16 %v4760, %v4759
  %v4832 = vpack.c.b16 %v4762, %v4761
  %v4833 = vpack.c.b16 %v4764, %v4763
  %v4834 = vpack.c.b16 %v4766, %v4765
  %v4835 = vpack.c.b16 %v4768, %v4767
  %v4836 = vpack.c.b16 %v4770, %v4769
  %v4837 = vpack.c.b16 %v4772, %v4771
  %v4838 = vpack.c.b16 %v4774, %v4773
  %v4839 = vpack.c.b16 %v4776, %v4775
  %v4840 = vpack.c.b16 %v4778, %v4777
  %v4841 = vpack.c.b16 %v4780, %v4779
  %v4842 = vpack.c.b16 %v4782, %v4781
  %v4843 = vpack.c.b16 %v4784, %v4783
  %v4844 = vpack.c.b16 %v4786, %v4785
  %v4845 = vpack.c.b16 %v4788, %v4787
  %v4846 = vpack.c.b16 %v4790, %v4789
  %v4847 = vpack.c.b16 %v4792, %v4791
  %v4848 = vpack.c.b16 %v4794, %v4793
  %v4849 = vpack.c.b16 %v4796, %v4795
  %v4850 = vpack.c.b16 %v4798, %v4797
  %v4851 = vpack.c.b16 %v4800, %v4799
  %v4852 = vpack.c.b16 %v4802, %v4801
  %v4853 = vpack.c.b16 %v4804, %v4803
  %v4854 = vpack.c.b16 %v4806, %v4805
  %v4855 = vpack.c.b16 %v4808, %v4807
  %v4856 = vpack.c.b16 %v4810, %v4809
  %v4857 = vpack.c.b16 %v4812, %v4811
  %v4858 = vpack.c.b16 %v4814, %v4813
  %v4859 = vpack.c.b16 %v4816, %v4815
  %v4860 = vpack.c.b16 %v4818, %v4817
  %v4861 = vpack.c.b16 %v4820, %v4819
  %v4862 = vpack.c.b16 %v4822, %v4821
  %v4863 = vpack.c.b16 %v4824, %v4823
  %v4864 = vpack.c.b16 %v4826, %v4825
  %v4865 = vpack.c.b16 %v4828, %v4827
  %v4866 = vpack.c.b16 %v4830, %v4829
  %v4904 = vsel %vm154, %v4547, 0
  %v4907 = vsel %vm154, %v4552, 0
  %v4910 = vsel %vm154, %v4557, 0
  %v4913 = vsel %vm154, %v4562, 0
  %v4916 = vsel %vm154, %v4567, 0
  %v4919 = vsel %vm154, %v4572, 0
  %v4922 = vsel %vm154, %v4577, 0
  %v4925 = vsel %vm154, %v4582, 0
  %v4928 = vsel %vm154, %v4587, 0
  %v4931 = vsel %vm154, %v4592, 0
  %v4934 = vsel %vm154, %v4597, 0
  %v4937 = vsel %vm154, %v4602, 0
  %v4940 = vsel %vm154, %v4607, 0
  %4942 = vmatprep.subr.bf16.mxu0 0
  %4943 = vmatpush1.bf16.msra.mxu0 %v4831
  %4944 = vmatprep.subr.bf16.mxu0 0
  %4945 = vmatpush1.bf16.msra.mxu0 %v4832
  %4946 = vmatprep.subr.bf16.mxu0 0
  %4947 = vmatpush1.bf16.msra.mxu0 %v4833
  %4948 = vmatprep.subr.bf16.mxu0 0
  %4949 = vmatpush1.bf16.msra.mxu0 %v4834
  %4950 = vmatprep.subr.bf16.mxu0 0
  %4951 = vmatpush1.bf16.msra.mxu0 %v4835
  %4952 = vmatprep.subr.bf16.mxu0 0
  %4953 = vmatpush1.bf16.msra.mxu0 %v4836
  %4954 = vmatprep.subr.bf16.mxu0 0
  %4955 = vmatpush1.bf16.msra.mxu0 %v4837
  %4956 = vmatprep.subr.bf16.mxu0 0
  %4957 = vmatpush1.bf16.msra.mxu0 %v4838
  %4958 = vmatprep.subr.bf16.mxu0 0
  %4959 = vmatpush1.bf16.msra.mxu0 %v4839
  %4960 = vmatprep.subr.bf16.mxu0 0
  %4961 = vmatpush1.bf16.msra.mxu0 %v4840
  %4962 = vmatprep.subr.bf16.mxu0 0
  %4963 = vmatpush1.bf16.msra.mxu0 %v4841
  %4964 = vmatprep.subr.bf16.mxu0 0
  %4965 = vmatpush1.bf16.msra.mxu0 %v4842
  %4966 = vmatprep.subr.bf16.mxu0 0
  %4967 = vmatpush1.bf16.msra.mxu0 %v4843
  %4968 = vmatprep.subr.bf16.mxu0 0
  %4969 = vmatpush1.bf16.msra.mxu0 %v4844
  %4970 = vmatprep.subr.bf16.mxu0 0
  %4971 = vmatpush1.bf16.msra.mxu0 %v4845
  %4972 = vmatprep.subr.bf16.mxu0 0
  %4973 = vmatpush1.bf16.msra.mxu0 %v4846
  %4974 = vmatprep.mubr.bf16.mxu0 %v4544
  %4975 = vmatmul.mubr.bf16.gmra.mrb[0].mxu0 %v4543
  %v4976 = vpop.f32.mrb[0].mxu0
  %v4977 = vadd.f32 %v4685, %v4976
  %v4978 = vpop.f32.mrb[0].mxu0
  %v4979 = vpop.f32.mrb[0].mxu0
  %v4980 = vadd.f32 %v4685, %v4979
  %v4981 = vpop.f32.mrb[0].mxu0
  %4982 = vmatprep.mubr.bf16.mxu0 %v4549
  %4983 = vmatmul.mubr.bf16.gmra.mrb[0].mxu0 %v4548
  %v4984 = vpop.f32.mrb[0].mxu0
  %v4985 = vadd.f32 %v4685, %v4984
  %v4986 = vpop.f32.mrb[0].mxu0
  %v4987 = vpop.f32.mrb[0].mxu0
  %v4988 = vadd.f32 %v4685, %v4987
  %v4989 = vpop.f32.mrb[0].mxu0
  %4990 = vmatprep.mubr.bf16.mxu0 %v4554
  %4991 = vmatmul.mubr.bf16.gmra.mrb[0].mxu0 %v4553
  %v4992 = vpop.f32.mrb[0].mxu0
  %v4993 = vadd.f32 %v4685, %v4992
  %v4994 = vpop.f32.mrb[0].mxu0
  %v4995 = vpop.f32.mrb[0].mxu0
  %v4996 = vadd.f32 %v4685, %v4995
  %v4997 = vpop.f32.mrb[0].mxu0
  %4998 = vmatprep.mubr.bf16.mxu0 %v4559
  %4999 = vmatmul.mubr.bf16.gmra.mrb[0].mxu0 %v4558
  %v5000 = vpop.f32.mrb[0].mxu0
  %v5001 = vadd.f32 %v4685, %v5000
  %v5002 = vpop.f32.mrb[0].mxu0
  %v5003 = vpop.f32.mrb[0].mxu0
  %v5004 = vadd.f32 %v4685, %v5003
  %v5005 = vpop.f32.mrb[0].mxu0
  %5006 = vmatprep.mubr.bf16.mxu0 %v4564
  %5007 = vmatmul.mubr.bf16.gmra.mrb[0].mxu0 %v4563
  %v5008 = vpop.f32.mrb[0].mxu0
  %v5009 = vadd.f32 %v4685, %v5008
  %v5010 = vpop.f32.mrb[0].mxu0
  %v5011 = vpop.f32.mrb[0].mxu0
  %v5012 = vpop.f32.mrb[0].mxu0
  %5013 = vmatprep.mubr.bf16.mxu0 %v4569
  %5014 = vmatmul.mubr.bf16.gmra.mrb[0].mxu0 %v4568
  %v5015 = vpop.f32.mrb[0].mxu0
  %v5016 = vpop.f32.mrb[0].mxu0
  %v5017 = vpop.f32.mrb[0].mxu0
  %v5018 = vpop.f32.mrb[0].mxu0
  %5019 = vmatprep.mubr.bf16.mxu0 %v4574
  %5020 = vmatmul.mubr.bf16.gmra.mrb[0].mxu0 %v4573
  %v5021 = vpop.f32.mrb[0].mxu0
  %v5022 = vadd.f32 %v4685, %v5021
  %v5023 = vpop.f32.mrb[0].mxu0
  %v5024 = vpop.f32.mrb[0].mxu0
  %v5025 = vadd.f32 %v4685, %v5024
  %v5026 = vpop.f32.mrb[0].mxu0
  %5027 = vmatprep.mubr.bf16.mxu0 %v4579
  %5028 = vmatmul.mubr.bf16.gmra.mrb[0].mxu0 %v4578
  %v5029 = vpop.f32.mrb[0].mxu0
  %v5030 = vadd.f32 %v4685, %v5029
  %v5031 = vpop.f32.mrb[0].mxu0
  %v5032 = vpop.f32.mrb[0].mxu0
  %v5033 = vadd.f32 %v4685, %v5032
  %v5034 = vpop.f32.mrb[0].mxu0
  %5035 = vmatprep.mubr.bf16.mxu0 %v4584
  %5036 = vmatmul.mubr.bf16.gmra.mrb[0].mxu0 %v4583
  %v5037 = vpop.f32.mrb[0].mxu0
  %v5038 = vadd.f32 %v4685, %v5037
  %v5039 = vpop.f32.mrb[0].mxu0
  %v5040 = vpop.f32.mrb[0].mxu0
  %v5041 = vadd.f32 %v4685, %v5040
  %v5042 = vpop.f32.mrb[0].mxu0
  %5043 = vmatprep.mubr.bf16.mxu0 %v4589
  %5044 = vmatmul.mubr.bf16.gmra.mrb[0].mxu0 %v4588
  %v5045 = vpop.f32.mrb[0].mxu0
  %v5046 = vadd.f32 %v4685, %v5045
  %v5047 = vpop.f32.mrb[0].mxu0
  %v5048 = vpop.f32.mrb[0].mxu0
  %v5049 = vadd.f32 %v4685, %v5048
  %v5050 = vpop.f32.mrb[0].mxu0
  %5051 = vmatprep.mubr.bf16.mxu0 %v4594
  %5052 = vmatmul.mubr.bf16.gmra.mrb[0].mxu0 %v4593
  %v5053 = vpop.f32.mrb[0].mxu0
  %v5054 = vadd.f32 %v4685, %v5053
  %v5055 = vpop.f32.mrb[0].mxu0
  %v5056 = vpop.f32.mrb[0].mxu0
  %v5057 = vpop.f32.mrb[0].mxu0
  %5058 = vmatprep.mubr.bf16.mxu0 %v4599
  %5059 = vmatmul.mubr.bf16.gmra.mrb[0].mxu0 %v4598
  %v5060 = vpop.f32.mrb[0].mxu0
  %v5061 = vpop.f32.mrb[0].mxu0
  %v5062 = vpop.f32.mrb[0].mxu0
  %v5063 = vpop.f32.mrb[0].mxu0
  %5064 = vmatprep.mubr.bf16.mxu0 %v4604
  %5065 = vmatmul.mubr.bf16.gmra.mrb[0].mxu0 %v4603
  %v5066 = vpop.f32.mrb[0].mxu0
  %v5067 = vpop.f32.mrb[0].mxu0
  %v5068 = vpop.f32.mrb[0].mxu0
  %v5069 = vpop.f32.mrb[0].mxu0
  %5070 = vdwg.mxu0
  %5071 = vmatprep.subr.bf16.mxu0 0
  %5072 = vmatpush1.bf16.msra.mxu0 %v4847
  %5073 = vmatprep.subr.bf16.mxu0 0
  %5074 = vmatpush1.bf16.msra.mxu0 %v4848
  %5075 = vmatprep.subr.bf16.mxu0 0
  %5076 = vmatpush1.bf16.msra.mxu0 %v4849
  %5077 = vmatprep.subr.bf16.mxu0 0
  %5078 = vmatpush1.bf16.msra.mxu0 %v4850
  %5079 = vmatprep.subr.bf16.mxu0 0
  %5080 = vmatpush1.bf16.msra.mxu0 %v4851
  %5081 = vmatprep.subr.bf16.mxu0 0
  %5082 = vmatpush1.bf16.msra.mxu0 %v4852
  %5083 = vmatprep.subr.bf16.mxu0 0
  %5084 = vmatpush1.bf16.msra.mxu0 %v4853
  %5085 = vmatprep.subr.bf16.mxu0 0
  %5086 = vmatpush1.bf16.msra.mxu0 %v4854
  %5087 = vmatprep.subr.bf16.mxu0 0
  %5088 = vmatpush1.bf16.msra.mxu0 %v4855
  %5089 = vmatprep.subr.bf16.mxu0 0
  %5090 = vmatpush1.bf16.msra.mxu0 %v4856
  %5091 = vmatprep.subr.bf16.mxu0 0
  %5092 = vmatpush1.bf16.msra.mxu0 %v4857
  %5093 = vmatprep.subr.bf16.mxu0 0
  %5094 = vmatpush1.bf16.msra.mxu0 %v4858
  %5095 = vmatprep.subr.bf16.mxu0 0
  %5096 = vmatpush1.bf16.msra.mxu0 %v4859
  %5097 = vmatprep.subr.bf16.mxu0 0
  %5098 = vmatpush1.bf16.msra.mxu0 %v4860
  %5099 = vmatprep.subr.bf16.mxu0 0
  %5100 = vmatpush1.bf16.msra.mxu0 %v4861
  %5101 = vmatprep.subr.bf16.mxu0 0
  %5102 = vmatpush1.bf16.msra.mxu0 %v4862
  %5103 = vmatprep.mubr.bf16.mxu0 %v4546
  %5104 = vmatmul.mubr.bf16.gmra.mrb[0].mxu0 %v4545
  %v5105 = vpop.f32.mrb[0].mxu0
  %v5106 = vadd.f32 %v4977, %v5105
  %v5107 = vpop.f32.mrb[0].mxu0
  %v5108 = vpop.f32.mrb[0].mxu0
  %v5109 = vadd.f32 %v4980, %v5108
  %v5110 = vpop.f32.mrb[0].mxu0
  %5111 = vmatprep.mubr.bf16.mxu0 %v4551
  %5112 = vmatmul.mubr.bf16.gmra.mrb[0].mxu0 %v4550
  %v5113 = vpop.f32.mrb[0].mxu0
  %v5114 = vadd.f32 %v4985, %v5113
  %v5115 = vpop.f32.mrb[0].mxu0
  %v5116 = vpop.f32.mrb[0].mxu0
  %v5117 = vadd.f32 %v4988, %v5116
  %v5118 = vpop.f32.mrb[0].mxu0
  %5119 = vmatprep.mubr.bf16.mxu0 %v4556
  %5120 = vmatmul.mubr.bf16.gmra.mrb[0].mxu0 %v4555
  %v5121 = vpop.f32.mrb[0].mxu0
  %v5122 = vadd.f32 %v4993, %v5121
  %v5123 = vpop.f32.mrb[0].mxu0
  %v5124 = vpop.f32.mrb[0].mxu0
  %v5125 = vadd.f32 %v4996, %v5124
  %v5126 = vpop.f32.mrb[0].mxu0
  %5127 = vmatprep.mubr.bf16.mxu0 %v4561
  %5128 = vmatmul.mubr.bf16.gmra.mrb[0].mxu0 %v4560
  %v5129 = vpop.f32.mrb[0].mxu0
  %v5130 = vadd.f32 %v5001, %v5129
  %v5131 = vpop.f32.mrb[0].mxu0
  %v5132 = vpop.f32.mrb[0].mxu0
  %v5133 = vadd.f32 %v5004, %v5132
  %v5134 = vpop.f32.mrb[0].mxu0
  %5135 = vmatprep.mubr.bf16.mxu0 %v4566
  %5136 = vmatmul.mubr.bf16.gmra.mrb[0].mxu0 %v4565
  %v5137 = vpop.f32.mrb[0].mxu0
  %v5138 = vadd.f32 %v5009, %v5137
  %v5139 = vpop.f32.mrb[0].mxu0
  %v5140 = vpop.f32.mrb[0].mxu0
  %v5141 = vpop.f32.mrb[0].mxu0
  %5142 = vmatprep.mubr.bf16.mxu0 %v4571
  %5143 = vmatmul.mubr.bf16.gmra.mrb[0].mxu0 %v4570
  %v5144 = vpop.f32.mrb[0].mxu0
  %v5145 = vpop.f32.mrb[0].mxu0
  %v5146 = vpop.f32.mrb[0].mxu0
  %v5147 = vpop.f32.mrb[0].mxu0
  %5148 = vmatprep.mubr.bf16.mxu0 %v4576
  %5149 = vmatmul.mubr.bf16.gmra.mrb[0].mxu0 %v4575
  %v5150 = vpop.f32.mrb[0].mxu0
  %v5151 = vadd.f32 %v5022, %v5150
  %v5152 = vpop.f32.mrb[0].mxu0
  %v5153 = vpop.f32.mrb[0].mxu0
  %v5154 = vadd.f32 %v5025, %v5153
  %v5155 = vpop.f32.mrb[0].mxu0
  %5156 = vmatprep.mubr.bf16.mxu0 %v4581
  %5157 = vmatmul.mubr.bf16.gmra.mrb[0].mxu0 %v4580
  %v5158 = vpop.f32.mrb[0].mxu0
  %v5159 = vadd.f32 %v5030, %v5158
  %v5160 = vpop.f32.mrb[0].mxu0
  %v5161 = vpop.f32.mrb[0].mxu0
  %v5162 = vadd.f32 %v5033, %v5161
  %v5163 = vpop.f32.mrb[0].mxu0
  %5164 = vmatprep.mubr.bf16.mxu0 %v4586
  %5165 = vmatmul.mubr.bf16.gmra.mrb[0].mxu0 %v4585
  %v5166 = vpop.f32.mrb[0].mxu0
  %v5167 = vadd.f32 %v5038, %v5166
  %v5168 = vpop.f32.mrb[0].mxu0
  %v5169 = vpop.f32.mrb[0].mxu0
  %v5170 = vadd.f32 %v5041, %v5169
  %v5171 = vpop.f32.mrb[0].mxu0
  %5172 = vmatprep.mubr.bf16.mxu0 %v4591
  %5173 = vmatmul.mubr.bf16.gmra.mrb[0].mxu0 %v4590
  %v5174 = vpop.f32.mrb[0].mxu0
  %v5175 = vadd.f32 %v5046, %v5174
  %v5176 = vpop.f32.mrb[0].mxu0
  %v5177 = vpop.f32.mrb[0].mxu0
  %v5178 = vadd.f32 %v5049, %v5177
  %v5179 = vpop.f32.mrb[0].mxu0
  %5180 = vmatprep.mubr.bf16.mxu0 %v4596
  %5181 = vmatmul.mubr.bf16.gmra.mrb[0].mxu0 %v4595
  %v5182 = vpop.f32.mrb[0].mxu0
  %v5183 = vadd.f32 %v5054, %v5182
  %v5184 = vpop.f32.mrb[0].mxu0
  %v5185 = vpop.f32.mrb[0].mxu0
  %v5186 = vpop.f32.mrb[0].mxu0
  %5187 = vmatprep.mubr.bf16.mxu0 %v4601
  %5188 = vmatmul.mubr.bf16.gmra.mrb[0].mxu0 %v4600
  %v5189 = vpop.f32.mrb[0].mxu0
  %v5190 = vpop.f32.mrb[0].mxu0
  %v5191 = vpop.f32.mrb[0].mxu0
  %v5192 = vpop.f32.mrb[0].mxu0
  %5193 = vmatprep.mubr.bf16.mxu0 %v4606
  %5194 = vmatmul.mubr.bf16.gmra.mrb[0].mxu0 %v4605
  %v5195 = vpop.f32.mrb[0].mxu0
  %v5196 = vpop.f32.mrb[0].mxu0
  %v5197 = vpop.f32.mrb[0].mxu0
  %v5198 = vpop.f32.mrb[0].mxu0
  %5199 = vdwg.mxu0
  %5200 = vmatprep.subr.bf16.mxu0 0
  %5201 = vmatpush1.bf16.msra.mxu0 %v4863
  %5202 = vmatprep.subr.bf16.mxu0 0
  %5203 = vmatpush1.bf16.msra.mxu0 %v4864
  %5204 = vmatprep.subr.bf16.mxu0 0
  %5205 = vmatpush1.bf16.msra.mxu0 %v4865
  %5206 = vmatprep.subr.bf16.mxu0 0
  %5207 = vmatpush1.bf16.msra.mxu0 %v4866
  %5208 = vmatprep.subr.bf16.mxu0 0
  %5209 = vmatpush1.bf16.msra.mxu0 0
  %5210 = vmatprep.subr.bf16.mxu0 0
  %5211 = vmatpush1.bf16.msra.mxu0 0
  %5212 = vmatprep.subr.bf16.mxu0 0
  %5213 = vmatpush1.bf16.msra.mxu0 0
  %5214 = vmatprep.subr.bf16.mxu0 0
  %5215 = vmatpush1.bf16.msra.mxu0 0
  %5216 = vmatprep.subr.bf16.mxu0 0
  %5217 = vmatpush1.bf16.msra.mxu0 0
  %5218 = vmatprep.subr.bf16.mxu0 0
  %5219 = vmatpush1.bf16.msra.mxu0 0
  %5220 = vmatprep.subr.bf16.mxu0 0
  %5221 = vmatpush1.bf16.msra.mxu0 0
  %5222 = vmatprep.subr.bf16.mxu0 0
  %5223 = vmatpush1.bf16.msra.mxu0 0
  %5224 = vmatprep.subr.bf16.mxu0 0
  %5225 = vmatpush1.bf16.msra.mxu0 0
  %5226 = vmatprep.subr.bf16.mxu0 0
  %5227 = vmatpush1.bf16.msra.mxu0 0
  %5228 = vmatprep.subr.bf16.mxu0 0
  %5229 = vmatpush1.bf16.msra.mxu0 0
  %5230 = vmatprep.subr.bf16.mxu0 0
  %5231 = vmatpush1.bf16.msra.mxu0 0
  %5232 = vmatprep.mubr.bf16.mxu0 0
  %5233 = vmatmul.mubr.bf16.gmra.mrb[0].mxu0 %v4904
  %v5234 = vpop.f32.mrb[0].mxu0
  %v5235 = vadd.f32 %v5106, %v5234
  %v5236 = vpop.f32.mrb[0].mxu0
  %v5237 = vpop.f32.mrb[0].mxu0
  %v5238 = vadd.f32 %v5109, %v5237
  %v5239 = vpop.f32.mrb[0].mxu0
  %5240 = vmatprep.mubr.bf16.mxu0 0
  %5241 = vmatmul.mubr.bf16.gmra.mrb[0].mxu0 %v4907
  %v5242 = vpop.f32.mrb[0].mxu0
  %v5243 = vadd.f32 %v5114, %v5242
  %v5244 = vpop.f32.mrb[0].mxu0
  %v5245 = vpop.f32.mrb[0].mxu0
  %v5246 = vadd.f32 %v5117, %v5245
  %v5247 = vpop.f32.mrb[0].mxu0
  %5248 = vmatprep.mubr.bf16.mxu0 0
  %5249 = vmatmul.mubr.bf16.gmra.mrb[0].mxu0 %v4910
  %v5250 = vpop.f32.mrb[0].mxu0
  %v5251 = vadd.f32 %v5122, %v5250
  %v5252 = vpop.f32.mrb[0].mxu0
  %v5253 = vpop.f32.mrb[0].mxu0
  %v5254 = vadd.f32 %v5125, %v5253
  %v5255 = vpop.f32.mrb[0].mxu0
  %5256 = vmatprep.mubr.bf16.mxu0 0
  %5257 = vmatmul.mubr.bf16.gmra.mrb[0].mxu0 %v4913
  %v5258 = vpop.f32.mrb[0].mxu0
  %v5259 = vadd.f32 %v5130, %v5258
  %v5260 = vpop.f32.mrb[0].mxu0
  %v5261 = vpop.f32.mrb[0].mxu0
  %v5262 = vadd.f32 %v5133, %v5261
  %v5263 = vpop.f32.mrb[0].mxu0
  %5264 = vmatprep.mubr.bf16.mxu0 0
  %5265 = vmatmul.mubr.bf16.gmra.mrb[0].mxu0 %v4916
  %v5266 = vpop.f32.mrb[0].mxu0
  %v5267 = vadd.f32 %v5138, %v5266
  %v5268 = vpop.f32.mrb[0].mxu0
  %v5269 = vpop.f32.mrb[0].mxu0
  %v5270 = vpop.f32.mrb[0].mxu0
  %5271 = vmatprep.mubr.bf16.mxu0 0
  %5272 = vmatmul.mubr.bf16.gmra.mrb[0].mxu0 %v4919
  %v5273 = vpop.f32.mrb[0].mxu0
  %v5274 = vpop.f32.mrb[0].mxu0
  %v5275 = vpop.f32.mrb[0].mxu0
  %v5276 = vpop.f32.mrb[0].mxu0
  %5277 = vmatprep.mubr.bf16.mxu0 0
  %5278 = vmatmul.mubr.bf16.gmra.mrb[0].mxu0 %v4922
  %v5279 = vpop.f32.mrb[0].mxu0
  %v5280 = vadd.f32 %v5151, %v5279
  %v5281 = vpop.f32.mrb[0].mxu0
  %v5282 = vpop.f32.mrb[0].mxu0
  %v5283 = vadd.f32 %v5154, %v5282
  %v5284 = vpop.f32.mrb[0].mxu0
  %5285 = vmatprep.mubr.bf16.mxu0 0
  %5286 = vmatmul.mubr.bf16.gmra.mrb[0].mxu0 %v4925
  %v5287 = vpop.f32.mrb[0].mxu0
  %v5288 = vadd.f32 %v5159, %v5287
  %v5289 = vpop.f32.mrb[0].mxu0
  %v5290 = vpop.f32.mrb[0].mxu0
  %v5291 = vadd.f32 %v5162, %v5290
  %v5292 = vpop.f32.mrb[0].mxu0
  %5293 = vmatprep.mubr.bf16.mxu0 0
  %5294 = vmatmul.mubr.bf16.gmra.mrb[0].mxu0 %v4928
  %v5295 = vpop.f32.mrb[0].mxu0
  %v5296 = vadd.f32 %v5167, %v5295
  %v5297 = vpop.f32.mrb[0].mxu0
  %v5298 = vpop.f32.mrb[0].mxu0
  %v5299 = vadd.f32 %v5170, %v5298
  %v5300 = vpop.f32.mrb[0].mxu0
  %5301 = vmatprep.mubr.bf16.mxu0 0
  %5302 = vmatmul.mubr.bf16.gmra.mrb[0].mxu0 %v4931
  %v5303 = vpop.f32.mrb[0].mxu0
  %v5304 = vadd.f32 %v5175, %v5303
  %v5305 = vpop.f32.mrb[0].mxu0
  %v5306 = vpop.f32.mrb[0].mxu0
  %v5307 = vadd.f32 %v5178, %v5306
  %v5308 = vpop.f32.mrb[0].mxu0
  %5309 = vmatprep.mubr.bf16.mxu0 0
  %5310 = vmatmul.mubr.bf16.gmra.mrb[0].mxu0 %v4934
  %v5311 = vpop.f32.mrb[0].mxu0
  %v5312 = vadd.f32 %v5183, %v5311
  %v5313 = vpop.f32.mrb[0].mxu0
  %v5314 = vpop.f32.mrb[0].mxu0
  %v5315 = vpop.f32.mrb[0].mxu0
  %5316 = vmatprep.mubr.bf16.mxu0 0
  %5317 = vmatmul.mubr.bf16.gmra.mrb[0].mxu0 %v4937
  %v5318 = vpop.f32.mrb[0].mxu0
  %v5319 = vpop.f32.mrb[0].mxu0
  %v5320 = vpop.f32.mrb[0].mxu0
  %v5321 = vpop.f32.mrb[0].mxu0
  %5322 = vmatprep.mubr.bf16.mxu0 0
  %5323 = vmatmul.mubr.bf16.gmra.mrb[0].mxu0 %v4940
  %v5324 = vpop.f32.mrb[0].mxu0
  %v5325 = vpop.f32.mrb[0].mxu0
  %v5326 = vpop.f32.mrb[0].mxu0
  %v5327 = vpop.f32.mrb[0].mxu0
  %5328 = vdwg.mxu0
  %v5329 = vmax.f32 %v5235, 0.0
  %v5330 = vmax.f32 %v5238, 0.0
  %v5331 = vmax.f32 %v5243, 0.0
  %v5332 = vmax.f32 %v5246, 0.0
  %v5333 = vmax.f32 %v5251, 0.0
  %v5334 = vmax.f32 %v5254, 0.0
  %v5335 = vmax.f32 %v5259, 0.0
  %v5336 = vmax.f32 %v5262, 0.0
  %v5337 = vmax.f32 %v5267, 0.0
  %v5338 = vmax.f32 %v5280, 0.0
  %v5339 = vmax.f32 %v5283, 0.0
  %v5340 = vmax.f32 %v5288, 0.0
  %v5341 = vmax.f32 %v5291, 0.0
  %v5342 = vmax.f32 %v5296, 0.0
  %v5343 = vmax.f32 %v5299, 0.0
  %v5344 = vmax.f32 %v5304, 0.0
  %v5345 = vmax.f32 %v5307, 0.0
  %v5346 = vmax.f32 %v5312, 0.0
  %vm5347 = vcmask 522240
  %5348 = vst.msk [vmem:[%s7] sm:$0x7f] %vm5347, %v5329
  %vm5349 = vcmask 523266
  %5350 = vst.msk [vmem:[%s7 + $0x5] sm:$0xfc] %vm5349, %v5330
  %vm5351 = vcmask 516096
  %5352 = vst.msk [vmem:[%s7 + $0xd] sm:$0x1] %vm5351, %v5331
  %vm5353 = vcmask 523268
  %5354 = vst.msk [vmem:[%s7 + $0xa] sm:$0xf0] %vm5353, %v5331
  %vm5355 = vcmask 518144
  %5356 = vst.msk [vmem:[%s7 + $0x12] sm:$0x7] %vm5355, %v5332
  %vm5357 = vcmask 523270
  %5358 = vst.msk [vmem:[%s7 + $0xf] sm:$0xc0] %vm5357, %v5332
  %vm5359 = vcmask 520192
  %5360 = vst.msk [vmem:[%s7 + $0x17] sm:$0x1f] %vm5359, %v5333
  %5361 = vst.msk [vmem:[%s7 + $0x1c] sm:$0x7f] %vm5347, %v5334
  %5362 = vst.msk [vmem:[%s7 + $0x21] sm:$0xfc] %vm5349, %v5335
  %5363 = vst.msk [vmem:[%s7 + $0x29] sm:$0x1] %vm5351, %v5336
  %5364 = vst.msk [vmem:[%s7 + $0x26] sm:$0xf0] %vm5353, %v5336
  %5365 = vst.msk [vmem:[%s7 + $0x2e] sm:$0x7] %vm5355, %v5337
  %s5366 = scalar_lea.vmem %s7, 56
  %5367 = vst.msk [vmem:[%s5366 - $0x4] sm:$0xf0] %vm5353, %v5338
  %5368 = vst.msk [vmem:[%s5366 + $0x4] sm:$0x7] %vm5355, %v5339
  %5369 = vst.msk [vmem:[%s5366 + $0x1] sm:$0xc0] %vm5357, %v5339
  %5370 = vst.msk [vmem:[%s5366 + $0x9] sm:$0x1f] %vm5359, %v5340
  %5371 = vst.msk [vmem:[%s5366 + $0xe] sm:$0x7f] %vm5347, %v5341
  %5372 = vst.msk [vmem:[%s5366 + $0x13] sm:$0xfc] %vm5349, %v5342
  %5373 = vst.msk [vmem:[%s5366 + $0x1b] sm:$0x1] %vm5351, %v5343
  %5374 = vst.msk [vmem:[%s5366 + $0x18] sm:$0xf0] %vm5353, %v5343
  %5375 = vst.msk [vmem:[%s5366 + $0x20] sm:$0x7] %vm5355, %v5344
  %5376 = vst.msk [vmem:[%s5366 + $0x1d] sm:$0xc0] %vm5357, %v5344
  %5377 = vst.msk [vmem:[%s5366 + $0x25] sm:$0x1f] %vm5359, %v5345
  %5378 = vst.msk [vmem:[%s5366 + $0x2a] sm:$0x7f] %vm5347, %v5346
  // Predicated region
  $region30: #{actor_forward.2} parent=0 // pred_check
    _
  $region31: #{actor_forward.2} parent=0 // pred_check_branch
    %5380 = sbr.rel (0) target = $region33
  $region32: #{actor_forward.2} parent=0 // pred_region
    _
  $region33: #{actor_forward.2} parent=0 // pred_fallthru
    _
  // Predicated region
  $region34: #{actor_forward.2} parent=0 // pred_check
    _
  $region35: #{actor_forward.2} parent=0 // pred_check_branch
    %5382 = sbr.rel (0) target = $region37
  $region36: #{actor_forward.2} parent=0 // pred_region
    _
  $region37: #{actor_forward.2} parent=0 // pred_fallthru
    _

// kernel: actor_forward.3
$region0: #{actor_forward.3}
  #allocation0 [shape = 'u32[]', space=smem, size = 0x4, offset = 0x4, fixed_abs, tag = 'smem constant byte address 0x4 - core index']
  #allocation1 [shape = 'u32[144,128]{1,0:T(1,128)}', space=vmem, size = 0x12000, scoped, tag = 'internal scratch']
  #allocation2 [shape = 'f32[2,128]{1,0:T(2,128)}', space=vmem, size = 0x400, scoped, tag = 'scratch operand']
  #allocation3 [shape = 'f32[2,32]{1,0:T(2,128)}', space=vmem, size = 0x400, scoped, tag = 'scratch operand']
  %s0 = inlined_call_operand.vmem [shape: bf16[2,3136], index: 0, kind: input, shape index: {}]
  %s1 = inlined_call_operand.vmem [shape: bf16[3136,32], index: 1, kind: input, shape index: {}]
  %s2 = inlined_call_operand.vmem [shape: f32[1,32], index: 2, kind: input, shape index: {}]
  %s3 = inlined_call_operand.vmem [shape: bf16[32,128], index: 3, kind: input, shape index: {}]
  %s4 = inlined_call_operand.vmem [shape: f32[1,128], index: 4, kind: input, shape index: {}]
  %s5 = inlined_call_operand.vmem [shape: bf16[32,128], index: 5, kind: input, shape index: {}]
  %s6 = inlined_call_operand.vmem [shape: bf16[32,4], index: 6, kind: input, shape index: {}]
  %s7 = inlined_call_operand.vmem [shape: f32[1,4], index: 7, kind: input, shape index: {}]
  %s8 = inlined_call_operand.vmem [shape: f32[2,32], index: 8, kind: input, shape index: {}]
  %s9 = inlined_call_operand.vmem [shape: f32[2,32], index: 9, kind: input, shape index: {}]
  %s10 = inlined_call_operand.hbm [shape: f32[2,4], index: 10, kind: output, shape index: {0}]
  %s11 = inlined_call_operand.hbm [shape: f32[2,32], index: 11, kind: output, shape index: {1}]
  %s12 = inlined_call_operand.hbm [shape: f32[2,32], index: 12, kind: output, shape index: {2}]
  %13 = xla_tuple %s10, %s11, %s12
  %s14 = sld [smem:[#allocation0]]
  $region66: #{actor_forward.3} parent=0
    _
  %s16 = ssub.s32 1, %s14
  %s17 = scalar_select 0, %s16, %s14
  $region1: #{actor_forward.3} parent=0
    #allocation4 [shape = 'u8[1024]{0}', space=vmem, size = 0x400, scoped, tag = 'output window, operand 0, single buffered']
    #allocation5 [shape = 's32[1]{0}', space=sflag, size = 0x4, scoped, tag = 'scoped memory for actor_forward.3']
    #allocation6 [shape = 'u8[1024]{0}', space=vmem, size = 0x400, scoped, tag = 'output window, operand 1, single buffered']
    #allocation7 [shape = 's32[1]{0}', space=sflag, size = 0x4, scoped, tag = 'scoped memory for actor_forward.3']
    #allocation8 [shape = 'u8[1024]{0}', space=vmem, size = 0x400, scoped, tag = 'output window, operand 2, single buffered']
    %18 = vsyncpa [#allocation5], 0
    %19 = vsyncpa [#allocation7], 0
    // Predicated region
    $region2: #{actor_forward.3} parent=1 // pred_check
      _
    $region3: #{actor_forward.3} parent=1 // pred_check_branch
      %21 = sbr.rel (0) target = $region5
    $region4: #{actor_forward.3} parent=1 // pred_region
      _
    $region5: #{actor_forward.3} parent=1 // pred_fallthru
      _
    // Predicated region
    $region6: #{actor_forward.3} parent=1 // pred_check
      _
    $region7: #{actor_forward.3} parent=1 // pred_check_branch
      %23 = sbr.rel (0) target = $region9
    $region8: #{actor_forward.3} parent=1 // pred_region
      _
    $region9: #{actor_forward.3} parent=1 // pred_fallthru
      _
    // Predicated region
    $region10: #{actor_forward.3} parent=1 // pred_check
      _
    $region11: #{actor_forward.3} parent=1 // pred_check_branch
      %25 = sbr.rel (0) target = $region13
    $region12: #{actor_forward.3} parent=1 // pred_region
      _
    $region13: #{actor_forward.3} parent=1 // pred_fallthru
      _
    // Predicated region
    $region14: #{actor_forward.3} parent=1 // pred_check
      _
    $region15: #{actor_forward.3} parent=1 // pred_check_branch
      %27 = sbr.rel (0) target = $region17
    $region16: #{actor_forward.3} parent=1 // pred_region
      _
    $region17: #{actor_forward.3} parent=1 // pred_fallthru
      _
    // Predicated region
    $region18: #{actor_forward.3} parent=1 // pred_check
      _
    $region19: #{actor_forward.3} parent=1 // pred_check_branch
      %29 = sbr.rel (0) target = $region21
    $region20: #{actor_forward.3} parent=1 // pred_region
      _
    $region21: #{actor_forward.3} parent=1 // pred_fallthru
      _
    // Predicated region
    $region22: #{actor_forward.3} parent=1 // pred_check
      _
    $region23: #{actor_forward.3} parent=1 // pred_check_branch
      %31 = sbr.rel (0) target = $region25
    $region24: #{actor_forward.3} parent=1 // pred_region
      _
    $region25: #{actor_forward.3} parent=1 // pred_fallthru
      _
    // Predicated region
    $region26: #{actor_forward.3} parent=1 // pred_check
      _
    $region27: #{actor_forward.3} parent=1 // pred_check_branch
      %33 = sbr.rel (0) target = $region29
    $region28: #{actor_forward.3} parent=1 // pred_region
      _
    $region29: #{actor_forward.3} parent=1 // pred_fallthru
      _
    // Predicated region
    $region30: #{actor_forward.3} parent=1 // pred_check
      _
    $region31: #{actor_forward.3} parent=1 // pred_check_branch
      %35 = sbr.rel (0) target = $region33
    $region32: #{actor_forward.3} parent=1 // pred_region
      _
    $region33: #{actor_forward.3} parent=1 // pred_fallthru
      _
    // Predicated region
    $region34: #{actor_forward.3} parent=1 // pred_check
      _
    $region35: #{actor_forward.3} parent=1 // pred_check_branch
      %37 = sbr.rel (0) target = $region37
    $region36: #{actor_forward.3} parent=1 // pred_region
      _
    $region37: #{actor_forward.3} parent=1 // pred_fallthru
      _
    // Predicated region
    $region38: #{actor_forward.3} parent=1 // pred_check
      _
    $region39: #{actor_forward.3} parent=1 // pred_check_branch
      %39 = sbr.rel (0) target = $region41
    $region40: #{actor_forward.3} parent=1 // pred_region
      _
    $region41: #{actor_forward.3} parent=1 // pred_fallthru
      _
    %v41 = vld [vmem:[%s0] sm:$0xff]
    %v42 = vld [vmem:[%s0 + $0x8] sm:$0xff]
    %v43 = vld [vmem:[%s0 + $0x10] sm:$0xff]
    %v44 = vld [vmem:[%s0 + $0x18] sm:$0x1]
    %v45 = vld [vmem:[%s1] sm:$0xf]
    %v46 = vld [vmem:[%s1 + $0x4] sm:$0xf]
    %v47 = vld [vmem:[%s1 + $0x8] sm:$0xf]
    %v48 = vld [vmem:[%s1 + $0xc] sm:$0xf]
    %v49 = vld [vmem:[%s1 + $0x10] sm:$0xf]
    %v50 = vld [vmem:[%s1 + $0x14] sm:$0xf]
    %v51 = vld [vmem:[%s1 + $0x18] sm:$0xf]
    %v52 = vld [vmem:[%s1 + $0x1c] sm:$0xf]
    %v53 = vld [vmem:[%s1 + $0x20] sm:$0xf]
    %v54 = vld [vmem:[%s1 + $0x24] sm:$0xf]
    %v55 = vld [vmem:[%s1 + $0x28] sm:$0xf]
    %v56 = vld [vmem:[%s1 + $0x2c] sm:$0xf]
    %v57 = vld [vmem:[%s1 + $0x30] sm:$0xf]
    %v58 = vld [vmem:[%s1 + $0x34] sm:$0xf]
    %v59 = vld [vmem:[%s1 + $0x38] sm:$0xf]
    %v60 = vld [vmem:[%s1 + $0x3c] sm:$0xf]
    %v61 = vld [vmem:[%s1 + $0x40] sm:$0xf]
    %v62 = vld [vmem:[%s1 + $0x44] sm:$0xf]
    %v63 = vld [vmem:[%s1 + $0x48] sm:$0xf]
    %v64 = vld [vmem:[%s1 + $0x4c] sm:$0xf]
    %v65 = vld [vmem:[%s1 + $0x50] sm:$0xf]
    %v66 = vld [vmem:[%s1 + $0x54] sm:$0xf]
    %v67 = vld [vmem:[%s1 + $0x58] sm:$0xf]
    %v68 = vld [vmem:[%s1 + $0x5c] sm:$0xf]
    %v69 = vld [vmem:[%s1 + $0x60] sm:$0xf]
    %v70 = vld [vmem:[%s1 + $0x64] sm:$0xf]
    %v71 = vld [vmem:[%s1 + $0x68] sm:$0xf]
    %v72 = vld [vmem:[%s1 + $0x6c] sm:$0xf]
    %v73 = vld [vmem:[%s1 + $0x70] sm:$0xf]
    %v74 = vld [vmem:[%s1 + $0x74] sm:$0xf]
    %v75 = vld [vmem:[%s1 + $0x78] sm:$0xf]
    %v76 = vld [vmem:[%s1 + $0x7c] sm:$0xf]
    %v77 = vld [vmem:[%s1 + $0x80] sm:$0xf]
    %v78 = vld [vmem:[%s1 + $0x84] sm:$0xf]
    %v79 = vld [vmem:[%s1 + $0x88] sm:$0xf]
    %v80 = vld [vmem:[%s1 + $0x8c] sm:$0xf]
    %v81 = vld [vmem:[%s1 + $0x90] sm:$0xf]
    %v82 = vld [vmem:[%s1 + $0x94] sm:$0xf]
    %v83 = vld [vmem:[%s1 + $0x98] sm:$0xf]
    %v84 = vld [vmem:[%s1 + $0x9c] sm:$0xf]
    %v85 = vld [vmem:[%s1 + $0xa0] sm:$0xf]
    %v86 = vld [vmem:[%s1 + $0xa4] sm:$0xf]
    %v87 = vld [vmem:[%s1 + $0xa8] sm:$0xf]
    %v88 = vld [vmem:[%s1 + $0xac] sm:$0xf]
    %v89 = vld [vmem:[%s1 + $0xb0] sm:$0xf]
    %v90 = vld [vmem:[%s1 + $0xb4] sm:$0xf]
    %v91 = vld [vmem:[%s1 + $0xb8] sm:$0xf]
    %v92 = vld [vmem:[%s1 + $0xbc] sm:$0xf]
    %v93 = vld [vmem:[%s1 + $0xc0] sm:$0xf]
    %v94 = vld [vmem:[%s1 + $0xc4] sm:$0xf]
    %v95 = vld [vmem:[%s1 + $0xc8] sm:$0xf]
    %v96 = vld [vmem:[%s1 + $0xcc] sm:$0xf]
    %v97 = vld [vmem:[%s1 + $0xd0] sm:$0xf]
    %v98 = vld [vmem:[%s1 + $0xd4] sm:$0xf]
    %v99 = vld [vmem:[%s1 + $0xd8] sm:$0xf]
    %v100 = vld [vmem:[%s1 + $0xdc] sm:$0xf]
    %v101 = vld [vmem:[%s1 + $0xe0] sm:$0xf]
    %v102 = vld [vmem:[%s1 + $0xe4] sm:$0xf]
    %v103 = vld [vmem:[%s1 + $0xe8] sm:$0xf]
    %v104 = vld [vmem:[%s1 + $0xec] sm:$0xf]
    %v105 = vld [vmem:[%s1 + $0xf0] sm:$0xf]
    %v106 = vld [vmem:[%s1 + $0xf4] sm:$0xf]
    %v107 = vld [vmem:[%s1 + $0xf8] sm:$0xf]
    %v108 = vld [vmem:[%s1 + $0xfc] sm:$0xf]
    %v109 = vld [vmem:[%s1 + $0x100] sm:$0xf]
    %v110 = vld [vmem:[%s1 + $0x104] sm:$0xf]
    %v111 = vld [vmem:[%s1 + $0x108] sm:$0xf]
    %v112 = vld [vmem:[%s1 + $0x10c] sm:$0xf]
    %v113 = vld [vmem:[%s1 + $0x110] sm:$0xf]
    %v114 = vld [vmem:[%s1 + $0x114] sm:$0xf]
    %v115 = vld [vmem:[%s1 + $0x118] sm:$0xf]
    %v116 = vld [vmem:[%s1 + $0x11c] sm:$0xf]
    %v117 = vld [vmem:[%s1 + $0x120] sm:$0xf]
    %v118 = vld [vmem:[%s1 + $0x124] sm:$0xf]
    %v119 = vld [vmem:[%s1 + $0x128] sm:$0xf]
    %v120 = vld [vmem:[%s1 + $0x12c] sm:$0xf]
    %v121 = vld [vmem:[%s1 + $0x130] sm:$0xf]
    %v122 = vld [vmem:[%s1 + $0x134] sm:$0xf]
    %v123 = vld [vmem:[%s1 + $0x138] sm:$0xf]
    %v124 = vld [vmem:[%s1 + $0x13c] sm:$0xf]
    %v125 = vld [vmem:[%s1 + $0x140] sm:$0xf]
    %v126 = vld [vmem:[%s1 + $0x144] sm:$0xf]
    %v127 = vld [vmem:[%s1 + $0x148] sm:$0xf]
    %v128 = vld [vmem:[%s1 + $0x14c] sm:$0xf]
    %v129 = vld [vmem:[%s1 + $0x150] sm:$0xf]
    %v130 = vld [vmem:[%s1 + $0x154] sm:$0xf]
    %v131 = vld [vmem:[%s1 + $0x158] sm:$0xf]
    %v132 = vld [vmem:[%s1 + $0x15c] sm:$0xf]
    %v133 = vld [vmem:[%s1 + $0x160] sm:$0xf]
    %v134 = vld [vmem:[%s1 + $0x164] sm:$0xf]
    %v135 = vld [vmem:[%s1 + $0x168] sm:$0xf]
    %v136 = vld [vmem:[%s1 + $0x16c] sm:$0xf]
    %v137 = vld [vmem:[%s1 + $0x170] sm:$0xf]
    %v138 = vld [vmem:[%s1 + $0x174] sm:$0xf]
    %v139 = vld [vmem:[%s1 + $0x178] sm:$0xf]
    %v140 = vld [vmem:[%s1 + $0x17c] sm:$0xf]
    %v141 = vld [vmem:[%s1 + $0x180] sm:$0xf]
    %v142 = vld [vmem:[%s1 + $0x184] sm:$0xf]
    %v143 = vld [vmem:[%s1 + $0x188] sm:$0xf]
    %v144 = vld [vmem:[%s1 + $0x18c] sm:$0xf]
    %v145 = vld [vmem:[%s1 + $0x190] sm:$0xf]
    %v146 = vld [vmem:[%s1 + $0x194] sm:$0xf]
    %v147 = vld [vmem:[%s1 + $0x198] sm:$0xf]
    %v148 = vld [vmem:[%s1 + $0x19c] sm:$0xf]
    %v149 = vld [vmem:[%s1 + $0x1a0] sm:$0xf]
    %v150 = vld [vmem:[%s1 + $0x1a4] sm:$0xf]
    %v151 = vld [vmem:[%s1 + $0x1a8] sm:$0xf]
    %v152 = vld [vmem:[%s1 + $0x1ac] sm:$0xf]
    %v153 = vld [vmem:[%s1 + $0x1b0] sm:$0xf]
    %v154 = vld [vmem:[%s1 + $0x1b4] sm:$0xf]
    %v155 = vld [vmem:[%s1 + $0x1b8] sm:$0xf]
    %v156 = vld [vmem:[%s1 + $0x1bc] sm:$0xf]
    %v157 = vld [vmem:[%s1 + $0x1c0] sm:$0xf]
    %v158 = vld [vmem:[%s1 + $0x1c4] sm:$0xf]
    %v159 = vld [vmem:[%s1 + $0x1c8] sm:$0xf]
    %v160 = vld [vmem:[%s1 + $0x1cc] sm:$0xf]
    %v161 = vld [vmem:[%s1 + $0x1d0] sm:$0xf]
    %v162 = vld [vmem:[%s1 + $0x1d4] sm:$0xf]
    %v163 = vld [vmem:[%s1 + $0x1d8] sm:$0xf]
    %v164 = vld [vmem:[%s1 + $0x1dc] sm:$0xf]
    %v165 = vld [vmem:[%s1 + $0x1e0] sm:$0xf]
    %v166 = vld [vmem:[%s1 + $0x1e4] sm:$0xf]
    %v167 = vld [vmem:[%s1 + $0x1e8] sm:$0xf]
    %v168 = vld [vmem:[%s1 + $0x1ec] sm:$0xf]
    %v169 = vld [vmem:[%s1 + $0x1f0] sm:$0xf]
    %v170 = vld [vmem:[%s1 + $0x1f4] sm:$0xf]
    %v171 = vld [vmem:[%s1 + $0x1f8] sm:$0xf]
    %v172 = vld [vmem:[%s1 + $0x1fc] sm:$0xf]
    %v173 = vld [vmem:[%s1 + $0x200] sm:$0xf]
    %v174 = vld [vmem:[%s1 + $0x204] sm:$0xf]
    %v175 = vld [vmem:[%s1 + $0x208] sm:$0xf]
    %v176 = vld [vmem:[%s1 + $0x20c] sm:$0xf]
    %v177 = vld [vmem:[%s1 + $0x210] sm:$0xf]
    %v178 = vld [vmem:[%s1 + $0x214] sm:$0xf]
    %v179 = vld [vmem:[%s1 + $0x218] sm:$0xf]
    %v180 = vld [vmem:[%s1 + $0x21c] sm:$0xf]
    %v181 = vld [vmem:[%s1 + $0x220] sm:$0xf]
    %v182 = vld [vmem:[%s1 + $0x224] sm:$0xf]
    %v183 = vld [vmem:[%s1 + $0x228] sm:$0xf]
    %v184 = vld [vmem:[%s1 + $0x22c] sm:$0xf]
    %v185 = vld [vmem:[%s1 + $0x230] sm:$0xf]
    %v186 = vld [vmem:[%s1 + $0x234] sm:$0xf]
    %v187 = vld [vmem:[%s1 + $0x238] sm:$0xf]
    %v188 = vld [vmem:[%s1 + $0x23c] sm:$0xf]
    %v189 = vld [vmem:[%s1 + $0x240] sm:$0xf]
    %v190 = vld [vmem:[%s1 + $0x244] sm:$0xf]
    %v191 = vld [vmem:[%s1 + $0x248] sm:$0xf]
    %v192 = vld [vmem:[%s1 + $0x24c] sm:$0xf]
    %v193 = vld [vmem:[%s1 + $0x250] sm:$0xf]
    %v194 = vld [vmem:[%s1 + $0x254] sm:$0xf]
    %v195 = vld [vmem:[%s1 + $0x258] sm:$0xf]
    %v196 = vld [vmem:[%s1 + $0x25c] sm:$0xf]
    %v197 = vld [vmem:[%s1 + $0x260] sm:$0xf]
    %v198 = vld [vmem:[%s1 + $0x264] sm:$0xf]
    %v199 = vld [vmem:[%s1 + $0x268] sm:$0xf]
    %v200 = vld [vmem:[%s1 + $0x26c] sm:$0xf]
    %v201 = vld [vmem:[%s1 + $0x270] sm:$0xf]
    %v202 = vld [vmem:[%s1 + $0x274] sm:$0xf]
    %v203 = vld [vmem:[%s1 + $0x278] sm:$0xf]
    %v204 = vld [vmem:[%s1 + $0x27c] sm:$0xf]
    %v205 = vld [vmem:[%s1 + $0x280] sm:$0xf]
    %v206 = vld [vmem:[%s1 + $0x284] sm:$0xf]
    %v207 = vld [vmem:[%s1 + $0x288] sm:$0xf]
    %v208 = vld [vmem:[%s1 + $0x28c] sm:$0xf]
    %v209 = vld [vmem:[%s1 + $0x290] sm:$0xf]
    %v210 = vld [vmem:[%s1 + $0x294] sm:$0xf]
    %v211 = vld [vmem:[%s1 + $0x298] sm:$0xf]
    %v212 = vld [vmem:[%s1 + $0x29c] sm:$0xf]
    %v213 = vld [vmem:[%s1 + $0x2a0] sm:$0xf]
    %v214 = vld [vmem:[%s1 + $0x2a4] sm:$0xf]
    %v215 = vld [vmem:[%s1 + $0x2a8] sm:$0xf]
    %v216 = vld [vmem:[%s1 + $0x2ac] sm:$0xf]
    %v217 = vld [vmem:[%s1 + $0x2b0] sm:$0xf]
    %v218 = vld [vmem:[%s1 + $0x2b4] sm:$0xf]
    %v219 = vld [vmem:[%s1 + $0x2b8] sm:$0xf]
    %v220 = vld [vmem:[%s1 + $0x2bc] sm:$0xf]
    %v221 = vld [vmem:[%s1 + $0x2c0] sm:$0xf]
    %v222 = vld [vmem:[%s1 + $0x2c4] sm:$0xf]
    %v223 = vld [vmem:[%s1 + $0x2c8] sm:$0xf]
    %v224 = vld [vmem:[%s1 + $0x2cc] sm:$0xf]
    %v225 = vld [vmem:[%s1 + $0x2d0] sm:$0xf]
    %v226 = vld [vmem:[%s1 + $0x2d4] sm:$0xf]
    %v227 = vld [vmem:[%s1 + $0x2d8] sm:$0xf]
    %v228 = vld [vmem:[%s1 + $0x2dc] sm:$0xf]
    %v229 = vld [vmem:[%s1 + $0x2e0] sm:$0xf]
    %v230 = vld [vmem:[%s1 + $0x2e4] sm:$0xf]
    %v231 = vld [vmem:[%s1 + $0x2e8] sm:$0xf]
    %v232 = vld [vmem:[%s1 + $0x2ec] sm:$0xf]
    %v233 = vld [vmem:[%s1 + $0x2f0] sm:$0xf]
    %v234 = vld [vmem:[%s1 + $0x2f4] sm:$0xf]
    %v235 = vld [vmem:[%s1 + $0x2f8] sm:$0xf]
    %v236 = vld [vmem:[%s1 + $0x2fc] sm:$0xf]
    %v237 = vld [vmem:[%s1 + $0x300] sm:$0xf]
    %v238 = vld [vmem:[%s1 + $0x304] sm:$0xf]
    %v239 = vld [vmem:[%s1 + $0x308] sm:$0xf]
    %v240 = vld [vmem:[%s1 + $0x30c] sm:$0xf]
    %v241 = vld [vmem:[%s1 + $0x310] sm:$0xf]
    %v242 = vld [vmem:[%s1 + $0x314] sm:$0xf]
    %v243 = vld [vmem:[%s1 + $0x318] sm:$0xf]
    %v244 = vld [vmem:[%s1 + $0x31c] sm:$0xf]
    %v245 = vld [vmem:[%s1 + $0x320] sm:$0xf]
    %v246 = vld [vmem:[%s1 + $0x324] sm:$0xf]
    %v247 = vld [vmem:[%s1 + $0x328] sm:$0xf]
    %v248 = vld [vmem:[%s1 + $0x32c] sm:$0xf]
    %v249 = vld [vmem:[%s1 + $0x330] sm:$0xf]
    %v250 = vld [vmem:[%s1 + $0x334] sm:$0xf]
    %v251 = vld [vmem:[%s1 + $0x338] sm:$0xf]
    %v252 = vld [vmem:[%s1 + $0x33c] sm:$0xf]
    %v253 = vld [vmem:[%s1 + $0x340] sm:$0xf]
    %v254 = vld [vmem:[%s1 + $0x344] sm:$0xf]
    %v255 = vld [vmem:[%s1 + $0x348] sm:$0xf]
    %v256 = vld [vmem:[%s1 + $0x34c] sm:$0xf]
    %v257 = vld [vmem:[%s1 + $0x350] sm:$0xf]
    %v258 = vld [vmem:[%s1 + $0x354] sm:$0xf]
    %v259 = vld [vmem:[%s1 + $0x358] sm:$0xf]
    %v260 = vld [vmem:[%s1 + $0x35c] sm:$0xf]
    %v261 = vld [vmem:[%s1 + $0x360] sm:$0xf]
    %v262 = vld [vmem:[%s1 + $0x364] sm:$0xf]
    %v263 = vld [vmem:[%s1 + $0x368] sm:$0xf]
    %v264 = vld [vmem:[%s1 + $0x36c] sm:$0xf]
    %v265 = vld [vmem:[%s1 + $0x370] sm:$0xf]
    %v266 = vld [vmem:[%s1 + $0x374] sm:$0xf]
    %v267 = vld [vmem:[%s1 + $0x378] sm:$0xf]
    %v268 = vld [vmem:[%s1 + $0x37c] sm:$0xf]
    %v269 = vld [vmem:[%s1 + $0x380] sm:$0xf]
    %v270 = vld [vmem:[%s1 + $0x384] sm:$0xf]
    %v271 = vld [vmem:[%s1 + $0x388] sm:$0xf]
    %v272 = vld [vmem:[%s1 + $0x38c] sm:$0xf]
    %v273 = vld [vmem:[%s1 + $0x390] sm:$0xf]
    %v274 = vld [vmem:[%s1 + $0x394] sm:$0xf]
    %v275 = vld [vmem:[%s1 + $0x398] sm:$0xf]
    %v276 = vld [vmem:[%s1 + $0x39c] sm:$0xf]
    %v277 = vld [vmem:[%s1 + $0x3a0] sm:$0xf]
    %v278 = vld [vmem:[%s1 + $0x3a4] sm:$0xf]
    %v279 = vld [vmem:[%s1 + $0x3a8] sm:$0xf]
    %v280 = vld [vmem:[%s1 + $0x3ac] sm:$0xf]
    %v281 = vld [vmem:[%s1 + $0x3b0] sm:$0xf]
    %v282 = vld [vmem:[%s1 + $0x3b4] sm:$0xf]
    %v283 = vld [vmem:[%s1 + $0x3b8] sm:$0xf]
    %v284 = vld [vmem:[%s1 + $0x3bc] sm:$0xf]
    %v285 = vld [vmem:[%s1 + $0x3c0] sm:$0xf]
    %v286 = vld [vmem:[%s1 + $0x3c4] sm:$0xf]
    %v287 = vld [vmem:[%s1 + $0x3c8] sm:$0xf]
    %v288 = vld [vmem:[%s1 + $0x3cc] sm:$0xf]
    %v289 = vld [vmem:[%s1 + $0x3d0] sm:$0xf]
    %v290 = vld [vmem:[%s1 + $0x3d4] sm:$0xf]
    %v291 = vld [vmem:[%s1 + $0x3d8] sm:$0xf]
    %v292 = vld [vmem:[%s1 + $0x3dc] sm:$0xf]
    %v293 = vld [vmem:[%s1 + $0x3e0] sm:$0xf]
    %v294 = vld [vmem:[%s1 + $0x3e4] sm:$0xf]
    %v295 = vld [vmem:[%s1 + $0x3e8] sm:$0xf]
    %v296 = vld [vmem:[%s1 + $0x3ec] sm:$0xf]
    %v297 = vld [vmem:[%s1 + $0x3f0] sm:$0xf]
    %v298 = vld [vmem:[%s1 + $0x3f4] sm:$0xf]
    %v299 = vld [vmem:[%s1 + $0x3f8] sm:$0xf]
    %v300 = vld [vmem:[%s1 + $0x3fc] sm:$0xf]
    %v301 = vld [vmem:[%s1 + $0x400] sm:$0xf]
    %v302 = vld [vmem:[%s1 + $0x404] sm:$0xf]
    %v303 = vld [vmem:[%s1 + $0x408] sm:$0xf]
    %v304 = vld [vmem:[%s1 + $0x40c] sm:$0xf]
    %v305 = vld [vmem:[%s1 + $0x410] sm:$0xf]
    %v306 = vld [vmem:[%s1 + $0x414] sm:$0xf]
    %v307 = vld [vmem:[%s1 + $0x418] sm:$0xf]
    %v308 = vld [vmem:[%s1 + $0x41c] sm:$0xf]
    %v309 = vld [vmem:[%s1 + $0x420] sm:$0xf]
    %v310 = vld [vmem:[%s1 + $0x424] sm:$0xf]
    %v311 = vld [vmem:[%s1 + $0x428] sm:$0xf]
    %v312 = vld [vmem:[%s1 + $0x42c] sm:$0xf]
    %v313 = vld [vmem:[%s1 + $0x430] sm:$0xf]
    %v314 = vld [vmem:[%s1 + $0x434] sm:$0xf]
    %v315 = vld [vmem:[%s1 + $0x438] sm:$0xf]
    %v316 = vld [vmem:[%s1 + $0x43c] sm:$0xf]
    %v317 = vld [vmem:[%s1 + $0x440] sm:$0xf]
    %v318 = vld [vmem:[%s1 + $0x444] sm:$0xf]
    %v319 = vld [vmem:[%s1 + $0x448] sm:$0xf]
    %v320 = vld [vmem:[%s1 + $0x44c] sm:$0xf]
    %v321 = vld [vmem:[%s1 + $0x450] sm:$0xf]
    %v322 = vld [vmem:[%s1 + $0x454] sm:$0xf]
    %v323 = vld [vmem:[%s1 + $0x458] sm:$0xf]
    %v324 = vld [vmem:[%s1 + $0x45c] sm:$0xf]
    %v325 = vld [vmem:[%s1 + $0x460] sm:$0xf]
    %v326 = vld [vmem:[%s1 + $0x464] sm:$0xf]
    %v327 = vld [vmem:[%s1 + $0x468] sm:$0xf]
    %v328 = vld [vmem:[%s1 + $0x46c] sm:$0xf]
    %v329 = vld [vmem:[%s1 + $0x470] sm:$0xf]
    %v330 = vld [vmem:[%s1 + $0x474] sm:$0xf]
    %v331 = vld [vmem:[%s1 + $0x478] sm:$0xf]
    %v332 = vld [vmem:[%s1 + $0x47c] sm:$0xf]
    %v333 = vld [vmem:[%s1 + $0x480] sm:$0xf]
    %v334 = vld [vmem:[%s1 + $0x484] sm:$0xf]
    %v335 = vld [vmem:[%s1 + $0x488] sm:$0xf]
    %v336 = vld [vmem:[%s1 + $0x48c] sm:$0xf]
    %v337 = vld [vmem:[%s1 + $0x490] sm:$0xf]
    %v338 = vld [vmem:[%s1 + $0x494] sm:$0xf]
    %v339 = vld [vmem:[%s1 + $0x498] sm:$0xf]
    %v340 = vld [vmem:[%s1 + $0x49c] sm:$0xf]
    %v341 = vld [vmem:[%s1 + $0x4a0] sm:$0xf]
    %v342 = vld [vmem:[%s1 + $0x4a4] sm:$0xf]
    %v343 = vld [vmem:[%s1 + $0x4a8] sm:$0xf]
    %v344 = vld [vmem:[%s1 + $0x4ac] sm:$0xf]
    %v345 = vld [vmem:[%s1 + $0x4b0] sm:$0xf]
    %v346 = vld [vmem:[%s1 + $0x4b4] sm:$0xf]
    %v347 = vld [vmem:[%s1 + $0x4b8] sm:$0xf]
    %v348 = vld [vmem:[%s1 + $0x4bc] sm:$0xf]
    %v349 = vld [vmem:[%s1 + $0x4c0] sm:$0xf]
    %v350 = vld [vmem:[%s1 + $0x4c4] sm:$0xf]
    %v351 = vld [vmem:[%s1 + $0x4c8] sm:$0xf]
    %v352 = vld [vmem:[%s1 + $0x4cc] sm:$0xf]
    %v353 = vld [vmem:[%s1 + $0x4d0] sm:$0xf]
    %v354 = vld [vmem:[%s1 + $0x4d4] sm:$0xf]
    %v355 = vld [vmem:[%s1 + $0x4d8] sm:$0xf]
    %v356 = vld [vmem:[%s1 + $0x4dc] sm:$0xf]
    %v357 = vld [vmem:[%s1 + $0x4e0] sm:$0xf]
    %v358 = vld [vmem:[%s1 + $0x4e4] sm:$0xf]
    %v359 = vld [vmem:[%s1 + $0x4e8] sm:$0xf]
    %v360 = vld [vmem:[%s1 + $0x4ec] sm:$0xf]
    %v361 = vld [vmem:[%s1 + $0x4f0] sm:$0xf]
    %v362 = vld [vmem:[%s1 + $0x4f4] sm:$0xf]
    %v363 = vld [vmem:[%s1 + $0x4f8] sm:$0xf]
    %v364 = vld [vmem:[%s1 + $0x4fc] sm:$0xf]
    %v365 = vld [vmem:[%s1 + $0x500] sm:$0xf]
    %v366 = vld [vmem:[%s1 + $0x504] sm:$0xf]
    %v367 = vld [vmem:[%s1 + $0x508] sm:$0xf]
    %v368 = vld [vmem:[%s1 + $0x50c] sm:$0xf]
    %v369 = vld [vmem:[%s1 + $0x510] sm:$0xf]
    %v370 = vld [vmem:[%s1 + $0x514] sm:$0xf]
    %v371 = vld [vmem:[%s1 + $0x518] sm:$0xf]
    %v372 = vld [vmem:[%s1 + $0x51c] sm:$0xf]
    %v373 = vld [vmem:[%s1 + $0x520] sm:$0xf]
    %v374 = vld [vmem:[%s1 + $0x524] sm:$0xf]
    %v375 = vld [vmem:[%s1 + $0x528] sm:$0xf]
    %v376 = vld [vmem:[%s1 + $0x52c] sm:$0xf]
    %v377 = vld [vmem:[%s1 + $0x530] sm:$0xf]
    %v378 = vld [vmem:[%s1 + $0x534] sm:$0xf]
    %v379 = vld [vmem:[%s1 + $0x538] sm:$0xf]
    %v380 = vld [vmem:[%s1 + $0x53c] sm:$0xf]
    %v381 = vld [vmem:[%s1 + $0x540] sm:$0xf]
    %v382 = vld [vmem:[%s1 + $0x544] sm:$0xf]
    %v383 = vld [vmem:[%s1 + $0x548] sm:$0xf]
    %v384 = vld [vmem:[%s1 + $0x54c] sm:$0xf]
    %v385 = vld [vmem:[%s1 + $0x550] sm:$0xf]
    %v386 = vld [vmem:[%s1 + $0x554] sm:$0xf]
    %v387 = vld [vmem:[%s1 + $0x558] sm:$0xf]
    %v388 = vld [vmem:[%s1 + $0x55c] sm:$0xf]
    %v389 = vld [vmem:[%s1 + $0x560] sm:$0xf]
    %v390 = vld [vmem:[%s1 + $0x564] sm:$0xf]
    %v391 = vld [vmem:[%s1 + $0x568] sm:$0xf]
    %v392 = vld [vmem:[%s1 + $0x56c] sm:$0xf]
    %v393 = vld [vmem:[%s1 + $0x570] sm:$0xf]
    %v394 = vld [vmem:[%s1 + $0x574] sm:$0xf]
    %v395 = vld [vmem:[%s1 + $0x578] sm:$0xf]
    %v396 = vld [vmem:[%s1 + $0x57c] sm:$0xf]
    %v397 = vld [vmem:[%s1 + $0x580] sm:$0xf]
    %v398 = vld [vmem:[%s1 + $0x584] sm:$0xf]
    %v399 = vld [vmem:[%s1 + $0x588] sm:$0xf]
    %v400 = vld [vmem:[%s1 + $0x58c] sm:$0xf]
    %v401 = vld [vmem:[%s1 + $0x590] sm:$0xf]
    %v402 = vld [vmem:[%s1 + $0x594] sm:$0xf]
    %v403 = vld [vmem:[%s1 + $0x598] sm:$0xf]
    %v404 = vld [vmem:[%s1 + $0x59c] sm:$0xf]
    %v405 = vld [vmem:[%s1 + $0x5a0] sm:$0xf]
    %v406 = vld [vmem:[%s1 + $0x5a4] sm:$0xf]
    %v407 = vld [vmem:[%s1 + $0x5a8] sm:$0xf]
    %v408 = vld [vmem:[%s1 + $0x5ac] sm:$0xf]
    %v409 = vld [vmem:[%s1 + $0x5b0] sm:$0xf]
    %v410 = vld [vmem:[%s1 + $0x5b4] sm:$0xf]
    %v411 = vld [vmem:[%s1 + $0x5b8] sm:$0xf]
    %v412 = vld [vmem:[%s1 + $0x5bc] sm:$0xf]
    %v413 = vld [vmem:[%s1 + $0x5c0] sm:$0xf]
    %v414 = vld [vmem:[%s1 + $0x5c4] sm:$0xf]
    %v415 = vld [vmem:[%s1 + $0x5c8] sm:$0xf]
    %v416 = vld [vmem:[%s1 + $0x5cc] sm:$0xf]
    %v417 = vld [vmem:[%s1 + $0x5d0] sm:$0xf]
    %v418 = vld [vmem:[%s1 + $0x5d4] sm:$0xf]
    %v419 = vld [vmem:[%s1 + $0x5d8] sm:$0xf]
    %v420 = vld [vmem:[%s1 + $0x5dc] sm:$0xf]
    %v421 = vld [vmem:[%s1 + $0x5e0] sm:$0xf]
    %v422 = vld [vmem:[%s1 + $0x5e4] sm:$0xf]
    %v423 = vld [vmem:[%s1 + $0x5e8] sm:$0xf]
    %v424 = vld [vmem:[%s1 + $0x5ec] sm:$0xf]
    %v425 = vld [vmem:[%s1 + $0x5f0] sm:$0xf]
    %v426 = vld [vmem:[%s1 + $0x5f4] sm:$0xf]
    %v427 = vld [vmem:[%s1 + $0x5f8] sm:$0xf]
    %v428 = vld [vmem:[%s1 + $0x5fc] sm:$0xf]
    %v429 = vld [vmem:[%s1 + $0x600] sm:$0xf]
    %v430 = vld [vmem:[%s1 + $0x604] sm:$0xf]
    %v431 = vld [vmem:[%s1 + $0x608] sm:$0xf]
    %v432 = vld [vmem:[%s1 + $0x60c] sm:$0xf]
    %v433 = vld [vmem:[%s1 + $0x610] sm:$0xf]
    %v434 = vld [vmem:[%s1 + $0x614] sm:$0xf]
    %v435 = vld [vmem:[%s1 + $0x618] sm:$0xf]
    %v436 = vld [vmem:[%s1 + $0x61c] sm:$0xf]
    %v437 = vld [vmem:[%s2] sm:$0x1]
    %v439 = vlaneseq
    %v440 = vshrl.u32 %v439, 7
    %v441 = vsub.s32 0, %v440
    %v442 = vrot.slane %v437, %v441
    %v448 = vcombine.high %v41, %v41
    %v450 = vunpack.c.l.s4 1966171168
    %v451 = vunpack.c.0.s8 %v450
    %v452 = vlaneseq
    %v453 = vshrl.u32 %v452, 7
    %v454 = vsub.s32 %v451, %v453
    %v455 = vrot.slane %v41, %v454
    %v457 = vunpack.c.l.s4 1966171168
    %v458 = vunpack.c.0.s8 %v457
    %v459 = vlaneseq
    %v460 = vshrl.u32 %v459, 7
    %v461 = vsub.s32 %v458, %v460
    %v462 = vrot.slane %v448, %v461
    %v463 = vcombine.high %v455, %v455
    %v464 = vcombine.high %v462, %v462
    %v466 = vunpack.c.l.s4 1966171168
    %v467 = vunpack.c.0.s8 %v466
    %v468 = vlaneseq
    %v469 = vshrl.u32 %v468, 7
    %v470 = vsub.s32 %v467, %v469
    %v471 = vrot.slane %v455, %v470
    %v473 = vunpack.c.l.s4 1966171168
    %v474 = vunpack.c.0.s8 %v473
    %v475 = vlaneseq
    %v476 = vshrl.u32 %v475, 7
    %v477 = vsub.s32 %v474, %v476
    %v478 = vrot.slane %v462, %v477
    %v480 = vunpack.c.l.s4 1966171168
    %v481 = vunpack.c.0.s8 %v480
    %v482 = vlaneseq
    %v483 = vshrl.u32 %v482, 7
    %v484 = vsub.s32 %v481, %v483
    %v485 = vrot.slane %v463, %v484
    %v487 = vunpack.c.l.s4 1966171168
    %v488 = vunpack.c.0.s8 %v487
    %v489 = vlaneseq
    %v490 = vshrl.u32 %v489, 7
    %v491 = vsub.s32 %v488, %v490
    %v492 = vrot.slane %v464, %v491
    %v493 = vcombine.high %v471, %v471
    %v494 = vcombine.high %v478, %v478
    %v495 = vcombine.high %v485, %v485
    %v496 = vcombine.high %v492, %v492
    %v497 = vcombine.high %v42, %v42
    %v499 = vunpack.c.l.s4 1966171168
    %v500 = vunpack.c.0.s8 %v499
    %v501 = vlaneseq
    %v502 = vshrl.u32 %v501, 7
    %v503 = vsub.s32 %v500, %v502
    %v504 = vrot.slane %v42, %v503
    %v506 = vunpack.c.l.s4 1966171168
    %v507 = vunpack.c.0.s8 %v506
    %v508 = vlaneseq
    %v509 = vshrl.u32 %v508, 7
    %v510 = vsub.s32 %v507, %v509
    %v511 = vrot.slane %v497, %v510
    %v512 = vcombine.high %v504, %v504
    %v513 = vcombine.high %v511, %v511
    %v515 = vunpack.c.l.s4 1966171168
    %v516 = vunpack.c.0.s8 %v515
    %v517 = vlaneseq
    %v518 = vshrl.u32 %v517, 7
    %v519 = vsub.s32 %v516, %v518
    %v520 = vrot.slane %v504, %v519
    %v522 = vunpack.c.l.s4 1966171168
    %v523 = vunpack.c.0.s8 %v522
    %v524 = vlaneseq
    %v525 = vshrl.u32 %v524, 7
    %v526 = vsub.s32 %v523, %v525
    %v527 = vrot.slane %v511, %v526
    %v529 = vunpack.c.l.s4 1966171168
    %v530 = vunpack.c.0.s8 %v529
    %v531 = vlaneseq
    %v532 = vshrl.u32 %v531, 7
    %v533 = vsub.s32 %v530, %v532
    %v534 = vrot.slane %v512, %v533
    %v536 = vunpack.c.l.s4 1966171168
    %v537 = vunpack.c.0.s8 %v536
    %v538 = vlaneseq
    %v539 = vshrl.u32 %v538, 7
    %v540 = vsub.s32 %v537, %v539
    %v541 = vrot.slane %v513, %v540
    %v542 = vcombine.high %v520, %v520
    %v543 = vcombine.high %v527, %v527
    %v544 = vcombine.high %v534, %v534
    %v545 = vcombine.high %v541, %v541
    %v546 = vcombine.high %v43, %v43
    %v548 = vunpack.c.l.s4 1966171168
    %v549 = vunpack.c.0.s8 %v548
    %v550 = vlaneseq
    %v551 = vshrl.u32 %v550, 7
    %v552 = vsub.s32 %v549, %v551
    %v553 = vrot.slane %v43, %v552
    %v555 = vunpack.c.l.s4 1966171168
    %v556 = vunpack.c.0.s8 %v555
    %v557 = vlaneseq
    %v558 = vshrl.u32 %v557, 7
    %v559 = vsub.s32 %v556, %v558
    %v560 = vrot.slane %v546, %v559
    %v561 = vcombine.high %v553, %v553
    %v562 = vcombine.high %v560, %v560
    %v564 = vunpack.c.l.s4 1966171168
    %v565 = vunpack.c.0.s8 %v564
    %v566 = vlaneseq
    %v567 = vshrl.u32 %v566, 7
    %v568 = vsub.s32 %v565, %v567
    %v569 = vrot.slane %v553, %v568
    %v571 = vunpack.c.l.s4 1966171168
    %v572 = vunpack.c.0.s8 %v571
    %v573 = vlaneseq
    %v574 = vshrl.u32 %v573, 7
    %v575 = vsub.s32 %v572, %v574
    %v576 = vrot.slane %v560, %v575
    %v578 = vunpack.c.l.s4 1966171168
    %v579 = vunpack.c.0.s8 %v578
    %v580 = vlaneseq
    %v581 = vshrl.u32 %v580, 7
    %v582 = vsub.s32 %v579, %v581
    %v583 = vrot.slane %v561, %v582
    %v585 = vunpack.c.l.s4 1966171168
    %v586 = vunpack.c.0.s8 %v585
    %v587 = vlaneseq
    %v588 = vshrl.u32 %v587, 7
    %v589 = vsub.s32 %v586, %v588
    %v590 = vrot.slane %v562, %v589
    %v591 = vcombine.high %v569, %v569
    %v592 = vcombine.high %v576, %v576
    %v593 = vcombine.high %v583, %v583
    %v594 = vcombine.high %v590, %v590
    %v596 = vunpack.c.l.s4 1966171168
    %v597 = vunpack.c.0.s8 %v596
    %v598 = vlaneseq
    %v599 = vshrl.u32 %v598, 7
    %v600 = vsub.s32 %v597, %v599
    %v601 = vrot.slane %v44, %v600
    %v603 = vunpack.c.l.s4 1966171168
    %v604 = vunpack.c.0.s8 %v603
    %v605 = vlaneseq
    %v606 = vshrl.u32 %v605, 7
    %v607 = vsub.s32 %v604, %v606
    %v608 = vrot.slane %v601, %v607
    %v1025 = vunpack.c.l.b16 %v45
    %v1026 = vunpack.c.l.b16 %v46
    %v1027 = vunpack.c.l.b16 %v47
    %v1028 = vunpack.c.l.b16 %v48
    %v1029 = vunpack.c.l.b16 %v49
    %v1030 = vunpack.c.l.b16 %v50
    %v1031 = vunpack.c.l.b16 %v51
    %v1032 = vunpack.c.l.b16 %v52
    %v1033 = vunpack.c.l.b16 %v53
    %v1034 = vunpack.c.l.b16 %v54
    %v1035 = vunpack.c.l.b16 %v55
    %v1036 = vunpack.c.l.b16 %v56
    %v1037 = vunpack.c.l.b16 %v57
    %v1038 = vunpack.c.l.b16 %v58
    %v1039 = vunpack.c.l.b16 %v59
    %v1040 = vunpack.c.l.b16 %v60
    %v1041 = vunpack.c.l.b16 %v61
    %v1042 = vunpack.c.l.b16 %v62
    %v1043 = vunpack.c.l.b16 %v63
    %v1044 = vunpack.c.l.b16 %v64
    %v1045 = vunpack.c.l.b16 %v65
    %v1046 = vunpack.c.l.b16 %v66
    %v1047 = vunpack.c.l.b16 %v67
    %v1048 = vunpack.c.l.b16 %v68
    %v1049 = vunpack.c.l.b16 %v69
    %v1050 = vunpack.c.l.b16 %v70
    %v1051 = vunpack.c.l.b16 %v71
    %v1052 = vunpack.c.l.b16 %v72
    %v1053 = vunpack.c.l.b16 %v73
    %v1054 = vunpack.c.l.b16 %v74
    %v1055 = vunpack.c.l.b16 %v75
    %v1056 = vunpack.c.l.b16 %v76
    %v1057 = vunpack.c.l.b16 %v77
    %v1058 = vunpack.c.l.b16 %v78
    %v1059 = vunpack.c.l.b16 %v79
    %v1060 = vunpack.c.l.b16 %v80
    %v1061 = vunpack.c.l.b16 %v81
    %v1062 = vunpack.c.l.b16 %v82
    %v1063 = vunpack.c.l.b16 %v83
    %v1064 = vunpack.c.l.b16 %v84
    %v1065 = vunpack.c.l.b16 %v85
    %v1066 = vunpack.c.l.b16 %v86
    %v1067 = vunpack.c.l.b16 %v87
    %v1068 = vunpack.c.l.b16 %v88
    %v1069 = vunpack.c.l.b16 %v89
    %v1070 = vunpack.c.l.b16 %v90
    %v1071 = vunpack.c.l.b16 %v91
    %v1072 = vunpack.c.l.b16 %v92
    %v1073 = vunpack.c.l.b16 %v93
    %v1074 = vunpack.c.l.b16 %v94
    %v1075 = vunpack.c.l.b16 %v95
    %v1076 = vunpack.c.l.b16 %v96
    %v1077 = vunpack.c.l.b16 %v97
    %v1078 = vunpack.c.l.b16 %v98
    %v1079 = vunpack.c.l.b16 %v99
    %v1080 = vunpack.c.l.b16 %v100
    %v1081 = vunpack.c.l.b16 %v101
    %v1082 = vunpack.c.l.b16 %v102
    %v1083 = vunpack.c.l.b16 %v103
    %v1084 = vunpack.c.l.b16 %v104
    %v1085 = vunpack.c.l.b16 %v105
    %v1086 = vunpack.c.l.b16 %v106
    %v1087 = vunpack.c.l.b16 %v107
    %v1088 = vunpack.c.l.b16 %v108
    %v1089 = vunpack.c.l.b16 %v109
    %v1090 = vunpack.c.l.b16 %v110
    %v1091 = vunpack.c.l.b16 %v111
    %v1092 = vunpack.c.l.b16 %v112
    %v1093 = vunpack.c.l.b16 %v113
    %v1094 = vunpack.c.l.b16 %v114
    %v1095 = vunpack.c.l.b16 %v115
    %v1096 = vunpack.c.l.b16 %v116
    %v1097 = vunpack.c.l.b16 %v117
    %v1098 = vunpack.c.l.b16 %v118
    %v1099 = vunpack.c.l.b16 %v119
    %v1100 = vunpack.c.l.b16 %v120
    %v1101 = vunpack.c.l.b16 %v121
    %v1102 = vunpack.c.l.b16 %v122
    %v1103 = vunpack.c.l.b16 %v123
    %v1104 = vunpack.c.l.b16 %v124
    %v1105 = vunpack.c.l.b16 %v125
    %v1106 = vunpack.c.l.b16 %v126
    %v1107 = vunpack.c.l.b16 %v127
    %v1108 = vunpack.c.l.b16 %v128
    %v1109 = vunpack.c.l.b16 %v129
    %v1110 = vunpack.c.l.b16 %v130
    %v1111 = vunpack.c.l.b16 %v131
    %v1112 = vunpack.c.l.b16 %v132
    %v1113 = vunpack.c.l.b16 %v133
    %v1114 = vunpack.c.l.b16 %v134
    %v1115 = vunpack.c.l.b16 %v135
    %v1116 = vunpack.c.l.b16 %v136
    %v1117 = vunpack.c.l.b16 %v137
    %v1118 = vunpack.c.l.b16 %v138
    %v1119 = vunpack.c.l.b16 %v139
    %v1120 = vunpack.c.l.b16 %v140
    %v1121 = vunpack.c.l.b16 %v141
    %v1122 = vunpack.c.l.b16 %v142
    %v1123 = vunpack.c.l.b16 %v143
    %v1124 = vunpack.c.l.b16 %v144
    %v1125 = vunpack.c.l.b16 %v145
    %v1126 = vunpack.c.l.b16 %v146
    %v1127 = vunpack.c.l.b16 %v147
    %v1128 = vunpack.c.l.b16 %v148
    %v1129 = vunpack.c.l.b16 %v149
    %v1130 = vunpack.c.l.b16 %v150
    %v1131 = vunpack.c.l.b16 %v151
    %v1132 = vunpack.c.l.b16 %v152
    %v1133 = vunpack.c.l.b16 %v153
    %v1134 = vunpack.c.l.b16 %v154
    %v1135 = vunpack.c.l.b16 %v155
    %v1136 = vunpack.c.l.b16 %v156
    %v1137 = vunpack.c.l.b16 %v157
    %v1138 = vunpack.c.l.b16 %v158
    %v1139 = vunpack.c.l.b16 %v159
    %v1140 = vunpack.c.l.b16 %v160
    %v1141 = vunpack.c.l.b16 %v161
    %v1142 = vunpack.c.l.b16 %v162
    %v1143 = vunpack.c.l.b16 %v163
    %v1144 = vunpack.c.l.b16 %v164
    %v1145 = vunpack.c.l.b16 %v165
    %v1146 = vunpack.c.l.b16 %v166
    %v1147 = vunpack.c.l.b16 %v167
    %v1148 = vunpack.c.l.b16 %v168
    %v1149 = vunpack.c.l.b16 %v169
    %v1150 = vunpack.c.l.b16 %v170
    %v1151 = vunpack.c.l.b16 %v171
    %v1152 = vunpack.c.l.b16 %v172
    %v1153 = vunpack.c.l.b16 %v173
    %v1154 = vunpack.c.l.b16 %v174
    %v1155 = vunpack.c.l.b16 %v175
    %v1156 = vunpack.c.l.b16 %v176
    %v1157 = vunpack.c.l.b16 %v177
    %v1158 = vunpack.c.l.b16 %v178
    %v1159 = vunpack.c.l.b16 %v179
    %v1160 = vunpack.c.l.b16 %v180
    %v1161 = vunpack.c.l.b16 %v181
    %v1162 = vunpack.c.l.b16 %v182
    %v1163 = vunpack.c.l.b16 %v183
    %v1164 = vunpack.c.l.b16 %v184
    %v1165 = vunpack.c.l.b16 %v185
    %v1166 = vunpack.c.l.b16 %v186
    %v1167 = vunpack.c.l.b16 %v187
    %v1168 = vunpack.c.l.b16 %v188
    %v1169 = vunpack.c.l.b16 %v189
    %v1170 = vunpack.c.l.b16 %v190
    %v1171 = vunpack.c.l.b16 %v191
    %v1172 = vunpack.c.l.b16 %v192
    %v1173 = vunpack.c.l.b16 %v193
    %v1174 = vunpack.c.l.b16 %v194
    %v1175 = vunpack.c.l.b16 %v195
    %v1176 = vunpack.c.l.b16 %v196
    %v1177 = vunpack.c.l.b16 %v197
    %v1178 = vunpack.c.l.b16 %v198
    %v1179 = vunpack.c.l.b16 %v199
    %v1180 = vunpack.c.l.b16 %v200
    %v1181 = vunpack.c.l.b16 %v201
    %v1182 = vunpack.c.l.b16 %v202
    %v1183 = vunpack.c.l.b16 %v203
    %v1184 = vunpack.c.l.b16 %v204
    %v1185 = vunpack.c.l.b16 %v205
    %v1186 = vunpack.c.l.b16 %v206
    %v1187 = vunpack.c.l.b16 %v207
    %v1188 = vunpack.c.l.b16 %v208
    %v1189 = vunpack.c.l.b16 %v209
    %v1190 = vunpack.c.l.b16 %v210
    %v1191 = vunpack.c.l.b16 %v211
    %v1192 = vunpack.c.l.b16 %v212
    %v1193 = vunpack.c.l.b16 %v213
    %v1194 = vunpack.c.l.b16 %v214
    %v1195 = vunpack.c.l.b16 %v215
    %v1196 = vunpack.c.l.b16 %v216
    %v1197 = vunpack.c.l.b16 %v217
    %v1198 = vunpack.c.l.b16 %v218
    %v1199 = vunpack.c.l.b16 %v219
    %v1200 = vunpack.c.l.b16 %v220
    %v1201 = vunpack.c.l.b16 %v221
    %v1202 = vunpack.c.l.b16 %v222
    %v1203 = vunpack.c.l.b16 %v223
    %v1204 = vunpack.c.l.b16 %v224
    %v1205 = vunpack.c.l.b16 %v225
    %v1206 = vunpack.c.l.b16 %v226
    %v1207 = vunpack.c.l.b16 %v227
    %v1208 = vunpack.c.l.b16 %v228
    %v1209 = vunpack.c.l.b16 %v229
    %v1210 = vunpack.c.l.b16 %v230
    %v1211 = vunpack.c.l.b16 %v231
    %v1212 = vunpack.c.l.b16 %v232
    %v1213 = vunpack.c.l.b16 %v233
    %v1214 = vunpack.c.l.b16 %v234
    %v1215 = vunpack.c.l.b16 %v235
    %v1216 = vunpack.c.l.b16 %v236
    %v1217 = vunpack.c.l.b16 %v237
    %v1218 = vunpack.c.l.b16 %v238
    %v1219 = vunpack.c.l.b16 %v239
    %v1220 = vunpack.c.l.b16 %v240
    %v1221 = vunpack.c.l.b16 %v241
    %v1222 = vunpack.c.l.b16 %v242
    %v1223 = vunpack.c.l.b16 %v243
    %v1224 = vunpack.c.l.b16 %v244
    %v1225 = vunpack.c.l.b16 %v245
    %v1226 = vunpack.c.l.b16 %v246
    %v1227 = vunpack.c.l.b16 %v247
    %v1228 = vunpack.c.l.b16 %v248
    %v1229 = vunpack.c.l.b16 %v249
    %v1230 = vunpack.c.l.b16 %v250
    %v1231 = vunpack.c.l.b16 %v251
    %v1232 = vunpack.c.l.b16 %v252
    %v1233 = vunpack.c.l.b16 %v253
    %v1234 = vunpack.c.l.b16 %v254
    %v1235 = vunpack.c.l.b16 %v255
    %v1236 = vunpack.c.l.b16 %v256
    %v1237 = vunpack.c.l.b16 %v257
    %v1238 = vunpack.c.l.b16 %v258
    %v1239 = vunpack.c.l.b16 %v259
    %v1240 = vunpack.c.l.b16 %v260
    %v1241 = vunpack.c.l.b16 %v261
    %v1242 = vunpack.c.l.b16 %v262
    %v1243 = vunpack.c.l.b16 %v263
    %v1244 = vunpack.c.l.b16 %v264
    %v1245 = vunpack.c.l.b16 %v265
    %v1246 = vunpack.c.l.b16 %v266
    %v1247 = vunpack.c.l.b16 %v267
    %v1248 = vunpack.c.l.b16 %v268
    %v1249 = vunpack.c.l.b16 %v269
    %v1250 = vunpack.c.l.b16 %v270
    %v1251 = vunpack.c.l.b16 %v271
    %v1252 = vunpack.c.l.b16 %v272
    %v1253 = vunpack.c.l.b16 %v273
    %v1254 = vunpack.c.l.b16 %v274
    %v1255 = vunpack.c.l.b16 %v275
    %v1256 = vunpack.c.l.b16 %v276
    %v1257 = vunpack.c.l.b16 %v277
    %v1258 = vunpack.c.l.b16 %v278
    %v1259 = vunpack.c.l.b16 %v279
    %v1260 = vunpack.c.l.b16 %v280
    %v1261 = vunpack.c.l.b16 %v281
    %v1262 = vunpack.c.l.b16 %v282
    %v1263 = vunpack.c.l.b16 %v283
    %v1264 = vunpack.c.l.b16 %v284
    %v1265 = vunpack.c.l.b16 %v285
    %v1266 = vunpack.c.l.b16 %v286
    %v1267 = vunpack.c.l.b16 %v287
    %v1268 = vunpack.c.l.b16 %v288
    %v1269 = vunpack.c.l.b16 %v289
    %v1270 = vunpack.c.l.b16 %v290
    %v1271 = vunpack.c.l.b16 %v291
    %v1272 = vunpack.c.l.b16 %v292
    %v1273 = vunpack.c.l.b16 %v293
    %v1274 = vunpack.c.l.b16 %v294
    %v1275 = vunpack.c.l.b16 %v295
    %v1276 = vunpack.c.l.b16 %v296
    %v1277 = vunpack.c.l.b16 %v297
    %v1278 = vunpack.c.l.b16 %v298
    %v1279 = vunpack.c.l.b16 %v299
    %v1280 = vunpack.c.l.b16 %v300
    %v1281 = vunpack.c.l.b16 %v301
    %v1282 = vunpack.c.l.b16 %v302
    %v1283 = vunpack.c.l.b16 %v303
    %v1284 = vunpack.c.l.b16 %v304
    %v1285 = vunpack.c.l.b16 %v305
    %v1286 = vunpack.c.l.b16 %v306
    %v1287 = vunpack.c.l.b16 %v307
    %v1288 = vunpack.c.l.b16 %v308
    %v1289 = vunpack.c.l.b16 %v309
    %v1290 = vunpack.c.l.b16 %v310
    %v1291 = vunpack.c.l.b16 %v311
    %v1292 = vunpack.c.l.b16 %v312
    %v1293 = vunpack.c.l.b16 %v313
    %v1294 = vunpack.c.l.b16 %v314
    %v1295 = vunpack.c.l.b16 %v315
    %v1296 = vunpack.c.l.b16 %v316
    %v1297 = vunpack.c.l.b16 %v317
    %v1298 = vunpack.c.l.b16 %v318
    %v1299 = vunpack.c.l.b16 %v319
    %v1300 = vunpack.c.l.b16 %v320
    %v1301 = vunpack.c.l.b16 %v321
    %v1302 = vunpack.c.l.b16 %v322
    %v1303 = vunpack.c.l.b16 %v323
    %v1304 = vunpack.c.l.b16 %v324
    %v1305 = vunpack.c.l.b16 %v325
    %v1306 = vunpack.c.l.b16 %v326
    %v1307 = vunpack.c.l.b16 %v327
    %v1308 = vunpack.c.l.b16 %v328
    %v1309 = vunpack.c.l.b16 %v329
    %v1310 = vunpack.c.l.b16 %v330
    %v1311 = vunpack.c.l.b16 %v331
    %v1312 = vunpack.c.l.b16 %v332
    %v1313 = vunpack.c.l.b16 %v333
    %v1314 = vunpack.c.l.b16 %v334
    %v1315 = vunpack.c.l.b16 %v335
    %v1316 = vunpack.c.l.b16 %v336
    %v1317 = vunpack.c.l.b16 %v337
    %v1318 = vunpack.c.l.b16 %v338
    %v1319 = vunpack.c.l.b16 %v339
    %v1320 = vunpack.c.l.b16 %v340
    %v1321 = vunpack.c.l.b16 %v341
    %v1322 = vunpack.c.l.b16 %v342
    %v1323 = vunpack.c.l.b16 %v343
    %v1324 = vunpack.c.l.b16 %v344
    %v1325 = vunpack.c.l.b16 %v345
    %v1326 = vunpack.c.l.b16 %v346
    %v1327 = vunpack.c.l.b16 %v347
    %v1328 = vunpack.c.l.b16 %v348
    %v1329 = vunpack.c.l.b16 %v349
    %v1330 = vunpack.c.l.b16 %v350
    %v1331 = vunpack.c.l.b16 %v351
    %v1332 = vunpack.c.l.b16 %v352
    %v1333 = vunpack.c.l.b16 %v353
    %v1334 = vunpack.c.l.b16 %v354
    %v1335 = vunpack.c.l.b16 %v355
    %v1336 = vunpack.c.l.b16 %v356
    %v1337 = vunpack.c.l.b16 %v357
    %v1338 = vunpack.c.l.b16 %v358
    %v1339 = vunpack.c.l.b16 %v359
    %v1340 = vunpack.c.l.b16 %v360
    %v1341 = vunpack.c.l.b16 %v361
    %v1342 = vunpack.c.l.b16 %v362
    %v1343 = vunpack.c.l.b16 %v363
    %v1344 = vunpack.c.l.b16 %v364
    %v1345 = vunpack.c.l.b16 %v365
    %v1346 = vunpack.c.l.b16 %v366
    %v1347 = vunpack.c.l.b16 %v367
    %v1348 = vunpack.c.l.b16 %v368
    %v1349 = vunpack.c.l.b16 %v369
    %v1350 = vunpack.c.l.b16 %v370
    %v1351 = vunpack.c.l.b16 %v371
    %v1352 = vunpack.c.l.b16 %v372
    %v1353 = vunpack.c.l.b16 %v373
    %v1354 = vunpack.c.l.b16 %v374
    %v1355 = vunpack.c.l.b16 %v375
    %v1356 = vunpack.c.l.b16 %v376
    %v1357 = vunpack.c.l.b16 %v377
    %v1358 = vunpack.c.l.b16 %v378
    %v1359 = vunpack.c.l.b16 %v379
    %v1360 = vunpack.c.l.b16 %v380
    %v1361 = vunpack.c.l.b16 %v381
    %v1362 = vunpack.c.l.b16 %v382
    %v1363 = vunpack.c.l.b16 %v383
    %v1364 = vunpack.c.l.b16 %v384
    %v1365 = vunpack.c.l.b16 %v385
    %v1366 = vunpack.c.l.b16 %v386
    %v1367 = vunpack.c.l.b16 %v387
    %v1368 = vunpack.c.l.b16 %v388
    %v1369 = vunpack.c.l.b16 %v389
    %v1370 = vunpack.c.l.b16 %v390
    %v1371 = vunpack.c.l.b16 %v391
    %v1372 = vunpack.c.l.b16 %v392
    %v1373 = vunpack.c.l.b16 %v393
    %v1374 = vunpack.c.l.b16 %v394
    %v1375 = vunpack.c.l.b16 %v395
    %v1376 = vunpack.c.l.b16 %v396
    %v1377 = vunpack.c.l.b16 %v397
    %v1378 = vunpack.c.l.b16 %v398
    %v1379 = vunpack.c.l.b16 %v399
    %v1380 = vunpack.c.l.b16 %v400
    %v1381 = vunpack.c.l.b16 %v401
    %v1382 = vunpack.c.l.b16 %v402
    %v1383 = vunpack.c.l.b16 %v403
    %v1384 = vunpack.c.l.b16 %v404
    %v1385 = vunpack.c.l.b16 %v405
    %v1386 = vunpack.c.l.b16 %v406
    %v1387 = vunpack.c.l.b16 %v407
    %v1388 = vunpack.c.l.b16 %v408
    %v1389 = vunpack.c.l.b16 %v409
    %v1390 = vunpack.c.l.b16 %v410
    %v1391 = vunpack.c.l.b16 %v411
    %v1392 = vunpack.c.l.b16 %v412
    %v1393 = vunpack.c.l.b16 %v413
    %v1394 = vunpack.c.l.b16 %v414
    %v1395 = vunpack.c.l.b16 %v415
    %v1396 = vunpack.c.l.b16 %v416
    %v1397 = vunpack.c.l.b16 %v417
    %v1398 = vunpack.c.l.b16 %v418
    %v1399 = vunpack.c.l.b16 %v419
    %v1400 = vunpack.c.l.b16 %v420
    %v1401 = vunpack.c.l.b16 %v421
    %v1402 = vunpack.c.l.b16 %v422
    %v1403 = vunpack.c.l.b16 %v423
    %v1404 = vunpack.c.l.b16 %v424
    %v1405 = vunpack.c.l.b16 %v425
    %v1406 = vunpack.c.l.b16 %v426
    %v1407 = vunpack.c.l.b16 %v427
    %v1408 = vunpack.c.l.b16 %v428
    %v1409 = vunpack.c.l.b16 %v429
    %v1410 = vunpack.c.l.b16 %v430
    %v1411 = vunpack.c.l.b16 %v431
    %v1412 = vunpack.c.l.b16 %v432
    %v1413 = vunpack.c.l.b16 %v433
    %v1414 = vunpack.c.l.b16 %v434
    %v1415 = vunpack.c.l.b16 %v435
    %v1416 = vunpack.c.l.b16 %v436
    %v1417 = vpack.c.b16 %v1026, %v1025
    %v1418 = vpack.c.b16 %v1028, %v1027
    %v1419 = vpack.c.b16 %v1030, %v1029
    %v1420 = vpack.c.b16 %v1032, %v1031
    %v1421 = vpack.c.b16 %v1034, %v1033
    %v1422 = vpack.c.b16 %v1036, %v1035
    %v1423 = vpack.c.b16 %v1038, %v1037
    %v1424 = vpack.c.b16 %v1040, %v1039
    %v1425 = vpack.c.b16 %v1042, %v1041
    %v1426 = vpack.c.b16 %v1044, %v1043
    %v1427 = vpack.c.b16 %v1046, %v1045
    %v1428 = vpack.c.b16 %v1048, %v1047
    %v1429 = vpack.c.b16 %v1050, %v1049
    %v1430 = vpack.c.b16 %v1052, %v1051
    %v1431 = vpack.c.b16 %v1054, %v1053
    %v1432 = vpack.c.b16 %v1056, %v1055
    %v1433 = vpack.c.b16 %v1058, %v1057
    %v1434 = vpack.c.b16 %v1060, %v1059
    %v1435 = vpack.c.b16 %v1062, %v1061
    %v1436 = vpack.c.b16 %v1064, %v1063
    %v1437 = vpack.c.b16 %v1066, %v1065
    %v1438 = vpack.c.b16 %v1068, %v1067
    %v1439 = vpack.c.b16 %v1070, %v1069
    %v1440 = vpack.c.b16 %v1072, %v1071
    %v1441 = vpack.c.b16 %v1074, %v1073
    %v1442 = vpack.c.b16 %v1076, %v1075
    %v1443 = vpack.c.b16 %v1078, %v1077
    %v1444 = vpack.c.b16 %v1080, %v1079
    %v1445 = vpack.c.b16 %v1082, %v1081
    %v1446 = vpack.c.b16 %v1084, %v1083
    %v1447 = vpack.c.b16 %v1086, %v1085
    %v1448 = vpack.c.b16 %v1088, %v1087
    %v1449 = vpack.c.b16 %v1090, %v1089
    %v1450 = vpack.c.b16 %v1092, %v1091
    %v1451 = vpack.c.b16 %v1094, %v1093
    %v1452 = vpack.c.b16 %v1096, %v1095
    %v1453 = vpack.c.b16 %v1098, %v1097
    %v1454 = vpack.c.b16 %v1100, %v1099
    %v1455 = vpack.c.b16 %v1102, %v1101
    %v1456 = vpack.c.b16 %v1104, %v1103
    %v1457 = vpack.c.b16 %v1106, %v1105
    %v1458 = vpack.c.b16 %v1108, %v1107
    %v1459 = vpack.c.b16 %v1110, %v1109
    %v1460 = vpack.c.b16 %v1112, %v1111
    %v1461 = vpack.c.b16 %v1114, %v1113
    %v1462 = vpack.c.b16 %v1116, %v1115
    %v1463 = vpack.c.b16 %v1118, %v1117
    %v1464 = vpack.c.b16 %v1120, %v1119
    %v1465 = vpack.c.b16 %v1122, %v1121
    %v1466 = vpack.c.b16 %v1124, %v1123
    %v1467 = vpack.c.b16 %v1126, %v1125
    %v1468 = vpack.c.b16 %v1128, %v1127
    %v1469 = vpack.c.b16 %v1130, %v1129
    %v1470 = vpack.c.b16 %v1132, %v1131
    %v1471 = vpack.c.b16 %v1134, %v1133
    %v1472 = vpack.c.b16 %v1136, %v1135
    %v1473 = vpack.c.b16 %v1138, %v1137
    %v1474 = vpack.c.b16 %v1140, %v1139
    %v1475 = vpack.c.b16 %v1142, %v1141
    %v1476 = vpack.c.b16 %v1144, %v1143
    %v1477 = vpack.c.b16 %v1146, %v1145
    %v1478 = vpack.c.b16 %v1148, %v1147
    %v1479 = vpack.c.b16 %v1150, %v1149
    %v1480 = vpack.c.b16 %v1152, %v1151
    %v1481 = vpack.c.b16 %v1154, %v1153
    %v1482 = vpack.c.b16 %v1156, %v1155
    %v1483 = vpack.c.b16 %v1158, %v1157
    %v1484 = vpack.c.b16 %v1160, %v1159
    %v1485 = vpack.c.b16 %v1162, %v1161
    %v1486 = vpack.c.b16 %v1164, %v1163
    %v1487 = vpack.c.b16 %v1166, %v1165
    %v1488 = vpack.c.b16 %v1168, %v1167
    %v1489 = vpack.c.b16 %v1170, %v1169
    %v1490 = vpack.c.b16 %v1172, %v1171
    %v1491 = vpack.c.b16 %v1174, %v1173
    %v1492 = vpack.c.b16 %v1176, %v1175
    %v1493 = vpack.c.b16 %v1178, %v1177
    %v1494 = vpack.c.b16 %v1180, %v1179
    %v1495 = vpack.c.b16 %v1182, %v1181
    %v1496 = vpack.c.b16 %v1184, %v1183
    %v1497 = vpack.c.b16 %v1186, %v1185
    %v1498 = vpack.c.b16 %v1188, %v1187
    %v1499 = vpack.c.b16 %v1190, %v1189
    %v1500 = vpack.c.b16 %v1192, %v1191
    %v1501 = vpack.c.b16 %v1194, %v1193
    %v1502 = vpack.c.b16 %v1196, %v1195
    %v1503 = vpack.c.b16 %v1198, %v1197
    %v1504 = vpack.c.b16 %v1200, %v1199
    %v1505 = vpack.c.b16 %v1202, %v1201
    %v1506 = vpack.c.b16 %v1204, %v1203
    %v1507 = vpack.c.b16 %v1206, %v1205
    %v1508 = vpack.c.b16 %v1208, %v1207
    %v1509 = vpack.c.b16 %v1210, %v1209
    %v1510 = vpack.c.b16 %v1212, %v1211
    %v1511 = vpack.c.b16 %v1214, %v1213
    %v1512 = vpack.c.b16 %v1216, %v1215
    %v1513 = vpack.c.b16 %v1218, %v1217
    %v1514 = vpack.c.b16 %v1220, %v1219
    %v1515 = vpack.c.b16 %v1222, %v1221
    %v1516 = vpack.c.b16 %v1224, %v1223
    %v1517 = vpack.c.b16 %v1226, %v1225
    %v1518 = vpack.c.b16 %v1228, %v1227
    %v1519 = vpack.c.b16 %v1230, %v1229
    %v1520 = vpack.c.b16 %v1232, %v1231
    %v1521 = vpack.c.b16 %v1234, %v1233
    %v1522 = vpack.c.b16 %v1236, %v1235
    %v1523 = vpack.c.b16 %v1238, %v1237
    %v1524 = vpack.c.b16 %v1240, %v1239
    %v1525 = vpack.c.b16 %v1242, %v1241
    %v1526 = vpack.c.b16 %v1244, %v1243
    %v1527 = vpack.c.b16 %v1246, %v1245
    %v1528 = vpack.c.b16 %v1248, %v1247
    %v1529 = vpack.c.b16 %v1250, %v1249
    %v1530 = vpack.c.b16 %v1252, %v1251
    %v1531 = vpack.c.b16 %v1254, %v1253
    %v1532 = vpack.c.b16 %v1256, %v1255
    %v1533 = vpack.c.b16 %v1258, %v1257
    %v1534 = vpack.c.b16 %v1260, %v1259
    %v1535 = vpack.c.b16 %v1262, %v1261
    %v1536 = vpack.c.b16 %v1264, %v1263
    %v1537 = vpack.c.b16 %v1266, %v1265
    %v1538 = vpack.c.b16 %v1268, %v1267
    %v1539 = vpack.c.b16 %v1270, %v1269
    %v1540 = vpack.c.b16 %v1272, %v1271
    %v1541 = vpack.c.b16 %v1274, %v1273
    %v1542 = vpack.c.b16 %v1276, %v1275
    %v1543 = vpack.c.b16 %v1278, %v1277
    %v1544 = vpack.c.b16 %v1280, %v1279
    %v1545 = vpack.c.b16 %v1282, %v1281
    %v1546 = vpack.c.b16 %v1284, %v1283
    %v1547 = vpack.c.b16 %v1286, %v1285
    %v1548 = vpack.c.b16 %v1288, %v1287
    %v1549 = vpack.c.b16 %v1290, %v1289
    %v1550 = vpack.c.b16 %v1292, %v1291
    %v1551 = vpack.c.b16 %v1294, %v1293
    %v1552 = vpack.c.b16 %v1296, %v1295
    %v1553 = vpack.c.b16 %v1298, %v1297
    %v1554 = vpack.c.b16 %v1300, %v1299
    %v1555 = vpack.c.b16 %v1302, %v1301
    %v1556 = vpack.c.b16 %v1304, %v1303
    %v1557 = vpack.c.b16 %v1306, %v1305
    %v1558 = vpack.c.b16 %v1308, %v1307
    %v1559 = vpack.c.b16 %v1310, %v1309
    %v1560 = vpack.c.b16 %v1312, %v1311
    %v1561 = vpack.c.b16 %v1314, %v1313
    %v1562 = vpack.c.b16 %v1316, %v1315
    %v1563 = vpack.c.b16 %v1318, %v1317
    %v1564 = vpack.c.b16 %v1320, %v1319
    %v1565 = vpack.c.b16 %v1322, %v1321
    %v1566 = vpack.c.b16 %v1324, %v1323
    %v1567 = vpack.c.b16 %v1326, %v1325
    %v1568 = vpack.c.b16 %v1328, %v1327
    %v1569 = vpack.c.b16 %v1330, %v1329
    %v1570 = vpack.c.b16 %v1332, %v1331
    %v1571 = vpack.c.b16 %v1334, %v1333
    %v1572 = vpack.c.b16 %v1336, %v1335
    %v1573 = vpack.c.b16 %v1338, %v1337
    %v1574 = vpack.c.b16 %v1340, %v1339
    %v1575 = vpack.c.b16 %v1342, %v1341
    %v1576 = vpack.c.b16 %v1344, %v1343
    %v1577 = vpack.c.b16 %v1346, %v1345
    %v1578 = vpack.c.b16 %v1348, %v1347
    %v1579 = vpack.c.b16 %v1350, %v1349
    %v1580 = vpack.c.b16 %v1352, %v1351
    %v1581 = vpack.c.b16 %v1354, %v1353
    %v1582 = vpack.c.b16 %v1356, %v1355
    %v1583 = vpack.c.b16 %v1358, %v1357
    %v1584 = vpack.c.b16 %v1360, %v1359
    %v1585 = vpack.c.b16 %v1362, %v1361
    %v1586 = vpack.c.b16 %v1364, %v1363
    %v1587 = vpack.c.b16 %v1366, %v1365
    %v1588 = vpack.c.b16 %v1368, %v1367
    %v1589 = vpack.c.b16 %v1370, %v1369
    %v1590 = vpack.c.b16 %v1372, %v1371
    %v1591 = vpack.c.b16 %v1374, %v1373
    %v1592 = vpack.c.b16 %v1376, %v1375
    %v1593 = vpack.c.b16 %v1378, %v1377
    %v1594 = vpack.c.b16 %v1380, %v1379
    %v1595 = vpack.c.b16 %v1382, %v1381
    %v1596 = vpack.c.b16 %v1384, %v1383
    %v1597 = vpack.c.b16 %v1386, %v1385
    %v1598 = vpack.c.b16 %v1388, %v1387
    %v1599 = vpack.c.b16 %v1390, %v1389
    %v1600 = vpack.c.b16 %v1392, %v1391
    %v1601 = vpack.c.b16 %v1394, %v1393
    %v1602 = vpack.c.b16 %v1396, %v1395
    %v1603 = vpack.c.b16 %v1398, %v1397
    %v1604 = vpack.c.b16 %v1400, %v1399
    %v1605 = vpack.c.b16 %v1402, %v1401
    %v1606 = vpack.c.b16 %v1404, %v1403
    %v1607 = vpack.c.b16 %v1406, %v1405
    %v1608 = vpack.c.b16 %v1408, %v1407
    %v1609 = vpack.c.b16 %v1410, %v1409
    %v1610 = vpack.c.b16 %v1412, %v1411
    %v1611 = vpack.c.b16 %v1414, %v1413
    %v1612 = vpack.c.b16 %v1416, %v1415
    %vm1809 = vcmask 523264
    %v1811 = vsel %vm1809, %v608, 0
    %1813 = vmatprep.subr.bf16.mxu0 0
    %1814 = vmatpush1.bf16.msra.mxu0 %v1417
    %1815 = vmatprep.subr.bf16.mxu0 0
    %1816 = vmatpush1.bf16.msra.mxu0 %v1418
    %1817 = vmatprep.subr.bf16.mxu0 0
    %1818 = vmatpush1.bf16.msra.mxu0 %v1419
    %1819 = vmatprep.subr.bf16.mxu0 0
    %1820 = vmatpush1.bf16.msra.mxu0 %v1420
    %1821 = vmatprep.subr.bf16.mxu0 0
    %1822 = vmatpush1.bf16.msra.mxu0 %v1421
    %1823 = vmatprep.subr.bf16.mxu0 0
    %1824 = vmatpush1.bf16.msra.mxu0 %v1422
    %1825 = vmatprep.subr.bf16.mxu0 0
    %1826 = vmatpush1.bf16.msra.mxu0 %v1423
    %1827 = vmatprep.subr.bf16.mxu0 0
    %1828 = vmatpush1.bf16.msra.mxu0 %v1424
    %1829 = vmatprep.subr.bf16.mxu0 0
    %1830 = vmatpush1.bf16.msra.mxu0 %v1425
    %1831 = vmatprep.subr.bf16.mxu0 0
    %1832 = vmatpush1.bf16.msra.mxu0 %v1426
    %1833 = vmatprep.subr.bf16.mxu0 0
    %1834 = vmatpush1.bf16.msra.mxu0 %v1427
    %1835 = vmatprep.subr.bf16.mxu0 0
    %1836 = vmatpush1.bf16.msra.mxu0 %v1428
    %1837 = vmatprep.subr.bf16.mxu0 0
    %1838 = vmatpush1.bf16.msra.mxu0 %v1429
    %1839 = vmatprep.subr.bf16.mxu0 0
    %1840 = vmatpush1.bf16.msra.mxu0 %v1430
    %1841 = vmatprep.subr.bf16.mxu0 0
    %1842 = vmatpush1.bf16.msra.mxu0 %v1431
    %1843 = vmatprep.subr.bf16.mxu0 0
    %1844 = vmatpush1.bf16.msra.mxu0 %v1432
    %1845 = vmatprep.mubr.bf16.mxu0 %v485
    %1846 = vmatmul.mubr.bf16.gmra.mrb[0].mxu0 %v471
    %v1847 = vpop.f32.mrb[0].mxu0
    %v1848 = vadd.f32 %v442, %v1847
    %v1849 = vpop.f32.mrb[0].mxu0
    %v1850 = vpop.f32.mrb[0].mxu0
    %v1851 = vpop.f32.mrb[0].mxu0
    %1852 = vdwg.mxu0
    %1853 = vmatprep.subr.bf16.mxu0 0
    %1854 = vmatpush1.bf16.msra.mxu0 %v1433
    %1855 = vmatprep.subr.bf16.mxu0 0
    %1856 = vmatpush1.bf16.msra.mxu0 %v1434
    %1857 = vmatprep.subr.bf16.mxu0 0
    %1858 = vmatpush1.bf16.msra.mxu0 %v1435
    %1859 = vmatprep.subr.bf16.mxu0 0
    %1860 = vmatpush1.bf16.msra.mxu0 %v1436
    %1861 = vmatprep.subr.bf16.mxu0 0
    %1862 = vmatpush1.bf16.msra.mxu0 %v1437
    %1863 = vmatprep.subr.bf16.mxu0 0
    %1864 = vmatpush1.bf16.msra.mxu0 %v1438
    %1865 = vmatprep.subr.bf16.mxu0 0
    %1866 = vmatpush1.bf16.msra.mxu0 %v1439
    %1867 = vmatprep.subr.bf16.mxu0 0
    %1868 = vmatpush1.bf16.msra.mxu0 %v1440
    %1869 = vmatprep.subr.bf16.mxu0 0
    %1870 = vmatpush1.bf16.msra.mxu0 %v1441
    %1871 = vmatprep.subr.bf16.mxu0 0
    %1872 = vmatpush1.bf16.msra.mxu0 %v1442
    %1873 = vmatprep.subr.bf16.mxu0 0
    %1874 = vmatpush1.bf16.msra.mxu0 %v1443
    %1875 = vmatprep.subr.bf16.mxu0 0
    %1876 = vmatpush1.bf16.msra.mxu0 %v1444
    %1877 = vmatprep.subr.bf16.mxu0 0
    %1878 = vmatpush1.bf16.msra.mxu0 %v1445
    %1879 = vmatprep.subr.bf16.mxu0 0
    %1880 = vmatpush1.bf16.msra.mxu0 %v1446
    %1881 = vmatprep.subr.bf16.mxu0 0
    %1882 = vmatpush1.bf16.msra.mxu0 %v1447
    %1883 = vmatprep.subr.bf16.mxu0 0
    %1884 = vmatpush1.bf16.msra.mxu0 %v1448
    %1885 = vmatprep.mubr.bf16.mxu0 %v495
    %1886 = vmatmul.mubr.bf16.gmra.mrb[0].mxu0 %v493
    %v1887 = vpop.f32.mrb[0].mxu0
    %v1888 = vadd.f32 %v1848, %v1887
    %v1889 = vpop.f32.mrb[0].mxu0
    %v1890 = vpop.f32.mrb[0].mxu0
    %v1891 = vpop.f32.mrb[0].mxu0
    %1892 = vdwg.mxu0
    %1893 = vmatprep.subr.bf16.mxu0 0
    %1894 = vmatpush1.bf16.msra.mxu0 %v1449
    %1895 = vmatprep.subr.bf16.mxu0 0
    %1896 = vmatpush1.bf16.msra.mxu0 %v1450
    %1897 = vmatprep.subr.bf16.mxu0 0
    %1898 = vmatpush1.bf16.msra.mxu0 %v1451
    %1899 = vmatprep.subr.bf16.mxu0 0
    %1900 = vmatpush1.bf16.msra.mxu0 %v1452
    %1901 = vmatprep.subr.bf16.mxu0 0
    %1902 = vmatpush1.bf16.msra.mxu0 %v1453
    %1903 = vmatprep.subr.bf16.mxu0 0
    %1904 = vmatpush1.bf16.msra.mxu0 %v1454
    %1905 = vmatprep.subr.bf16.mxu0 0
    %1906 = vmatpush1.bf16.msra.mxu0 %v1455
    %1907 = vmatprep.subr.bf16.mxu0 0
    %1908 = vmatpush1.bf16.msra.mxu0 %v1456
    %1909 = vmatprep.subr.bf16.mxu0 0
    %1910 = vmatpush1.bf16.msra.mxu0 %v1457
    %1911 = vmatprep.subr.bf16.mxu0 0
    %1912 = vmatpush1.bf16.msra.mxu0 %v1458
    %1913 = vmatprep.subr.bf16.mxu0 0
    %1914 = vmatpush1.bf16.msra.mxu0 %v1459
    %1915 = vmatprep.subr.bf16.mxu0 0
    %1916 = vmatpush1.bf16.msra.mxu0 %v1460
    %1917 = vmatprep.subr.bf16.mxu0 0
    %1918 = vmatpush1.bf16.msra.mxu0 %v1461
    %1919 = vmatprep.subr.bf16.mxu0 0
    %1920 = vmatpush1.bf16.msra.mxu0 %v1462
    %1921 = vmatprep.subr.bf16.mxu0 0
    %1922 = vmatpush1.bf16.msra.mxu0 %v1463
    %1923 = vmatprep.subr.bf16.mxu0 0
    %1924 = vmatpush1.bf16.msra.mxu0 %v1464
    %1925 = vmatprep.mubr.bf16.mxu0 %v492
    %1926 = vmatmul.mubr.bf16.gmra.mrb[0].mxu0 %v478
    %v1927 = vpop.f32.mrb[0].mxu0
    %v1928 = vadd.f32 %v1888, %v1927
    %v1929 = vpop.f32.mrb[0].mxu0
    %v1930 = vpop.f32.mrb[0].mxu0
    %v1931 = vpop.f32.mrb[0].mxu0
    %1932 = vdwg.mxu0
    %1933 = vmatprep.subr.bf16.mxu0 0
    %1934 = vmatpush1.bf16.msra.mxu0 %v1465
    %1935 = vmatprep.subr.bf16.mxu0 0
    %1936 = vmatpush1.bf16.msra.mxu0 %v1466
    %1937 = vmatprep.subr.bf16.mxu0 0
    %1938 = vmatpush1.bf16.msra.mxu0 %v1467
    %1939 = vmatprep.subr.bf16.mxu0 0
    %1940 = vmatpush1.bf16.msra.mxu0 %v1468
    %1941 = vmatprep.subr.bf16.mxu0 0
    %1942 = vmatpush1.bf16.msra.mxu0 %v1469
    %1943 = vmatprep.subr.bf16.mxu0 0
    %1944 = vmatpush1.bf16.msra.mxu0 %v1470
    %1945 = vmatprep.subr.bf16.mxu0 0
    %1946 = vmatpush1.bf16.msra.mxu0 %v1471
    %1947 = vmatprep.subr.bf16.mxu0 0
    %1948 = vmatpush1.bf16.msra.mxu0 %v1472
    %1949 = vmatprep.subr.bf16.mxu0 0
    %1950 = vmatpush1.bf16.msra.mxu0 %v1473
    %1951 = vmatprep.subr.bf16.mxu0 0
    %1952 = vmatpush1.bf16.msra.mxu0 %v1474
    %1953 = vmatprep.subr.bf16.mxu0 0
    %1954 = vmatpush1.bf16.msra.mxu0 %v1475
    %1955 = vmatprep.subr.bf16.mxu0 0
    %1956 = vmatpush1.bf16.msra.mxu0 %v1476
    %1957 = vmatprep.subr.bf16.mxu0 0
    %1958 = vmatpush1.bf16.msra.mxu0 %v1477
    %1959 = vmatprep.subr.bf16.mxu0 0
    %1960 = vmatpush1.bf16.msra.mxu0 %v1478
    %1961 = vmatprep.subr.bf16.mxu0 0
    %1962 = vmatpush1.bf16.msra.mxu0 %v1479
    %1963 = vmatprep.subr.bf16.mxu0 0
    %1964 = vmatpush1.bf16.msra.mxu0 %v1480
    %1965 = vmatprep.mubr.bf16.mxu0 %v496
    %1966 = vmatmul.mubr.bf16.gmra.mrb[0].mxu0 %v494
    %v1967 = vpop.f32.mrb[0].mxu0
    %v1968 = vadd.f32 %v1928, %v1967
    %v1969 = vpop.f32.mrb[0].mxu0
    %v1970 = vpop.f32.mrb[0].mxu0
    %v1971 = vpop.f32.mrb[0].mxu0
    %1972 = vdwg.mxu0
    %1973 = vmatprep.subr.bf16.mxu0 0
    %1974 = vmatpush1.bf16.msra.mxu0 %v1481
    %1975 = vmatprep.subr.bf16.mxu0 0
    %1976 = vmatpush1.bf16.msra.mxu0 %v1482
    %1977 = vmatprep.subr.bf16.mxu0 0
    %1978 = vmatpush1.bf16.msra.mxu0 %v1483
    %1979 = vmatprep.subr.bf16.mxu0 0
    %1980 = vmatpush1.bf16.msra.mxu0 %v1484
    %1981 = vmatprep.subr.bf16.mxu0 0
    %1982 = vmatpush1.bf16.msra.mxu0 %v1485
    %1983 = vmatprep.subr.bf16.mxu0 0
    %1984 = vmatpush1.bf16.msra.mxu0 %v1486
    %1985 = vmatprep.subr.bf16.mxu0 0
    %1986 = vmatpush1.bf16.msra.mxu0 %v1487
    %1987 = vmatprep.subr.bf16.mxu0 0
    %1988 = vmatpush1.bf16.msra.mxu0 %v1488
    %1989 = vmatprep.subr.bf16.mxu0 0
    %1990 = vmatpush1.bf16.msra.mxu0 %v1489
    %1991 = vmatprep.subr.bf16.mxu0 0
    %1992 = vmatpush1.bf16.msra.mxu0 %v1490
    %1993 = vmatprep.subr.bf16.mxu0 0
    %1994 = vmatpush1.bf16.msra.mxu0 %v1491
    %1995 = vmatprep.subr.bf16.mxu0 0
    %1996 = vmatpush1.bf16.msra.mxu0 %v1492
    %1997 = vmatprep.subr.bf16.mxu0 0
    %1998 = vmatpush1.bf16.msra.mxu0 %v1493
    %1999 = vmatprep.subr.bf16.mxu0 0
    %2000 = vmatpush1.bf16.msra.mxu0 %v1494
    %2001 = vmatprep.subr.bf16.mxu0 0
    %2002 = vmatpush1.bf16.msra.mxu0 %v1495
    %2003 = vmatprep.subr.bf16.mxu0 0
    %2004 = vmatpush1.bf16.msra.mxu0 %v1496
    %2005 = vmatprep.mubr.bf16.mxu0 %v534
    %2006 = vmatmul.mubr.bf16.gmra.mrb[0].mxu0 %v520
    %v2007 = vpop.f32.mrb[0].mxu0
    %v2008 = vadd.f32 %v1968, %v2007
    %v2009 = vpop.f32.mrb[0].mxu0
    %v2010 = vpop.f32.mrb[0].mxu0
    %v2011 = vpop.f32.mrb[0].mxu0
    %2012 = vdwg.mxu0
    %2013 = vmatprep.subr.bf16.mxu0 0
    %2014 = vmatpush1.bf16.msra.mxu0 %v1497
    %2015 = vmatprep.subr.bf16.mxu0 0
    %2016 = vmatpush1.bf16.msra.mxu0 %v1498
    %2017 = vmatprep.subr.bf16.mxu0 0
    %2018 = vmatpush1.bf16.msra.mxu0 %v1499
    %2019 = vmatprep.subr.bf16.mxu0 0
    %2020 = vmatpush1.bf16.msra.mxu0 %v1500
    %2021 = vmatprep.subr.bf16.mxu0 0
    %2022 = vmatpush1.bf16.msra.mxu0 %v1501
    %2023 = vmatprep.subr.bf16.mxu0 0
    %2024 = vmatpush1.bf16.msra.mxu0 %v1502
    %2025 = vmatprep.subr.bf16.mxu0 0
    %2026 = vmatpush1.bf16.msra.mxu0 %v1503
    %2027 = vmatprep.subr.bf16.mxu0 0
    %2028 = vmatpush1.bf16.msra.mxu0 %v1504
    %2029 = vmatprep.subr.bf16.mxu0 0
    %2030 = vmatpush1.bf16.msra.mxu0 %v1505
    %2031 = vmatprep.subr.bf16.mxu0 0
    %2032 = vmatpush1.bf16.msra.mxu0 %v1506
    %2033 = vmatprep.subr.bf16.mxu0 0
    %2034 = vmatpush1.bf16.msra.mxu0 %v1507
    %2035 = vmatprep.subr.bf16.mxu0 0
    %2036 = vmatpush1.bf16.msra.mxu0 %v1508
    %2037 = vmatprep.subr.bf16.mxu0 0
    %2038 = vmatpush1.bf16.msra.mxu0 %v1509
    %2039 = vmatprep.subr.bf16.mxu0 0
    %2040 = vmatpush1.bf16.msra.mxu0 %v1510
    %2041 = vmatprep.subr.bf16.mxu0 0
    %2042 = vmatpush1.bf16.msra.mxu0 %v1511
    %2043 = vmatprep.subr.bf16.mxu0 0
    %2044 = vmatpush1.bf16.msra.mxu0 %v1512
    %2045 = vmatprep.mubr.bf16.mxu0 %v544
    %2046 = vmatmul.mubr.bf16.gmra.mrb[0].mxu0 %v542
    %v2047 = vpop.f32.mrb[0].mxu0
    %v2048 = vadd.f32 %v2008, %v2047
    %v2049 = vpop.f32.mrb[0].mxu0
    %v2050 = vpop.f32.mrb[0].mxu0
    %v2051 = vpop.f32.mrb[0].mxu0
    %2052 = vdwg.mxu0
    %2053 = vmatprep.subr.bf16.mxu0 0
    %2054 = vmatpush1.bf16.msra.mxu0 %v1513
    %2055 = vmatprep.subr.bf16.mxu0 0
    %2056 = vmatpush1.bf16.msra.mxu0 %v1514
    %2057 = vmatprep.subr.bf16.mxu0 0
    %2058 = vmatpush1.bf16.msra.mxu0 %v1515
    %2059 = vmatprep.subr.bf16.mxu0 0
    %2060 = vmatpush1.bf16.msra.mxu0 %v1516
    %2061 = vmatprep.subr.bf16.mxu0 0
    %2062 = vmatpush1.bf16.msra.mxu0 %v1517
    %2063 = vmatprep.subr.bf16.mxu0 0
    %2064 = vmatpush1.bf16.msra.mxu0 %v1518
    %2065 = vmatprep.subr.bf16.mxu0 0
    %2066 = vmatpush1.bf16.msra.mxu0 %v1519
    %2067 = vmatprep.subr.bf16.mxu0 0
    %2068 = vmatpush1.bf16.msra.mxu0 %v1520
    %2069 = vmatprep.subr.bf16.mxu0 0
    %2070 = vmatpush1.bf16.msra.mxu0 %v1521
    %2071 = vmatprep.subr.bf16.mxu0 0
    %2072 = vmatpush1.bf16.msra.mxu0 %v1522
    %2073 = vmatprep.subr.bf16.mxu0 0
    %2074 = vmatpush1.bf16.msra.mxu0 %v1523
    %2075 = vmatprep.subr.bf16.mxu0 0
    %2076 = vmatpush1.bf16.msra.mxu0 %v1524
    %2077 = vmatprep.subr.bf16.mxu0 0
    %2078 = vmatpush1.bf16.msra.mxu0 %v1525
    %2079 = vmatprep.subr.bf16.mxu0 0
    %2080 = vmatpush1.bf16.msra.mxu0 %v1526
    %2081 = vmatprep.subr.bf16.mxu0 0
    %2082 = vmatpush1.bf16.msra.mxu0 %v1527
    %2083 = vmatprep.subr.bf16.mxu0 0
    %2084 = vmatpush1.bf16.msra.mxu0 %v1528
    %2085 = vmatprep.mubr.bf16.mxu0 %v541
    %2086 = vmatmul.mubr.bf16.gmra.mrb[0].mxu0 %v527
    %v2087 = vpop.f32.mrb[0].mxu0
    %v2088 = vadd.f32 %v2048, %v2087
    %v2089 = vpop.f32.mrb[0].mxu0
    %v2090 = vpop.f32.mrb[0].mxu0
    %v2091 = vpop.f32.mrb[0].mxu0
    %2092 = vdwg.mxu0
    %2093 = vmatprep.subr.bf16.mxu0 0
    %2094 = vmatpush1.bf16.msra.mxu0 %v1529
    %2095 = vmatprep.subr.bf16.mxu0 0
    %2096 = vmatpush1.bf16.msra.mxu0 %v1530
    %2097 = vmatprep.subr.bf16.mxu0 0
    %2098 = vmatpush1.bf16.msra.mxu0 %v1531
    %2099 = vmatprep.subr.bf16.mxu0 0
    %2100 = vmatpush1.bf16.msra.mxu0 %v1532
    %2101 = vmatprep.subr.bf16.mxu0 0
    %2102 = vmatpush1.bf16.msra.mxu0 %v1533
    %2103 = vmatprep.subr.bf16.mxu0 0
    %2104 = vmatpush1.bf16.msra.mxu0 %v1534
    %2105 = vmatprep.subr.bf16.mxu0 0
    %2106 = vmatpush1.bf16.msra.mxu0 %v1535
    %2107 = vmatprep.subr.bf16.mxu0 0
    %2108 = vmatpush1.bf16.msra.mxu0 %v1536
    %2109 = vmatprep.subr.bf16.mxu0 0
    %2110 = vmatpush1.bf16.msra.mxu0 %v1537
    %2111 = vmatprep.subr.bf16.mxu0 0
    %2112 = vmatpush1.bf16.msra.mxu0 %v1538
    %2113 = vmatprep.subr.bf16.mxu0 0
    %2114 = vmatpush1.bf16.msra.mxu0 %v1539
    %2115 = vmatprep.subr.bf16.mxu0 0
    %2116 = vmatpush1.bf16.msra.mxu0 %v1540
    %2117 = vmatprep.subr.bf16.mxu0 0
    %2118 = vmatpush1.bf16.msra.mxu0 %v1541
    %2119 = vmatprep.subr.bf16.mxu0 0
    %2120 = vmatpush1.bf16.msra.mxu0 %v1542
    %2121 = vmatprep.subr.bf16.mxu0 0
    %2122 = vmatpush1.bf16.msra.mxu0 %v1543
    %2123 = vmatprep.subr.bf16.mxu0 0
    %2124 = vmatpush1.bf16.msra.mxu0 %v1544
    %2125 = vmatprep.mubr.bf16.mxu0 %v545
    %2126 = vmatmul.mubr.bf16.gmra.mrb[0].mxu0 %v543
    %v2127 = vpop.f32.mrb[0].mxu0
    %v2128 = vadd.f32 %v2088, %v2127
    %v2129 = vpop.f32.mrb[0].mxu0
    %v2130 = vpop.f32.mrb[0].mxu0
    %v2131 = vpop.f32.mrb[0].mxu0
    %2132 = vdwg.mxu0
    %2133 = vmatprep.subr.bf16.mxu0 0
    %2134 = vmatpush1.bf16.msra.mxu0 %v1545
    %2135 = vmatprep.subr.bf16.mxu0 0
    %2136 = vmatpush1.bf16.msra.mxu0 %v1546
    %2137 = vmatprep.subr.bf16.mxu0 0
    %2138 = vmatpush1.bf16.msra.mxu0 %v1547
    %2139 = vmatprep.subr.bf16.mxu0 0
    %2140 = vmatpush1.bf16.msra.mxu0 %v1548
    %2141 = vmatprep.subr.bf16.mxu0 0
    %2142 = vmatpush1.bf16.msra.mxu0 %v1549
    %2143 = vmatprep.subr.bf16.mxu0 0
    %2144 = vmatpush1.bf16.msra.mxu0 %v1550
    %2145 = vmatprep.subr.bf16.mxu0 0
    %2146 = vmatpush1.bf16.msra.mxu0 %v1551
    %2147 = vmatprep.subr.bf16.mxu0 0
    %2148 = vmatpush1.bf16.msra.mxu0 %v1552
    %2149 = vmatprep.subr.bf16.mxu0 0
    %2150 = vmatpush1.bf16.msra.mxu0 %v1553
    %2151 = vmatprep.subr.bf16.mxu0 0
    %2152 = vmatpush1.bf16.msra.mxu0 %v1554
    %2153 = vmatprep.subr.bf16.mxu0 0
    %2154 = vmatpush1.bf16.msra.mxu0 %v1555
    %2155 = vmatprep.subr.bf16.mxu0 0
    %2156 = vmatpush1.bf16.msra.mxu0 %v1556
    %2157 = vmatprep.subr.bf16.mxu0 0
    %2158 = vmatpush1.bf16.msra.mxu0 %v1557
    %2159 = vmatprep.subr.bf16.mxu0 0
    %2160 = vmatpush1.bf16.msra.mxu0 %v1558
    %2161 = vmatprep.subr.bf16.mxu0 0
    %2162 = vmatpush1.bf16.msra.mxu0 %v1559
    %2163 = vmatprep.subr.bf16.mxu0 0
    %2164 = vmatpush1.bf16.msra.mxu0 %v1560
    %2165 = vmatprep.mubr.bf16.mxu0 %v583
    %2166 = vmatmul.mubr.bf16.gmra.mrb[0].mxu0 %v569
    %v2167 = vpop.f32.mrb[0].mxu0
    %v2168 = vadd.f32 %v2128, %v2167
    %v2169 = vpop.f32.mrb[0].mxu0
    %v2170 = vpop.f32.mrb[0].mxu0
    %v2171 = vpop.f32.mrb[0].mxu0
    %2172 = vdwg.mxu0
    %2173 = vmatprep.subr.bf16.mxu0 0
    %2174 = vmatpush1.bf16.msra.mxu0 %v1561
    %2175 = vmatprep.subr.bf16.mxu0 0
    %2176 = vmatpush1.bf16.msra.mxu0 %v1562
    %2177 = vmatprep.subr.bf16.mxu0 0
    %2178 = vmatpush1.bf16.msra.mxu0 %v1563
    %2179 = vmatprep.subr.bf16.mxu0 0
    %2180 = vmatpush1.bf16.msra.mxu0 %v1564
    %2181 = vmatprep.subr.bf16.mxu0 0
    %2182 = vmatpush1.bf16.msra.mxu0 %v1565
    %2183 = vmatprep.subr.bf16.mxu0 0
    %2184 = vmatpush1.bf16.msra.mxu0 %v1566
    %2185 = vmatprep.subr.bf16.mxu0 0
    %2186 = vmatpush1.bf16.msra.mxu0 %v1567
    %2187 = vmatprep.subr.bf16.mxu0 0
    %2188 = vmatpush1.bf16.msra.mxu0 %v1568
    %2189 = vmatprep.subr.bf16.mxu0 0
    %2190 = vmatpush1.bf16.msra.mxu0 %v1569
    %2191 = vmatprep.subr.bf16.mxu0 0
    %2192 = vmatpush1.bf16.msra.mxu0 %v1570
    %2193 = vmatprep.subr.bf16.mxu0 0
    %2194 = vmatpush1.bf16.msra.mxu0 %v1571
    %2195 = vmatprep.subr.bf16.mxu0 0
    %2196 = vmatpush1.bf16.msra.mxu0 %v1572
    %2197 = vmatprep.subr.bf16.mxu0 0
    %2198 = vmatpush1.bf16.msra.mxu0 %v1573
    %2199 = vmatprep.subr.bf16.mxu0 0
    %2200 = vmatpush1.bf16.msra.mxu0 %v1574
    %2201 = vmatprep.subr.bf16.mxu0 0
    %2202 = vmatpush1.bf16.msra.mxu0 %v1575
    %2203 = vmatprep.subr.bf16.mxu0 0
    %2204 = vmatpush1.bf16.msra.mxu0 %v1576
    %2205 = vmatprep.mubr.bf16.mxu0 %v593
    %2206 = vmatmul.mubr.bf16.gmra.mrb[0].mxu0 %v591
    %v2207 = vpop.f32.mrb[0].mxu0
    %v2208 = vadd.f32 %v2168, %v2207
    %v2209 = vpop.f32.mrb[0].mxu0
    %v2210 = vpop.f32.mrb[0].mxu0
    %v2211 = vpop.f32.mrb[0].mxu0
    %2212 = vdwg.mxu0
    %2213 = vmatprep.subr.bf16.mxu0 0
    %2214 = vmatpush1.bf16.msra.mxu0 %v1577
    %2215 = vmatprep.subr.bf16.mxu0 0
    %2216 = vmatpush1.bf16.msra.mxu0 %v1578
    %2217 = vmatprep.subr.bf16.mxu0 0
    %2218 = vmatpush1.bf16.msra.mxu0 %v1579
    %2219 = vmatprep.subr.bf16.mxu0 0
    %2220 = vmatpush1.bf16.msra.mxu0 %v1580
    %2221 = vmatprep.subr.bf16.mxu0 0
    %2222 = vmatpush1.bf16.msra.mxu0 %v1581
    %2223 = vmatprep.subr.bf16.mxu0 0
    %2224 = vmatpush1.bf16.msra.mxu0 %v1582
    %2225 = vmatprep.subr.bf16.mxu0 0
    %2226 = vmatpush1.bf16.msra.mxu0 %v1583
    %2227 = vmatprep.subr.bf16.mxu0 0
    %2228 = vmatpush1.bf16.msra.mxu0 %v1584
    %2229 = vmatprep.subr.bf16.mxu0 0
    %2230 = vmatpush1.bf16.msra.mxu0 %v1585
    %2231 = vmatprep.subr.bf16.mxu0 0
    %2232 = vmatpush1.bf16.msra.mxu0 %v1586
    %2233 = vmatprep.subr.bf16.mxu0 0
    %2234 = vmatpush1.bf16.msra.mxu0 %v1587
    %2235 = vmatprep.subr.bf16.mxu0 0
    %2236 = vmatpush1.bf16.msra.mxu0 %v1588
    %2237 = vmatprep.subr.bf16.mxu0 0
    %2238 = vmatpush1.bf16.msra.mxu0 %v1589
    %2239 = vmatprep.subr.bf16.mxu0 0
    %2240 = vmatpush1.bf16.msra.mxu0 %v1590
    %2241 = vmatprep.subr.bf16.mxu0 0
    %2242 = vmatpush1.bf16.msra.mxu0 %v1591
    %2243 = vmatprep.subr.bf16.mxu0 0
    %2244 = vmatpush1.bf16.msra.mxu0 %v1592
    %2245 = vmatprep.mubr.bf16.mxu0 %v590
    %2246 = vmatmul.mubr.bf16.gmra.mrb[0].mxu0 %v576
    %v2247 = vpop.f32.mrb[0].mxu0
    %v2248 = vadd.f32 %v2208, %v2247
    %v2249 = vpop.f32.mrb[0].mxu0
    %v2250 = vpop.f32.mrb[0].mxu0
    %v2251 = vpop.f32.mrb[0].mxu0
    %2252 = vdwg.mxu0
    %2253 = vmatprep.subr.bf16.mxu0 0
    %2254 = vmatpush1.bf16.msra.mxu0 %v1593
    %2255 = vmatprep.subr.bf16.mxu0 0
    %2256 = vmatpush1.bf16.msra.mxu0 %v1594
    %2257 = vmatprep.subr.bf16.mxu0 0
    %2258 = vmatpush1.bf16.msra.mxu0 %v1595
    %2259 = vmatprep.subr.bf16.mxu0 0
    %2260 = vmatpush1.bf16.msra.mxu0 %v1596
    %2261 = vmatprep.subr.bf16.mxu0 0
    %2262 = vmatpush1.bf16.msra.mxu0 %v1597
    %2263 = vmatprep.subr.bf16.mxu0 0
    %2264 = vmatpush1.bf16.msra.mxu0 %v1598
    %2265 = vmatprep.subr.bf16.mxu0 0
    %2266 = vmatpush1.bf16.msra.mxu0 %v1599
    %2267 = vmatprep.subr.bf16.mxu0 0
    %2268 = vmatpush1.bf16.msra.mxu0 %v1600
    %2269 = vmatprep.subr.bf16.mxu0 0
    %2270 = vmatpush1.bf16.msra.mxu0 %v1601
    %2271 = vmatprep.subr.bf16.mxu0 0
    %2272 = vmatpush1.bf16.msra.mxu0 %v1602
    %2273 = vmatprep.subr.bf16.mxu0 0
    %2274 = vmatpush1.bf16.msra.mxu0 %v1603
    %2275 = vmatprep.subr.bf16.mxu0 0
    %2276 = vmatpush1.bf16.msra.mxu0 %v1604
    %2277 = vmatprep.subr.bf16.mxu0 0
    %2278 = vmatpush1.bf16.msra.mxu0 %v1605
    %2279 = vmatprep.subr.bf16.mxu0 0
    %2280 = vmatpush1.bf16.msra.mxu0 %v1606
    %2281 = vmatprep.subr.bf16.mxu0 0
    %2282 = vmatpush1.bf16.msra.mxu0 %v1607
    %2283 = vmatprep.subr.bf16.mxu0 0
    %2284 = vmatpush1.bf16.msra.mxu0 %v1608
    %2285 = vmatprep.mubr.bf16.mxu0 %v594
    %2286 = vmatmul.mubr.bf16.gmra.mrb[0].mxu0 %v592
    %v2287 = vpop.f32.mrb[0].mxu0
    %v2288 = vadd.f32 %v2248, %v2287
    %v2289 = vpop.f32.mrb[0].mxu0
    %v2290 = vpop.f32.mrb[0].mxu0
    %v2291 = vpop.f32.mrb[0].mxu0
    %2292 = vdwg.mxu0
    %2293 = vmatprep.subr.bf16.mxu0 0
    %2294 = vmatpush1.bf16.msra.mxu0 %v1609
    %2295 = vmatprep.subr.bf16.mxu0 0
    %2296 = vmatpush1.bf16.msra.mxu0 %v1610
    %2297 = vmatprep.subr.bf16.mxu0 0
    %2298 = vmatpush1.bf16.msra.mxu0 %v1611
    %2299 = vmatprep.subr.bf16.mxu0 0
    %2300 = vmatpush1.bf16.msra.mxu0 %v1612
    %2301 = vmatprep.subr.bf16.mxu0 0
    %2302 = vmatpush1.bf16.msra.mxu0 0
    %2303 = vmatprep.subr.bf16.mxu0 0
    %2304 = vmatpush1.bf16.msra.mxu0 0
    %2305 = vmatprep.subr.bf16.mxu0 0
    %2306 = vmatpush1.bf16.msra.mxu0 0
    %2307 = vmatprep.subr.bf16.mxu0 0
    %2308 = vmatpush1.bf16.msra.mxu0 0
    %2309 = vmatprep.subr.bf16.mxu0 0
    %2310 = vmatpush1.bf16.msra.mxu0 0
    %2311 = vmatprep.subr.bf16.mxu0 0
    %2312 = vmatpush1.bf16.msra.mxu0 0
    %2313 = vmatprep.subr.bf16.mxu0 0
    %2314 = vmatpush1.bf16.msra.mxu0 0
    %2315 = vmatprep.subr.bf16.mxu0 0
    %2316 = vmatpush1.bf16.msra.mxu0 0
    %2317 = vmatprep.subr.bf16.mxu0 0
    %2318 = vmatpush1.bf16.msra.mxu0 0
    %2319 = vmatprep.subr.bf16.mxu0 0
    %2320 = vmatpush1.bf16.msra.mxu0 0
    %2321 = vmatprep.subr.bf16.mxu0 0
    %2322 = vmatpush1.bf16.msra.mxu0 0
    %2323 = vmatprep.subr.bf16.mxu0 0
    %2324 = vmatpush1.bf16.msra.mxu0 0
    %2325 = vmatprep.mubr.bf16.mxu0 0
    %2326 = vmatmul.mubr.bf16.gmra.mrb[0].mxu0 %v1811
    %v2327 = vpop.f32.mrb[0].mxu0
    %v2328 = vadd.f32 %v2288, %v2327
    %v2329 = vpop.f32.mrb[0].mxu0
    %v2330 = vpop.f32.mrb[0].mxu0
    %v2331 = vpop.f32.mrb[0].mxu0
    %2332 = vdwg.mxu0
    %v2333 = vmax.f32 %v2328, 0.0
    %v2334 = vpack.c.bf16 %v2333, %v2333
    %v2335 = vld [vmem:[%s3] sm:$0xf]
    %v2336 = vld [vmem:[%s3 + $0x4] sm:$0xf]
    %v2337 = vld [vmem:[%s3 + $0x8] sm:$0xf]
    %v2338 = vld [vmem:[%s3 + $0xc] sm:$0xf]
    %v2339 = vld [vmem:[%s4] sm:$0x1]
    %v2341 = vlaneseq
    %v2342 = vshrl.u32 %v2341, 7
    %v2343 = vsub.s32 0, %v2342
    %v2344 = vrot.slane %v2339, %v2343
    %v2350 = vunpack.c.l.b16 %v2335
    %v2351 = vunpack.c.l.b16 %v2336
    %v2352 = vunpack.c.l.b16 %v2337
    %v2353 = vunpack.c.l.b16 %v2338
    %v2354 = vpack.c.b16 %v2351, %v2350
    %v2355 = vpack.c.b16 %v2353, %v2352
    %vm2358 = vcmask 261120
    %v2360 = vsel %vm2358, %v2334, 0
    %2362 = vmatprep.subr.bf16.mxu0 0
    %2363 = vmatpush1.bf16.msra.mxu0 %v2354
    %2364 = vmatprep.subr.bf16.mxu0 0
    %2365 = vmatpush1.bf16.msra.mxu0 %v2355
    %2366 = vmatprep.subr.bf16.mxu0 0
    %2367 = vmatpush1.bf16.msra.mxu0 0
    %2368 = vmatprep.subr.bf16.mxu0 0
    %2369 = vmatpush1.bf16.msra.mxu0 0
    %2370 = vmatprep.subr.bf16.mxu0 0
    %2371 = vmatpush1.bf16.msra.mxu0 0
    %2372 = vmatprep.subr.bf16.mxu0 0
    %2373 = vmatpush1.bf16.msra.mxu0 0
    %2374 = vmatprep.subr.bf16.mxu0 0
    %2375 = vmatpush1.bf16.msra.mxu0 0
    %2376 = vmatprep.subr.bf16.mxu0 0
    %2377 = vmatpush1.bf16.msra.mxu0 0
    %2378 = vmatprep.subr.bf16.mxu0 0
    %2379 = vmatpush1.bf16.msra.mxu0 0
    %2380 = vmatprep.subr.bf16.mxu0 0
    %2381 = vmatpush1.bf16.msra.mxu0 0
    %2382 = vmatprep.subr.bf16.mxu0 0
    %2383 = vmatpush1.bf16.msra.mxu0 0
    %2384 = vmatprep.subr.bf16.mxu0 0
    %2385 = vmatpush1.bf16.msra.mxu0 0
    %2386 = vmatprep.subr.bf16.mxu0 0
    %2387 = vmatpush1.bf16.msra.mxu0 0
    %2388 = vmatprep.subr.bf16.mxu0 0
    %2389 = vmatpush1.bf16.msra.mxu0 0
    %2390 = vmatprep.subr.bf16.mxu0 0
    %2391 = vmatpush1.bf16.msra.mxu0 0
    %2392 = vmatprep.subr.bf16.mxu0 0
    %2393 = vmatpush1.bf16.msra.mxu0 0
    %2394 = vmatprep.mubr.bf16.mxu0 0
    %2395 = vmatmul.mubr.bf16.gmra.mrb[0].mxu0 %v2360
    %v2396 = vpop.f32.mrb[0].mxu0
    %v2397 = vadd.f32 %v2344, %v2396
    %v2398 = vpop.f32.mrb[0].mxu0
    %v2399 = vpop.f32.mrb[0].mxu0
    %v2400 = vpop.f32.mrb[0].mxu0
    %2401 = vdwg.mxu0
    %2402 = vst [vmem:[#allocation2] sm:$0x3] %v2397
    %v2403 = vld [vmem:[%s8] sm:$0x3]
    %v2404 = vld [vmem:[%s9] sm:$0x3]
    %v2405 = vld [vmem:[%s5] sm:$0xf]
    %v2406 = vld [vmem:[%s5 + $0x4] sm:$0xf]
    %v2407 = vld [vmem:[%s5 + $0x8] sm:$0xf]
    %v2408 = vld [vmem:[%s5 + $0xc] sm:$0xf]
    %v2409 = vld [vmem:[#allocation2] sm:$0x3]
    %v2410 = vpack.c.bf16 %v2403, %v2403
    %v2415 = vunpack.c.l.b16 %v2405
    %v2416 = vunpack.c.l.b16 %v2406
    %v2417 = vunpack.c.l.b16 %v2407
    %v2418 = vunpack.c.l.b16 %v2408
    %v2419 = vpack.c.b16 %v2416, %v2415
    %v2420 = vpack.c.b16 %v2418, %v2417
    %v2424 = vsel %vm2358, %v2410, 0
    %2426 = vmatprep.subr.bf16.mxu0 0
    %2427 = vmatpush1.bf16.msra.mxu0 %v2419
    %2428 = vmatprep.subr.bf16.mxu0 0
    %2429 = vmatpush1.bf16.msra.mxu0 %v2420
    %2430 = vmatprep.subr.bf16.mxu0 0
    %2431 = vmatpush1.bf16.msra.mxu0 0
    %2432 = vmatprep.subr.bf16.mxu0 0
    %2433 = vmatpush1.bf16.msra.mxu0 0
    %2434 = vmatprep.subr.bf16.mxu0 0
    %2435 = vmatpush1.bf16.msra.mxu0 0
    %2436 = vmatprep.subr.bf16.mxu0 0
    %2437 = vmatpush1.bf16.msra.mxu0 0
    %2438 = vmatprep.subr.bf16.mxu0 0
    %2439 = vmatpush1.bf16.msra.mxu0 0
    %2440 = vmatprep.subr.bf16.mxu0 0
    %2441 = vmatpush1.bf16.msra.mxu0 0
    %2442 = vmatprep.subr.bf16.mxu0 0
    %2443 = vmatpush1.bf16.msra.mxu0 0
    %2444 = vmatprep.subr.bf16.mxu0 0
    %2445 = vmatpush1.bf16.msra.mxu0 0
    %2446 = vmatprep.subr.bf16.mxu0 0
    %2447 = vmatpush1.bf16.msra.mxu0 0
    %2448 = vmatprep.subr.bf16.mxu0 0
    %2449 = vmatpush1.bf16.msra.mxu0 0
    %2450 = vmatprep.subr.bf16.mxu0 0
    %2451 = vmatpush1.bf16.msra.mxu0 0
    %2452 = vmatprep.subr.bf16.mxu0 0
    %2453 = vmatpush1.bf16.msra.mxu0 0
    %2454 = vmatprep.subr.bf16.mxu0 0
    %2455 = vmatpush1.bf16.msra.mxu0 0
    %2456 = vmatprep.subr.bf16.mxu0 0
    %2457 = vmatpush1.bf16.msra.mxu0 0
    %2458 = vmatprep.mubr.bf16.mxu0 0
    %2459 = vmatmul.mubr.bf16.gmra.mrb[0].mxu0 %v2424
    %v2460 = vpop.f32.mrb[0].mxu0
    %v2461 = vadd.f32 0.0, %v2460
    %v2462 = vpop.f32.mrb[0].mxu0
    %v2463 = vpop.f32.mrb[0].mxu0
    %v2464 = vpop.f32.mrb[0].mxu0
    %2465 = vdwg.mxu0
    %v2466 = vadd.f32 %v2409, %v2461
    %v2467 = vxor.u32 %v2466, 2147483648
    %v2468 = vmul.f32 %v2467, 1.442695
    %v2469 = vpow.pop %v2468
    %v2470 = vadd.f32 %v2469, 1.0
    %v2471 = vrcp.pop %v2470
    %v2472 = vmul.f32 1.0, %v2471
    %v2473 = vtanh.pop %v2466
    %2475 = vrot.lane.b32.xlu0 %v2404, 32
    %v2476 = vpop.permute.xlu0 %2475
    %v2478 = vmul.f32 %v2472, %v2476
    %2480 = vrot.lane.b32.xlu0 %v2473, 64
    %v2481 = vpop.permute.xlu0 %2480
    %v2483 = vmul.f32 %v2472, %v2481
    %2485 = vrot.lane.b32.xlu0 %v2483, 32
    %v2486 = vpop.permute.xlu0 %2485
    %v2488 = vadd.f32 %v2478, %v2486
    %v2489 = vtanh.pop %v2488
    %2491 = vrot.lane.b32.xlu0 %v2489, 64
    %v2492 = vpop.permute.xlu0 %2491
    %v2494 = vmul.f32 %v2472, %v2492
    %2496 = vrot.lane.b32.xlu0 %v2494, 32
    %v2497 = vpop.permute.xlu0 %2496
    %vm2499 = vcmask 254976
    %2500 = vst.msk [vmem:[#allocation3] sm:$0x3] %vm2499, %v2497
    %v2501 = vld [vmem:[#allocation3] sm:$0x3]
    %v2502 = vpack.c.bf16 %v2501, %v2501
    %v2503 = vld [vmem:[%s6] sm:$0xf]
    %v2504 = vld [vmem:[%s6 + $0x4] sm:$0xf]
    %v2505 = vld [vmem:[%s6 + $0x8] sm:$0xf]
    %v2506 = vld [vmem:[%s6 + $0xc] sm:$0xf]
    %v2507 = vld [vmem:[%s7] sm:$0x1]
    %v2509 = vlaneseq
    %v2510 = vshrl.u32 %v2509, 7
    %v2511 = vsub.s32 0, %v2510
    %v2512 = vrot.slane %v2507, %v2511
    %v2518 = vunpack.c.l.b16 %v2503
    %v2519 = vunpack.c.l.b16 %v2504
    %v2520 = vunpack.c.l.b16 %v2505
    %v2521 = vunpack.c.l.b16 %v2506
    %v2522 = vpack.c.b16 %v2519, %v2518
    %v2523 = vpack.c.b16 %v2521, %v2520
    %v2527 = vsel %vm2358, %v2502, 0
    %2529 = vmatprep.subr.bf16.mxu0 0
    %2530 = vmatpush1.bf16.msra.mxu0 %v2522
    %2531 = vmatprep.subr.bf16.mxu0 0
    %2532 = vmatpush1.bf16.msra.mxu0 %v2523
    %2533 = vmatprep.subr.bf16.mxu0 0
    %2534 = vmatpush1.bf16.msra.mxu0 0
    %2535 = vmatprep.subr.bf16.mxu0 0
    %2536 = vmatpush1.bf16.msra.mxu0 0
    %2537 = vmatprep.subr.bf16.mxu0 0
    %2538 = vmatpush1.bf16.msra.mxu0 0
    %2539 = vmatprep.subr.bf16.mxu0 0
    %2540 = vmatpush1.bf16.msra.mxu0 0
    %2541 = vmatprep.subr.bf16.mxu0 0
    %2542 = vmatpush1.bf16.msra.mxu0 0
    %2543 = vmatprep.subr.bf16.mxu0 0
    %2544 = vmatpush1.bf16.msra.mxu0 0
    %2545 = vmatprep.subr.bf16.mxu0 0
    %2546 = vmatpush1.bf16.msra.mxu0 0
    %2547 = vmatprep.subr.bf16.mxu0 0
    %2548 = vmatpush1.bf16.msra.mxu0 0
    %2549 = vmatprep.subr.bf16.mxu0 0
    %2550 = vmatpush1.bf16.msra.mxu0 0
    %2551 = vmatprep.subr.bf16.mxu0 0
    %2552 = vmatpush1.bf16.msra.mxu0 0
    %2553 = vmatprep.subr.bf16.mxu0 0
    %2554 = vmatpush1.bf16.msra.mxu0 0
    %2555 = vmatprep.subr.bf16.mxu0 0
    %2556 = vmatpush1.bf16.msra.mxu0 0
    %2557 = vmatprep.subr.bf16.mxu0 0
    %2558 = vmatpush1.bf16.msra.mxu0 0
    %2559 = vmatprep.subr.bf16.mxu0 0
    %2560 = vmatpush1.bf16.msra.mxu0 0
    %2561 = vmatprep.mubr.bf16.mxu0 0
    %2562 = vmatmul.mubr.bf16.gmra.mrb[0].mxu0 %v2527
    %v2563 = vpop.f32.mrb[0].mxu0
    %v2564 = vadd.f32 %v2512, %v2563
    %v2565 = vpop.f32.mrb[0].mxu0
    %v2566 = vpop.f32.mrb[0].mxu0
    %v2567 = vpop.f32.mrb[0].mxu0
    %2568 = vdwg.mxu0
    %vm2569 = vcmask 25600
    %2570 = vst.msk [vmem:[#allocation4] sm:$0x3] %vm2569, %v2564
    %2571 = vst.msk [vmem:[#allocation6] sm:$0x3] %vm2499, %v2497
    %2573 = vrot.lane.b32.xlu0 %v2488, 96
    %v2574 = vpop.permute.xlu0 %2573
    %2576 = vst.msk [vmem:[#allocation8] sm:$0x3] %vm2499, %v2574
    // Predicated region
    $region42: #{actor_forward.3} parent=1 // pred_check
      _
    $region43: #{actor_forward.3} parent=1 // pred_check_branch
      %2578 = sbr.rel (0) target = $region45
    $region44: #{actor_forward.3} parent=1 // pred_region
      %s2580 = ssub.s32 32, 32
      %2581 = vsyncadd [#allocation5], %s2580
      %s2583 = sshll.u32 [#allocation4], 4
      %s2584 = int_to_ptr.vmem [resolvable:$true] %s2583
      %2586 = dma.vmem_to_hbm [thread:$0]  %s2584, 32, %s10, [#allocation5]
    $region45: #{actor_forward.3} parent=1 // pred_fallthru
      _
    // Predicated region
    $region46: #{actor_forward.3} parent=1 // pred_check
      _
    $region47: #{actor_forward.3} parent=1 // pred_check_branch
      %2588 = sbr.rel (0) target = $region49
    $region48: #{actor_forward.3} parent=1 // pred_region
      %s2590 = ssub.s32 32, 32
      %2591 = vsyncadd [#allocation7], %s2590
      %s2593 = sshll.u32 [#allocation6], 4
      %s2594 = int_to_ptr.vmem [resolvable:$true] %s2593
      %2596 = dma.vmem_to_hbm [thread:$0]  %s2594, 32, %s11, [#allocation7]
    $region49: #{actor_forward.3} parent=1 // pred_fallthru
      _
    // Predicated region
    $region50: #{actor_forward.3} parent=1 // pred_check
      _
    $region51: #{actor_forward.3} parent=1 // pred_check_branch
      %2598 = sbr.rel (0) target = $region53
    $region52: #{actor_forward.3} parent=1 // pred_region
      %s2600 = ssub.s32 32, 32
      %2601 = vsyncadd [#allocation7], %s2600
      %s2603 = sshll.u32 [#allocation8], 4
      %s2604 = int_to_ptr.vmem [resolvable:$true] %s2603
      %2606 = dma.vmem_to_hbm [thread:$0]  %s2604, 32, %s12, [#allocation7]
    $region53: #{actor_forward.3} parent=1 // pred_fallthru
      _
    // Predicated region
    $region54: #{actor_forward.3} parent=1 // pred_check
      _
    $region55: #{actor_forward.3} parent=1 // pred_check_branch
      %2608 = sbr.rel (0) target = $region57
    $region56: #{actor_forward.3} parent=1 // pred_region
      %2609 = dma.done [#allocation5], 32
    $region57: #{actor_forward.3} parent=1 // pred_fallthru
      _
    // Predicated region
    $region58: #{actor_forward.3} parent=1 // pred_check
      _
    $region59: #{actor_forward.3} parent=1 // pred_check_branch
      %2611 = sbr.rel (0) target = $region61
    $region60: #{actor_forward.3} parent=1 // pred_region
      %2612 = dma.done [#allocation7], 32
    $region61: #{actor_forward.3} parent=1 // pred_fallthru
      _
    // Predicated region
    $region62: #{actor_forward.3} parent=1 // pred_check
      _
    $region63: #{actor_forward.3} parent=1 // pred_check_branch
      %2614 = sbr.rel (0) target = $region65
    $region64: #{actor_forward.3} parent=1 // pred_region
      %2615 = dma.done [#allocation7], 32
    $region65: #{actor_forward.3} parent=1 // pred_fallthru
      _
    %2616 = vsyncpa [#allocation5], 1
    %2617 = vsyncpa [#allocation7], 1

</llo_original>
